<compile_context>
chip_gen: v5e
topology: v5e:2x2
jax: 0.10.0
libtpu: 0.0.40
codegen_flags: <defaults>
</compile_context>

<pallas_src>
import functools

import jax
import jax.numpy as jnp
from jax import lax
from jax.experimental import pallas as pl
from jax.experimental.pallas import tpu as pltpu


def _round_up(x, m):
    return (x + m - 1) // m * m


# ------------------------------ Pallas kernel --------------------------------

def _basic_block_kernel(xp_ref, res_ref, w1_ref, b1_ref, w2_ref, b2_ref,
                        o_ref, o1_ref):
    """Fully fused BasicBlock for one image.

    xp_ref : (H+2, W+2, Cp) bf16  spatially zero-padded, channel-padded input
    res_ref: (H,   W,   Cp) f32   identity residual (channel-padded)
    w*_ref : (9, Cp, Cp)    bf16  conv weights with BN scale folded in
    b*_ref : (1, Cp)        f32   folded BN bias (0 in padded channels)
    o_ref  : (H, W, Cp)     f32   block output
    o1_ref : (H+2, W+2, Cp) bf16  VMEM scratch: conv1 output + zero halo
    """
    H, W, Cp = o_ref.shape

    def conv3x3(src_ref, w_ref):
        # 3x3 conv as 9 accumulating (H*W, Cp) @ (Cp, Cp) MXU matmuls over
        # statically shifted views of the padded VMEM tile (no HBM im2col).
        acc = jnp.zeros((H * W, Cp), jnp.float32)
        for kh in range(3):
            for kw in range(3):
                patch = src_ref[pl.ds(kh, H), pl.ds(kw, W), :]
                acc = acc + jnp.dot(patch.reshape(H * W, Cp),
                                    w_ref[kh * 3 + kw],
                                    preferred_element_type=jnp.float32)
        return acc

    # conv1 -> bn1(folded) -> relu, kept entirely in VMEM (never hits HBM).
    o1 = jnp.maximum(conv3x3(xp_ref, w1_ref) + b1_ref[...], 0.0)
    o1_ref[...] = jnp.zeros_like(o1_ref)          # zero halo = conv2's padding
    o1_ref[pl.ds(1, H), pl.ds(1, W), :] = (
        o1.reshape(H, W, Cp).astype(o1_ref.dtype))

    # conv2 -> bn2(folded) -> + residual -> relu.
    y = conv3x3(o1_ref, w2_ref) + b2_ref[...] + res_ref[...].reshape(H * W, Cp)
    o_ref[...] = jnp.maximum(y, 0.0).reshape(H, W, Cp).astype(o_ref.dtype)


# ------------------------------ wrapper / glue --------------------------------

def fold_bn_into_conv(w, gamma, beta, mean, var, eps=1e-5):
    """Eval-mode BN folded into conv: returns (w * scale, bias)."""
    s = gamma / jnp.sqrt(var + eps)
    return w * s[None, None, None, :], beta - mean * s


@functools.partial(jax.jit, static_argnames=("compute_dtype",))
def basic_block_forward(x_nhwc, w1f, b1, w2f, b2, compute_dtype=jnp.bfloat16):
    """BasicBlock forward. x_nhwc: (N,H,W,Cin); w*f: (3,3,Cin,P) HWIO, BN folded."""
    N, H, W, Cin = x_nhwc.shape
    P = w1f.shape[-1]
    assert w1f.shape[2] == Cin and w2f.shape[2] == P and w2f.shape[3] == P
    assert Cin == P, "identity residual requires inplanes == planes"

    # Pad channels up to a lane-dense multiple of 128.
    Cp = _round_up(max(Cin, P, 128), 128)
    itemsize = jnp.dtype(compute_dtype).itemsize

    # Channel-pad + 1-pixel spatial zero halo + bf16 cast for the MXU.
    xp = jnp.zeros((N, H + 2, W + 2, Cp), compute_dtype)
    xp = xp.at[:, 1:H + 1, 1:W + 1, :Cin].set(x_nhwc.astype(compute_dtype))

    # Residual stays f32 (added in the f32 epilogue), channel-padded with zeros.
    res = jnp.zeros((N, H, W, Cp), jnp.float32)
    res = res.at[..., :Cin].set(x_nhwc)

    def pad_w(w):
        wp = jnp.zeros((3, 3, Cp, Cp), compute_dtype)
        wp = wp.at[:, :, :w.shape[2], :w.shape[3]].set(w.astype(compute_dtype))
        return wp.reshape(9, Cp, Cp)

    def pad_b(b):
        return jnp.zeros((1, Cp), jnp.float32).at[0, :b.shape[0]].set(b)

    w1p, w2p = pad_w(w1f), pad_w(w2f)
    b1p, b2p = pad_b(b1), pad_b(b2)

    flops = 2 * (2 * N * H * W * 9 * Cp * Cp)            # two 3x3 convs
    bytes_accessed = (xp.size * itemsize + res.size * 4
                      + (w1p.size + w2p.size) * itemsize
                      + (b1p.size + b2p.size) * 4
                      + N * H * W * Cp * 4)

    out = pl.pallas_call(
        _basic_block_kernel,
        out_shape=jax.ShapeDtypeStruct((N, H, W, Cp), jnp.float32),
        grid=(N,),
        in_specs=[
            pl.BlockSpec((None, H + 2, W + 2, Cp), lambda n: (n, 0, 0, 0)),
            pl.BlockSpec((None, H, W, Cp), lambda n: (n, 0, 0, 0)),
            pl.BlockSpec((9, Cp, Cp), lambda n: (0, 0, 0)),
            pl.BlockSpec((1, Cp), lambda n: (0, 0)),
            pl.BlockSpec((9, Cp, Cp), lambda n: (0, 0, 0)),
            pl.BlockSpec((1, Cp), lambda n: (0, 0)),
        ],
        out_specs=pl.BlockSpec((None, H, W, Cp), lambda n: (n, 0, 0, 0)),
        scratch_shapes=[pltpu.VMEM((H + 2, W + 2, Cp), compute_dtype)],
        compiler_params=pltpu.CompilerParams(
            dimension_semantics=("parallel",)),
        cost_estimate=pl.CostEstimate(flops=flops, transcendentals=0,
                                      bytes_accessed=bytes_accessed),
    )(xp, res, w1p, b1p, w2p, b2p)

    return out[..., :P]            # drop the zero-padded channels


# ------------------------------ reference (JAX) -------------------------------

def ref_forward(x_nhwc, w1f, b1, w2f, b2, compute_dtype=jnp.bfloat16):
    """Same math, same bf16 quantization points, via lax.conv."""
    dn = ('NHWC', 'HWIO', 'NHWC')
    q = lambda a: a.astype(compute_dtype).astype(jnp.float32)
    c1 = lax.conv_general_dilated(q(x_nhwc), q(w1f), (1, 1), 'SAME',
                                  dimension_numbers=dn,
                                  precision=lax.Precision.HIGHEST)
    o1 = jnp.maximum(c1 + b1, 0.0)
    c2 = lax.conv_general_dilated(q(o1), q(w2f), (1, 1), 'SAME',
                                  dimension_numbers=dn,
                                  precision=lax.Precision.HIGHEST)
    return jnp.maximum(c2 + b2 + x_nhwc, 0.0)


# ----------------------------------- main -------------------------------------

if __name__ == "__main__":
    N, Cin, H, W = 2, 4, 16, 16           # PyTorch input x: NCHW = (2, 4, 16, 16)
    planes = Cin                           # stride=1, downsample=None -> identity
    eps = 1e-5

    key = jax.random.PRNGKey(0)
    kx, k1, k2 = jax.random.split(key, 3)

    # Deterministic synthetic parameters (HWIO conv weights).
    w1 = jax.random.normal(k1, (3, 3, Cin, planes), jnp.float32) * 0.1
    w2 = jax.random.normal(k2, (3, 3, planes, planes), jnp.float32) * 0.1

    gamma1 = jnp.linspace(0.9, 1.1, planes, dtype=jnp.float32)
    beta1 = jnp.linspace(-0.1, 0.1, planes, dtype=jnp.float32)
    mean1 = jnp.linspace(-0.05, 0.05, planes, dtype=jnp.float32)
    var1 = jnp.linspace(0.5, 1.5, planes, dtype=jnp.float32)
    gamma2 = jnp.linspace(1.1, 0.9, planes, dtype=jnp.float32)
    beta2 = jnp.linspace(0.1, -0.1, planes, dtype=jnp.float32)
    mean2 = jnp.linspace(0.05, -0.05, planes, dtype=jnp.float32)
    var2 = jnp.linspace(1.5, 0.5, planes, dtype=jnp.float32)

    # Fold eval-mode BN into the conv weights / bias (constant fold).
    w1f, b1 = fold_bn_into_conv(w1, gamma1, beta1, mean1, var1, eps)
    w2f, b2 = fold_bn_into_conv(w2, gamma2, beta2, mean2, var2, eps)

    x_nchw = jax.random.normal(kx, (N, Cin, H, W), jnp.float32)
    x_nhwc = jnp.transpose(x_nchw, (0, 2, 3, 1))   # NCHW -> NHWC for the kernel

    out = basic_block_forward(x_nhwc, w1f, b1, w2f, b2)
    out = jax.block_until_ready(out)

    ref = ref_forward(x_nhwc, w1f, b1, w2f, b2)
    assert out.shape == (N, H, W, planes)
    max_err = float(jnp.max(jnp.abs(out - ref)))
    assert jnp.allclose(out, ref, rtol=1e-3, atol=1e-3), f"mismatch {max_err}"

    # Back to NCHW to match the PyTorch output convention (shape check only).
    out_nchw = jnp.transpose(out, (0, 3, 1, 2))
    assert out_nchw.shape == (N, planes, H, W)

    print("KERNEL_OK")
</pallas_src>

<mosaic_0001>
module attributes {stable_mosaic.version = 11 : i64} {
  func.func @_basic_block_kernel(%arg0: i32, %arg1: memref<1x18x18x128xbf16, #tpu.memory_space<vmem>>, %arg2: memref<1x16x16x128xf32, #tpu.memory_space<vmem>>, %arg3: memref<9x128x128xbf16, #tpu.memory_space<vmem>>, %arg4: memref<1x128xf32, #tpu.memory_space<vmem>>, %arg5: memref<9x128x128xbf16, #tpu.memory_space<vmem>>, %arg6: memref<1x128xf32, #tpu.memory_space<vmem>>, %arg7: memref<1x16x16x128xf32, #tpu.memory_space<vmem>>, %arg8: memref<18x18x128xbf16, #tpu.memory_space<vmem>>) attributes {dimension_semantics = [#tpu.dimension_semantics<parallel>], iteration_bounds = array<i64: 2>, scalar_prefetch = 0 : i64, scratch_operands = 1 : i64, tpu.core_type = #tpu.core_type<tc>, window_params = [{transform_indices = @transform_0, window_bounds = array<i64: 1, 18, 18, 128>}, {transform_indices = @transform_1, window_bounds = array<i64: 1, 16, 16, 128>}, {pipeline_mode = #tpu.pipeline_mode<synchronous>, transform_indices = @transform_2, window_bounds = array<i64: 9, 128, 128>}, {pipeline_mode = #tpu.pipeline_mode<synchronous>, transform_indices = @transform_3, window_bounds = array<i64: 1, 128>}, {pipeline_mode = #tpu.pipeline_mode<synchronous>, transform_indices = @transform_4, window_bounds = array<i64: 9, 128, 128>}, {pipeline_mode = #tpu.pipeline_mode<synchronous>, transform_indices = @transform_5, window_bounds = array<i64: 1, 128>}, {transform_indices = @transform_6, window_bounds = array<i64: 1, 16, 16, 128>}]} {
    %cst = arith.constant 0.000000e+00 : f32
    %0 = vector.broadcast %cst : f32 to vector<256x128xf32>
    %c0 = arith.constant 0 : index
    %c0_0 = arith.constant 0 : index
    %c0_1 = arith.constant 0 : index
    %c0_2 = arith.constant 0 : index
    %1 = vector.load %arg1[%c0, %c0_0, %c0_1, %c0_2] : memref<1x18x18x128xbf16, #tpu.memory_space<vmem>>, vector<1x16x16x128xbf16>
    %2 = vector.shape_cast %1 : vector<1x16x16x128xbf16> to vector<16x16x128xbf16>
    %3 = vector.shape_cast %2 : vector<16x16x128xbf16> to vector<256x128xbf16>
    %c0_3 = arith.constant 0 : index
    %c0_4 = arith.constant 0 : index
    %c0_5 = arith.constant 0 : index
    %4 = vector.load %arg3[%c0_3, %c0_4, %c0_5] : memref<9x128x128xbf16, #tpu.memory_space<vmem>>, vector<1x128x128xbf16>
    %5 = vector.shape_cast %4 : vector<1x128x128xbf16> to vector<128x128xbf16>
    %cst_6 = arith.constant dense<0.000000e+00> : vector<256x128xf32>
    %6 = tpu.matmul %3, %5, %cst_6 {dimension_numbers = #tpu.dot_dimension_numbers<[1], [0], [0], [1], [0, 0, 1, 1], [], []>} : vector<256x128xbf16>, vector<128x128xbf16>, vector<256x128xf32> -> vector<256x128xf32>
    %7 = arith.addf %0, %6 : vector<256x128xf32>
    %c0_7 = arith.constant 0 : index
    %c0_8 = arith.constant 0 : index
    %c1 = arith.constant 1 : index
    %c0_9 = arith.constant 0 : index
    %8 = vector.load %arg1[%c0_7, %c0_8, %c1, %c0_9] : memref<1x18x18x128xbf16, #tpu.memory_space<vmem>>, vector<1x16x16x128xbf16>
    %9 = vector.shape_cast %8 : vector<1x16x16x128xbf16> to vector<16x16x128xbf16>
    %10 = vector.shape_cast %9 : vector<16x16x128xbf16> to vector<256x128xbf16>
    %c1_10 = arith.constant 1 : index
    %c0_11 = arith.constant 0 : index
    %c0_12 = arith.constant 0 : index
    %11 = vector.load %arg3[%c1_10, %c0_11, %c0_12] : memref<9x128x128xbf16, #tpu.memory_space<vmem>>, vector<1x128x128xbf16>
    %12 = vector.shape_cast %11 : vector<1x128x128xbf16> to vector<128x128xbf16>
    %cst_13 = arith.constant dense<0.000000e+00> : vector<256x128xf32>
    %13 = tpu.matmul %10, %12, %cst_13 {dimension_numbers = #tpu.dot_dimension_numbers<[1], [0], [0], [1], [0, 0, 1, 1], [], []>} : vector<256x128xbf16>, vector<128x128xbf16>, vector<256x128xf32> -> vector<256x128xf32>
    %14 = arith.addf %7, %13 : vector<256x128xf32>
    %c0_14 = arith.constant 0 : index
    %c0_15 = arith.constant 0 : index
    %c2 = arith.constant 2 : index
    %c0_16 = arith.constant 0 : index
    %15 = vector.load %arg1[%c0_14, %c0_15, %c2, %c0_16] : memref<1x18x18x128xbf16, #tpu.memory_space<vmem>>, vector<1x16x16x128xbf16>
    %16 = vector.shape_cast %15 : vector<1x16x16x128xbf16> to vector<16x16x128xbf16>
    %17 = vector.shape_cast %16 : vector<16x16x128xbf16> to vector<256x128xbf16>
    %c2_17 = arith.constant 2 : index
    %c0_18 = arith.constant 0 : index
    %c0_19 = arith.constant 0 : index
    %18 = vector.load %arg3[%c2_17, %c0_18, %c0_19] : memref<9x128x128xbf16, #tpu.memory_space<vmem>>, vector<1x128x128xbf16>
    %19 = vector.shape_cast %18 : vector<1x128x128xbf16> to vector<128x128xbf16>
    %cst_20 = arith.constant dense<0.000000e+00> : vector<256x128xf32>
    %20 = tpu.matmul %17, %19, %cst_20 {dimension_numbers = #tpu.dot_dimension_numbers<[1], [0], [0], [1], [0, 0, 1, 1], [], []>} : vector<256x128xbf16>, vector<128x128xbf16>, vector<256x128xf32> -> vector<256x128xf32>
    %21 = arith.addf %14, %20 : vector<256x128xf32>
    %c0_21 = arith.constant 0 : index
    %c1_22 = arith.constant 1 : index
    %c0_23 = arith.constant 0 : index
    %c0_24 = arith.constant 0 : index
    %22 = vector.load %arg1[%c0_21, %c1_22, %c0_23, %c0_24] : memref<1x18x18x128xbf16, #tpu.memory_space<vmem>>, vector<1x16x16x128xbf16>
    %23 = vector.shape_cast %22 : vector<1x16x16x128xbf16> to vector<16x16x128xbf16>
    %24 = vector.shape_cast %23 : vector<16x16x128xbf16> to vector<256x128xbf16>
    %c3 = arith.constant 3 : index
    %c0_25 = arith.constant 0 : index
    %c0_26 = arith.constant 0 : index
    %25 = vector.load %arg3[%c3, %c0_25, %c0_26] : memref<9x128x128xbf16, #tpu.memory_space<vmem>>, vector<1x128x128xbf16>
    %26 = vector.shape_cast %25 : vector<1x128x128xbf16> to vector<128x128xbf16>
    %cst_27 = arith.constant dense<0.000000e+00> : vector<256x128xf32>
    %27 = tpu.matmul %24, %26, %cst_27 {dimension_numbers = #tpu.dot_dimension_numbers<[1], [0], [0], [1], [0, 0, 1, 1], [], []>} : vector<256x128xbf16>, vector<128x128xbf16>, vector<256x128xf32> -> vector<256x128xf32>
    %28 = arith.addf %21, %27 : vector<256x128xf32>
    %c0_28 = arith.constant 0 : index
    %c1_29 = arith.constant 1 : index
    %c1_30 = arith.constant 1 : index
    %c0_31 = arith.constant 0 : index
    %29 = vector.load %arg1[%c0_28, %c1_29, %c1_30, %c0_31] : memref<1x18x18x128xbf16, #tpu.memory_space<vmem>>, vector<1x16x16x128xbf16>
    %30 = vector.shape_cast %29 : vector<1x16x16x128xbf16> to vector<16x16x128xbf16>
    %31 = vector.shape_cast %30 : vector<16x16x128xbf16> to vector<256x128xbf16>
    %c4 = arith.constant 4 : index
    %c0_32 = arith.constant 0 : index
    %c0_33 = arith.constant 0 : index
    %32 = vector.load %arg3[%c4, %c0_32, %c0_33] : memref<9x128x128xbf16, #tpu.memory_space<vmem>>, vector<1x128x128xbf16>
    %33 = vector.shape_cast %32 : vector<1x128x128xbf16> to vector<128x128xbf16>
    %cst_34 = arith.constant dense<0.000000e+00> : vector<256x128xf32>
    %34 = tpu.matmul %31, %33, %cst_34 {dimension_numbers = #tpu.dot_dimension_numbers<[1], [0], [0], [1], [0, 0, 1, 1], [], []>} : vector<256x128xbf16>, vector<128x128xbf16>, vector<256x128xf32> -> vector<256x128xf32>
    %35 = arith.addf %28, %34 : vector<256x128xf32>
    %c0_35 = arith.constant 0 : index
    %c1_36 = arith.constant 1 : index
    %c2_37 = arith.constant 2 : index
    %c0_38 = arith.constant 0 : index
    %36 = vector.load %arg1[%c0_35, %c1_36, %c2_37, %c0_38] : memref<1x18x18x128xbf16, #tpu.memory_space<vmem>>, vector<1x16x16x128xbf16>
    %37 = vector.shape_cast %36 : vector<1x16x16x128xbf16> to vector<16x16x128xbf16>
    %38 = vector.shape_cast %37 : vector<16x16x128xbf16> to vector<256x128xbf16>
    %c5 = arith.constant 5 : index
    %c0_39 = arith.constant 0 : index
    %c0_40 = arith.constant 0 : index
    %39 = vector.load %arg3[%c5, %c0_39, %c0_40] : memref<9x128x128xbf16, #tpu.memory_space<vmem>>, vector<1x128x128xbf16>
    %40 = vector.shape_cast %39 : vector<1x128x128xbf16> to vector<128x128xbf16>
    %cst_41 = arith.constant dense<0.000000e+00> : vector<256x128xf32>
    %41 = tpu.matmul %38, %40, %cst_41 {dimension_numbers = #tpu.dot_dimension_numbers<[1], [0], [0], [1], [0, 0, 1, 1], [], []>} : vector<256x128xbf16>, vector<128x128xbf16>, vector<256x128xf32> -> vector<256x128xf32>
    %42 = arith.addf %35, %41 : vector<256x128xf32>
    %c0_42 = arith.constant 0 : index
    %c2_43 = arith.constant 2 : index
    %c0_44 = arith.constant 0 : index
    %c0_45 = arith.constant 0 : index
    %43 = vector.load %arg1[%c0_42, %c2_43, %c0_44, %c0_45] : memref<1x18x18x128xbf16, #tpu.memory_space<vmem>>, vector<1x16x16x128xbf16>
    %44 = vector.shape_cast %43 : vector<1x16x16x128xbf16> to vector<16x16x128xbf16>
    %45 = vector.shape_cast %44 : vector<16x16x128xbf16> to vector<256x128xbf16>
    %c6 = arith.constant 6 : index
    %c0_46 = arith.constant 0 : index
    %c0_47 = arith.constant 0 : index
    %46 = vector.load %arg3[%c6, %c0_46, %c0_47] : memref<9x128x128xbf16, #tpu.memory_space<vmem>>, vector<1x128x128xbf16>
    %47 = vector.shape_cast %46 : vector<1x128x128xbf16> to vector<128x128xbf16>
    %cst_48 = arith.constant dense<0.000000e+00> : vector<256x128xf32>
    %48 = tpu.matmul %45, %47, %cst_48 {dimension_numbers = #tpu.dot_dimension_numbers<[1], [0], [0], [1], [0, 0, 1, 1], [], []>} : vector<256x128xbf16>, vector<128x128xbf16>, vector<256x128xf32> -> vector<256x128xf32>
    %49 = arith.addf %42, %48 : vector<256x128xf32>
    %c0_49 = arith.constant 0 : index
    %c2_50 = arith.constant 2 : index
    %c1_51 = arith.constant 1 : index
    %c0_52 = arith.constant 0 : index
    %50 = vector.load %arg1[%c0_49, %c2_50, %c1_51, %c0_52] : memref<1x18x18x128xbf16, #tpu.memory_space<vmem>>, vector<1x16x16x128xbf16>
    %51 = vector.shape_cast %50 : vector<1x16x16x128xbf16> to vector<16x16x128xbf16>
    %52 = vector.shape_cast %51 : vector<16x16x128xbf16> to vector<256x128xbf16>
    %c7 = arith.constant 7 : index
    %c0_53 = arith.constant 0 : index
    %c0_54 = arith.constant 0 : index
    %53 = vector.load %arg3[%c7, %c0_53, %c0_54] : memref<9x128x128xbf16, #tpu.memory_space<vmem>>, vector<1x128x128xbf16>
    %54 = vector.shape_cast %53 : vector<1x128x128xbf16> to vector<128x128xbf16>
    %cst_55 = arith.constant dense<0.000000e+00> : vector<256x128xf32>
    %55 = tpu.matmul %52, %54, %cst_55 {dimension_numbers = #tpu.dot_dimension_numbers<[1], [0], [0], [1], [0, 0, 1, 1], [], []>} : vector<256x128xbf16>, vector<128x128xbf16>, vector<256x128xf32> -> vector<256x128xf32>
    %56 = arith.addf %49, %55 : vector<256x128xf32>
    %c0_56 = arith.constant 0 : index
    %c2_57 = arith.constant 2 : index
    %c2_58 = arith.constant 2 : index
    %c0_59 = arith.constant 0 : index
    %57 = vector.load %arg1[%c0_56, %c2_57, %c2_58, %c0_59] : memref<1x18x18x128xbf16, #tpu.memory_space<vmem>>, vector<1x16x16x128xbf16>
    %58 = vector.shape_cast %57 : vector<1x16x16x128xbf16> to vector<16x16x128xbf16>
    %59 = vector.shape_cast %58 : vector<16x16x128xbf16> to vector<256x128xbf16>
    %c8 = arith.constant 8 : index
    %c0_60 = arith.constant 0 : index
    %c0_61 = arith.constant 0 : index
    %60 = vector.load %arg3[%c8, %c0_60, %c0_61] : memref<9x128x128xbf16, #tpu.memory_space<vmem>>, vector<1x128x128xbf16>
    %61 = vector.shape_cast %60 : vector<1x128x128xbf16> to vector<128x128xbf16>
    %cst_62 = arith.constant dense<0.000000e+00> : vector<256x128xf32>
    %62 = tpu.matmul %59, %61, %cst_62 {dimension_numbers = #tpu.dot_dimension_numbers<[1], [0], [0], [1], [0, 0, 1, 1], [], []>} : vector<256x128xbf16>, vector<128x128xbf16>, vector<256x128xf32> -> vector<256x128xf32>
    %63 = arith.addf %56, %62 : vector<256x128xf32>
    %c0_63 = arith.constant 0 : index
    %c0_64 = arith.constant 0 : index
    %64 = vector.load %arg4[%c0_63, %c0_64] : memref<1x128xf32, #tpu.memory_space<vmem>>, vector<1x128xf32>
    %65 = vector.broadcast %64 : vector<1x128xf32> to vector<256x128xf32>
    %66 = arith.addf %63, %65 : vector<256x128xf32>
    %cst_65 = arith.constant 0.000000e+00 : f32
    %67 = vector.broadcast %cst_65 : f32 to vector<256x128xf32>
    %68 = arith.maximumf %66, %67 : vector<256x128xf32>
    %cst_66 = arith.constant 0.000000e+00 : bf16
    %69 = vector.broadcast %cst_66 : bf16 to vector<18x18x128xbf16>
    %c0_67 = arith.constant 0 : index
    %c0_68 = arith.constant 0 : index
    %c0_69 = arith.constant 0 : index
    %70 = vector.load %arg8[%c0_67, %c0_68, %c0_69] : memref<18x18x128xbf16, #tpu.memory_space<vmem>>, vector<18x18x128xbf16>
    tpu.vector_store %arg8[%c0_67, %c0_68, %c0_69], %69 {strides = array<i32>} : memref<18x18x128xbf16, #tpu.memory_space<vmem>>, vector<18x18x128xbf16>,
    %71 = vector.shape_cast %68 : vector<256x128xf32> to vector<16x16x128xf32>
    %72 = arith.truncf %71 : vector<16x16x128xf32> to vector<16x16x128xbf16>
    %c1_70 = arith.constant 1 : index
    %c1_71 = arith.constant 1 : index
    %c0_72 = arith.constant 0 : index
    %73 = vector.load %arg8[%c1_70, %c1_71, %c0_72] : memref<18x18x128xbf16, #tpu.memory_space<vmem>>, vector<16x16x128xbf16>
    tpu.vector_store %arg8[%c1_70, %c1_71, %c0_72], %72 {strides = array<i32>} : memref<18x18x128xbf16, #tpu.memory_space<vmem>>, vector<16x16x128xbf16>,
    %cst_73 = arith.constant 0.000000e+00 : f32
    %74 = vector.broadcast %cst_73 : f32 to vector<256x128xf32>
    %c0_74 = arith.constant 0 : index
    %c0_75 = arith.constant 0 : index
    %c0_76 = arith.constant 0 : index
    %75 = vector.load %arg8[%c0_74, %c0_75, %c0_76] : memref<18x18x128xbf16, #tpu.memory_space<vmem>>, vector<16x16x128xbf16>
    %76 = vector.shape_cast %75 : vector<16x16x128xbf16> to vector<256x128xbf16>
    %c0_77 = arith.constant 0 : index
    %c0_78 = arith.constant 0 : index
    %c0_79 = arith.constant 0 : index
    %77 = vector.load %arg5[%c0_77, %c0_78, %c0_79] : memref<9x128x128xbf16, #tpu.memory_space<vmem>>, vector<1x128x128xbf16>
    %78 = vector.shape_cast %77 : vector<1x128x128xbf16> to vector<128x128xbf16>
    %cst_80 = arith.constant dense<0.000000e+00> : vector<256x128xf32>
    %79 = tpu.matmul %76, %78, %cst_80 {dimension_numbers = #tpu.dot_dimension_numbers<[1], [0], [0], [1], [0, 0, 1, 1], [], []>} : vector<256x128xbf16>, vector<128x128xbf16>, vector<256x128xf32> -> vector<256x128xf32>
    %80 = arith.addf %74, %79 : vector<256x128xf32>
    %c0_81 = arith.constant 0 : index
    %c1_82 = arith.constant 1 : index
    %c0_83 = arith.constant 0 : index
    %81 = vector.load %arg8[%c0_81, %c1_82, %c0_83] : memref<18x18x128xbf16, #tpu.memory_space<vmem>>, vector<16x16x128xbf16>
    %82 = vector.shape_cast %81 : vector<16x16x128xbf16> to vector<256x128xbf16>
    %c1_84 = arith.constant 1 : index
    %c0_85 = arith.constant 0 : index
    %c0_86 = arith.constant 0 : index
    %83 = vector.load %arg5[%c1_84, %c0_85, %c0_86] : memref<9x128x128xbf16, #tpu.memory_space<vmem>>, vector<1x128x128xbf16>
    %84 = vector.shape_cast %83 : vector<1x128x128xbf16> to vector<128x128xbf16>
    %cst_87 = arith.constant dense<0.000000e+00> : vector<256x128xf32>
    %85 = tpu.matmul %82, %84, %cst_87 {dimension_numbers = #tpu.dot_dimension_numbers<[1], [0], [0], [1], [0, 0, 1, 1], [], []>} : vector<256x128xbf16>, vector<128x128xbf16>, vector<256x128xf32> -> vector<256x128xf32>
    %86 = arith.addf %80, %85 : vector<256x128xf32>
    %c0_88 = arith.constant 0 : index
    %c2_89 = arith.constant 2 : index
    %c0_90 = arith.constant 0 : index
    %87 = vector.load %arg8[%c0_88, %c2_89, %c0_90] : memref<18x18x128xbf16, #tpu.memory_space<vmem>>, vector<16x16x128xbf16>
    %88 = vector.shape_cast %87 : vector<16x16x128xbf16> to vector<256x128xbf16>
    %c2_91 = arith.constant 2 : index
    %c0_92 = arith.constant 0 : index
    %c0_93 = arith.constant 0 : index
    %89 = vector.load %arg5[%c2_91, %c0_92, %c0_93] : memref<9x128x128xbf16, #tpu.memory_space<vmem>>, vector<1x128x128xbf16>
    %90 = vector.shape_cast %89 : vector<1x128x128xbf16> to vector<128x128xbf16>
    %cst_94 = arith.constant dense<0.000000e+00> : vector<256x128xf32>
    %91 = tpu.matmul %88, %90, %cst_94 {dimension_numbers = #tpu.dot_dimension_numbers<[1], [0], [0], [1], [0, 0, 1, 1], [], []>} : vector<256x128xbf16>, vector<128x128xbf16>, vector<256x128xf32> -> vector<256x128xf32>
    %92 = arith.addf %86, %91 : vector<256x128xf32>
    %c1_95 = arith.constant 1 : index
    %c0_96 = arith.constant 0 : index
    %c0_97 = arith.constant 0 : index
    %93 = vector.load %arg8[%c1_95, %c0_96, %c0_97] : memref<18x18x128xbf16, #tpu.memory_space<vmem>>, vector<16x16x128xbf16>
    %94 = vector.shape_cast %93 : vector<16x16x128xbf16> to vector<256x128xbf16>
    %c3_98 = arith.constant 3 : index
    %c0_99 = arith.constant 0 : index
    %c0_100 = arith.constant 0 : index
    %95 = vector.load %arg5[%c3_98, %c0_99, %c0_100] : memref<9x128x128xbf16, #tpu.memory_space<vmem>>, vector<1x128x128xbf16>
    %96 = vector.shape_cast %95 : vector<1x128x128xbf16> to vector<128x128xbf16>
    %cst_101 = arith.constant dense<0.000000e+00> : vector<256x128xf32>
    %97 = tpu.matmul %94, %96, %cst_101 {dimension_numbers = #tpu.dot_dimension_numbers<[1], [0], [0], [1], [0, 0, 1, 1], [], []>} : vector<256x128xbf16>, vector<128x128xbf16>, vector<256x128xf32> -> vector<256x128xf32>
    %98 = arith.addf %92, %97 : vector<256x128xf32>
    %c1_102 = arith.constant 1 : index
    %c1_103 = arith.constant 1 : index
    %c0_104 = arith.constant 0 : index
    %99 = vector.load %arg8[%c1_102, %c1_103, %c0_104] : memref<18x18x128xbf16, #tpu.memory_space<vmem>>, vector<16x16x128xbf16>
    %100 = vector.shape_cast %99 : vector<16x16x128xbf16> to vector<256x128xbf16>
    %c4_105 = arith.constant 4 : index
    %c0_106 = arith.constant 0 : index
    %c0_107 = arith.constant 0 : index
    %101 = vector.load %arg5[%c4_105, %c0_106, %c0_107] : memref<9x128x128xbf16, #tpu.memory_space<vmem>>, vector<1x128x128xbf16>
    %102 = vector.shape_cast %101 : vector<1x128x128xbf16> to vector<128x128xbf16>
    %cst_108 = arith.constant dense<0.000000e+00> : vector<256x128xf32>
    %103 = tpu.matmul %100, %102, %cst_108 {dimension_numbers = #tpu.dot_dimension_numbers<[1], [0], [0], [1], [0, 0, 1, 1], [], []>} : vector<256x128xbf16>, vector<128x128xbf16>, vector<256x128xf32> -> vector<256x128xf32>
    %104 = arith.addf %98, %103 : vector<256x128xf32>
    %c1_109 = arith.constant 1 : index
    %c2_110 = arith.constant 2 : index
    %c0_111 = arith.constant 0 : index
    %105 = vector.load %arg8[%c1_109, %c2_110, %c0_111] : memref<18x18x128xbf16, #tpu.memory_space<vmem>>, vector<16x16x128xbf16>
    %106 = vector.shape_cast %105 : vector<16x16x128xbf16> to vector<256x128xbf16>
    %c5_112 = arith.constant 5 : index
    %c0_113 = arith.constant 0 : index
    %c0_114 = arith.constant 0 : index
    %107 = vector.load %arg5[%c5_112, %c0_113, %c0_114] : memref<9x128x128xbf16, #tpu.memory_space<vmem>>, vector<1x128x128xbf16>
    %108 = vector.shape_cast %107 : vector<1x128x128xbf16> to vector<128x128xbf16>
    %cst_115 = arith.constant dense<0.000000e+00> : vector<256x128xf32>
    %109 = tpu.matmul %106, %108, %cst_115 {dimension_numbers = #tpu.dot_dimension_numbers<[1], [0], [0], [1], [0, 0, 1, 1], [], []>} : vector<256x128xbf16>, vector<128x128xbf16>, vector<256x128xf32> -> vector<256x128xf32>
    %110 = arith.addf %104, %109 : vector<256x128xf32>
    %c2_116 = arith.constant 2 : index
    %c0_117 = arith.constant 0 : index
    %c0_118 = arith.constant 0 : index
    %111 = vector.load %arg8[%c2_116, %c0_117, %c0_118] : memref<18x18x128xbf16, #tpu.memory_space<vmem>>, vector<16x16x128xbf16>
    %112 = vector.shape_cast %111 : vector<16x16x128xbf16> to vector<256x128xbf16>
    %c6_119 = arith.constant 6 : index
    %c0_120 = arith.constant 0 : index
    %c0_121 = arith.constant 0 : index
    %113 = vector.load %arg5[%c6_119, %c0_120, %c0_121] : memref<9x128x128xbf16, #tpu.memory_space<vmem>>, vector<1x128x128xbf16>
    %114 = vector.shape_cast %113 : vector<1x128x128xbf16> to vector<128x128xbf16>
    %cst_122 = arith.constant dense<0.000000e+00> : vector<256x128xf32>
    %115 = tpu.matmul %112, %114, %cst_122 {dimension_numbers = #tpu.dot_dimension_numbers<[1], [0], [0], [1], [0, 0, 1, 1], [], []>} : vector<256x128xbf16>, vector<128x128xbf16>, vector<256x128xf32> -> vector<256x128xf32>
    %116 = arith.addf %110, %115 : vector<256x128xf32>
    %c2_123 = arith.constant 2 : index
    %c1_124 = arith.constant 1 : index
    %c0_125 = arith.constant 0 : index
    %117 = vector.load %arg8[%c2_123, %c1_124, %c0_125] : memref<18x18x128xbf16, #tpu.memory_space<vmem>>, vector<16x16x128xbf16>
    %118 = vector.shape_cast %117 : vector<16x16x128xbf16> to vector<256x128xbf16>
    %c7_126 = arith.constant 7 : index
    %c0_127 = arith.constant 0 : index
    %c0_128 = arith.constant 0 : index
    %119 = vector.load %arg5[%c7_126, %c0_127, %c0_128] : memref<9x128x128xbf16, #tpu.memory_space<vmem>>, vector<1x128x128xbf16>
    %120 = vector.shape_cast %119 : vector<1x128x128xbf16> to vector<128x128xbf16>
    %cst_129 = arith.constant dense<0.000000e+00> : vector<256x128xf32>
    %121 = tpu.matmul %118, %120, %cst_129 {dimension_numbers = #tpu.dot_dimension_numbers<[1], [0], [0], [1], [0, 0, 1, 1], [], []>} : vector<256x128xbf16>, vector<128x128xbf16>, vector<256x128xf32> -> vector<256x128xf32>
    %122 = arith.addf %116, %121 : vector<256x128xf32>
    %c2_130 = arith.constant 2 : index
    %c2_131 = arith.constant 2 : index
    %c0_132 = arith.constant 0 : index
    %123 = vector.load %arg8[%c2_130, %c2_131, %c0_132] : memref<18x18x128xbf16, #tpu.memory_space<vmem>>, vector<16x16x128xbf16>
    %124 = vector.shape_cast %123 : vector<16x16x128xbf16> to vector<256x128xbf16>
    %c8_133 = arith.constant 8 : index
    %c0_134 = arith.constant 0 : index
    %c0_135 = arith.constant 0 : index
    %125 = vector.load %arg5[%c8_133, %c0_134, %c0_135] : memref<9x128x128xbf16, #tpu.memory_space<vmem>>, vector<1x128x128xbf16>
    %126 = vector.shape_cast %125 : vector<1x128x128xbf16> to vector<128x128xbf16>
    %cst_136 = arith.constant dense<0.000000e+00> : vector<256x128xf32>
    %127 = tpu.matmul %124, %126, %cst_136 {dimension_numbers = #tpu.dot_dimension_numbers<[1], [0], [0], [1], [0, 0, 1, 1], [], []>} : vector<256x128xbf16>, vector<128x128xbf16>, vector<256x128xf32> -> vector<256x128xf32>
    %128 = arith.addf %122, %127 : vector<256x128xf32>
    %c0_137 = arith.constant 0 : index
    %c0_138 = arith.constant 0 : index
    %129 = vector.load %arg6[%c0_137, %c0_138] : memref<1x128xf32, #tpu.memory_space<vmem>>, vector<1x128xf32>
    %130 = vector.broadcast %129 : vector<1x128xf32> to vector<256x128xf32>
    %131 = arith.addf %128, %130 : vector<256x128xf32>
    %c0_139 = arith.constant 0 : index
    %c0_140 = arith.constant 0 : index
    %c0_141 = arith.constant 0 : index
    %c0_142 = arith.constant 0 : index
    %132 = vector.load %arg2[%c0_139, %c0_140, %c0_141, %c0_142] : memref<1x16x16x128xf32, #tpu.memory_space<vmem>>, vector<1x16x16x128xf32>
    %133 = vector.shape_cast %132 : vector<1x16x16x128xf32> to vector<16x16x128xf32>
    %134 = vector.shape_cast %133 : vector<16x16x128xf32> to vector<256x128xf32>
    %135 = arith.addf %131, %134 : vector<256x128xf32>
    %cst_143 = arith.constant 0.000000e+00 : f32
    %136 = vector.broadcast %cst_143 : f32 to vector<256x128xf32>
    %137 = arith.maximumf %135, %136 : vector<256x128xf32>
    %138 = vector.shape_cast %137 : vector<256x128xf32> to vector<16x16x128xf32>
    %c0_144 = arith.constant 0 : index
    %c0_145 = arith.constant 0 : index
    %c0_146 = arith.constant 0 : index
    %c0_147 = arith.constant 0 : index
    %139 = vector.load %arg7[%c0_144, %c0_145, %c0_146, %c0_147] : memref<1x16x16x128xf32, #tpu.memory_space<vmem>>, vector<1x16x16x128xf32>
    %140 = vector.shape_cast %139 : vector<1x16x16x128xf32> to vector<16x16x128xf32>
    %141 = vector.shape_cast %138 : vector<16x16x128xf32> to vector<1x16x16x128xf32>
    tpu.vector_store %arg7[%c0_144, %c0_145, %c0_146, %c0_147], %141 {strides = array<i32>} : memref<1x16x16x128xf32, #tpu.memory_space<vmem>>, vector<1x16x16x128xf32>,
    return
  }
  func.func @transform_0(%arg0: i32) -> (i32, i32, i32, i32) {
    %c0_i32 = arith.constant 0 : i32
    %c0_i32_0 = arith.constant 0 : i32
    %c0_i32_1 = arith.constant 0 : i32
    %c0_i32_2 = arith.constant 0 : i32
    return %arg0, %c0_i32, %c0_i32_0, %c0_i32_1 : i32, i32, i32, i32
  }
  func.func @transform_1(%arg0: i32) -> (i32, i32, i32, i32) {
    %c0_i32 = arith.constant 0 : i32
    %c0_i32_0 = arith.constant 0 : i32
    %c0_i32_1 = arith.constant 0 : i32
    %c0_i32_2 = arith.constant 0 : i32
    return %arg0, %c0_i32, %c0_i32_0, %c0_i32_1 : i32, i32, i32, i32
  }
  func.func @transform_2(%arg0: i32) -> (i32, i32, i32) {
    %c0_i32 = arith.constant 0 : i32
    %c0_i32_0 = arith.constant 0 : i32
    %c0_i32_1 = arith.constant 0 : i32
    %c0_i32_2 = arith.constant 0 : i32
    return %c0_i32, %c0_i32_0, %c0_i32_1 : i32, i32, i32
  }
  func.func @transform_3(%arg0: i32) -> (i32, i32) {
    %c0_i32 = arith.constant 0 : i32
    %c0_i32_0 = arith.constant 0 : i32
    %c0_i32_1 = arith.constant 0 : i32
    return %c0_i32, %c0_i32_0 : i32, i32
  }
  func.func @transform_4(%arg0: i32) -> (i32, i32, i32) {
    %c0_i32 = arith.constant 0 : i32
    %c0_i32_0 = arith.constant 0 : i32
    %c0_i32_1 = arith.constant 0 : i32
    %c0_i32_2 = arith.constant 0 : i32
    return %c0_i32, %c0_i32_0, %c0_i32_1 : i32, i32, i32
  }
  func.func @transform_5(%arg0: i32) -> (i32, i32) {
    %c0_i32 = arith.constant 0 : i32
    %c0_i32_0 = arith.constant 0 : i32
    %c0_i32_1 = arith.constant 0 : i32
    return %c0_i32, %c0_i32_0 : i32, i32
  }
  func.func @transform_6(%arg0: i32) -> (i32, i32, i32, i32) {
    %c0_i32 = arith.constant 0 : i32
    %c0_i32_0 = arith.constant 0 : i32
    %c0_i32_1 = arith.constant 0 : i32
    %c0_i32_2 = arith.constant 0 : i32
    return %arg0, %c0_i32, %c0_i32_0, %c0_i32_1 : i32, i32, i32, i32
  }
}

</mosaic_0001>

<llo_original>
// kernel: basic_block_forward.1
$region0: #{basic_block_forward.1}
  #allocation0 [shape = 'u32[]', space=smem, size = 0x4, offset = 0x4, fixed_abs, tag = 'smem constant byte address 0x4 - core index']
  #allocation1 [shape = 'u32[72,128]{1,0:T(1,128)}', space=vmem, size = 0x9000, scoped, tag = 'internal scratch']
  #allocation2 [shape = 'bf16[18,18,128]{2,1,0:T(8,128)(2,1)}', space=vmem, size = 0x1b000, scoped, tag = 'scratch operand']
  %s0 = inlined_call_operand.vmem [shape: bf16[2,18,18,128], index: 0, kind: input, shape index: {}]
  %s1 = inlined_call_operand.vmem [shape: f32[2,16,16,128], index: 1, kind: input, shape index: {}]
  %s2 = inlined_call_operand.vmem [shape: bf16[9,128,128], index: 2, kind: input, shape index: {}]
  %s3 = inlined_call_operand.vmem [shape: f32[1,128], index: 3, kind: input, shape index: {}]
  %s4 = inlined_call_operand.vmem [shape: bf16[9,128,128], index: 4, kind: input, shape index: {}]
  %s5 = inlined_call_operand.vmem [shape: f32[1,128], index: 5, kind: input, shape index: {}]
  %s6 = inlined_call_operand.vmem [shape: f32[2,16,16,128], index: 6, kind: output, shape index: {}]
  %s7 = sld [smem:[#allocation0]]
  $region57: #{basic_block_forward.1} parent=0
    _
  %s9 = ssub.s32 1, %s7
  %s10 = scalar_select 0, %s9, %s7
  loop: start=0, step=1, limit=4
  $region2: #{basic_block_forward.1} parent=0 // loop_pre_header
    _
  $region3: #{basic_block_forward.1} parent=0 // loop_header
    %s12 = sphi 0, %s16
    %p13 = scmp.ge.s32.totalorder %s12, 4
    %s22 = sphi 0, %s24
    %s25 = sphi 0, %s22
    %s26 = sphi 0, %s25
    %s42 = sphi 0, %s26
    %s48 = sphi 0, %s50
    %s51 = sphi 0, %s48
    %s52 = sphi 0, %s51
    %s68 = sphi 0, %s52
    %s72 = sphi 0, %s72
    %s74 = sphi 0, %s72
    %s75 = sphi 0, %s74
    %s89 = sphi 0, %s75
    %s93 = sphi 0, %s93
    %s95 = sphi 0, %s93
    %s96 = sphi 0, %s95
    %s110 = sphi 0, %s96
    %s114 = sphi 0, %s114
    %s116 = sphi 0, %s114
    %s117 = sphi 0, %s116
    %s131 = sphi 0, %s117
    %s135 = sphi 0, %s135
    %s137 = sphi 0, %s135
    %s138 = sphi 0, %s137
    %s152 = sphi 0, %s138
    %s158 = sphi 0, %s160
    %s161 = sphi 0, %s158
    %s162 = sphi 0, %s161
    %s178 = sphi 0, %s162
  $region4: #{basic_block_forward.1} parent=0 // loop_header_branch
    %15 = sbr.rel (%p13) target = $region8
  $region5: #{basic_block_forward.1} parent=0 // loop_body
    %s17 = ssub.s32 %s12, 1
    %s18 = ssub.s32 %s12, 2
    %s19 = sadd.s32 %s12, 1
    %s20 = ssub.s32 %s12, %s19
    %p21 = scmp.eq.s32.totalorder %s20, 0
    %s23 = sadd.s32 %s22, 1
    %s24 = scalar_select %p21, %s22, %s23
    %p27 = pneg %p21
    %p28 = scmp.eq.s32.totalorder %s12, 1
    %p29 = por %p27, %p28
    %p30 = scmp.ne.s32.totalorder %s22, %s25
    %p31 = scmp.eq.s32.totalorder %s12, 0
    %p32 = por %p30, %p31
    %p33 = scmp.ne.s32.totalorder %s22, %s25
    %p34 = scmp.eq.s32.totalorder %s17, 1
    %p35 = por %p33, %p34
    %p36 = scmp.ne.s32.totalorder %s25, %s26
    %p37 = scmp.eq.s32.totalorder %s17, 0
    %p38 = por %p36, %p37
    %p39 = scmp.ne.s32.totalorder %s25, %s26
    %p40 = scmp.eq.s32.totalorder %s18, 1
    %p41 = por %p39, %p40
    %p43 = scmp.ne.s32.totalorder %s26, %s42
    %p44 = scmp.eq.s32.totalorder %s18, 0
    %p45 = por %p43, %p44
    %s46 = ssub.s32 %s12, %s19
    %p47 = scmp.eq.s32.totalorder %s46, 0
    %s49 = sadd.s32 %s48, 1
    %s50 = scalar_select %p47, %s48, %s49
    %p53 = pneg %p47
    %p54 = scmp.eq.s32.totalorder %s12, 1
    %p55 = por %p53, %p54
    %p56 = scmp.ne.s32.totalorder %s48, %s51
    %p57 = scmp.eq.s32.totalorder %s12, 0
    %p58 = por %p56, %p57
    %p59 = scmp.ne.s32.totalorder %s48, %s51
    %p60 = scmp.eq.s32.totalorder %s17, 1
    %p61 = por %p59, %p60
    %p62 = scmp.ne.s32.totalorder %s51, %s52
    %p63 = scmp.eq.s32.totalorder %s17, 0
    %p64 = por %p62, %p63
    %p65 = scmp.ne.s32.totalorder %s51, %s52
    %p66 = scmp.eq.s32.totalorder %s18, 1
    %p67 = por %p65, %p66
    %p69 = scmp.ne.s32.totalorder %s52, %s68
    %p70 = scmp.eq.s32.totalorder %s18, 0
    %p71 = por %p69, %p70
    %s73 = sadd.s32 %s72, 1
    %p76 = scmp.eq.s32.totalorder %s12, 1
    %p77 = scmp.ne.s32.totalorder %s72, %s74
    %p78 = scmp.eq.s32.totalorder %s12, 0
    %p79 = por %p77, %p78
    %p80 = scmp.ne.s32.totalorder %s72, %s74
    %p81 = scmp.eq.s32.totalorder %s17, 1
    %p82 = por %p80, %p81
    %p83 = scmp.ne.s32.totalorder %s74, %s75
    %p84 = scmp.eq.s32.totalorder %s17, 0
    %p85 = por %p83, %p84
    %p86 = scmp.ne.s32.totalorder %s74, %s75
    %p87 = scmp.eq.s32.totalorder %s18, 1
    %p88 = por %p86, %p87
    %p90 = scmp.ne.s32.totalorder %s75, %s89
    %p91 = scmp.eq.s32.totalorder %s18, 0
    %p92 = por %p90, %p91
    %s94 = sadd.s32 %s93, 1
    %p97 = scmp.eq.s32.totalorder %s12, 1
    %p98 = scmp.ne.s32.totalorder %s93, %s95
    %p99 = scmp.eq.s32.totalorder %s12, 0
    %p100 = por %p98, %p99
    %p101 = scmp.ne.s32.totalorder %s93, %s95
    %p102 = scmp.eq.s32.totalorder %s17, 1
    %p103 = por %p101, %p102
    %p104 = scmp.ne.s32.totalorder %s95, %s96
    %p105 = scmp.eq.s32.totalorder %s17, 0
    %p106 = por %p104, %p105
    %p107 = scmp.ne.s32.totalorder %s95, %s96
    %p108 = scmp.eq.s32.totalorder %s18, 1
    %p109 = por %p107, %p108
    %p111 = scmp.ne.s32.totalorder %s96, %s110
    %p112 = scmp.eq.s32.totalorder %s18, 0
    %p113 = por %p111, %p112
    %s115 = sadd.s32 %s114, 1
    %p118 = scmp.eq.s32.totalorder %s12, 1
    %p119 = scmp.ne.s32.totalorder %s114, %s116
    %p120 = scmp.eq.s32.totalorder %s12, 0
    %p121 = por %p119, %p120
    %p122 = scmp.ne.s32.totalorder %s114, %s116
    %p123 = scmp.eq.s32.totalorder %s17, 1
    %p124 = por %p122, %p123
    %p125 = scmp.ne.s32.totalorder %s116, %s117
    %p126 = scmp.eq.s32.totalorder %s17, 0
    %p127 = por %p125, %p126
    %p128 = scmp.ne.s32.totalorder %s116, %s117
    %p129 = scmp.eq.s32.totalorder %s18, 1
    %p130 = por %p128, %p129
    %p132 = scmp.ne.s32.totalorder %s117, %s131
    %p133 = scmp.eq.s32.totalorder %s18, 0
    %p134 = por %p132, %p133
    %s136 = sadd.s32 %s135, 1
    %p139 = scmp.eq.s32.totalorder %s12, 1
    %p140 = scmp.ne.s32.totalorder %s135, %s137
    %p141 = scmp.eq.s32.totalorder %s12, 0
    %p142 = por %p140, %p141
    %p143 = scmp.ne.s32.totalorder %s135, %s137
    %p144 = scmp.eq.s32.totalorder %s17, 1
    %p145 = por %p143, %p144
    %p146 = scmp.ne.s32.totalorder %s137, %s138
    %p147 = scmp.eq.s32.totalorder %s17, 0
    %p148 = por %p146, %p147
    %p149 = scmp.ne.s32.totalorder %s137, %s138
    %p150 = scmp.eq.s32.totalorder %s18, 1
    %p151 = por %p149, %p150
    %p153 = scmp.ne.s32.totalorder %s138, %s152
    %p154 = scmp.eq.s32.totalorder %s18, 0
    %p155 = por %p153, %p154
    %s156 = ssub.s32 %s12, %s19
    %p157 = scmp.eq.s32.totalorder %s156, 0
    %s159 = sadd.s32 %s158, 1
    %s160 = scalar_select %p157, %s158, %s159
    %p163 = pneg %p157
    %p164 = scmp.eq.s32.totalorder %s12, 1
    %p165 = por %p163, %p164
    %p166 = scmp.ne.s32.totalorder %s158, %s161
    %p167 = scmp.eq.s32.totalorder %s12, 0
    %p168 = por %p166, %p167
    %p169 = scmp.ne.s32.totalorder %s158, %s161
    %p170 = scmp.eq.s32.totalorder %s17, 1
    %p171 = por %p169, %p170
    %p172 = scmp.ne.s32.totalorder %s161, %s162
    %p173 = scmp.eq.s32.totalorder %s17, 0
    %p174 = por %p172, %p173
    %p175 = scmp.ne.s32.totalorder %s161, %s162
    %p176 = scmp.eq.s32.totalorder %s18, 1
    %p177 = por %p175, %p176
    %p179 = scmp.ne.s32.totalorder %s162, %s178
    %p180 = scmp.eq.s32.totalorder %s18, 0
    %p181 = por %p179, %p180
    %p182 = scmp.le.s32.totalorder 1, %s12
    %p183 = scmp.lt.s32.totalorder %s12, 3
    %p184 = pnand %p182, %p183
    %p185 = pneg %p184
    // Predicated region
    $region9: #{basic_block_forward.1} parent=5 // pred_check
      _
    $region10: #{basic_block_forward.1} parent=5 // pred_check_branch
      %187 = sbr.rel (%p184) target = $region12
    $region11: #{basic_block_forward.1} parent=5 // pred_region
      %s188 = ssub.s32 %s12, 1
      // Predicated region
      $region13: #{basic_block_forward.1} parent=11 // pred_check
        %p189 = pneg %p85
      $region14: #{basic_block_forward.1} parent=11 // pred_check_branch
        %191 = sbr.rel (%p189) target = $region16
      $region15: #{basic_block_forward.1} parent=11 // pred_region
        _
      $region16: #{basic_block_forward.1} parent=11 // pred_fallthru
        _
      // Predicated region
      $region17: #{basic_block_forward.1} parent=11 // pred_check
        %p192 = pneg %p106
      $region18: #{basic_block_forward.1} parent=11 // pred_check_branch
        %194 = sbr.rel (%p192) target = $region20
      $region19: #{basic_block_forward.1} parent=11 // pred_region
        _
      $region20: #{basic_block_forward.1} parent=11 // pred_fallthru
        _
      // Predicated region
      $region21: #{basic_block_forward.1} parent=11 // pred_check
        %p195 = pneg %p127
      $region22: #{basic_block_forward.1} parent=11 // pred_check_branch
        %197 = sbr.rel (%p195) target = $region24
      $region23: #{basic_block_forward.1} parent=11 // pred_region
        _
      $region24: #{basic_block_forward.1} parent=11 // pred_fallthru
        _
      // Predicated region
      $region25: #{basic_block_forward.1} parent=11 // pred_check
        %p198 = pneg %p148
      $region26: #{basic_block_forward.1} parent=11 // pred_check_branch
        %200 = sbr.rel (%p198) target = $region28
      $region27: #{basic_block_forward.1} parent=11 // pred_region
        _
      $region28: #{basic_block_forward.1} parent=11 // pred_fallthru
        _
    $region12: #{basic_block_forward.1} parent=5 // pred_fallthru
      _
    %p201 = scmp.lt.s32.totalorder %s12, 2
    // Predicated region
    $region29: #{basic_block_forward.1} parent=5 // pred_check
      %p202 = pneg %p201
    $region30: #{basic_block_forward.1} parent=5 // pred_check_branch
      %204 = sbr.rel (%p202) target = $region32
    $region31: #{basic_block_forward.1} parent=5 // pred_region
      // Predicated region
      $region33: #{basic_block_forward.1} parent=31 // pred_check
        %p205 = pneg %p32
      $region34: #{basic_block_forward.1} parent=31 // pred_check_branch
        %207 = sbr.rel (%p205) target = $region36
      $region35: #{basic_block_forward.1} parent=31 // pred_region
        %p208 = scmp.lt.s32.totalorder %s12, 1
        %s209 = scalar_select %p208, %s12, 1
        %s210 = smul.addr %s209, 54
        %s211 = smul.addr %s210, 4
        %s212 = scalar_lea.vmem %s0, %s211
      $region36: #{basic_block_forward.1} parent=31 // pred_fallthru
        _
      // Predicated region
      $region37: #{basic_block_forward.1} parent=31 // pred_check
        %p213 = pneg %p58
      $region38: #{basic_block_forward.1} parent=31 // pred_check_branch
        %215 = sbr.rel (%p213) target = $region40
      $region39: #{basic_block_forward.1} parent=31 // pred_region
        %p216 = scmp.lt.s32.totalorder %s12, 1
        %s217 = scalar_select %p216, %s12, 1
        %s218 = smul.addr %s217, 32
        %s219 = smul.addr %s218, 8
        %s220 = scalar_lea.vmem %s1, %s219
      $region40: #{basic_block_forward.1} parent=31 // pred_fallthru
        _
    $region32: #{basic_block_forward.1} parent=5 // pred_fallthru
      _
    %p221 = scmp.le.s32.totalorder 1, %s12
    %p222 = scmp.lt.s32.totalorder %s12, 3
    %p223 = pnand %p221, %p222
    %p224 = pneg %p223
    // Predicated region
    $region41: #{basic_block_forward.1} parent=5 // pred_check
      _
    $region42: #{basic_block_forward.1} parent=5 // pred_check_branch
      %226 = sbr.rel (%p223) target = $region44
    $region43: #{basic_block_forward.1} parent=5 // pred_region
      %s227 = ssub.s32 %s12, 1
      %p228 = scmp.lt.s32.totalorder %s17, 1
      %s229 = scalar_select %p228, %s17, 1
      %s230 = smul.addr %s229, 54
      %s231 = smul.addr %s230, 4
      %s232 = scalar_lea.vmem %s0, %s231
      %p233 = pneg %p38
      %p234 = pneg %p35
      %p235 = scmp.lt.s32.totalorder %s17, 1
      %s236 = scalar_select %p235, %s17, 1
      %s237 = smul.addr %s236, 32
      %s238 = smul.addr %s237, 8
      %s239 = scalar_lea.vmem %s1, %s238
      %p240 = pneg %p64
      %p241 = pneg %p61
      %p242 = pneg %p85
      %p243 = pneg %p82
      %p244 = pneg %p106
      %p245 = pneg %p103
      %p246 = pneg %p127
      %p247 = pneg %p124
      %p248 = pneg %p148
      %p249 = pneg %p145
      %p250 = pneg %p174
      %p251 = pneg %p171
      %p252 = scmp.lt.s32.totalorder %s17, 1
      %s253 = scalar_select %p252, %s17, 1
      %s254 = smul.addr %s253, 32
      %s255 = smul.addr %s254, 8
      %s256 = scalar_lea.vmem %s6, %s255
      %p257 = scmp.lt.s32.totalorder %s17, 1
      %s258 = scalar_select %p257, %s17, 1
      %s259 = smul.addr %s258, 54
      %s260 = smul.addr %s259, 4
      %s261 = scalar_lea.vmem %s0, %s260
      %p262 = scmp.lt.s32.totalorder %s17, 1
      %s263 = scalar_select %p262, %s17, 1
      %s264 = smul.addr %s263, 32
      %s265 = smul.addr %s264, 8
      %s266 = scalar_lea.vmem %s1, %s265
      %p267 = scmp.lt.s32.totalorder %s17, 1
      %s268 = scalar_select %p267, %s17, 1
      %s269 = smul.addr %s268, 32
      %s270 = smul.addr %s269, 8
      %s271 = scalar_lea.vmem %s6, %s270
      %v273 = vld [vmem:[%s261] sm:$0xf]
      %v274 = vld [vmem:[%s261 + $0x4] sm:$0xf]
      %v275 = vld [vmem:[%s261 + $0xc] sm:$0xf]
      %v276 = vld [vmem:[%s261 + $0x10] sm:$0xf]
      %v277 = vld [vmem:[%s261 + $0x18] sm:$0xf]
      %v278 = vld [vmem:[%s261 + $0x1c] sm:$0xf]
      %v279 = vld [vmem:[%s261 + $0x24] sm:$0xf]
      %v280 = vld [vmem:[%s261 + $0x28] sm:$0xf]
      %v281 = vld [vmem:[%s261 + $0x30] sm:$0xf]
      %v282 = vld [vmem:[%s261 + $0x34] sm:$0xf]
      %v283 = vld [vmem:[%s261 + $0x3c] sm:$0xf]
      %v284 = vld [vmem:[%s261 + $0x40] sm:$0xf]
      %v285 = vld [vmem:[%s261 + $0x48] sm:$0xf]
      %v286 = vld [vmem:[%s261 + $0x4c] sm:$0xf]
      %v287 = vld [vmem:[%s261 + $0x54] sm:$0xf]
      %v288 = vld [vmem:[%s261 + $0x58] sm:$0xf]
      %v289 = vld [vmem:[%s261 + $0x60] sm:$0xf]
      %v290 = vld [vmem:[%s261 + $0x64] sm:$0xf]
      %v291 = vld [vmem:[%s261 + $0x6c] sm:$0xf]
      %v292 = vld [vmem:[%s261 + $0x70] sm:$0xf]
      %v293 = vld [vmem:[%s261 + $0x78] sm:$0xf]
      %v294 = vld [vmem:[%s261 + $0x7c] sm:$0xf]
      %v295 = vld [vmem:[%s261 + $0x84] sm:$0xf]
      %v296 = vld [vmem:[%s261 + $0x88] sm:$0xf]
      %v297 = vld [vmem:[%s261 + $0x90] sm:$0xf]
      %v298 = vld [vmem:[%s261 + $0x94] sm:$0xf]
      %v299 = vld [vmem:[%s261 + $0x9c] sm:$0xf]
      %v300 = vld [vmem:[%s261 + $0xa0] sm:$0xf]
      %v301 = vld [vmem:[%s261 + $0xa8] sm:$0xf]
      %v302 = vld [vmem:[%s261 + $0xac] sm:$0xf]
      %v303 = vld [vmem:[%s261 + $0xb4] sm:$0xf]
      %v304 = vld [vmem:[%s261 + $0xb8] sm:$0xf]
      %v305 = vld [vmem:[%s2] sm:$0xf]
      %v306 = vld [vmem:[%s2 + $0x4] sm:$0xf]
      %v307 = vld [vmem:[%s2 + $0x8] sm:$0xf]
      %v308 = vld [vmem:[%s2 + $0xc] sm:$0xf]
      %v309 = vld [vmem:[%s2 + $0x10] sm:$0xf]
      %v310 = vld [vmem:[%s2 + $0x14] sm:$0xf]
      %v311 = vld [vmem:[%s2 + $0x18] sm:$0xf]
      %v312 = vld [vmem:[%s2 + $0x1c] sm:$0xf]
      %v313 = vld [vmem:[%s2 + $0x20] sm:$0xf]
      %v314 = vld [vmem:[%s2 + $0x24] sm:$0xf]
      %v315 = vld [vmem:[%s2 + $0x28] sm:$0xf]
      %v316 = vld [vmem:[%s2 + $0x2c] sm:$0xf]
      %v317 = vld [vmem:[%s2 + $0x30] sm:$0xf]
      %v318 = vld [vmem:[%s2 + $0x34] sm:$0xf]
      %v319 = vld [vmem:[%s2 + $0x38] sm:$0xf]
      %v320 = vld [vmem:[%s2 + $0x3c] sm:$0xf]
      %v321 = vld [vmem:[%s261 + $0x8] sm:$0x1]
      %v322 = vld [vmem:[%s261 + $0x14] sm:$0x1]
      %v323 = vld [vmem:[%s261 + $0x20] sm:$0x1]
      %v324 = vld [vmem:[%s261 + $0x2c] sm:$0x1]
      %v325 = vld [vmem:[%s261 + $0x38] sm:$0x1]
      %v326 = vld [vmem:[%s261 + $0x44] sm:$0x1]
      %v327 = vld [vmem:[%s261 + $0x50] sm:$0x1]
      %v328 = vld [vmem:[%s261 + $0x5c] sm:$0x1]
      %v329 = vld [vmem:[%s261 + $0x68] sm:$0x1]
      %v330 = vld [vmem:[%s261 + $0x74] sm:$0x1]
      %v331 = vld [vmem:[%s261 + $0x80] sm:$0x1]
      %v332 = vld [vmem:[%s261 + $0x8c] sm:$0x1]
      %v333 = vld [vmem:[%s261 + $0x98] sm:$0x1]
      %v334 = vld [vmem:[%s261 + $0xa4] sm:$0x1]
      %v335 = vld [vmem:[%s261 + $0xb0] sm:$0x1]
      %v336 = vld [vmem:[%s261 + $0xbc] sm:$0x1]
      %vm337 = vsmask.f32 3328
      %vm338 = vsmask.f32 7440
      %vm339 = vmor %vm337, %vm338
      %v341 = vshrl.u32 %v273, 16
      %v343 = vrot.slane %v341, 4
      %v344 = vshll.u32 %v273, 16
      %v346 = vrot.slane %v344, 5
      %v347 = vor.u32 %v343, %v346
      %v348 = vrot.slane %v347, 4
      %v350 = vshll.u32 %v274, 16
      %v352 = vrot.slane %v350, 5
      %v353 = vsel %vm339, %v348, %v352
      %v354 = vshrl.u32 %v274, 16
      %v356 = vrot.slane %v354, 4
      %v357 = vor.u32 %v356, %v352
      %v358 = vrot.slane %v357, 4
      %v360 = vshll.u32 %v321, 16
      %v362 = vrot.slane %v360, 5
      %v363 = vsel %vm339, %v358, %v362
      %v365 = vshrl.u32 %v275, 16
      %v367 = vrot.slane %v365, 4
      %v368 = vshll.u32 %v275, 16
      %v370 = vrot.slane %v368, 5
      %v371 = vor.u32 %v367, %v370
      %v372 = vrot.slane %v371, 4
      %v374 = vshll.u32 %v276, 16
      %v376 = vrot.slane %v374, 5
      %v377 = vsel %vm339, %v372, %v376
      %v378 = vshrl.u32 %v276, 16
      %v380 = vrot.slane %v378, 4
      %v381 = vor.u32 %v380, %v376
      %v382 = vrot.slane %v381, 4
      %v384 = vshll.u32 %v322, 16
      %v386 = vrot.slane %v384, 5
      %v387 = vsel %vm339, %v382, %v386
      %v389 = vshrl.u32 %v277, 16
      %v391 = vrot.slane %v389, 4
      %v392 = vshll.u32 %v277, 16
      %v394 = vrot.slane %v392, 5
      %v395 = vor.u32 %v391, %v394
      %v396 = vrot.slane %v395, 4
      %v398 = vshll.u32 %v278, 16
      %v400 = vrot.slane %v398, 5
      %v401 = vsel %vm339, %v396, %v400
      %v402 = vshrl.u32 %v278, 16
      %v404 = vrot.slane %v402, 4
      %v405 = vor.u32 %v404, %v400
      %v406 = vrot.slane %v405, 4
      %v408 = vshll.u32 %v323, 16
      %v410 = vrot.slane %v408, 5
      %v411 = vsel %vm339, %v406, %v410
      %v413 = vshrl.u32 %v279, 16
      %v415 = vrot.slane %v413, 4
      %v416 = vshll.u32 %v279, 16
      %v418 = vrot.slane %v416, 5
      %v419 = vor.u32 %v415, %v418
      %v420 = vrot.slane %v419, 4
      %v422 = vshll.u32 %v280, 16
      %v424 = vrot.slane %v422, 5
      %v425 = vsel %vm339, %v420, %v424
      %v426 = vshrl.u32 %v280, 16
      %v428 = vrot.slane %v426, 4
      %v429 = vor.u32 %v428, %v424
      %v430 = vrot.slane %v429, 4
      %v432 = vshll.u32 %v324, 16
      %v434 = vrot.slane %v432, 5
      %v435 = vsel %vm339, %v430, %v434
      %v437 = vshrl.u32 %v281, 16
      %v439 = vrot.slane %v437, 4
      %v440 = vshll.u32 %v281, 16
      %v442 = vrot.slane %v440, 5
      %v443 = vor.u32 %v439, %v442
      %v444 = vrot.slane %v443, 4
      %v446 = vshll.u32 %v282, 16
      %v448 = vrot.slane %v446, 5
      %v449 = vsel %vm339, %v444, %v448
      %v450 = vshrl.u32 %v282, 16
      %v452 = vrot.slane %v450, 4
      %v453 = vor.u32 %v452, %v448
      %v454 = vrot.slane %v453, 4
      %v456 = vshll.u32 %v325, 16
      %v458 = vrot.slane %v456, 5
      %v459 = vsel %vm339, %v454, %v458
      %v461 = vshrl.u32 %v283, 16
      %v463 = vrot.slane %v461, 4
      %v464 = vshll.u32 %v283, 16
      %v466 = vrot.slane %v464, 5
      %v467 = vor.u32 %v463, %v466
      %v468 = vrot.slane %v467, 4
      %v470 = vshll.u32 %v284, 16
      %v472 = vrot.slane %v470, 5
      %v473 = vsel %vm339, %v468, %v472
      %v474 = vshrl.u32 %v284, 16
      %v476 = vrot.slane %v474, 4
      %v477 = vor.u32 %v476, %v472
      %v478 = vrot.slane %v477, 4
      %v480 = vshll.u32 %v326, 16
      %v482 = vrot.slane %v480, 5
      %v483 = vsel %vm339, %v478, %v482
      %v485 = vshrl.u32 %v285, 16
      %v487 = vrot.slane %v485, 4
      %v488 = vshll.u32 %v285, 16
      %v490 = vrot.slane %v488, 5
      %v491 = vor.u32 %v487, %v490
      %v492 = vrot.slane %v491, 4
      %v494 = vshll.u32 %v286, 16
      %v496 = vrot.slane %v494, 5
      %v497 = vsel %vm339, %v492, %v496
      %v498 = vshrl.u32 %v286, 16
      %v500 = vrot.slane %v498, 4
      %v501 = vor.u32 %v500, %v496
      %v502 = vrot.slane %v501, 4
      %v504 = vshll.u32 %v327, 16
      %v506 = vrot.slane %v504, 5
      %v507 = vsel %vm339, %v502, %v506
      %v509 = vshrl.u32 %v287, 16
      %v511 = vrot.slane %v509, 4
      %v512 = vshll.u32 %v287, 16
      %v514 = vrot.slane %v512, 5
      %v515 = vor.u32 %v511, %v514
      %v516 = vrot.slane %v515, 4
      %v518 = vshll.u32 %v288, 16
      %v520 = vrot.slane %v518, 5
      %v521 = vsel %vm339, %v516, %v520
      %v522 = vshrl.u32 %v288, 16
      %v524 = vrot.slane %v522, 4
      %v525 = vor.u32 %v524, %v520
      %v526 = vrot.slane %v525, 4
      %v528 = vshll.u32 %v328, 16
      %v530 = vrot.slane %v528, 5
      %v531 = vsel %vm339, %v526, %v530
      %v533 = vshrl.u32 %v289, 16
      %v535 = vrot.slane %v533, 4
      %v536 = vshll.u32 %v289, 16
      %v538 = vrot.slane %v536, 5
      %v539 = vor.u32 %v535, %v538
      %v540 = vrot.slane %v539, 4
      %v542 = vshll.u32 %v290, 16
      %v544 = vrot.slane %v542, 5
      %v545 = vsel %vm339, %v540, %v544
      %v546 = vshrl.u32 %v290, 16
      %v548 = vrot.slane %v546, 4
      %v549 = vor.u32 %v548, %v544
      %v550 = vrot.slane %v549, 4
      %v552 = vshll.u32 %v329, 16
      %v554 = vrot.slane %v552, 5
      %v555 = vsel %vm339, %v550, %v554
      %v557 = vshrl.u32 %v291, 16
      %v559 = vrot.slane %v557, 4
      %v560 = vshll.u32 %v291, 16
      %v562 = vrot.slane %v560, 5
      %v563 = vor.u32 %v559, %v562
      %v564 = vrot.slane %v563, 4
      %v566 = vshll.u32 %v292, 16
      %v568 = vrot.slane %v566, 5
      %v569 = vsel %vm339, %v564, %v568
      %v570 = vshrl.u32 %v292, 16
      %v572 = vrot.slane %v570, 4
      %v573 = vor.u32 %v572, %v568
      %v574 = vrot.slane %v573, 4
      %v576 = vshll.u32 %v330, 16
      %v578 = vrot.slane %v576, 5
      %v579 = vsel %vm339, %v574, %v578
      %v581 = vshrl.u32 %v293, 16
      %v583 = vrot.slane %v581, 4
      %v584 = vshll.u32 %v293, 16
      %v586 = vrot.slane %v584, 5
      %v587 = vor.u32 %v583, %v586
      %v588 = vrot.slane %v587, 4
      %v590 = vshll.u32 %v294, 16
      %v592 = vrot.slane %v590, 5
      %v593 = vsel %vm339, %v588, %v592
      %v594 = vshrl.u32 %v294, 16
      %v596 = vrot.slane %v594, 4
      %v597 = vor.u32 %v596, %v592
      %v598 = vrot.slane %v597, 4
      %v600 = vshll.u32 %v331, 16
      %v602 = vrot.slane %v600, 5
      %v603 = vsel %vm339, %v598, %v602
      %v605 = vshrl.u32 %v295, 16
      %v607 = vrot.slane %v605, 4
      %v608 = vshll.u32 %v295, 16
      %v610 = vrot.slane %v608, 5
      %v611 = vor.u32 %v607, %v610
      %v612 = vrot.slane %v611, 4
      %v614 = vshll.u32 %v296, 16
      %v616 = vrot.slane %v614, 5
      %v617 = vsel %vm339, %v612, %v616
      %v618 = vshrl.u32 %v296, 16
      %v620 = vrot.slane %v618, 4
      %v621 = vor.u32 %v620, %v616
      %v622 = vrot.slane %v621, 4
      %v624 = vshll.u32 %v332, 16
      %v626 = vrot.slane %v624, 5
      %v627 = vsel %vm339, %v622, %v626
      %v629 = vshrl.u32 %v297, 16
      %v631 = vrot.slane %v629, 4
      %v632 = vshll.u32 %v297, 16
      %v634 = vrot.slane %v632, 5
      %v635 = vor.u32 %v631, %v634
      %v636 = vrot.slane %v635, 4
      %v638 = vshll.u32 %v298, 16
      %v640 = vrot.slane %v638, 5
      %v641 = vsel %vm339, %v636, %v640
      %v642 = vshrl.u32 %v298, 16
      %v644 = vrot.slane %v642, 4
      %v645 = vor.u32 %v644, %v640
      %v646 = vrot.slane %v645, 4
      %v648 = vshll.u32 %v333, 16
      %v650 = vrot.slane %v648, 5
      %v651 = vsel %vm339, %v646, %v650
      %v653 = vshrl.u32 %v299, 16
      %v655 = vrot.slane %v653, 4
      %v656 = vshll.u32 %v299, 16
      %v658 = vrot.slane %v656, 5
      %v659 = vor.u32 %v655, %v658
      %v660 = vrot.slane %v659, 4
      %v662 = vshll.u32 %v300, 16
      %v664 = vrot.slane %v662, 5
      %v665 = vsel %vm339, %v660, %v664
      %v666 = vshrl.u32 %v300, 16
      %v668 = vrot.slane %v666, 4
      %v669 = vor.u32 %v668, %v664
      %v670 = vrot.slane %v669, 4
      %v672 = vshll.u32 %v334, 16
      %v674 = vrot.slane %v672, 5
      %v675 = vsel %vm339, %v670, %v674
      %v677 = vshrl.u32 %v301, 16
      %v679 = vrot.slane %v677, 4
      %v680 = vshll.u32 %v301, 16
      %v682 = vrot.slane %v680, 5
      %v683 = vor.u32 %v679, %v682
      %v684 = vrot.slane %v683, 4
      %v686 = vshll.u32 %v302, 16
      %v688 = vrot.slane %v686, 5
      %v689 = vsel %vm339, %v684, %v688
      %v690 = vshrl.u32 %v302, 16
      %v692 = vrot.slane %v690, 4
      %v693 = vor.u32 %v692, %v688
      %v694 = vrot.slane %v693, 4
      %v696 = vshll.u32 %v335, 16
      %v698 = vrot.slane %v696, 5
      %v699 = vsel %vm339, %v694, %v698
      %v701 = vshrl.u32 %v303, 16
      %v703 = vrot.slane %v701, 4
      %v704 = vshll.u32 %v303, 16
      %v706 = vrot.slane %v704, 5
      %v707 = vor.u32 %v703, %v706
      %v708 = vrot.slane %v707, 4
      %v710 = vshll.u32 %v304, 16
      %v712 = vrot.slane %v710, 5
      %v713 = vsel %vm339, %v708, %v712
      %v714 = vshrl.u32 %v304, 16
      %v716 = vrot.slane %v714, 4
      %v717 = vor.u32 %v716, %v712
      %v718 = vrot.slane %v717, 4
      %v720 = vshll.u32 %v336, 16
      %v722 = vrot.slane %v720, 5
      %v723 = vsel %vm339, %v718, %v722
      %s724 = scalar_lea.vmem %s2, 64
      %v725 = vld [vmem:[%s724] sm:$0xf]
      %v726 = vld [vmem:[%s724 + $0x4] sm:$0xf]
      %v727 = vld [vmem:[%s724 + $0x8] sm:$0xf]
      %v728 = vld [vmem:[%s724 + $0xc] sm:$0xf]
      %v729 = vld [vmem:[%s724 + $0x10] sm:$0xf]
      %v730 = vld [vmem:[%s724 + $0x14] sm:$0xf]
      %v731 = vld [vmem:[%s724 + $0x18] sm:$0xf]
      %v732 = vld [vmem:[%s724 + $0x1c] sm:$0xf]
      %v733 = vld [vmem:[%s724 + $0x20] sm:$0xf]
      %v734 = vld [vmem:[%s724 + $0x24] sm:$0xf]
      %v735 = vld [vmem:[%s724 + $0x28] sm:$0xf]
      %v736 = vld [vmem:[%s724 + $0x2c] sm:$0xf]
      %v737 = vld [vmem:[%s724 + $0x30] sm:$0xf]
      %v738 = vld [vmem:[%s724 + $0x34] sm:$0xf]
      %v739 = vld [vmem:[%s724 + $0x38] sm:$0xf]
      %v740 = vld [vmem:[%s724 + $0x3c] sm:$0xf]
      %v741 = vunpack.c.l.b16 %v353
      %v742 = vunpack.c.l.b16 %v363
      %v743 = vunpack.c.l.b16 %v377
      %v744 = vunpack.c.l.b16 %v387
      %v745 = vunpack.c.l.b16 %v401
      %v746 = vunpack.c.l.b16 %v411
      %v747 = vunpack.c.l.b16 %v425
      %v748 = vunpack.c.l.b16 %v435
      %v749 = vunpack.c.l.b16 %v449
      %v750 = vunpack.c.l.b16 %v459
      %v751 = vunpack.c.l.b16 %v473
      %v752 = vunpack.c.l.b16 %v483
      %v753 = vunpack.c.l.b16 %v497
      %v754 = vunpack.c.l.b16 %v507
      %v755 = vunpack.c.l.b16 %v521
      %v756 = vunpack.c.l.b16 %v531
      %v757 = vunpack.c.l.b16 %v545
      %v758 = vunpack.c.l.b16 %v555
      %v759 = vunpack.c.l.b16 %v569
      %v760 = vunpack.c.l.b16 %v579
      %v761 = vunpack.c.l.b16 %v593
      %v762 = vunpack.c.l.b16 %v603
      %v763 = vunpack.c.l.b16 %v617
      %v764 = vunpack.c.l.b16 %v627
      %v765 = vunpack.c.l.b16 %v641
      %v766 = vunpack.c.l.b16 %v651
      %v767 = vunpack.c.l.b16 %v665
      %v768 = vunpack.c.l.b16 %v675
      %v769 = vunpack.c.l.b16 %v689
      %v770 = vunpack.c.l.b16 %v699
      %v771 = vunpack.c.l.b16 %v713
      %v772 = vunpack.c.l.b16 %v723
      %v773 = vpack.c.b16 %v742, %v741
      %v774 = vpack.c.b16 %v744, %v743
      %v775 = vpack.c.b16 %v746, %v745
      %v776 = vpack.c.b16 %v748, %v747
      %v777 = vpack.c.b16 %v750, %v749
      %v778 = vpack.c.b16 %v752, %v751
      %v779 = vpack.c.b16 %v754, %v753
      %v780 = vpack.c.b16 %v756, %v755
      %v781 = vpack.c.b16 %v758, %v757
      %v782 = vpack.c.b16 %v760, %v759
      %v783 = vpack.c.b16 %v762, %v761
      %v784 = vpack.c.b16 %v764, %v763
      %v785 = vpack.c.b16 %v766, %v765
      %v786 = vpack.c.b16 %v768, %v767
      %v787 = vpack.c.b16 %v770, %v769
      %v788 = vpack.c.b16 %v772, %v771
      %v821 = vunpack.c.l.b16 %v725
      %v822 = vunpack.c.l.b16 %v726
      %v823 = vunpack.c.l.b16 %v727
      %v824 = vunpack.c.l.b16 %v728
      %v825 = vunpack.c.l.b16 %v729
      %v826 = vunpack.c.l.b16 %v730
      %v827 = vunpack.c.l.b16 %v731
      %v828 = vunpack.c.l.b16 %v732
      %v829 = vunpack.c.l.b16 %v733
      %v830 = vunpack.c.l.b16 %v734
      %v831 = vunpack.c.l.b16 %v735
      %v832 = vunpack.c.l.b16 %v736
      %v833 = vunpack.c.l.b16 %v737
      %v834 = vunpack.c.l.b16 %v738
      %v835 = vunpack.c.l.b16 %v739
      %v836 = vunpack.c.l.b16 %v740
      %v837 = vpack.c.b16 %v822, %v821
      %v838 = vpack.c.b16 %v824, %v823
      %v839 = vpack.c.b16 %v826, %v825
      %v840 = vpack.c.b16 %v828, %v827
      %v841 = vpack.c.b16 %v830, %v829
      %v842 = vpack.c.b16 %v832, %v831
      %v843 = vpack.c.b16 %v834, %v833
      %v844 = vpack.c.b16 %v836, %v835
      %853 = vmatpush.bf16.msra.mxu0 %v844
      %854 = vmatpush.bf16.msra.mxu0 %v843
      %855 = vmatpush.bf16.msra.mxu0 %v842
      %856 = vmatpush.bf16.msra.mxu0 %v841
      %857 = vmatpush.bf16.msra.mxu0 %v840
      %858 = vmatpush.bf16.msra.mxu0 %v839
      %859 = vmatpush.bf16.msra.mxu0 %v838
      %860 = vmatpush.bf16.msra.mxu0 %v837
      %861 = vmatmul.bf16.gmra.mxu0 %v773
      %v862 = vpop.f32.mrf.mxu0
      %v863 = vadd.f32 0.0, %v862
      %v864 = vpop.f32.mrf.mxu0
      %v865 = vadd.f32 0.0, %v864
      %866 = vmatmul.bf16.gmra.mxu0 %v774
      %v867 = vpop.f32.mrf.mxu0
      %v868 = vadd.f32 0.0, %v867
      %v869 = vpop.f32.mrf.mxu0
      %v870 = vadd.f32 0.0, %v869
      %871 = vmatmul.bf16.gmra.mxu0 %v775
      %v872 = vpop.f32.mrf.mxu0
      %v873 = vadd.f32 0.0, %v872
      %v874 = vpop.f32.mrf.mxu0
      %v875 = vadd.f32 0.0, %v874
      %876 = vmatmul.bf16.gmra.mxu0 %v776
      %v877 = vpop.f32.mrf.mxu0
      %v878 = vadd.f32 0.0, %v877
      %v879 = vpop.f32.mrf.mxu0
      %v880 = vadd.f32 0.0, %v879
      %881 = vmatmul.bf16.gmra.mxu0 %v777
      %v882 = vpop.f32.mrf.mxu0
      %v883 = vadd.f32 0.0, %v882
      %v884 = vpop.f32.mrf.mxu0
      %v885 = vadd.f32 0.0, %v884
      %886 = vmatmul.bf16.gmra.mxu0 %v778
      %v887 = vpop.f32.mrf.mxu0
      %v888 = vadd.f32 0.0, %v887
      %v889 = vpop.f32.mrf.mxu0
      %v890 = vadd.f32 0.0, %v889
      %891 = vmatmul.bf16.gmra.mxu0 %v779
      %v892 = vpop.f32.mrf.mxu0
      %v893 = vadd.f32 0.0, %v892
      %v894 = vpop.f32.mrf.mxu0
      %v895 = vadd.f32 0.0, %v894
      %896 = vmatmul.bf16.gmra.mxu0 %v780
      %v897 = vpop.f32.mrf.mxu0
      %v898 = vadd.f32 0.0, %v897
      %v899 = vpop.f32.mrf.mxu0
      %v900 = vadd.f32 0.0, %v899
      %901 = vmatmul.bf16.gmra.mxu0 %v781
      %v902 = vpop.f32.mrf.mxu0
      %v903 = vadd.f32 0.0, %v902
      %v904 = vpop.f32.mrf.mxu0
      %v905 = vadd.f32 0.0, %v904
      %906 = vmatmul.bf16.gmra.mxu0 %v782
      %v907 = vpop.f32.mrf.mxu0
      %v908 = vadd.f32 0.0, %v907
      %v909 = vpop.f32.mrf.mxu0
      %v910 = vadd.f32 0.0, %v909
      %911 = vmatmul.bf16.gmra.mxu0 %v783
      %v912 = vpop.f32.mrf.mxu0
      %v913 = vadd.f32 0.0, %v912
      %v914 = vpop.f32.mrf.mxu0
      %v915 = vadd.f32 0.0, %v914
      %916 = vmatmul.bf16.gmra.mxu0 %v784
      %v917 = vpop.f32.mrf.mxu0
      %v918 = vadd.f32 0.0, %v917
      %v919 = vpop.f32.mrf.mxu0
      %v920 = vadd.f32 0.0, %v919
      %921 = vmatmul.bf16.gmra.mxu0 %v785
      %v922 = vpop.f32.mrf.mxu0
      %v923 = vadd.f32 0.0, %v922
      %v924 = vpop.f32.mrf.mxu0
      %v925 = vadd.f32 0.0, %v924
      %926 = vmatmul.bf16.gmra.mxu0 %v786
      %v927 = vpop.f32.mrf.mxu0
      %v928 = vadd.f32 0.0, %v927
      %v929 = vpop.f32.mrf.mxu0
      %v930 = vadd.f32 0.0, %v929
      %931 = vmatmul.bf16.gmra.mxu0 %v787
      %v932 = vpop.f32.mrf.mxu0
      %v933 = vadd.f32 0.0, %v932
      %v934 = vpop.f32.mrf.mxu0
      %v935 = vadd.f32 0.0, %v934
      %936 = vmatmul.bf16.gmra.mxu0 %v788
      %v937 = vpop.f32.mrf.mxu0
      %v938 = vadd.f32 0.0, %v937
      %v939 = vpop.f32.mrf.mxu0
      %v940 = vadd.f32 0.0, %v939
      %941 = vdwg.mxu0
      %v974 = vunpack.c.l.b16 %v273
      %v975 = vunpack.c.l.b16 %v274
      %v976 = vunpack.c.l.b16 %v275
      %v977 = vunpack.c.l.b16 %v276
      %v978 = vunpack.c.l.b16 %v277
      %v979 = vunpack.c.l.b16 %v278
      %v980 = vunpack.c.l.b16 %v279
      %v981 = vunpack.c.l.b16 %v280
      %v982 = vunpack.c.l.b16 %v281
      %v983 = vunpack.c.l.b16 %v282
      %v984 = vunpack.c.l.b16 %v283
      %v985 = vunpack.c.l.b16 %v284
      %v986 = vunpack.c.l.b16 %v285
      %v987 = vunpack.c.l.b16 %v286
      %v988 = vunpack.c.l.b16 %v287
      %v989 = vunpack.c.l.b16 %v288
      %v990 = vunpack.c.l.b16 %v289
      %v991 = vunpack.c.l.b16 %v290
      %v992 = vunpack.c.l.b16 %v291
      %v993 = vunpack.c.l.b16 %v292
      %v994 = vunpack.c.l.b16 %v293
      %v995 = vunpack.c.l.b16 %v294
      %v996 = vunpack.c.l.b16 %v295
      %v997 = vunpack.c.l.b16 %v296
      %v998 = vunpack.c.l.b16 %v297
      %v999 = vunpack.c.l.b16 %v298
      %v1000 = vunpack.c.l.b16 %v299
      %v1001 = vunpack.c.l.b16 %v300
      %v1002 = vunpack.c.l.b16 %v301
      %v1003 = vunpack.c.l.b16 %v302
      %v1004 = vunpack.c.l.b16 %v303
      %v1005 = vunpack.c.l.b16 %v304
      %v1006 = vpack.c.b16 %v975, %v974
      %v1007 = vpack.c.b16 %v977, %v976
      %v1008 = vpack.c.b16 %v979, %v978
      %v1009 = vpack.c.b16 %v981, %v980
      %v1010 = vpack.c.b16 %v983, %v982
      %v1011 = vpack.c.b16 %v985, %v984
      %v1012 = vpack.c.b16 %v987, %v986
      %v1013 = vpack.c.b16 %v989, %v988
      %v1014 = vpack.c.b16 %v991, %v990
      %v1015 = vpack.c.b16 %v993, %v992
      %v1016 = vpack.c.b16 %v995, %v994
      %v1017 = vpack.c.b16 %v997, %v996
      %v1018 = vpack.c.b16 %v999, %v998
      %v1019 = vpack.c.b16 %v1001, %v1000
      %v1020 = vpack.c.b16 %v1003, %v1002
      %v1021 = vpack.c.b16 %v1005, %v1004
      %v1054 = vunpack.c.l.b16 %v305
      %v1055 = vunpack.c.l.b16 %v306
      %v1056 = vunpack.c.l.b16 %v307
      %v1057 = vunpack.c.l.b16 %v308
      %v1058 = vunpack.c.l.b16 %v309
      %v1059 = vunpack.c.l.b16 %v310
      %v1060 = vunpack.c.l.b16 %v311
      %v1061 = vunpack.c.l.b16 %v312
      %v1062 = vunpack.c.l.b16 %v313
      %v1063 = vunpack.c.l.b16 %v314
      %v1064 = vunpack.c.l.b16 %v315
      %v1065 = vunpack.c.l.b16 %v316
      %v1066 = vunpack.c.l.b16 %v317
      %v1067 = vunpack.c.l.b16 %v318
      %v1068 = vunpack.c.l.b16 %v319
      %v1069 = vunpack.c.l.b16 %v320
      %v1070 = vpack.c.b16 %v1055, %v1054
      %v1071 = vpack.c.b16 %v1057, %v1056
      %v1072 = vpack.c.b16 %v1059, %v1058
      %v1073 = vpack.c.b16 %v1061, %v1060
      %v1074 = vpack.c.b16 %v1063, %v1062
      %v1075 = vpack.c.b16 %v1065, %v1064
      %v1076 = vpack.c.b16 %v1067, %v1066
      %v1077 = vpack.c.b16 %v1069, %v1068
      %1086 = vmatpush.bf16.msra.mxu0 %v1077
      %1087 = vmatpush.bf16.msra.mxu0 %v1076
      %1088 = vmatpush.bf16.msra.mxu0 %v1075
      %1089 = vmatpush.bf16.msra.mxu0 %v1074
      %1090 = vmatpush.bf16.msra.mxu0 %v1073
      %1091 = vmatpush.bf16.msra.mxu0 %v1072
      %1092 = vmatpush.bf16.msra.mxu0 %v1071
      %1093 = vmatpush.bf16.msra.mxu0 %v1070
      %1094 = vmatmul.bf16.gmra.mxu0 %v1006
      %v1095 = vpop.f32.mrf.mxu0
      %v1096 = vadd.f32 %v863, %v1095
      %v1097 = vpop.f32.mrf.mxu0
      %v1098 = vadd.f32 %v865, %v1097
      %1099 = vmatmul.bf16.gmra.mxu0 %v1007
      %v1100 = vpop.f32.mrf.mxu0
      %v1101 = vadd.f32 %v868, %v1100
      %v1102 = vpop.f32.mrf.mxu0
      %v1103 = vadd.f32 %v870, %v1102
      %1104 = vmatmul.bf16.gmra.mxu0 %v1008
      %v1105 = vpop.f32.mrf.mxu0
      %v1106 = vadd.f32 %v873, %v1105
      %v1107 = vpop.f32.mrf.mxu0
      %v1108 = vadd.f32 %v875, %v1107
      %1109 = vmatmul.bf16.gmra.mxu0 %v1009
      %v1110 = vpop.f32.mrf.mxu0
      %v1111 = vadd.f32 %v878, %v1110
      %v1112 = vpop.f32.mrf.mxu0
      %v1113 = vadd.f32 %v880, %v1112
      %1114 = vmatmul.bf16.gmra.mxu0 %v1010
      %v1115 = vpop.f32.mrf.mxu0
      %v1116 = vadd.f32 %v883, %v1115
      %v1117 = vpop.f32.mrf.mxu0
      %v1118 = vadd.f32 %v885, %v1117
      %1119 = vmatmul.bf16.gmra.mxu0 %v1011
      %v1120 = vpop.f32.mrf.mxu0
      %v1121 = vadd.f32 %v888, %v1120
      %v1122 = vpop.f32.mrf.mxu0
      %v1123 = vadd.f32 %v890, %v1122
      %1124 = vmatmul.bf16.gmra.mxu0 %v1012
      %v1125 = vpop.f32.mrf.mxu0
      %v1126 = vadd.f32 %v893, %v1125
      %v1127 = vpop.f32.mrf.mxu0
      %v1128 = vadd.f32 %v895, %v1127
      %1129 = vmatmul.bf16.gmra.mxu0 %v1013
      %v1130 = vpop.f32.mrf.mxu0
      %v1131 = vadd.f32 %v898, %v1130
      %v1132 = vpop.f32.mrf.mxu0
      %v1133 = vadd.f32 %v900, %v1132
      %1134 = vmatmul.bf16.gmra.mxu0 %v1014
      %v1135 = vpop.f32.mrf.mxu0
      %v1136 = vadd.f32 %v903, %v1135
      %v1137 = vpop.f32.mrf.mxu0
      %v1138 = vadd.f32 %v905, %v1137
      %1139 = vmatmul.bf16.gmra.mxu0 %v1015
      %v1140 = vpop.f32.mrf.mxu0
      %v1141 = vadd.f32 %v908, %v1140
      %v1142 = vpop.f32.mrf.mxu0
      %v1143 = vadd.f32 %v910, %v1142
      %1144 = vmatmul.bf16.gmra.mxu0 %v1016
      %v1145 = vpop.f32.mrf.mxu0
      %v1146 = vadd.f32 %v913, %v1145
      %v1147 = vpop.f32.mrf.mxu0
      %v1148 = vadd.f32 %v915, %v1147
      %1149 = vmatmul.bf16.gmra.mxu0 %v1017
      %v1150 = vpop.f32.mrf.mxu0
      %v1151 = vadd.f32 %v918, %v1150
      %v1152 = vpop.f32.mrf.mxu0
      %v1153 = vadd.f32 %v920, %v1152
      %1154 = vmatmul.bf16.gmra.mxu0 %v1018
      %v1155 = vpop.f32.mrf.mxu0
      %v1156 = vadd.f32 %v923, %v1155
      %v1157 = vpop.f32.mrf.mxu0
      %v1158 = vadd.f32 %v925, %v1157
      %1159 = vmatmul.bf16.gmra.mxu0 %v1019
      %v1160 = vpop.f32.mrf.mxu0
      %v1161 = vadd.f32 %v928, %v1160
      %v1162 = vpop.f32.mrf.mxu0
      %v1163 = vadd.f32 %v930, %v1162
      %1164 = vmatmul.bf16.gmra.mxu0 %v1020
      %v1165 = vpop.f32.mrf.mxu0
      %v1166 = vadd.f32 %v933, %v1165
      %v1167 = vpop.f32.mrf.mxu0
      %v1168 = vadd.f32 %v935, %v1167
      %1169 = vmatmul.bf16.gmra.mxu0 %v1021
      %v1170 = vpop.f32.mrf.mxu0
      %v1171 = vadd.f32 %v938, %v1170
      %v1172 = vpop.f32.mrf.mxu0
      %v1173 = vadd.f32 %v940, %v1172
      %1174 = vdwg.mxu0
      %v1175 = vld [vmem:[%s261] sm:$0xe]
      %v1176 = vld [vmem:[%s261 + $0xc] sm:$0xe]
      %v1177 = vld [vmem:[%s261 + $0x18] sm:$0xe]
      %v1178 = vld [vmem:[%s261 + $0x24] sm:$0xe]
      %v1179 = vld [vmem:[%s261 + $0x30] sm:$0xe]
      %v1180 = vld [vmem:[%s261 + $0x3c] sm:$0xe]
      %v1181 = vld [vmem:[%s261 + $0x48] sm:$0xe]
      %v1182 = vld [vmem:[%s261 + $0x54] sm:$0xe]
      %v1183 = vld [vmem:[%s261 + $0x60] sm:$0xe]
      %v1184 = vld [vmem:[%s261 + $0x6c] sm:$0xe]
      %v1185 = vld [vmem:[%s261 + $0x78] sm:$0xe]
      %v1186 = vld [vmem:[%s261 + $0x84] sm:$0xe]
      %v1187 = vld [vmem:[%s261 + $0x90] sm:$0xe]
      %v1188 = vld [vmem:[%s261 + $0x9c] sm:$0xe]
      %v1189 = vld [vmem:[%s261 + $0xa8] sm:$0xe]
      %v1190 = vld [vmem:[%s261 + $0xb4] sm:$0xe]
      %vm1223 = vcmask 1042432
      %vm1224 = vcmask 1046532
      %vm1225 = vmor %vm1223, %vm1224
      %v1226 = vrot.slane %v1175, 5
      %v1227 = vrot.slane %v1226, 4
      %v1228 = vrot.slane %v274, 5
      %v1229 = vsel %vm1225, %v1227, %v1228
      %v1230 = vrot.slane %v1228, 4
      %v1231 = vrot.slane %v321, 5
      %v1232 = vsel %vm1225, %v1230, %v1231
      %v1233 = vrot.slane %v1176, 5
      %v1234 = vrot.slane %v1233, 4
      %v1235 = vrot.slane %v276, 5
      %v1236 = vsel %vm1225, %v1234, %v1235
      %v1237 = vrot.slane %v1235, 4
      %v1238 = vrot.slane %v322, 5
      %v1239 = vsel %vm1225, %v1237, %v1238
      %v1240 = vrot.slane %v1177, 5
      %v1241 = vrot.slane %v1240, 4
      %v1242 = vrot.slane %v278, 5
      %v1243 = vsel %vm1225, %v1241, %v1242
      %v1244 = vrot.slane %v1242, 4
      %v1245 = vrot.slane %v323, 5
      %v1246 = vsel %vm1225, %v1244, %v1245
      %v1247 = vrot.slane %v1178, 5
      %v1248 = vrot.slane %v1247, 4
      %v1249 = vrot.slane %v280, 5
      %v1250 = vsel %vm1225, %v1248, %v1249
      %v1251 = vrot.slane %v1249, 4
      %v1252 = vrot.slane %v324, 5
      %v1253 = vsel %vm1225, %v1251, %v1252
      %v1254 = vrot.slane %v1179, 5
      %v1255 = vrot.slane %v1254, 4
      %v1256 = vrot.slane %v282, 5
      %v1257 = vsel %vm1225, %v1255, %v1256
      %v1258 = vrot.slane %v1256, 4
      %v1259 = vrot.slane %v325, 5
      %v1260 = vsel %vm1225, %v1258, %v1259
      %v1261 = vrot.slane %v1180, 5
      %v1262 = vrot.slane %v1261, 4
      %v1263 = vrot.slane %v284, 5
      %v1264 = vsel %vm1225, %v1262, %v1263
      %v1265 = vrot.slane %v1263, 4
      %v1266 = vrot.slane %v326, 5
      %v1267 = vsel %vm1225, %v1265, %v1266
      %v1268 = vrot.slane %v1181, 5
      %v1269 = vrot.slane %v1268, 4
      %v1270 = vrot.slane %v286, 5
      %v1271 = vsel %vm1225, %v1269, %v1270
      %v1272 = vrot.slane %v1270, 4
      %v1273 = vrot.slane %v327, 5
      %v1274 = vsel %vm1225, %v1272, %v1273
      %v1275 = vrot.slane %v1182, 5
      %v1276 = vrot.slane %v1275, 4
      %v1277 = vrot.slane %v288, 5
      %v1278 = vsel %vm1225, %v1276, %v1277
      %v1279 = vrot.slane %v1277, 4
      %v1280 = vrot.slane %v328, 5
      %v1281 = vsel %vm1225, %v1279, %v1280
      %v1282 = vrot.slane %v1183, 5
      %v1283 = vrot.slane %v1282, 4
      %v1284 = vrot.slane %v290, 5
      %v1285 = vsel %vm1225, %v1283, %v1284
      %v1286 = vrot.slane %v1284, 4
      %v1287 = vrot.slane %v329, 5
      %v1288 = vsel %vm1225, %v1286, %v1287
      %v1289 = vrot.slane %v1184, 5
      %v1290 = vrot.slane %v1289, 4
      %v1291 = vrot.slane %v292, 5
      %v1292 = vsel %vm1225, %v1290, %v1291
      %v1293 = vrot.slane %v1291, 4
      %v1294 = vrot.slane %v330, 5
      %v1295 = vsel %vm1225, %v1293, %v1294
      %v1296 = vrot.slane %v1185, 5
      %v1297 = vrot.slane %v1296, 4
      %v1298 = vrot.slane %v294, 5
      %v1299 = vsel %vm1225, %v1297, %v1298
      %v1300 = vrot.slane %v1298, 4
      %v1301 = vrot.slane %v331, 5
      %v1302 = vsel %vm1225, %v1300, %v1301
      %v1303 = vrot.slane %v1186, 5
      %v1304 = vrot.slane %v1303, 4
      %v1305 = vrot.slane %v296, 5
      %v1306 = vsel %vm1225, %v1304, %v1305
      %v1307 = vrot.slane %v1305, 4
      %v1308 = vrot.slane %v332, 5
      %v1309 = vsel %vm1225, %v1307, %v1308
      %v1310 = vrot.slane %v1187, 5
      %v1311 = vrot.slane %v1310, 4
      %v1312 = vrot.slane %v298, 5
      %v1313 = vsel %vm1225, %v1311, %v1312
      %v1314 = vrot.slane %v1312, 4
      %v1315 = vrot.slane %v333, 5
      %v1316 = vsel %vm1225, %v1314, %v1315
      %v1317 = vrot.slane %v1188, 5
      %v1318 = vrot.slane %v1317, 4
      %v1319 = vrot.slane %v300, 5
      %v1320 = vsel %vm1225, %v1318, %v1319
      %v1321 = vrot.slane %v1319, 4
      %v1322 = vrot.slane %v334, 5
      %v1323 = vsel %vm1225, %v1321, %v1322
      %v1324 = vrot.slane %v1189, 5
      %v1325 = vrot.slane %v1324, 4
      %v1326 = vrot.slane %v302, 5
      %v1327 = vsel %vm1225, %v1325, %v1326
      %v1328 = vrot.slane %v1326, 4
      %v1329 = vrot.slane %v335, 5
      %v1330 = vsel %vm1225, %v1328, %v1329
      %v1331 = vrot.slane %v1190, 5
      %v1332 = vrot.slane %v1331, 4
      %v1333 = vrot.slane %v304, 5
      %v1334 = vsel %vm1225, %v1332, %v1333
      %v1335 = vrot.slane %v1333, 4
      %v1336 = vrot.slane %v336, 5
      %v1337 = vsel %vm1225, %v1335, %v1336
      %s1338 = scalar_lea.vmem %s2, 128
      %v1339 = vld [vmem:[%s1338] sm:$0xf]
      %v1340 = vld [vmem:[%s1338 + $0x4] sm:$0xf]
      %v1341 = vld [vmem:[%s1338 + $0x8] sm:$0xf]
      %v1342 = vld [vmem:[%s1338 + $0xc] sm:$0xf]
      %v1343 = vld [vmem:[%s1338 + $0x10] sm:$0xf]
      %v1344 = vld [vmem:[%s1338 + $0x14] sm:$0xf]
      %v1345 = vld [vmem:[%s1338 + $0x18] sm:$0xf]
      %v1346 = vld [vmem:[%s1338 + $0x1c] sm:$0xf]
      %v1347 = vld [vmem:[%s1338 + $0x20] sm:$0xf]
      %v1348 = vld [vmem:[%s1338 + $0x24] sm:$0xf]
      %v1349 = vld [vmem:[%s1338 + $0x28] sm:$0xf]
      %v1350 = vld [vmem:[%s1338 + $0x2c] sm:$0xf]
      %v1351 = vld [vmem:[%s1338 + $0x30] sm:$0xf]
      %v1352 = vld [vmem:[%s1338 + $0x34] sm:$0xf]
      %v1353 = vld [vmem:[%s1338 + $0x38] sm:$0xf]
      %v1354 = vld [vmem:[%s1338 + $0x3c] sm:$0xf]
      %v1355 = vunpack.c.l.b16 %v1229
      %v1356 = vunpack.c.l.b16 %v1232
      %v1357 = vunpack.c.l.b16 %v1236
      %v1358 = vunpack.c.l.b16 %v1239
      %v1359 = vunpack.c.l.b16 %v1243
      %v1360 = vunpack.c.l.b16 %v1246
      %v1361 = vunpack.c.l.b16 %v1250
      %v1362 = vunpack.c.l.b16 %v1253
      %v1363 = vunpack.c.l.b16 %v1257
      %v1364 = vunpack.c.l.b16 %v1260
      %v1365 = vunpack.c.l.b16 %v1264
      %v1366 = vunpack.c.l.b16 %v1267
      %v1367 = vunpack.c.l.b16 %v1271
      %v1368 = vunpack.c.l.b16 %v1274
      %v1369 = vunpack.c.l.b16 %v1278
      %v1370 = vunpack.c.l.b16 %v1281
      %v1371 = vunpack.c.l.b16 %v1285
      %v1372 = vunpack.c.l.b16 %v1288
      %v1373 = vunpack.c.l.b16 %v1292
      %v1374 = vunpack.c.l.b16 %v1295
      %v1375 = vunpack.c.l.b16 %v1299
      %v1376 = vunpack.c.l.b16 %v1302
      %v1377 = vunpack.c.l.b16 %v1306
      %v1378 = vunpack.c.l.b16 %v1309
      %v1379 = vunpack.c.l.b16 %v1313
      %v1380 = vunpack.c.l.b16 %v1316
      %v1381 = vunpack.c.l.b16 %v1320
      %v1382 = vunpack.c.l.b16 %v1323
      %v1383 = vunpack.c.l.b16 %v1327
      %v1384 = vunpack.c.l.b16 %v1330
      %v1385 = vunpack.c.l.b16 %v1334
      %v1386 = vunpack.c.l.b16 %v1337
      %v1387 = vpack.c.b16 %v1356, %v1355
      %v1388 = vpack.c.b16 %v1358, %v1357
      %v1389 = vpack.c.b16 %v1360, %v1359
      %v1390 = vpack.c.b16 %v1362, %v1361
      %v1391 = vpack.c.b16 %v1364, %v1363
      %v1392 = vpack.c.b16 %v1366, %v1365
      %v1393 = vpack.c.b16 %v1368, %v1367
      %v1394 = vpack.c.b16 %v1370, %v1369
      %v1395 = vpack.c.b16 %v1372, %v1371
      %v1396 = vpack.c.b16 %v1374, %v1373
      %v1397 = vpack.c.b16 %v1376, %v1375
      %v1398 = vpack.c.b16 %v1378, %v1377
      %v1399 = vpack.c.b16 %v1380, %v1379
      %v1400 = vpack.c.b16 %v1382, %v1381
      %v1401 = vpack.c.b16 %v1384, %v1383
      %v1402 = vpack.c.b16 %v1386, %v1385
      %v1435 = vunpack.c.l.b16 %v1339
      %v1436 = vunpack.c.l.b16 %v1340
      %v1437 = vunpack.c.l.b16 %v1341
      %v1438 = vunpack.c.l.b16 %v1342
      %v1439 = vunpack.c.l.b16 %v1343
      %v1440 = vunpack.c.l.b16 %v1344
      %v1441 = vunpack.c.l.b16 %v1345
      %v1442 = vunpack.c.l.b16 %v1346
      %v1443 = vunpack.c.l.b16 %v1347
      %v1444 = vunpack.c.l.b16 %v1348
      %v1445 = vunpack.c.l.b16 %v1349
      %v1446 = vunpack.c.l.b16 %v1350
      %v1447 = vunpack.c.l.b16 %v1351
      %v1448 = vunpack.c.l.b16 %v1352
      %v1449 = vunpack.c.l.b16 %v1353
      %v1450 = vunpack.c.l.b16 %v1354
      %v1451 = vpack.c.b16 %v1436, %v1435
      %v1452 = vpack.c.b16 %v1438, %v1437
      %v1453 = vpack.c.b16 %v1440, %v1439
      %v1454 = vpack.c.b16 %v1442, %v1441
      %v1455 = vpack.c.b16 %v1444, %v1443
      %v1456 = vpack.c.b16 %v1446, %v1445
      %v1457 = vpack.c.b16 %v1448, %v1447
      %v1458 = vpack.c.b16 %v1450, %v1449
      %1467 = vmatpush.bf16.msra.mxu0 %v1458
      %1468 = vmatpush.bf16.msra.mxu0 %v1457
      %1469 = vmatpush.bf16.msra.mxu0 %v1456
      %1470 = vmatpush.bf16.msra.mxu0 %v1455
      %1471 = vmatpush.bf16.msra.mxu0 %v1454
      %1472 = vmatpush.bf16.msra.mxu0 %v1453
      %1473 = vmatpush.bf16.msra.mxu0 %v1452
      %1474 = vmatpush.bf16.msra.mxu0 %v1451
      %1475 = vmatmul.bf16.gmra.mxu0 %v1387
      %v1476 = vpop.f32.mrf.mxu0
      %v1477 = vadd.f32 0.0, %v1476
      %v1478 = vpop.f32.mrf.mxu0
      %v1479 = vadd.f32 0.0, %v1478
      %1480 = vmatmul.bf16.gmra.mxu0 %v1388
      %v1481 = vpop.f32.mrf.mxu0
      %v1482 = vadd.f32 0.0, %v1481
      %v1483 = vpop.f32.mrf.mxu0
      %v1484 = vadd.f32 0.0, %v1483
      %1485 = vmatmul.bf16.gmra.mxu0 %v1389
      %v1486 = vpop.f32.mrf.mxu0
      %v1487 = vadd.f32 0.0, %v1486
      %v1488 = vpop.f32.mrf.mxu0
      %v1489 = vadd.f32 0.0, %v1488
      %1490 = vmatmul.bf16.gmra.mxu0 %v1390
      %v1491 = vpop.f32.mrf.mxu0
      %v1492 = vadd.f32 0.0, %v1491
      %v1493 = vpop.f32.mrf.mxu0
      %v1494 = vadd.f32 0.0, %v1493
      %1495 = vmatmul.bf16.gmra.mxu0 %v1391
      %v1496 = vpop.f32.mrf.mxu0
      %v1497 = vadd.f32 0.0, %v1496
      %v1498 = vpop.f32.mrf.mxu0
      %v1499 = vadd.f32 0.0, %v1498
      %1500 = vmatmul.bf16.gmra.mxu0 %v1392
      %v1501 = vpop.f32.mrf.mxu0
      %v1502 = vadd.f32 0.0, %v1501
      %v1503 = vpop.f32.mrf.mxu0
      %v1504 = vadd.f32 0.0, %v1503
      %1505 = vmatmul.bf16.gmra.mxu0 %v1393
      %v1506 = vpop.f32.mrf.mxu0
      %v1507 = vadd.f32 0.0, %v1506
      %v1508 = vpop.f32.mrf.mxu0
      %v1509 = vadd.f32 0.0, %v1508
      %1510 = vmatmul.bf16.gmra.mxu0 %v1394
      %v1511 = vpop.f32.mrf.mxu0
      %v1512 = vadd.f32 0.0, %v1511
      %v1513 = vpop.f32.mrf.mxu0
      %v1514 = vadd.f32 0.0, %v1513
      %1515 = vmatmul.bf16.gmra.mxu0 %v1395
      %v1516 = vpop.f32.mrf.mxu0
      %v1517 = vadd.f32 0.0, %v1516
      %v1518 = vpop.f32.mrf.mxu0
      %v1519 = vadd.f32 0.0, %v1518
      %1520 = vmatmul.bf16.gmra.mxu0 %v1396
      %v1521 = vpop.f32.mrf.mxu0
      %v1522 = vadd.f32 0.0, %v1521
      %v1523 = vpop.f32.mrf.mxu0
      %v1524 = vadd.f32 0.0, %v1523
      %1525 = vmatmul.bf16.gmra.mxu0 %v1397
      %v1526 = vpop.f32.mrf.mxu0
      %v1527 = vadd.f32 0.0, %v1526
      %v1528 = vpop.f32.mrf.mxu0
      %v1529 = vadd.f32 0.0, %v1528
      %1530 = vmatmul.bf16.gmra.mxu0 %v1398
      %v1531 = vpop.f32.mrf.mxu0
      %v1532 = vadd.f32 0.0, %v1531
      %v1533 = vpop.f32.mrf.mxu0
      %v1534 = vadd.f32 0.0, %v1533
      %1535 = vmatmul.bf16.gmra.mxu0 %v1399
      %v1536 = vpop.f32.mrf.mxu0
      %v1537 = vadd.f32 0.0, %v1536
      %v1538 = vpop.f32.mrf.mxu0
      %v1539 = vadd.f32 0.0, %v1538
      %1540 = vmatmul.bf16.gmra.mxu0 %v1400
      %v1541 = vpop.f32.mrf.mxu0
      %v1542 = vadd.f32 0.0, %v1541
      %v1543 = vpop.f32.mrf.mxu0
      %v1544 = vadd.f32 0.0, %v1543
      %1545 = vmatmul.bf16.gmra.mxu0 %v1401
      %v1546 = vpop.f32.mrf.mxu0
      %v1547 = vadd.f32 0.0, %v1546
      %v1548 = vpop.f32.mrf.mxu0
      %v1549 = vadd.f32 0.0, %v1548
      %1550 = vmatmul.bf16.gmra.mxu0 %v1402
      %v1551 = vpop.f32.mrf.mxu0
      %v1552 = vadd.f32 0.0, %v1551
      %v1553 = vpop.f32.mrf.mxu0
      %v1554 = vadd.f32 0.0, %v1553
      %1555 = vdwg.mxu0
      %v1556 = vadd.f32 %v1096, %v1477
      %v1557 = vadd.f32 %v1098, %v1479
      %v1558 = vadd.f32 %v1101, %v1482
      %v1559 = vadd.f32 %v1103, %v1484
      %v1560 = vadd.f32 %v1106, %v1487
      %v1561 = vadd.f32 %v1108, %v1489
      %v1562 = vadd.f32 %v1111, %v1492
      %v1563 = vadd.f32 %v1113, %v1494
      %v1564 = vadd.f32 %v1116, %v1497
      %v1565 = vadd.f32 %v1118, %v1499
      %v1566 = vadd.f32 %v1121, %v1502
      %v1567 = vadd.f32 %v1123, %v1504
      %v1568 = vadd.f32 %v1126, %v1507
      %v1569 = vadd.f32 %v1128, %v1509
      %v1570 = vadd.f32 %v1131, %v1512
      %v1571 = vadd.f32 %v1133, %v1514
      %v1572 = vadd.f32 %v1136, %v1517
      %v1573 = vadd.f32 %v1138, %v1519
      %v1574 = vadd.f32 %v1141, %v1522
      %v1575 = vadd.f32 %v1143, %v1524
      %v1576 = vadd.f32 %v1146, %v1527
      %v1577 = vadd.f32 %v1148, %v1529
      %v1578 = vadd.f32 %v1151, %v1532
      %v1579 = vadd.f32 %v1153, %v1534
      %v1580 = vadd.f32 %v1156, %v1537
      %v1581 = vadd.f32 %v1158, %v1539
      %v1582 = vadd.f32 %v1161, %v1542
      %v1583 = vadd.f32 %v1163, %v1544
      %v1584 = vadd.f32 %v1166, %v1547
      %v1585 = vadd.f32 %v1168, %v1549
      %v1586 = vadd.f32 %v1171, %v1552
      %v1587 = vadd.f32 %v1173, %v1554
      %s1588 = scalar_lea.vmem %s261, 12
      %v1589 = vld [vmem:[%s1588] sm:$0xf]
      %v1590 = vld [vmem:[%s1588 + $0x4] sm:$0xf]
      %v1591 = vld [vmem:[%s1588 + $0xc] sm:$0xf]
      %v1592 = vld [vmem:[%s1588 + $0x10] sm:$0xf]
      %v1593 = vld [vmem:[%s1588 + $0x18] sm:$0xf]
      %v1594 = vld [vmem:[%s1588 + $0x1c] sm:$0xf]
      %v1595 = vld [vmem:[%s1588 + $0x24] sm:$0xf]
      %v1596 = vld [vmem:[%s1588 + $0x28] sm:$0xf]
      %v1597 = vld [vmem:[%s1588 + $0x30] sm:$0xf]
      %v1598 = vld [vmem:[%s1588 + $0x34] sm:$0xf]
      %v1599 = vld [vmem:[%s1588 + $0x3c] sm:$0xf]
      %v1600 = vld [vmem:[%s1588 + $0x40] sm:$0xf]
      %v1601 = vld [vmem:[%s1588 + $0x48] sm:$0xf]
      %v1602 = vld [vmem:[%s1588 + $0x4c] sm:$0xf]
      %v1603 = vld [vmem:[%s1588 + $0x54] sm:$0xf]
      %v1604 = vld [vmem:[%s1588 + $0x58] sm:$0xf]
      %v1605 = vld [vmem:[%s1588 + $0x60] sm:$0xf]
      %v1606 = vld [vmem:[%s1588 + $0x64] sm:$0xf]
      %v1607 = vld [vmem:[%s1588 + $0x6c] sm:$0xf]
      %v1608 = vld [vmem:[%s1588 + $0x70] sm:$0xf]
      %v1609 = vld [vmem:[%s1588 + $0x78] sm:$0xf]
      %v1610 = vld [vmem:[%s1588 + $0x7c] sm:$0xf]
      %v1611 = vld [vmem:[%s1588 + $0x84] sm:$0xf]
      %v1612 = vld [vmem:[%s1588 + $0x88] sm:$0xf]
      %v1613 = vld [vmem:[%s1588 + $0x90] sm:$0xf]
      %v1614 = vld [vmem:[%s1588 + $0x94] sm:$0xf]
      %v1615 = vld [vmem:[%s1588 + $0x9c] sm:$0xf]
      %v1616 = vld [vmem:[%s1588 + $0xa0] sm:$0xf]
      %v1617 = vld [vmem:[%s1588 + $0xa8] sm:$0xf]
      %v1618 = vld [vmem:[%s1588 + $0xac] sm:$0xf]
      %v1619 = vld [vmem:[%s1588 + $0xb4] sm:$0xf]
      %v1620 = vld [vmem:[%s1588 + $0xb8] sm:$0xf]
      %s1621 = scalar_lea.vmem %s2, 192
      %v1622 = vld [vmem:[%s1621] sm:$0xf]
      %v1623 = vld [vmem:[%s1621 + $0x4] sm:$0xf]
      %v1624 = vld [vmem:[%s1621 + $0x8] sm:$0xf]
      %v1625 = vld [vmem:[%s1621 + $0xc] sm:$0xf]
      %v1626 = vld [vmem:[%s1621 + $0x10] sm:$0xf]
      %v1627 = vld [vmem:[%s1621 + $0x14] sm:$0xf]
      %v1628 = vld [vmem:[%s1621 + $0x18] sm:$0xf]
      %v1629 = vld [vmem:[%s1621 + $0x1c] sm:$0xf]
      %v1630 = vld [vmem:[%s1621 + $0x20] sm:$0xf]
      %v1631 = vld [vmem:[%s1621 + $0x24] sm:$0xf]
      %v1632 = vld [vmem:[%s1621 + $0x28] sm:$0xf]
      %v1633 = vld [vmem:[%s1621 + $0x2c] sm:$0xf]
      %v1634 = vld [vmem:[%s1621 + $0x30] sm:$0xf]
      %v1635 = vld [vmem:[%s1621 + $0x34] sm:$0xf]
      %v1636 = vld [vmem:[%s1621 + $0x38] sm:$0xf]
      %v1637 = vld [vmem:[%s1621 + $0x3c] sm:$0xf]
      %v1670 = vunpack.c.l.b16 %v1589
      %v1671 = vunpack.c.l.b16 %v1590
      %v1672 = vunpack.c.l.b16 %v1591
      %v1673 = vunpack.c.l.b16 %v1592
      %v1674 = vunpack.c.l.b16 %v1593
      %v1675 = vunpack.c.l.b16 %v1594
      %v1676 = vunpack.c.l.b16 %v1595
      %v1677 = vunpack.c.l.b16 %v1596
      %v1678 = vunpack.c.l.b16 %v1597
      %v1679 = vunpack.c.l.b16 %v1598
      %v1680 = vunpack.c.l.b16 %v1599
      %v1681 = vunpack.c.l.b16 %v1600
      %v1682 = vunpack.c.l.b16 %v1601
      %v1683 = vunpack.c.l.b16 %v1602
      %v1684 = vunpack.c.l.b16 %v1603
      %v1685 = vunpack.c.l.b16 %v1604
      %v1686 = vunpack.c.l.b16 %v1605
      %v1687 = vunpack.c.l.b16 %v1606
      %v1688 = vunpack.c.l.b16 %v1607
      %v1689 = vunpack.c.l.b16 %v1608
      %v1690 = vunpack.c.l.b16 %v1609
      %v1691 = vunpack.c.l.b16 %v1610
      %v1692 = vunpack.c.l.b16 %v1611
      %v1693 = vunpack.c.l.b16 %v1612
      %v1694 = vunpack.c.l.b16 %v1613
      %v1695 = vunpack.c.l.b16 %v1614
      %v1696 = vunpack.c.l.b16 %v1615
      %v1697 = vunpack.c.l.b16 %v1616
      %v1698 = vunpack.c.l.b16 %v1617
      %v1699 = vunpack.c.l.b16 %v1618
      %v1700 = vunpack.c.l.b16 %v1619
      %v1701 = vunpack.c.l.b16 %v1620
      %v1702 = vpack.c.b16 %v1671, %v1670
      %v1703 = vpack.c.b16 %v1673, %v1672
      %v1704 = vpack.c.b16 %v1675, %v1674
      %v1705 = vpack.c.b16 %v1677, %v1676
      %v1706 = vpack.c.b16 %v1679, %v1678
      %v1707 = vpack.c.b16 %v1681, %v1680
      %v1708 = vpack.c.b16 %v1683, %v1682
      %v1709 = vpack.c.b16 %v1685, %v1684
      %v1710 = vpack.c.b16 %v1687, %v1686
      %v1711 = vpack.c.b16 %v1689, %v1688
      %v1712 = vpack.c.b16 %v1691, %v1690
      %v1713 = vpack.c.b16 %v1693, %v1692
      %v1714 = vpack.c.b16 %v1695, %v1694
      %v1715 = vpack.c.b16 %v1697, %v1696
      %v1716 = vpack.c.b16 %v1699, %v1698
      %v1717 = vpack.c.b16 %v1701, %v1700
      %v1750 = vunpack.c.l.b16 %v1622
      %v1751 = vunpack.c.l.b16 %v1623
      %v1752 = vunpack.c.l.b16 %v1624
      %v1753 = vunpack.c.l.b16 %v1625
      %v1754 = vunpack.c.l.b16 %v1626
      %v1755 = vunpack.c.l.b16 %v1627
      %v1756 = vunpack.c.l.b16 %v1628
      %v1757 = vunpack.c.l.b16 %v1629
      %v1758 = vunpack.c.l.b16 %v1630
      %v1759 = vunpack.c.l.b16 %v1631
      %v1760 = vunpack.c.l.b16 %v1632
      %v1761 = vunpack.c.l.b16 %v1633
      %v1762 = vunpack.c.l.b16 %v1634
      %v1763 = vunpack.c.l.b16 %v1635
      %v1764 = vunpack.c.l.b16 %v1636
      %v1765 = vunpack.c.l.b16 %v1637
      %v1766 = vpack.c.b16 %v1751, %v1750
      %v1767 = vpack.c.b16 %v1753, %v1752
      %v1768 = vpack.c.b16 %v1755, %v1754
      %v1769 = vpack.c.b16 %v1757, %v1756
      %v1770 = vpack.c.b16 %v1759, %v1758
      %v1771 = vpack.c.b16 %v1761, %v1760
      %v1772 = vpack.c.b16 %v1763, %v1762
      %v1773 = vpack.c.b16 %v1765, %v1764
      %1782 = vmatpush.bf16.msra.mxu0 %v1773
      %1783 = vmatpush.bf16.msra.mxu0 %v1772
      %1784 = vmatpush.bf16.msra.mxu0 %v1771
      %1785 = vmatpush.bf16.msra.mxu0 %v1770
      %1786 = vmatpush.bf16.msra.mxu0 %v1769
      %1787 = vmatpush.bf16.msra.mxu0 %v1768
      %1788 = vmatpush.bf16.msra.mxu0 %v1767
      %1789 = vmatpush.bf16.msra.mxu0 %v1766
      %1790 = vmatmul.bf16.gmra.mxu0 %v1702
      %v1791 = vpop.f32.mrf.mxu0
      %v1792 = vadd.f32 0.0, %v1791
      %v1793 = vpop.f32.mrf.mxu0
      %v1794 = vadd.f32 0.0, %v1793
      %1795 = vmatmul.bf16.gmra.mxu0 %v1703
      %v1796 = vpop.f32.mrf.mxu0
      %v1797 = vadd.f32 0.0, %v1796
      %v1798 = vpop.f32.mrf.mxu0
      %v1799 = vadd.f32 0.0, %v1798
      %1800 = vmatmul.bf16.gmra.mxu0 %v1704
      %v1801 = vpop.f32.mrf.mxu0
      %v1802 = vadd.f32 0.0, %v1801
      %v1803 = vpop.f32.mrf.mxu0
      %v1804 = vadd.f32 0.0, %v1803
      %1805 = vmatmul.bf16.gmra.mxu0 %v1705
      %v1806 = vpop.f32.mrf.mxu0
      %v1807 = vadd.f32 0.0, %v1806
      %v1808 = vpop.f32.mrf.mxu0
      %v1809 = vadd.f32 0.0, %v1808
      %1810 = vmatmul.bf16.gmra.mxu0 %v1706
      %v1811 = vpop.f32.mrf.mxu0
      %v1812 = vadd.f32 0.0, %v1811
      %v1813 = vpop.f32.mrf.mxu0
      %v1814 = vadd.f32 0.0, %v1813
      %1815 = vmatmul.bf16.gmra.mxu0 %v1707
      %v1816 = vpop.f32.mrf.mxu0
      %v1817 = vadd.f32 0.0, %v1816
      %v1818 = vpop.f32.mrf.mxu0
      %v1819 = vadd.f32 0.0, %v1818
      %1820 = vmatmul.bf16.gmra.mxu0 %v1708
      %v1821 = vpop.f32.mrf.mxu0
      %v1822 = vadd.f32 0.0, %v1821
      %v1823 = vpop.f32.mrf.mxu0
      %v1824 = vadd.f32 0.0, %v1823
      %1825 = vmatmul.bf16.gmra.mxu0 %v1709
      %v1826 = vpop.f32.mrf.mxu0
      %v1827 = vadd.f32 0.0, %v1826
      %v1828 = vpop.f32.mrf.mxu0
      %v1829 = vadd.f32 0.0, %v1828
      %1830 = vmatmul.bf16.gmra.mxu0 %v1710
      %v1831 = vpop.f32.mrf.mxu0
      %v1832 = vadd.f32 0.0, %v1831
      %v1833 = vpop.f32.mrf.mxu0
      %v1834 = vadd.f32 0.0, %v1833
      %1835 = vmatmul.bf16.gmra.mxu0 %v1711
      %v1836 = vpop.f32.mrf.mxu0
      %v1837 = vadd.f32 0.0, %v1836
      %v1838 = vpop.f32.mrf.mxu0
      %v1839 = vadd.f32 0.0, %v1838
      %1840 = vmatmul.bf16.gmra.mxu0 %v1712
      %v1841 = vpop.f32.mrf.mxu0
      %v1842 = vadd.f32 0.0, %v1841
      %v1843 = vpop.f32.mrf.mxu0
      %v1844 = vadd.f32 0.0, %v1843
      %1845 = vmatmul.bf16.gmra.mxu0 %v1713
      %v1846 = vpop.f32.mrf.mxu0
      %v1847 = vadd.f32 0.0, %v1846
      %v1848 = vpop.f32.mrf.mxu0
      %v1849 = vadd.f32 0.0, %v1848
      %1850 = vmatmul.bf16.gmra.mxu0 %v1714
      %v1851 = vpop.f32.mrf.mxu0
      %v1852 = vadd.f32 0.0, %v1851
      %v1853 = vpop.f32.mrf.mxu0
      %v1854 = vadd.f32 0.0, %v1853
      %1855 = vmatmul.bf16.gmra.mxu0 %v1715
      %v1856 = vpop.f32.mrf.mxu0
      %v1857 = vadd.f32 0.0, %v1856
      %v1858 = vpop.f32.mrf.mxu0
      %v1859 = vadd.f32 0.0, %v1858
      %1860 = vmatmul.bf16.gmra.mxu0 %v1716
      %v1861 = vpop.f32.mrf.mxu0
      %v1862 = vadd.f32 0.0, %v1861
      %v1863 = vpop.f32.mrf.mxu0
      %v1864 = vadd.f32 0.0, %v1863
      %1865 = vmatmul.bf16.gmra.mxu0 %v1717
      %v1866 = vpop.f32.mrf.mxu0
      %v1867 = vadd.f32 0.0, %v1866
      %v1868 = vpop.f32.mrf.mxu0
      %v1869 = vadd.f32 0.0, %v1868
      %1870 = vdwg.mxu0
      %v1871 = vadd.f32 %v1556, %v1792
      %v1872 = vadd.f32 %v1557, %v1794
      %v1873 = vadd.f32 %v1558, %v1797
      %v1874 = vadd.f32 %v1559, %v1799
      %v1875 = vadd.f32 %v1560, %v1802
      %v1876 = vadd.f32 %v1561, %v1804
      %v1877 = vadd.f32 %v1562, %v1807
      %v1878 = vadd.f32 %v1563, %v1809
      %v1879 = vadd.f32 %v1564, %v1812
      %v1880 = vadd.f32 %v1565, %v1814
      %v1881 = vadd.f32 %v1566, %v1817
      %v1882 = vadd.f32 %v1567, %v1819
      %v1883 = vadd.f32 %v1568, %v1822
      %v1884 = vadd.f32 %v1569, %v1824
      %v1885 = vadd.f32 %v1570, %v1827
      %v1886 = vadd.f32 %v1571, %v1829
      %v1887 = vadd.f32 %v1572, %v1832
      %v1888 = vadd.f32 %v1573, %v1834
      %v1889 = vadd.f32 %v1574, %v1837
      %v1890 = vadd.f32 %v1575, %v1839
      %v1891 = vadd.f32 %v1576, %v1842
      %v1892 = vadd.f32 %v1577, %v1844
      %v1893 = vadd.f32 %v1578, %v1847
      %v1894 = vadd.f32 %v1579, %v1849
      %v1895 = vadd.f32 %v1580, %v1852
      %v1896 = vadd.f32 %v1581, %v1854
      %v1897 = vadd.f32 %v1582, %v1857
      %v1898 = vadd.f32 %v1583, %v1859
      %v1899 = vadd.f32 %v1584, %v1862
      %v1900 = vadd.f32 %v1585, %v1864
      %v1901 = vadd.f32 %v1586, %v1867
      %v1902 = vadd.f32 %v1587, %v1869
      %v1903 = vld [vmem:[%s1588] sm:$0xf]
      %v1904 = vld [vmem:[%s1588 + $0x4] sm:$0xf]
      %v1905 = vld [vmem:[%s1588 + $0x8] sm:$0x1]
      %v1906 = vld [vmem:[%s1588 + $0xc] sm:$0xf]
      %v1907 = vld [vmem:[%s1588 + $0x10] sm:$0xf]
      %v1908 = vld [vmem:[%s1588 + $0x14] sm:$0x1]
      %v1909 = vld [vmem:[%s1588 + $0x18] sm:$0xf]
      %v1910 = vld [vmem:[%s1588 + $0x1c] sm:$0xf]
      %v1911 = vld [vmem:[%s1588 + $0x20] sm:$0x1]
      %v1912 = vld [vmem:[%s1588 + $0x24] sm:$0xf]
      %v1913 = vld [vmem:[%s1588 + $0x28] sm:$0xf]
      %v1914 = vld [vmem:[%s1588 + $0x2c] sm:$0x1]
      %v1915 = vld [vmem:[%s1588 + $0x30] sm:$0xf]
      %v1916 = vld [vmem:[%s1588 + $0x34] sm:$0xf]
      %v1917 = vld [vmem:[%s1588 + $0x38] sm:$0x1]
      %v1918 = vld [vmem:[%s1588 + $0x3c] sm:$0xf]
      %v1919 = vld [vmem:[%s1588 + $0x40] sm:$0xf]
      %v1920 = vld [vmem:[%s1588 + $0x44] sm:$0x1]
      %v1921 = vld [vmem:[%s1588 + $0x48] sm:$0xf]
      %v1922 = vld [vmem:[%s1588 + $0x4c] sm:$0xf]
      %v1923 = vld [vmem:[%s1588 + $0x50] sm:$0x1]
      %v1924 = vld [vmem:[%s1588 + $0x54] sm:$0xf]
      %v1925 = vld [vmem:[%s1588 + $0x58] sm:$0xf]
      %v1926 = vld [vmem:[%s1588 + $0x5c] sm:$0x1]
      %v1927 = vld [vmem:[%s1588 + $0x60] sm:$0xf]
      %v1928 = vld [vmem:[%s1588 + $0x64] sm:$0xf]
      %v1929 = vld [vmem:[%s1588 + $0x68] sm:$0x1]
      %v1930 = vld [vmem:[%s1588 + $0x6c] sm:$0xf]
      %v1931 = vld [vmem:[%s1588 + $0x70] sm:$0xf]
      %v1932 = vld [vmem:[%s1588 + $0x74] sm:$0x1]
      %v1933 = vld [vmem:[%s1588 + $0x78] sm:$0xf]
      %v1934 = vld [vmem:[%s1588 + $0x7c] sm:$0xf]
      %v1935 = vld [vmem:[%s1588 + $0x80] sm:$0x1]
      %v1936 = vld [vmem:[%s1588 + $0x84] sm:$0xf]
      %v1937 = vld [vmem:[%s1588 + $0x88] sm:$0xf]
      %v1938 = vld [vmem:[%s1588 + $0x8c] sm:$0x1]
      %v1939 = vld [vmem:[%s1588 + $0x90] sm:$0xf]
      %v1940 = vld [vmem:[%s1588 + $0x94] sm:$0xf]
      %v1941 = vld [vmem:[%s1588 + $0x98] sm:$0x1]
      %v1942 = vld [vmem:[%s1588 + $0x9c] sm:$0xf]
      %v1943 = vld [vmem:[%s1588 + $0xa0] sm:$0xf]
      %v1944 = vld [vmem:[%s1588 + $0xa4] sm:$0x1]
      %v1945 = vld [vmem:[%s1588 + $0xa8] sm:$0xf]
      %v1946 = vld [vmem:[%s1588 + $0xac] sm:$0xf]
      %v1947 = vld [vmem:[%s1588 + $0xb0] sm:$0x1]
      %v1948 = vld [vmem:[%s1588 + $0xb4] sm:$0xf]
      %v1949 = vld [vmem:[%s1588 + $0xb8] sm:$0xf]
      %v1950 = vld [vmem:[%s1588 + $0xbc] sm:$0x1]
      %v1952 = vshrl.u32 %v1903, 16
      %v1954 = vrot.slane %v1952, 4
      %v1955 = vshll.u32 %v1903, 16
      %v1957 = vrot.slane %v1955, 5
      %v1958 = vor.u32 %v1954, %v1957
      %v1959 = vrot.slane %v1958, 4
      %v1961 = vshll.u32 %v1904, 16
      %v1963 = vrot.slane %v1961, 5
      %v1964 = vsel %vm339, %v1959, %v1963
      %v1965 = vshrl.u32 %v1904, 16
      %v1967 = vrot.slane %v1965, 4
      %v1968 = vor.u32 %v1967, %v1963
      %v1969 = vrot.slane %v1968, 4
      %v1971 = vshll.u32 %v1905, 16
      %v1973 = vrot.slane %v1971, 5
      %v1974 = vsel %vm339, %v1969, %v1973
      %v1976 = vshrl.u32 %v1906, 16
      %v1978 = vrot.slane %v1976, 4
      %v1979 = vshll.u32 %v1906, 16
      %v1981 = vrot.slane %v1979, 5
      %v1982 = vor.u32 %v1978, %v1981
      %v1983 = vrot.slane %v1982, 4
      %v1985 = vshll.u32 %v1907, 16
      %v1987 = vrot.slane %v1985, 5
      %v1988 = vsel %vm339, %v1983, %v1987
      %v1989 = vshrl.u32 %v1907, 16
      %v1991 = vrot.slane %v1989, 4
      %v1992 = vor.u32 %v1991, %v1987
      %v1993 = vrot.slane %v1992, 4
      %v1995 = vshll.u32 %v1908, 16
      %v1997 = vrot.slane %v1995, 5
      %v1998 = vsel %vm339, %v1993, %v1997
      %v2000 = vshrl.u32 %v1909, 16
      %v2002 = vrot.slane %v2000, 4
      %v2003 = vshll.u32 %v1909, 16
      %v2005 = vrot.slane %v2003, 5
      %v2006 = vor.u32 %v2002, %v2005
      %v2007 = vrot.slane %v2006, 4
      %v2009 = vshll.u32 %v1910, 16
      %v2011 = vrot.slane %v2009, 5
      %v2012 = vsel %vm339, %v2007, %v2011
      %v2013 = vshrl.u32 %v1910, 16
      %v2015 = vrot.slane %v2013, 4
      %v2016 = vor.u32 %v2015, %v2011
      %v2017 = vrot.slane %v2016, 4
      %v2019 = vshll.u32 %v1911, 16
      %v2021 = vrot.slane %v2019, 5
      %v2022 = vsel %vm339, %v2017, %v2021
      %v2024 = vshrl.u32 %v1912, 16
      %v2026 = vrot.slane %v2024, 4
      %v2027 = vshll.u32 %v1912, 16
      %v2029 = vrot.slane %v2027, 5
      %v2030 = vor.u32 %v2026, %v2029
      %v2031 = vrot.slane %v2030, 4
      %v2033 = vshll.u32 %v1913, 16
      %v2035 = vrot.slane %v2033, 5
      %v2036 = vsel %vm339, %v2031, %v2035
      %v2037 = vshrl.u32 %v1913, 16
      %v2039 = vrot.slane %v2037, 4
      %v2040 = vor.u32 %v2039, %v2035
      %v2041 = vrot.slane %v2040, 4
      %v2043 = vshll.u32 %v1914, 16
      %v2045 = vrot.slane %v2043, 5
      %v2046 = vsel %vm339, %v2041, %v2045
      %v2048 = vshrl.u32 %v1915, 16
      %v2050 = vrot.slane %v2048, 4
      %v2051 = vshll.u32 %v1915, 16
      %v2053 = vrot.slane %v2051, 5
      %v2054 = vor.u32 %v2050, %v2053
      %v2055 = vrot.slane %v2054, 4
      %v2057 = vshll.u32 %v1916, 16
      %v2059 = vrot.slane %v2057, 5
      %v2060 = vsel %vm339, %v2055, %v2059
      %v2061 = vshrl.u32 %v1916, 16
      %v2063 = vrot.slane %v2061, 4
      %v2064 = vor.u32 %v2063, %v2059
      %v2065 = vrot.slane %v2064, 4
      %v2067 = vshll.u32 %v1917, 16
      %v2069 = vrot.slane %v2067, 5
      %v2070 = vsel %vm339, %v2065, %v2069
      %v2072 = vshrl.u32 %v1918, 16
      %v2074 = vrot.slane %v2072, 4
      %v2075 = vshll.u32 %v1918, 16
      %v2077 = vrot.slane %v2075, 5
      %v2078 = vor.u32 %v2074, %v2077
      %v2079 = vrot.slane %v2078, 4
      %v2081 = vshll.u32 %v1919, 16
      %v2083 = vrot.slane %v2081, 5
      %v2084 = vsel %vm339, %v2079, %v2083
      %v2085 = vshrl.u32 %v1919, 16
      %v2087 = vrot.slane %v2085, 4
      %v2088 = vor.u32 %v2087, %v2083
      %v2089 = vrot.slane %v2088, 4
      %v2091 = vshll.u32 %v1920, 16
      %v2093 = vrot.slane %v2091, 5
      %v2094 = vsel %vm339, %v2089, %v2093
      %v2096 = vshrl.u32 %v1921, 16
      %v2098 = vrot.slane %v2096, 4
      %v2099 = vshll.u32 %v1921, 16
      %v2101 = vrot.slane %v2099, 5
      %v2102 = vor.u32 %v2098, %v2101
      %v2103 = vrot.slane %v2102, 4
      %v2105 = vshll.u32 %v1922, 16
      %v2107 = vrot.slane %v2105, 5
      %v2108 = vsel %vm339, %v2103, %v2107
      %v2109 = vshrl.u32 %v1922, 16
      %v2111 = vrot.slane %v2109, 4
      %v2112 = vor.u32 %v2111, %v2107
      %v2113 = vrot.slane %v2112, 4
      %v2115 = vshll.u32 %v1923, 16
      %v2117 = vrot.slane %v2115, 5
      %v2118 = vsel %vm339, %v2113, %v2117
      %v2120 = vshrl.u32 %v1924, 16
      %v2122 = vrot.slane %v2120, 4
      %v2123 = vshll.u32 %v1924, 16
      %v2125 = vrot.slane %v2123, 5
      %v2126 = vor.u32 %v2122, %v2125
      %v2127 = vrot.slane %v2126, 4
      %v2129 = vshll.u32 %v1925, 16
      %v2131 = vrot.slane %v2129, 5
      %v2132 = vsel %vm339, %v2127, %v2131
      %v2133 = vshrl.u32 %v1925, 16
      %v2135 = vrot.slane %v2133, 4
      %v2136 = vor.u32 %v2135, %v2131
      %v2137 = vrot.slane %v2136, 4
      %v2139 = vshll.u32 %v1926, 16
      %v2141 = vrot.slane %v2139, 5
      %v2142 = vsel %vm339, %v2137, %v2141
      %v2144 = vshrl.u32 %v1927, 16
      %v2146 = vrot.slane %v2144, 4
      %v2147 = vshll.u32 %v1927, 16
      %v2149 = vrot.slane %v2147, 5
      %v2150 = vor.u32 %v2146, %v2149
      %v2151 = vrot.slane %v2150, 4
      %v2153 = vshll.u32 %v1928, 16
      %v2155 = vrot.slane %v2153, 5
      %v2156 = vsel %vm339, %v2151, %v2155
      %v2157 = vshrl.u32 %v1928, 16
      %v2159 = vrot.slane %v2157, 4
      %v2160 = vor.u32 %v2159, %v2155
      %v2161 = vrot.slane %v2160, 4
      %v2163 = vshll.u32 %v1929, 16
      %v2165 = vrot.slane %v2163, 5
      %v2166 = vsel %vm339, %v2161, %v2165
      %v2168 = vshrl.u32 %v1930, 16
      %v2170 = vrot.slane %v2168, 4
      %v2171 = vshll.u32 %v1930, 16
      %v2173 = vrot.slane %v2171, 5
      %v2174 = vor.u32 %v2170, %v2173
      %v2175 = vrot.slane %v2174, 4
      %v2177 = vshll.u32 %v1931, 16
      %v2179 = vrot.slane %v2177, 5
      %v2180 = vsel %vm339, %v2175, %v2179
      %v2181 = vshrl.u32 %v1931, 16
      %v2183 = vrot.slane %v2181, 4
      %v2184 = vor.u32 %v2183, %v2179
      %v2185 = vrot.slane %v2184, 4
      %v2187 = vshll.u32 %v1932, 16
      %v2189 = vrot.slane %v2187, 5
      %v2190 = vsel %vm339, %v2185, %v2189
      %v2192 = vshrl.u32 %v1933, 16
      %v2194 = vrot.slane %v2192, 4
      %v2195 = vshll.u32 %v1933, 16
      %v2197 = vrot.slane %v2195, 5
      %v2198 = vor.u32 %v2194, %v2197
      %v2199 = vrot.slane %v2198, 4
      %v2201 = vshll.u32 %v1934, 16
      %v2203 = vrot.slane %v2201, 5
      %v2204 = vsel %vm339, %v2199, %v2203
      %v2205 = vshrl.u32 %v1934, 16
      %v2207 = vrot.slane %v2205, 4
      %v2208 = vor.u32 %v2207, %v2203
      %v2209 = vrot.slane %v2208, 4
      %v2211 = vshll.u32 %v1935, 16
      %v2213 = vrot.slane %v2211, 5
      %v2214 = vsel %vm339, %v2209, %v2213
      %v2216 = vshrl.u32 %v1936, 16
      %v2218 = vrot.slane %v2216, 4
      %v2219 = vshll.u32 %v1936, 16
      %v2221 = vrot.slane %v2219, 5
      %v2222 = vor.u32 %v2218, %v2221
      %v2223 = vrot.slane %v2222, 4
      %v2225 = vshll.u32 %v1937, 16
      %v2227 = vrot.slane %v2225, 5
      %v2228 = vsel %vm339, %v2223, %v2227
      %v2229 = vshrl.u32 %v1937, 16
      %v2231 = vrot.slane %v2229, 4
      %v2232 = vor.u32 %v2231, %v2227
      %v2233 = vrot.slane %v2232, 4
      %v2235 = vshll.u32 %v1938, 16
      %v2237 = vrot.slane %v2235, 5
      %v2238 = vsel %vm339, %v2233, %v2237
      %v2240 = vshrl.u32 %v1939, 16
      %v2242 = vrot.slane %v2240, 4
      %v2243 = vshll.u32 %v1939, 16
      %v2245 = vrot.slane %v2243, 5
      %v2246 = vor.u32 %v2242, %v2245
      %v2247 = vrot.slane %v2246, 4
      %v2249 = vshll.u32 %v1940, 16
      %v2251 = vrot.slane %v2249, 5
      %v2252 = vsel %vm339, %v2247, %v2251
      %v2253 = vshrl.u32 %v1940, 16
      %v2255 = vrot.slane %v2253, 4
      %v2256 = vor.u32 %v2255, %v2251
      %v2257 = vrot.slane %v2256, 4
      %v2259 = vshll.u32 %v1941, 16
      %v2261 = vrot.slane %v2259, 5
      %v2262 = vsel %vm339, %v2257, %v2261
      %v2264 = vshrl.u32 %v1942, 16
      %v2266 = vrot.slane %v2264, 4
      %v2267 = vshll.u32 %v1942, 16
      %v2269 = vrot.slane %v2267, 5
      %v2270 = vor.u32 %v2266, %v2269
      %v2271 = vrot.slane %v2270, 4
      %v2273 = vshll.u32 %v1943, 16
      %v2275 = vrot.slane %v2273, 5
      %v2276 = vsel %vm339, %v2271, %v2275
      %v2277 = vshrl.u32 %v1943, 16
      %v2279 = vrot.slane %v2277, 4
      %v2280 = vor.u32 %v2279, %v2275
      %v2281 = vrot.slane %v2280, 4
      %v2283 = vshll.u32 %v1944, 16
      %v2285 = vrot.slane %v2283, 5
      %v2286 = vsel %vm339, %v2281, %v2285
      %v2288 = vshrl.u32 %v1945, 16
      %v2290 = vrot.slane %v2288, 4
      %v2291 = vshll.u32 %v1945, 16
      %v2293 = vrot.slane %v2291, 5
      %v2294 = vor.u32 %v2290, %v2293
      %v2295 = vrot.slane %v2294, 4
      %v2297 = vshll.u32 %v1946, 16
      %v2299 = vrot.slane %v2297, 5
      %v2300 = vsel %vm339, %v2295, %v2299
      %v2301 = vshrl.u32 %v1946, 16
      %v2303 = vrot.slane %v2301, 4
      %v2304 = vor.u32 %v2303, %v2299
      %v2305 = vrot.slane %v2304, 4
      %v2307 = vshll.u32 %v1947, 16
      %v2309 = vrot.slane %v2307, 5
      %v2310 = vsel %vm339, %v2305, %v2309
      %v2312 = vshrl.u32 %v1948, 16
      %v2314 = vrot.slane %v2312, 4
      %v2315 = vshll.u32 %v1948, 16
      %v2317 = vrot.slane %v2315, 5
      %v2318 = vor.u32 %v2314, %v2317
      %v2319 = vrot.slane %v2318, 4
      %v2321 = vshll.u32 %v1949, 16
      %v2323 = vrot.slane %v2321, 5
      %v2324 = vsel %vm339, %v2319, %v2323
      %v2325 = vshrl.u32 %v1949, 16
      %v2327 = vrot.slane %v2325, 4
      %v2328 = vor.u32 %v2327, %v2323
      %v2329 = vrot.slane %v2328, 4
      %v2331 = vshll.u32 %v1950, 16
      %v2333 = vrot.slane %v2331, 5
      %v2334 = vsel %vm339, %v2329, %v2333
      %s2335 = scalar_lea.vmem %s2, 256
      %v2336 = vld [vmem:[%s2335] sm:$0xf]
      %v2337 = vld [vmem:[%s2335 + $0x4] sm:$0xf]
      %v2338 = vld [vmem:[%s2335 + $0x8] sm:$0xf]
      %v2339 = vld [vmem:[%s2335 + $0xc] sm:$0xf]
      %v2340 = vld [vmem:[%s2335 + $0x10] sm:$0xf]
      %v2341 = vld [vmem:[%s2335 + $0x14] sm:$0xf]
      %v2342 = vld [vmem:[%s2335 + $0x18] sm:$0xf]
      %v2343 = vld [vmem:[%s2335 + $0x1c] sm:$0xf]
      %v2344 = vld [vmem:[%s2335 + $0x20] sm:$0xf]
      %v2345 = vld [vmem:[%s2335 + $0x24] sm:$0xf]
      %v2346 = vld [vmem:[%s2335 + $0x28] sm:$0xf]
      %v2347 = vld [vmem:[%s2335 + $0x2c] sm:$0xf]
      %v2348 = vld [vmem:[%s2335 + $0x30] sm:$0xf]
      %v2349 = vld [vmem:[%s2335 + $0x34] sm:$0xf]
      %v2350 = vld [vmem:[%s2335 + $0x38] sm:$0xf]
      %v2351 = vld [vmem:[%s2335 + $0x3c] sm:$0xf]
      %v2352 = vunpack.c.l.b16 %v1964
      %v2353 = vunpack.c.l.b16 %v1974
      %v2354 = vunpack.c.l.b16 %v1988
      %v2355 = vunpack.c.l.b16 %v1998
      %v2356 = vunpack.c.l.b16 %v2012
      %v2357 = vunpack.c.l.b16 %v2022
      %v2358 = vunpack.c.l.b16 %v2036
      %v2359 = vunpack.c.l.b16 %v2046
      %v2360 = vunpack.c.l.b16 %v2060
      %v2361 = vunpack.c.l.b16 %v2070
      %v2362 = vunpack.c.l.b16 %v2084
      %v2363 = vunpack.c.l.b16 %v2094
      %v2364 = vunpack.c.l.b16 %v2108
      %v2365 = vunpack.c.l.b16 %v2118
      %v2366 = vunpack.c.l.b16 %v2132
      %v2367 = vunpack.c.l.b16 %v2142
      %v2368 = vunpack.c.l.b16 %v2156
      %v2369 = vunpack.c.l.b16 %v2166
      %v2370 = vunpack.c.l.b16 %v2180
      %v2371 = vunpack.c.l.b16 %v2190
      %v2372 = vunpack.c.l.b16 %v2204
      %v2373 = vunpack.c.l.b16 %v2214
      %v2374 = vunpack.c.l.b16 %v2228
      %v2375 = vunpack.c.l.b16 %v2238
      %v2376 = vunpack.c.l.b16 %v2252
      %v2377 = vunpack.c.l.b16 %v2262
      %v2378 = vunpack.c.l.b16 %v2276
      %v2379 = vunpack.c.l.b16 %v2286
      %v2380 = vunpack.c.l.b16 %v2300
      %v2381 = vunpack.c.l.b16 %v2310
      %v2382 = vunpack.c.l.b16 %v2324
      %v2383 = vunpack.c.l.b16 %v2334
      %v2384 = vpack.c.b16 %v2353, %v2352
      %v2385 = vpack.c.b16 %v2355, %v2354
      %v2386 = vpack.c.b16 %v2357, %v2356
      %v2387 = vpack.c.b16 %v2359, %v2358
      %v2388 = vpack.c.b16 %v2361, %v2360
      %v2389 = vpack.c.b16 %v2363, %v2362
      %v2390 = vpack.c.b16 %v2365, %v2364
      %v2391 = vpack.c.b16 %v2367, %v2366
      %v2392 = vpack.c.b16 %v2369, %v2368
      %v2393 = vpack.c.b16 %v2371, %v2370
      %v2394 = vpack.c.b16 %v2373, %v2372
      %v2395 = vpack.c.b16 %v2375, %v2374
      %v2396 = vpack.c.b16 %v2377, %v2376
      %v2397 = vpack.c.b16 %v2379, %v2378
      %v2398 = vpack.c.b16 %v2381, %v2380
      %v2399 = vpack.c.b16 %v2383, %v2382
      %v2432 = vunpack.c.l.b16 %v2336
      %v2433 = vunpack.c.l.b16 %v2337
      %v2434 = vunpack.c.l.b16 %v2338
      %v2435 = vunpack.c.l.b16 %v2339
      %v2436 = vunpack.c.l.b16 %v2340
      %v2437 = vunpack.c.l.b16 %v2341
      %v2438 = vunpack.c.l.b16 %v2342
      %v2439 = vunpack.c.l.b16 %v2343
      %v2440 = vunpack.c.l.b16 %v2344
      %v2441 = vunpack.c.l.b16 %v2345
      %v2442 = vunpack.c.l.b16 %v2346
      %v2443 = vunpack.c.l.b16 %v2347
      %v2444 = vunpack.c.l.b16 %v2348
      %v2445 = vunpack.c.l.b16 %v2349
      %v2446 = vunpack.c.l.b16 %v2350
      %v2447 = vunpack.c.l.b16 %v2351
      %v2448 = vpack.c.b16 %v2433, %v2432
      %v2449 = vpack.c.b16 %v2435, %v2434
      %v2450 = vpack.c.b16 %v2437, %v2436
      %v2451 = vpack.c.b16 %v2439, %v2438
      %v2452 = vpack.c.b16 %v2441, %v2440
      %v2453 = vpack.c.b16 %v2443, %v2442
      %v2454 = vpack.c.b16 %v2445, %v2444
      %v2455 = vpack.c.b16 %v2447, %v2446
      %2464 = vmatpush.bf16.msra.mxu0 %v2455
      %2465 = vmatpush.bf16.msra.mxu0 %v2454
      %2466 = vmatpush.bf16.msra.mxu0 %v2453
      %2467 = vmatpush.bf16.msra.mxu0 %v2452
      %2468 = vmatpush.bf16.msra.mxu0 %v2451
      %2469 = vmatpush.bf16.msra.mxu0 %v2450
      %2470 = vmatpush.bf16.msra.mxu0 %v2449
      %2471 = vmatpush.bf16.msra.mxu0 %v2448
      %2472 = vmatmul.bf16.gmra.mxu0 %v2384
      %v2473 = vpop.f32.mrf.mxu0
      %v2474 = vadd.f32 0.0, %v2473
      %v2475 = vpop.f32.mrf.mxu0
      %v2476 = vadd.f32 0.0, %v2475
      %2477 = vmatmul.bf16.gmra.mxu0 %v2385
      %v2478 = vpop.f32.mrf.mxu0
      %v2479 = vadd.f32 0.0, %v2478
      %v2480 = vpop.f32.mrf.mxu0
      %v2481 = vadd.f32 0.0, %v2480
      %2482 = vmatmul.bf16.gmra.mxu0 %v2386
      %v2483 = vpop.f32.mrf.mxu0
      %v2484 = vadd.f32 0.0, %v2483
      %v2485 = vpop.f32.mrf.mxu0
      %v2486 = vadd.f32 0.0, %v2485
      %2487 = vmatmul.bf16.gmra.mxu0 %v2387
      %v2488 = vpop.f32.mrf.mxu0
      %v2489 = vadd.f32 0.0, %v2488
      %v2490 = vpop.f32.mrf.mxu0
      %v2491 = vadd.f32 0.0, %v2490
      %2492 = vmatmul.bf16.gmra.mxu0 %v2388
      %v2493 = vpop.f32.mrf.mxu0
      %v2494 = vadd.f32 0.0, %v2493
      %v2495 = vpop.f32.mrf.mxu0
      %v2496 = vadd.f32 0.0, %v2495
      %2497 = vmatmul.bf16.gmra.mxu0 %v2389
      %v2498 = vpop.f32.mrf.mxu0
      %v2499 = vadd.f32 0.0, %v2498
      %v2500 = vpop.f32.mrf.mxu0
      %v2501 = vadd.f32 0.0, %v2500
      %2502 = vmatmul.bf16.gmra.mxu0 %v2390
      %v2503 = vpop.f32.mrf.mxu0
      %v2504 = vadd.f32 0.0, %v2503
      %v2505 = vpop.f32.mrf.mxu0
      %v2506 = vadd.f32 0.0, %v2505
      %2507 = vmatmul.bf16.gmra.mxu0 %v2391
      %v2508 = vpop.f32.mrf.mxu0
      %v2509 = vadd.f32 0.0, %v2508
      %v2510 = vpop.f32.mrf.mxu0
      %v2511 = vadd.f32 0.0, %v2510
      %2512 = vmatmul.bf16.gmra.mxu0 %v2392
      %v2513 = vpop.f32.mrf.mxu0
      %v2514 = vadd.f32 0.0, %v2513
      %v2515 = vpop.f32.mrf.mxu0
      %v2516 = vadd.f32 0.0, %v2515
      %2517 = vmatmul.bf16.gmra.mxu0 %v2393
      %v2518 = vpop.f32.mrf.mxu0
      %v2519 = vadd.f32 0.0, %v2518
      %v2520 = vpop.f32.mrf.mxu0
      %v2521 = vadd.f32 0.0, %v2520
      %2522 = vmatmul.bf16.gmra.mxu0 %v2394
      %v2523 = vpop.f32.mrf.mxu0
      %v2524 = vadd.f32 0.0, %v2523
      %v2525 = vpop.f32.mrf.mxu0
      %v2526 = vadd.f32 0.0, %v2525
      %2527 = vmatmul.bf16.gmra.mxu0 %v2395
      %v2528 = vpop.f32.mrf.mxu0
      %v2529 = vadd.f32 0.0, %v2528
      %v2530 = vpop.f32.mrf.mxu0
      %v2531 = vadd.f32 0.0, %v2530
      %2532 = vmatmul.bf16.gmra.mxu0 %v2396
      %v2533 = vpop.f32.mrf.mxu0
      %v2534 = vadd.f32 0.0, %v2533
      %v2535 = vpop.f32.mrf.mxu0
      %v2536 = vadd.f32 0.0, %v2535
      %2537 = vmatmul.bf16.gmra.mxu0 %v2397
      %v2538 = vpop.f32.mrf.mxu0
      %v2539 = vadd.f32 0.0, %v2538
      %v2540 = vpop.f32.mrf.mxu0
      %v2541 = vadd.f32 0.0, %v2540
      %2542 = vmatmul.bf16.gmra.mxu0 %v2398
      %v2543 = vpop.f32.mrf.mxu0
      %v2544 = vadd.f32 0.0, %v2543
      %v2545 = vpop.f32.mrf.mxu0
      %v2546 = vadd.f32 0.0, %v2545
      %2547 = vmatmul.bf16.gmra.mxu0 %v2399
      %v2548 = vpop.f32.mrf.mxu0
      %v2549 = vadd.f32 0.0, %v2548
      %v2550 = vpop.f32.mrf.mxu0
      %v2551 = vadd.f32 0.0, %v2550
      %2552 = vdwg.mxu0
      %v2553 = vadd.f32 %v1871, %v2474
      %v2554 = vadd.f32 %v1872, %v2476
      %v2555 = vadd.f32 %v1873, %v2479
      %v2556 = vadd.f32 %v1874, %v2481
      %v2557 = vadd.f32 %v1875, %v2484
      %v2558 = vadd.f32 %v1876, %v2486
      %v2559 = vadd.f32 %v1877, %v2489
      %v2560 = vadd.f32 %v1878, %v2491
      %v2561 = vadd.f32 %v1879, %v2494
      %v2562 = vadd.f32 %v1880, %v2496
      %v2563 = vadd.f32 %v1881, %v2499
      %v2564 = vadd.f32 %v1882, %v2501
      %v2565 = vadd.f32 %v1883, %v2504
      %v2566 = vadd.f32 %v1884, %v2506
      %v2567 = vadd.f32 %v1885, %v2509
      %v2568 = vadd.f32 %v1886, %v2511
      %v2569 = vadd.f32 %v1887, %v2514
      %v2570 = vadd.f32 %v1888, %v2516
      %v2571 = vadd.f32 %v1889, %v2519
      %v2572 = vadd.f32 %v1890, %v2521
      %v2573 = vadd.f32 %v1891, %v2524
      %v2574 = vadd.f32 %v1892, %v2526
      %v2575 = vadd.f32 %v1893, %v2529
      %v2576 = vadd.f32 %v1894, %v2531
      %v2577 = vadd.f32 %v1895, %v2534
      %v2578 = vadd.f32 %v1896, %v2536
      %v2579 = vadd.f32 %v1897, %v2539
      %v2580 = vadd.f32 %v1898, %v2541
      %v2581 = vadd.f32 %v1899, %v2544
      %v2582 = vadd.f32 %v1900, %v2546
      %v2583 = vadd.f32 %v1901, %v2549
      %v2584 = vadd.f32 %v1902, %v2551
      %v2585 = vld [vmem:[%s1588] sm:$0xe]
      %v2586 = vld [vmem:[%s1588 + $0xc] sm:$0xe]
      %v2587 = vld [vmem:[%s1588 + $0x18] sm:$0xe]
      %v2588 = vld [vmem:[%s1588 + $0x24] sm:$0xe]
      %v2589 = vld [vmem:[%s1588 + $0x30] sm:$0xe]
      %v2590 = vld [vmem:[%s1588 + $0x3c] sm:$0xe]
      %v2591 = vld [vmem:[%s1588 + $0x48] sm:$0xe]
      %v2592 = vld [vmem:[%s1588 + $0x54] sm:$0xe]
      %v2593 = vld [vmem:[%s1588 + $0x60] sm:$0xe]
      %v2594 = vld [vmem:[%s1588 + $0x6c] sm:$0xe]
      %v2595 = vld [vmem:[%s1588 + $0x78] sm:$0xe]
      %v2596 = vld [vmem:[%s1588 + $0x84] sm:$0xe]
      %v2597 = vld [vmem:[%s1588 + $0x90] sm:$0xe]
      %v2598 = vld [vmem:[%s1588 + $0x9c] sm:$0xe]
      %v2599 = vld [vmem:[%s1588 + $0xa8] sm:$0xe]
      %v2600 = vld [vmem:[%s1588 + $0xb4] sm:$0xe]
      %v2649 = vrot.slane %v2585, 5
      %v2650 = vrot.slane %v2649, 4
      %v2651 = vrot.slane %v1904, 5
      %v2652 = vsel %vm1225, %v2650, %v2651
      %v2653 = vrot.slane %v2651, 4
      %v2654 = vrot.slane %v1905, 5
      %v2655 = vsel %vm1225, %v2653, %v2654
      %v2656 = vrot.slane %v2586, 5
      %v2657 = vrot.slane %v2656, 4
      %v2658 = vrot.slane %v1907, 5
      %v2659 = vsel %vm1225, %v2657, %v2658
      %v2660 = vrot.slane %v2658, 4
      %v2661 = vrot.slane %v1908, 5
      %v2662 = vsel %vm1225, %v2660, %v2661
      %v2663 = vrot.slane %v2587, 5
      %v2664 = vrot.slane %v2663, 4
      %v2665 = vrot.slane %v1910, 5
      %v2666 = vsel %vm1225, %v2664, %v2665
      %v2667 = vrot.slane %v2665, 4
      %v2668 = vrot.slane %v1911, 5
      %v2669 = vsel %vm1225, %v2667, %v2668
      %v2670 = vrot.slane %v2588, 5
      %v2671 = vrot.slane %v2670, 4
      %v2672 = vrot.slane %v1913, 5
      %v2673 = vsel %vm1225, %v2671, %v2672
      %v2674 = vrot.slane %v2672, 4
      %v2675 = vrot.slane %v1914, 5
      %v2676 = vsel %vm1225, %v2674, %v2675
      %v2677 = vrot.slane %v2589, 5
      %v2678 = vrot.slane %v2677, 4
      %v2679 = vrot.slane %v1916, 5
      %v2680 = vsel %vm1225, %v2678, %v2679
      %v2681 = vrot.slane %v2679, 4
      %v2682 = vrot.slane %v1917, 5
      %v2683 = vsel %vm1225, %v2681, %v2682
      %v2684 = vrot.slane %v2590, 5
      %v2685 = vrot.slane %v2684, 4
      %v2686 = vrot.slane %v1919, 5
      %v2687 = vsel %vm1225, %v2685, %v2686
      %v2688 = vrot.slane %v2686, 4
      %v2689 = vrot.slane %v1920, 5
      %v2690 = vsel %vm1225, %v2688, %v2689
      %v2691 = vrot.slane %v2591, 5
      %v2692 = vrot.slane %v2691, 4
      %v2693 = vrot.slane %v1922, 5
      %v2694 = vsel %vm1225, %v2692, %v2693
      %v2695 = vrot.slane %v2693, 4
      %v2696 = vrot.slane %v1923, 5
      %v2697 = vsel %vm1225, %v2695, %v2696
      %v2698 = vrot.slane %v2592, 5
      %v2699 = vrot.slane %v2698, 4
      %v2700 = vrot.slane %v1925, 5
      %v2701 = vsel %vm1225, %v2699, %v2700
      %v2702 = vrot.slane %v2700, 4
      %v2703 = vrot.slane %v1926, 5
      %v2704 = vsel %vm1225, %v2702, %v2703
      %v2705 = vrot.slane %v2593, 5
      %v2706 = vrot.slane %v2705, 4
      %v2707 = vrot.slane %v1928, 5
      %v2708 = vsel %vm1225, %v2706, %v2707
      %v2709 = vrot.slane %v2707, 4
      %v2710 = vrot.slane %v1929, 5
      %v2711 = vsel %vm1225, %v2709, %v2710
      %v2712 = vrot.slane %v2594, 5
      %v2713 = vrot.slane %v2712, 4
      %v2714 = vrot.slane %v1931, 5
      %v2715 = vsel %vm1225, %v2713, %v2714
      %v2716 = vrot.slane %v2714, 4
      %v2717 = vrot.slane %v1932, 5
      %v2718 = vsel %vm1225, %v2716, %v2717
      %v2719 = vrot.slane %v2595, 5
      %v2720 = vrot.slane %v2719, 4
      %v2721 = vrot.slane %v1934, 5
      %v2722 = vsel %vm1225, %v2720, %v2721
      %v2723 = vrot.slane %v2721, 4
      %v2724 = vrot.slane %v1935, 5
      %v2725 = vsel %vm1225, %v2723, %v2724
      %v2726 = vrot.slane %v2596, 5
      %v2727 = vrot.slane %v2726, 4
      %v2728 = vrot.slane %v1937, 5
      %v2729 = vsel %vm1225, %v2727, %v2728
      %v2730 = vrot.slane %v2728, 4
      %v2731 = vrot.slane %v1938, 5
      %v2732 = vsel %vm1225, %v2730, %v2731
      %v2733 = vrot.slane %v2597, 5
      %v2734 = vrot.slane %v2733, 4
      %v2735 = vrot.slane %v1940, 5
      %v2736 = vsel %vm1225, %v2734, %v2735
      %v2737 = vrot.slane %v2735, 4
      %v2738 = vrot.slane %v1941, 5
      %v2739 = vsel %vm1225, %v2737, %v2738
      %v2740 = vrot.slane %v2598, 5
      %v2741 = vrot.slane %v2740, 4
      %v2742 = vrot.slane %v1943, 5
      %v2743 = vsel %vm1225, %v2741, %v2742
      %v2744 = vrot.slane %v2742, 4
      %v2745 = vrot.slane %v1944, 5
      %v2746 = vsel %vm1225, %v2744, %v2745
      %v2747 = vrot.slane %v2599, 5
      %v2748 = vrot.slane %v2747, 4
      %v2749 = vrot.slane %v1946, 5
      %v2750 = vsel %vm1225, %v2748, %v2749
      %v2751 = vrot.slane %v2749, 4
      %v2752 = vrot.slane %v1947, 5
      %v2753 = vsel %vm1225, %v2751, %v2752
      %v2754 = vrot.slane %v2600, 5
      %v2755 = vrot.slane %v2754, 4
      %v2756 = vrot.slane %v1949, 5
      %v2757 = vsel %vm1225, %v2755, %v2756
      %v2758 = vrot.slane %v2756, 4
      %v2759 = vrot.slane %v1950, 5
      %v2760 = vsel %vm1225, %v2758, %v2759
      %s2761 = scalar_lea.vmem %s2, 320
      %v2762 = vld [vmem:[%s2761] sm:$0xf]
      %v2763 = vld [vmem:[%s2761 + $0x4] sm:$0xf]
      %v2764 = vld [vmem:[%s2761 + $0x8] sm:$0xf]
      %v2765 = vld [vmem:[%s2761 + $0xc] sm:$0xf]
      %v2766 = vld [vmem:[%s2761 + $0x10] sm:$0xf]
      %v2767 = vld [vmem:[%s2761 + $0x14] sm:$0xf]
      %v2768 = vld [vmem:[%s2761 + $0x18] sm:$0xf]
      %v2769 = vld [vmem:[%s2761 + $0x1c] sm:$0xf]
      %v2770 = vld [vmem:[%s2761 + $0x20] sm:$0xf]
      %v2771 = vld [vmem:[%s2761 + $0x24] sm:$0xf]
      %v2772 = vld [vmem:[%s2761 + $0x28] sm:$0xf]
      %v2773 = vld [vmem:[%s2761 + $0x2c] sm:$0xf]
      %v2774 = vld [vmem:[%s2761 + $0x30] sm:$0xf]
      %v2775 = vld [vmem:[%s2761 + $0x34] sm:$0xf]
      %v2776 = vld [vmem:[%s2761 + $0x38] sm:$0xf]
      %v2777 = vld [vmem:[%s2761 + $0x3c] sm:$0xf]
      %v2778 = vunpack.c.l.b16 %v2652
      %v2779 = vunpack.c.l.b16 %v2655
      %v2780 = vunpack.c.l.b16 %v2659
      %v2781 = vunpack.c.l.b16 %v2662
      %v2782 = vunpack.c.l.b16 %v2666
      %v2783 = vunpack.c.l.b16 %v2669
      %v2784 = vunpack.c.l.b16 %v2673
      %v2785 = vunpack.c.l.b16 %v2676
      %v2786 = vunpack.c.l.b16 %v2680
      %v2787 = vunpack.c.l.b16 %v2683
      %v2788 = vunpack.c.l.b16 %v2687
      %v2789 = vunpack.c.l.b16 %v2690
      %v2790 = vunpack.c.l.b16 %v2694
      %v2791 = vunpack.c.l.b16 %v2697
      %v2792 = vunpack.c.l.b16 %v2701
      %v2793 = vunpack.c.l.b16 %v2704
      %v2794 = vunpack.c.l.b16 %v2708
      %v2795 = vunpack.c.l.b16 %v2711
      %v2796 = vunpack.c.l.b16 %v2715
      %v2797 = vunpack.c.l.b16 %v2718
      %v2798 = vunpack.c.l.b16 %v2722
      %v2799 = vunpack.c.l.b16 %v2725
      %v2800 = vunpack.c.l.b16 %v2729
      %v2801 = vunpack.c.l.b16 %v2732
      %v2802 = vunpack.c.l.b16 %v2736
      %v2803 = vunpack.c.l.b16 %v2739
      %v2804 = vunpack.c.l.b16 %v2743
      %v2805 = vunpack.c.l.b16 %v2746
      %v2806 = vunpack.c.l.b16 %v2750
      %v2807 = vunpack.c.l.b16 %v2753
      %v2808 = vunpack.c.l.b16 %v2757
      %v2809 = vunpack.c.l.b16 %v2760
      %v2810 = vpack.c.b16 %v2779, %v2778
      %v2811 = vpack.c.b16 %v2781, %v2780
      %v2812 = vpack.c.b16 %v2783, %v2782
      %v2813 = vpack.c.b16 %v2785, %v2784
      %v2814 = vpack.c.b16 %v2787, %v2786
      %v2815 = vpack.c.b16 %v2789, %v2788
      %v2816 = vpack.c.b16 %v2791, %v2790
      %v2817 = vpack.c.b16 %v2793, %v2792
      %v2818 = vpack.c.b16 %v2795, %v2794
      %v2819 = vpack.c.b16 %v2797, %v2796
      %v2820 = vpack.c.b16 %v2799, %v2798
      %v2821 = vpack.c.b16 %v2801, %v2800
      %v2822 = vpack.c.b16 %v2803, %v2802
      %v2823 = vpack.c.b16 %v2805, %v2804
      %v2824 = vpack.c.b16 %v2807, %v2806
      %v2825 = vpack.c.b16 %v2809, %v2808
      %v2858 = vunpack.c.l.b16 %v2762
      %v2859 = vunpack.c.l.b16 %v2763
      %v2860 = vunpack.c.l.b16 %v2764
      %v2861 = vunpack.c.l.b16 %v2765
      %v2862 = vunpack.c.l.b16 %v2766
      %v2863 = vunpack.c.l.b16 %v2767
      %v2864 = vunpack.c.l.b16 %v2768
      %v2865 = vunpack.c.l.b16 %v2769
      %v2866 = vunpack.c.l.b16 %v2770
      %v2867 = vunpack.c.l.b16 %v2771
      %v2868 = vunpack.c.l.b16 %v2772
      %v2869 = vunpack.c.l.b16 %v2773
      %v2870 = vunpack.c.l.b16 %v2774
      %v2871 = vunpack.c.l.b16 %v2775
      %v2872 = vunpack.c.l.b16 %v2776
      %v2873 = vunpack.c.l.b16 %v2777
      %v2874 = vpack.c.b16 %v2859, %v2858
      %v2875 = vpack.c.b16 %v2861, %v2860
      %v2876 = vpack.c.b16 %v2863, %v2862
      %v2877 = vpack.c.b16 %v2865, %v2864
      %v2878 = vpack.c.b16 %v2867, %v2866
      %v2879 = vpack.c.b16 %v2869, %v2868
      %v2880 = vpack.c.b16 %v2871, %v2870
      %v2881 = vpack.c.b16 %v2873, %v2872
      %2890 = vmatpush.bf16.msra.mxu0 %v2881
      %2891 = vmatpush.bf16.msra.mxu0 %v2880
      %2892 = vmatpush.bf16.msra.mxu0 %v2879
      %2893 = vmatpush.bf16.msra.mxu0 %v2878
      %2894 = vmatpush.bf16.msra.mxu0 %v2877
      %2895 = vmatpush.bf16.msra.mxu0 %v2876
      %2896 = vmatpush.bf16.msra.mxu0 %v2875
      %2897 = vmatpush.bf16.msra.mxu0 %v2874
      %2898 = vmatmul.bf16.gmra.mxu0 %v2810
      %v2899 = vpop.f32.mrf.mxu0
      %v2900 = vadd.f32 0.0, %v2899
      %v2901 = vpop.f32.mrf.mxu0
      %v2902 = vadd.f32 0.0, %v2901
      %2903 = vmatmul.bf16.gmra.mxu0 %v2811
      %v2904 = vpop.f32.mrf.mxu0
      %v2905 = vadd.f32 0.0, %v2904
      %v2906 = vpop.f32.mrf.mxu0
      %v2907 = vadd.f32 0.0, %v2906
      %2908 = vmatmul.bf16.gmra.mxu0 %v2812
      %v2909 = vpop.f32.mrf.mxu0
      %v2910 = vadd.f32 0.0, %v2909
      %v2911 = vpop.f32.mrf.mxu0
      %v2912 = vadd.f32 0.0, %v2911
      %2913 = vmatmul.bf16.gmra.mxu0 %v2813
      %v2914 = vpop.f32.mrf.mxu0
      %v2915 = vadd.f32 0.0, %v2914
      %v2916 = vpop.f32.mrf.mxu0
      %v2917 = vadd.f32 0.0, %v2916
      %2918 = vmatmul.bf16.gmra.mxu0 %v2814
      %v2919 = vpop.f32.mrf.mxu0
      %v2920 = vadd.f32 0.0, %v2919
      %v2921 = vpop.f32.mrf.mxu0
      %v2922 = vadd.f32 0.0, %v2921
      %2923 = vmatmul.bf16.gmra.mxu0 %v2815
      %v2924 = vpop.f32.mrf.mxu0
      %v2925 = vadd.f32 0.0, %v2924
      %v2926 = vpop.f32.mrf.mxu0
      %v2927 = vadd.f32 0.0, %v2926
      %2928 = vmatmul.bf16.gmra.mxu0 %v2816
      %v2929 = vpop.f32.mrf.mxu0
      %v2930 = vadd.f32 0.0, %v2929
      %v2931 = vpop.f32.mrf.mxu0
      %v2932 = vadd.f32 0.0, %v2931
      %2933 = vmatmul.bf16.gmra.mxu0 %v2817
      %v2934 = vpop.f32.mrf.mxu0
      %v2935 = vadd.f32 0.0, %v2934
      %v2936 = vpop.f32.mrf.mxu0
      %v2937 = vadd.f32 0.0, %v2936
      %2938 = vmatmul.bf16.gmra.mxu0 %v2818
      %v2939 = vpop.f32.mrf.mxu0
      %v2940 = vadd.f32 0.0, %v2939
      %v2941 = vpop.f32.mrf.mxu0
      %v2942 = vadd.f32 0.0, %v2941
      %2943 = vmatmul.bf16.gmra.mxu0 %v2819
      %v2944 = vpop.f32.mrf.mxu0
      %v2945 = vadd.f32 0.0, %v2944
      %v2946 = vpop.f32.mrf.mxu0
      %v2947 = vadd.f32 0.0, %v2946
      %2948 = vmatmul.bf16.gmra.mxu0 %v2820
      %v2949 = vpop.f32.mrf.mxu0
      %v2950 = vadd.f32 0.0, %v2949
      %v2951 = vpop.f32.mrf.mxu0
      %v2952 = vadd.f32 0.0, %v2951
      %2953 = vmatmul.bf16.gmra.mxu0 %v2821
      %v2954 = vpop.f32.mrf.mxu0
      %v2955 = vadd.f32 0.0, %v2954
      %v2956 = vpop.f32.mrf.mxu0
      %v2957 = vadd.f32 0.0, %v2956
      %2958 = vmatmul.bf16.gmra.mxu0 %v2822
      %v2959 = vpop.f32.mrf.mxu0
      %v2960 = vadd.f32 0.0, %v2959
      %v2961 = vpop.f32.mrf.mxu0
      %v2962 = vadd.f32 0.0, %v2961
      %2963 = vmatmul.bf16.gmra.mxu0 %v2823
      %v2964 = vpop.f32.mrf.mxu0
      %v2965 = vadd.f32 0.0, %v2964
      %v2966 = vpop.f32.mrf.mxu0
      %v2967 = vadd.f32 0.0, %v2966
      %2968 = vmatmul.bf16.gmra.mxu0 %v2824
      %v2969 = vpop.f32.mrf.mxu0
      %v2970 = vadd.f32 0.0, %v2969
      %v2971 = vpop.f32.mrf.mxu0
      %v2972 = vadd.f32 0.0, %v2971
      %2973 = vmatmul.bf16.gmra.mxu0 %v2825
      %v2974 = vpop.f32.mrf.mxu0
      %v2975 = vadd.f32 0.0, %v2974
      %v2976 = vpop.f32.mrf.mxu0
      %v2977 = vadd.f32 0.0, %v2976
      %2978 = vdwg.mxu0
      %v2979 = vadd.f32 %v2553, %v2900
      %v2980 = vadd.f32 %v2554, %v2902
      %v2981 = vadd.f32 %v2555, %v2905
      %v2982 = vadd.f32 %v2556, %v2907
      %v2983 = vadd.f32 %v2557, %v2910
      %v2984 = vadd.f32 %v2558, %v2912
      %v2985 = vadd.f32 %v2559, %v2915
      %v2986 = vadd.f32 %v2560, %v2917
      %v2987 = vadd.f32 %v2561, %v2920
      %v2988 = vadd.f32 %v2562, %v2922
      %v2989 = vadd.f32 %v2563, %v2925
      %v2990 = vadd.f32 %v2564, %v2927
      %v2991 = vadd.f32 %v2565, %v2930
      %v2992 = vadd.f32 %v2566, %v2932
      %v2993 = vadd.f32 %v2567, %v2935
      %v2994 = vadd.f32 %v2568, %v2937
      %v2995 = vadd.f32 %v2569, %v2940
      %v2996 = vadd.f32 %v2570, %v2942
      %v2997 = vadd.f32 %v2571, %v2945
      %v2998 = vadd.f32 %v2572, %v2947
      %v2999 = vadd.f32 %v2573, %v2950
      %v3000 = vadd.f32 %v2574, %v2952
      %v3001 = vadd.f32 %v2575, %v2955
      %v3002 = vadd.f32 %v2576, %v2957
      %v3003 = vadd.f32 %v2577, %v2960
      %v3004 = vadd.f32 %v2578, %v2962
      %v3005 = vadd.f32 %v2579, %v2965
      %v3006 = vadd.f32 %v2580, %v2967
      %v3007 = vadd.f32 %v2581, %v2970
      %v3008 = vadd.f32 %v2582, %v2972
      %v3009 = vadd.f32 %v2583, %v2975
      %v3010 = vadd.f32 %v2584, %v2977
      %s3011 = scalar_lea.vmem %s261, 24
      %v3012 = vld [vmem:[%s3011] sm:$0xf]
      %v3013 = vld [vmem:[%s3011 + $0x4] sm:$0xf]
      %v3014 = vld [vmem:[%s3011 + $0xc] sm:$0xf]
      %v3015 = vld [vmem:[%s3011 + $0x10] sm:$0xf]
      %v3016 = vld [vmem:[%s3011 + $0x18] sm:$0xf]
      %v3017 = vld [vmem:[%s3011 + $0x1c] sm:$0xf]
      %v3018 = vld [vmem:[%s3011 + $0x24] sm:$0xf]
      %v3019 = vld [vmem:[%s3011 + $0x28] sm:$0xf]
      %v3020 = vld [vmem:[%s3011 + $0x30] sm:$0xf]
      %v3021 = vld [vmem:[%s3011 + $0x34] sm:$0xf]
      %v3022 = vld [vmem:[%s3011 + $0x3c] sm:$0xf]
      %v3023 = vld [vmem:[%s3011 + $0x40] sm:$0xf]
      %v3024 = vld [vmem:[%s3011 + $0x48] sm:$0xf]
      %v3025 = vld [vmem:[%s3011 + $0x4c] sm:$0xf]
      %v3026 = vld [vmem:[%s3011 + $0x54] sm:$0xf]
      %v3027 = vld [vmem:[%s3011 + $0x58] sm:$0xf]
      %v3028 = vld [vmem:[%s3011 + $0x60] sm:$0xf]
      %v3029 = vld [vmem:[%s3011 + $0x64] sm:$0xf]
      %v3030 = vld [vmem:[%s3011 + $0x6c] sm:$0xf]
      %v3031 = vld [vmem:[%s3011 + $0x70] sm:$0xf]
      %v3032 = vld [vmem:[%s3011 + $0x78] sm:$0xf]
      %v3033 = vld [vmem:[%s3011 + $0x7c] sm:$0xf]
      %v3034 = vld [vmem:[%s3011 + $0x84] sm:$0xf]
      %v3035 = vld [vmem:[%s3011 + $0x88] sm:$0xf]
      %v3036 = vld [vmem:[%s3011 + $0x90] sm:$0xf]
      %v3037 = vld [vmem:[%s3011 + $0x94] sm:$0xf]
      %v3038 = vld [vmem:[%s3011 + $0x9c] sm:$0xf]
      %v3039 = vld [vmem:[%s3011 + $0xa0] sm:$0xf]
      %v3040 = vld [vmem:[%s3011 + $0xa8] sm:$0xf]
      %v3041 = vld [vmem:[%s3011 + $0xac] sm:$0xf]
      %v3042 = vld [vmem:[%s3011 + $0xb4] sm:$0xf]
      %v3043 = vld [vmem:[%s3011 + $0xb8] sm:$0xf]
      %s3044 = scalar_lea.vmem %s2, 384
      %v3045 = vld [vmem:[%s3044] sm:$0xf]
      %v3046 = vld [vmem:[%s3044 + $0x4] sm:$0xf]
      %v3047 = vld [vmem:[%s3044 + $0x8] sm:$0xf]
      %v3048 = vld [vmem:[%s3044 + $0xc] sm:$0xf]
      %v3049 = vld [vmem:[%s3044 + $0x10] sm:$0xf]
      %v3050 = vld [vmem:[%s3044 + $0x14] sm:$0xf]
      %v3051 = vld [vmem:[%s3044 + $0x18] sm:$0xf]
      %v3052 = vld [vmem:[%s3044 + $0x1c] sm:$0xf]
      %v3053 = vld [vmem:[%s3044 + $0x20] sm:$0xf]
      %v3054 = vld [vmem:[%s3044 + $0x24] sm:$0xf]
      %v3055 = vld [vmem:[%s3044 + $0x28] sm:$0xf]
      %v3056 = vld [vmem:[%s3044 + $0x2c] sm:$0xf]
      %v3057 = vld [vmem:[%s3044 + $0x30] sm:$0xf]
      %v3058 = vld [vmem:[%s3044 + $0x34] sm:$0xf]
      %v3059 = vld [vmem:[%s3044 + $0x38] sm:$0xf]
      %v3060 = vld [vmem:[%s3044 + $0x3c] sm:$0xf]
      %v3093 = vunpack.c.l.b16 %v3012
      %v3094 = vunpack.c.l.b16 %v3013
      %v3095 = vunpack.c.l.b16 %v3014
      %v3096 = vunpack.c.l.b16 %v3015
      %v3097 = vunpack.c.l.b16 %v3016
      %v3098 = vunpack.c.l.b16 %v3017
      %v3099 = vunpack.c.l.b16 %v3018
      %v3100 = vunpack.c.l.b16 %v3019
      %v3101 = vunpack.c.l.b16 %v3020
      %v3102 = vunpack.c.l.b16 %v3021
      %v3103 = vunpack.c.l.b16 %v3022
      %v3104 = vunpack.c.l.b16 %v3023
      %v3105 = vunpack.c.l.b16 %v3024
      %v3106 = vunpack.c.l.b16 %v3025
      %v3107 = vunpack.c.l.b16 %v3026
      %v3108 = vunpack.c.l.b16 %v3027
      %v3109 = vunpack.c.l.b16 %v3028
      %v3110 = vunpack.c.l.b16 %v3029
      %v3111 = vunpack.c.l.b16 %v3030
      %v3112 = vunpack.c.l.b16 %v3031
      %v3113 = vunpack.c.l.b16 %v3032
      %v3114 = vunpack.c.l.b16 %v3033
      %v3115 = vunpack.c.l.b16 %v3034
      %v3116 = vunpack.c.l.b16 %v3035
      %v3117 = vunpack.c.l.b16 %v3036
      %v3118 = vunpack.c.l.b16 %v3037
      %v3119 = vunpack.c.l.b16 %v3038
      %v3120 = vunpack.c.l.b16 %v3039
      %v3121 = vunpack.c.l.b16 %v3040
      %v3122 = vunpack.c.l.b16 %v3041
      %v3123 = vunpack.c.l.b16 %v3042
      %v3124 = vunpack.c.l.b16 %v3043
      %v3125 = vpack.c.b16 %v3094, %v3093
      %v3126 = vpack.c.b16 %v3096, %v3095
      %v3127 = vpack.c.b16 %v3098, %v3097
      %v3128 = vpack.c.b16 %v3100, %v3099
      %v3129 = vpack.c.b16 %v3102, %v3101
      %v3130 = vpack.c.b16 %v3104, %v3103
      %v3131 = vpack.c.b16 %v3106, %v3105
      %v3132 = vpack.c.b16 %v3108, %v3107
      %v3133 = vpack.c.b16 %v3110, %v3109
      %v3134 = vpack.c.b16 %v3112, %v3111
      %v3135 = vpack.c.b16 %v3114, %v3113
      %v3136 = vpack.c.b16 %v3116, %v3115
      %v3137 = vpack.c.b16 %v3118, %v3117
      %v3138 = vpack.c.b16 %v3120, %v3119
      %v3139 = vpack.c.b16 %v3122, %v3121
      %v3140 = vpack.c.b16 %v3124, %v3123
      %v3173 = vunpack.c.l.b16 %v3045
      %v3174 = vunpack.c.l.b16 %v3046
      %v3175 = vunpack.c.l.b16 %v3047
      %v3176 = vunpack.c.l.b16 %v3048
      %v3177 = vunpack.c.l.b16 %v3049
      %v3178 = vunpack.c.l.b16 %v3050
      %v3179 = vunpack.c.l.b16 %v3051
      %v3180 = vunpack.c.l.b16 %v3052
      %v3181 = vunpack.c.l.b16 %v3053
      %v3182 = vunpack.c.l.b16 %v3054
      %v3183 = vunpack.c.l.b16 %v3055
      %v3184 = vunpack.c.l.b16 %v3056
      %v3185 = vunpack.c.l.b16 %v3057
      %v3186 = vunpack.c.l.b16 %v3058
      %v3187 = vunpack.c.l.b16 %v3059
      %v3188 = vunpack.c.l.b16 %v3060
      %v3189 = vpack.c.b16 %v3174, %v3173
      %v3190 = vpack.c.b16 %v3176, %v3175
      %v3191 = vpack.c.b16 %v3178, %v3177
      %v3192 = vpack.c.b16 %v3180, %v3179
      %v3193 = vpack.c.b16 %v3182, %v3181
      %v3194 = vpack.c.b16 %v3184, %v3183
      %v3195 = vpack.c.b16 %v3186, %v3185
      %v3196 = vpack.c.b16 %v3188, %v3187
      %3205 = vmatpush.bf16.msra.mxu0 %v3196
      %3206 = vmatpush.bf16.msra.mxu0 %v3195
      %3207 = vmatpush.bf16.msra.mxu0 %v3194
      %3208 = vmatpush.bf16.msra.mxu0 %v3193
      %3209 = vmatpush.bf16.msra.mxu0 %v3192
      %3210 = vmatpush.bf16.msra.mxu0 %v3191
      %3211 = vmatpush.bf16.msra.mxu0 %v3190
      %3212 = vmatpush.bf16.msra.mxu0 %v3189
      %3213 = vmatmul.bf16.gmra.mxu0 %v3125
      %v3214 = vpop.f32.mrf.mxu0
      %v3215 = vadd.f32 0.0, %v3214
      %v3216 = vpop.f32.mrf.mxu0
      %v3217 = vadd.f32 0.0, %v3216
      %3218 = vmatmul.bf16.gmra.mxu0 %v3126
      %v3219 = vpop.f32.mrf.mxu0
      %v3220 = vadd.f32 0.0, %v3219
      %v3221 = vpop.f32.mrf.mxu0
      %v3222 = vadd.f32 0.0, %v3221
      %3223 = vmatmul.bf16.gmra.mxu0 %v3127
      %v3224 = vpop.f32.mrf.mxu0
      %v3225 = vadd.f32 0.0, %v3224
      %v3226 = vpop.f32.mrf.mxu0
      %v3227 = vadd.f32 0.0, %v3226
      %3228 = vmatmul.bf16.gmra.mxu0 %v3128
      %v3229 = vpop.f32.mrf.mxu0
      %v3230 = vadd.f32 0.0, %v3229
      %v3231 = vpop.f32.mrf.mxu0
      %v3232 = vadd.f32 0.0, %v3231
      %3233 = vmatmul.bf16.gmra.mxu0 %v3129
      %v3234 = vpop.f32.mrf.mxu0
      %v3235 = vadd.f32 0.0, %v3234
      %v3236 = vpop.f32.mrf.mxu0
      %v3237 = vadd.f32 0.0, %v3236
      %3238 = vmatmul.bf16.gmra.mxu0 %v3130
      %v3239 = vpop.f32.mrf.mxu0
      %v3240 = vadd.f32 0.0, %v3239
      %v3241 = vpop.f32.mrf.mxu0
      %v3242 = vadd.f32 0.0, %v3241
      %3243 = vmatmul.bf16.gmra.mxu0 %v3131
      %v3244 = vpop.f32.mrf.mxu0
      %v3245 = vadd.f32 0.0, %v3244
      %v3246 = vpop.f32.mrf.mxu0
      %v3247 = vadd.f32 0.0, %v3246
      %3248 = vmatmul.bf16.gmra.mxu0 %v3132
      %v3249 = vpop.f32.mrf.mxu0
      %v3250 = vadd.f32 0.0, %v3249
      %v3251 = vpop.f32.mrf.mxu0
      %v3252 = vadd.f32 0.0, %v3251
      %3253 = vmatmul.bf16.gmra.mxu0 %v3133
      %v3254 = vpop.f32.mrf.mxu0
      %v3255 = vadd.f32 0.0, %v3254
      %v3256 = vpop.f32.mrf.mxu0
      %v3257 = vadd.f32 0.0, %v3256
      %3258 = vmatmul.bf16.gmra.mxu0 %v3134
      %v3259 = vpop.f32.mrf.mxu0
      %v3260 = vadd.f32 0.0, %v3259
      %v3261 = vpop.f32.mrf.mxu0
      %v3262 = vadd.f32 0.0, %v3261
      %3263 = vmatmul.bf16.gmra.mxu0 %v3135
      %v3264 = vpop.f32.mrf.mxu0
      %v3265 = vadd.f32 0.0, %v3264
      %v3266 = vpop.f32.mrf.mxu0
      %v3267 = vadd.f32 0.0, %v3266
      %3268 = vmatmul.bf16.gmra.mxu0 %v3136
      %v3269 = vpop.f32.mrf.mxu0
      %v3270 = vadd.f32 0.0, %v3269
      %v3271 = vpop.f32.mrf.mxu0
      %v3272 = vadd.f32 0.0, %v3271
      %3273 = vmatmul.bf16.gmra.mxu0 %v3137
      %v3274 = vpop.f32.mrf.mxu0
      %v3275 = vadd.f32 0.0, %v3274
      %v3276 = vpop.f32.mrf.mxu0
      %v3277 = vadd.f32 0.0, %v3276
      %3278 = vmatmul.bf16.gmra.mxu0 %v3138
      %v3279 = vpop.f32.mrf.mxu0
      %v3280 = vadd.f32 0.0, %v3279
      %v3281 = vpop.f32.mrf.mxu0
      %v3282 = vadd.f32 0.0, %v3281
      %3283 = vmatmul.bf16.gmra.mxu0 %v3139
      %v3284 = vpop.f32.mrf.mxu0
      %v3285 = vadd.f32 0.0, %v3284
      %v3286 = vpop.f32.mrf.mxu0
      %v3287 = vadd.f32 0.0, %v3286
      %3288 = vmatmul.bf16.gmra.mxu0 %v3140
      %v3289 = vpop.f32.mrf.mxu0
      %v3290 = vadd.f32 0.0, %v3289
      %v3291 = vpop.f32.mrf.mxu0
      %v3292 = vadd.f32 0.0, %v3291
      %3293 = vdwg.mxu0
      %v3294 = vadd.f32 %v2979, %v3215
      %v3295 = vadd.f32 %v2980, %v3217
      %v3296 = vadd.f32 %v2981, %v3220
      %v3297 = vadd.f32 %v2982, %v3222
      %v3298 = vadd.f32 %v2983, %v3225
      %v3299 = vadd.f32 %v2984, %v3227
      %v3300 = vadd.f32 %v2985, %v3230
      %v3301 = vadd.f32 %v2986, %v3232
      %v3302 = vadd.f32 %v2987, %v3235
      %v3303 = vadd.f32 %v2988, %v3237
      %v3304 = vadd.f32 %v2989, %v3240
      %v3305 = vadd.f32 %v2990, %v3242
      %v3306 = vadd.f32 %v2991, %v3245
      %v3307 = vadd.f32 %v2992, %v3247
      %v3308 = vadd.f32 %v2993, %v3250
      %v3309 = vadd.f32 %v2994, %v3252
      %v3310 = vadd.f32 %v2995, %v3255
      %v3311 = vadd.f32 %v2996, %v3257
      %v3312 = vadd.f32 %v2997, %v3260
      %v3313 = vadd.f32 %v2998, %v3262
      %v3314 = vadd.f32 %v2999, %v3265
      %v3315 = vadd.f32 %v3000, %v3267
      %v3316 = vadd.f32 %v3001, %v3270
      %v3317 = vadd.f32 %v3002, %v3272
      %v3318 = vadd.f32 %v3003, %v3275
      %v3319 = vadd.f32 %v3004, %v3277
      %v3320 = vadd.f32 %v3005, %v3280
      %v3321 = vadd.f32 %v3006, %v3282
      %v3322 = vadd.f32 %v3007, %v3285
      %v3323 = vadd.f32 %v3008, %v3287
      %v3324 = vadd.f32 %v3009, %v3290
      %v3325 = vadd.f32 %v3010, %v3292
      %v3326 = vld [vmem:[%s3011] sm:$0xf]
      %v3327 = vld [vmem:[%s3011 + $0x4] sm:$0xf]
      %v3328 = vld [vmem:[%s3011 + $0x8] sm:$0x1]
      %v3329 = vld [vmem:[%s3011 + $0xc] sm:$0xf]
      %v3330 = vld [vmem:[%s3011 + $0x10] sm:$0xf]
      %v3331 = vld [vmem:[%s3011 + $0x14] sm:$0x1]
      %v3332 = vld [vmem:[%s3011 + $0x18] sm:$0xf]
      %v3333 = vld [vmem:[%s3011 + $0x1c] sm:$0xf]
      %v3334 = vld [vmem:[%s3011 + $0x20] sm:$0x1]
      %v3335 = vld [vmem:[%s3011 + $0x24] sm:$0xf]
      %v3336 = vld [vmem:[%s3011 + $0x28] sm:$0xf]
      %v3337 = vld [vmem:[%s3011 + $0x2c] sm:$0x1]
      %v3338 = vld [vmem:[%s3011 + $0x30] sm:$0xf]
      %v3339 = vld [vmem:[%s3011 + $0x34] sm:$0xf]
      %v3340 = vld [vmem:[%s3011 + $0x38] sm:$0x1]
      %v3341 = vld [vmem:[%s3011 + $0x3c] sm:$0xf]
      %v3342 = vld [vmem:[%s3011 + $0x40] sm:$0xf]
      %v3343 = vld [vmem:[%s3011 + $0x44] sm:$0x1]
      %v3344 = vld [vmem:[%s3011 + $0x48] sm:$0xf]
      %v3345 = vld [vmem:[%s3011 + $0x4c] sm:$0xf]
      %v3346 = vld [vmem:[%s3011 + $0x50] sm:$0x1]
      %v3347 = vld [vmem:[%s3011 + $0x54] sm:$0xf]
      %v3348 = vld [vmem:[%s3011 + $0x58] sm:$0xf]
      %v3349 = vld [vmem:[%s3011 + $0x5c] sm:$0x1]
      %v3350 = vld [vmem:[%s3011 + $0x60] sm:$0xf]
      %v3351 = vld [vmem:[%s3011 + $0x64] sm:$0xf]
      %v3352 = vld [vmem:[%s3011 + $0x68] sm:$0x1]
      %v3353 = vld [vmem:[%s3011 + $0x6c] sm:$0xf]
      %v3354 = vld [vmem:[%s3011 + $0x70] sm:$0xf]
      %v3355 = vld [vmem:[%s3011 + $0x74] sm:$0x1]
      %v3356 = vld [vmem:[%s3011 + $0x78] sm:$0xf]
      %v3357 = vld [vmem:[%s3011 + $0x7c] sm:$0xf]
      %v3358 = vld [vmem:[%s3011 + $0x80] sm:$0x1]
      %v3359 = vld [vmem:[%s3011 + $0x84] sm:$0xf]
      %v3360 = vld [vmem:[%s3011 + $0x88] sm:$0xf]
      %v3361 = vld [vmem:[%s3011 + $0x8c] sm:$0x1]
      %v3362 = vld [vmem:[%s3011 + $0x90] sm:$0xf]
      %v3363 = vld [vmem:[%s3011 + $0x94] sm:$0xf]
      %v3364 = vld [vmem:[%s3011 + $0x98] sm:$0x1]
      %v3365 = vld [vmem:[%s3011 + $0x9c] sm:$0xf]
      %v3366 = vld [vmem:[%s3011 + $0xa0] sm:$0xf]
      %v3367 = vld [vmem:[%s3011 + $0xa4] sm:$0x1]
      %v3368 = vld [vmem:[%s3011 + $0xa8] sm:$0xf]
      %v3369 = vld [vmem:[%s3011 + $0xac] sm:$0xf]
      %v3370 = vld [vmem:[%s3011 + $0xb0] sm:$0x1]
      %v3371 = vld [vmem:[%s3011 + $0xb4] sm:$0xf]
      %v3372 = vld [vmem:[%s3011 + $0xb8] sm:$0xf]
      %v3373 = vld [vmem:[%s3011 + $0xbc] sm:$0x1]
      %v3375 = vshrl.u32 %v3326, 16
      %v3377 = vrot.slane %v3375, 4
      %v3378 = vshll.u32 %v3326, 16
      %v3380 = vrot.slane %v3378, 5
      %v3381 = vor.u32 %v3377, %v3380
      %v3382 = vrot.slane %v3381, 4
      %v3384 = vshll.u32 %v3327, 16
      %v3386 = vrot.slane %v3384, 5
      %v3387 = vsel %vm339, %v3382, %v3386
      %v3388 = vshrl.u32 %v3327, 16
      %v3390 = vrot.slane %v3388, 4
      %v3391 = vor.u32 %v3390, %v3386
      %v3392 = vrot.slane %v3391, 4
      %v3394 = vshll.u32 %v3328, 16
      %v3396 = vrot.slane %v3394, 5
      %v3397 = vsel %vm339, %v3392, %v3396
      %v3399 = vshrl.u32 %v3329, 16
      %v3401 = vrot.slane %v3399, 4
      %v3402 = vshll.u32 %v3329, 16
      %v3404 = vrot.slane %v3402, 5
      %v3405 = vor.u32 %v3401, %v3404
      %v3406 = vrot.slane %v3405, 4
      %v3408 = vshll.u32 %v3330, 16
      %v3410 = vrot.slane %v3408, 5
      %v3411 = vsel %vm339, %v3406, %v3410
      %v3412 = vshrl.u32 %v3330, 16
      %v3414 = vrot.slane %v3412, 4
      %v3415 = vor.u32 %v3414, %v3410
      %v3416 = vrot.slane %v3415, 4
      %v3418 = vshll.u32 %v3331, 16
      %v3420 = vrot.slane %v3418, 5
      %v3421 = vsel %vm339, %v3416, %v3420
      %v3423 = vshrl.u32 %v3332, 16
      %v3425 = vrot.slane %v3423, 4
      %v3426 = vshll.u32 %v3332, 16
      %v3428 = vrot.slane %v3426, 5
      %v3429 = vor.u32 %v3425, %v3428
      %v3430 = vrot.slane %v3429, 4
      %v3432 = vshll.u32 %v3333, 16
      %v3434 = vrot.slane %v3432, 5
      %v3435 = vsel %vm339, %v3430, %v3434
      %v3436 = vshrl.u32 %v3333, 16
      %v3438 = vrot.slane %v3436, 4
      %v3439 = vor.u32 %v3438, %v3434
      %v3440 = vrot.slane %v3439, 4
      %v3442 = vshll.u32 %v3334, 16
      %v3444 = vrot.slane %v3442, 5
      %v3445 = vsel %vm339, %v3440, %v3444
      %v3447 = vshrl.u32 %v3335, 16
      %v3449 = vrot.slane %v3447, 4
      %v3450 = vshll.u32 %v3335, 16
      %v3452 = vrot.slane %v3450, 5
      %v3453 = vor.u32 %v3449, %v3452
      %v3454 = vrot.slane %v3453, 4
      %v3456 = vshll.u32 %v3336, 16
      %v3458 = vrot.slane %v3456, 5
      %v3459 = vsel %vm339, %v3454, %v3458
      %v3460 = vshrl.u32 %v3336, 16
      %v3462 = vrot.slane %v3460, 4
      %v3463 = vor.u32 %v3462, %v3458
      %v3464 = vrot.slane %v3463, 4
      %v3466 = vshll.u32 %v3337, 16
      %v3468 = vrot.slane %v3466, 5
      %v3469 = vsel %vm339, %v3464, %v3468
      %v3471 = vshrl.u32 %v3338, 16
      %v3473 = vrot.slane %v3471, 4
      %v3474 = vshll.u32 %v3338, 16
      %v3476 = vrot.slane %v3474, 5
      %v3477 = vor.u32 %v3473, %v3476
      %v3478 = vrot.slane %v3477, 4
      %v3480 = vshll.u32 %v3339, 16
      %v3482 = vrot.slane %v3480, 5
      %v3483 = vsel %vm339, %v3478, %v3482
      %v3484 = vshrl.u32 %v3339, 16
      %v3486 = vrot.slane %v3484, 4
      %v3487 = vor.u32 %v3486, %v3482
      %v3488 = vrot.slane %v3487, 4
      %v3490 = vshll.u32 %v3340, 16
      %v3492 = vrot.slane %v3490, 5
      %v3493 = vsel %vm339, %v3488, %v3492
      %v3495 = vshrl.u32 %v3341, 16
      %v3497 = vrot.slane %v3495, 4
      %v3498 = vshll.u32 %v3341, 16
      %v3500 = vrot.slane %v3498, 5
      %v3501 = vor.u32 %v3497, %v3500
      %v3502 = vrot.slane %v3501, 4
      %v3504 = vshll.u32 %v3342, 16
      %v3506 = vrot.slane %v3504, 5
      %v3507 = vsel %vm339, %v3502, %v3506
      %v3508 = vshrl.u32 %v3342, 16
      %v3510 = vrot.slane %v3508, 4
      %v3511 = vor.u32 %v3510, %v3506
      %v3512 = vrot.slane %v3511, 4
      %v3514 = vshll.u32 %v3343, 16
      %v3516 = vrot.slane %v3514, 5
      %v3517 = vsel %vm339, %v3512, %v3516
      %v3519 = vshrl.u32 %v3344, 16
      %v3521 = vrot.slane %v3519, 4
      %v3522 = vshll.u32 %v3344, 16
      %v3524 = vrot.slane %v3522, 5
      %v3525 = vor.u32 %v3521, %v3524
      %v3526 = vrot.slane %v3525, 4
      %v3528 = vshll.u32 %v3345, 16
      %v3530 = vrot.slane %v3528, 5
      %v3531 = vsel %vm339, %v3526, %v3530
      %v3532 = vshrl.u32 %v3345, 16
      %v3534 = vrot.slane %v3532, 4
      %v3535 = vor.u32 %v3534, %v3530
      %v3536 = vrot.slane %v3535, 4
      %v3538 = vshll.u32 %v3346, 16
      %v3540 = vrot.slane %v3538, 5
      %v3541 = vsel %vm339, %v3536, %v3540
      %v3543 = vshrl.u32 %v3347, 16
      %v3545 = vrot.slane %v3543, 4
      %v3546 = vshll.u32 %v3347, 16
      %v3548 = vrot.slane %v3546, 5
      %v3549 = vor.u32 %v3545, %v3548
      %v3550 = vrot.slane %v3549, 4
      %v3552 = vshll.u32 %v3348, 16
      %v3554 = vrot.slane %v3552, 5
      %v3555 = vsel %vm339, %v3550, %v3554
      %v3556 = vshrl.u32 %v3348, 16
      %v3558 = vrot.slane %v3556, 4
      %v3559 = vor.u32 %v3558, %v3554
      %v3560 = vrot.slane %v3559, 4
      %v3562 = vshll.u32 %v3349, 16
      %v3564 = vrot.slane %v3562, 5
      %v3565 = vsel %vm339, %v3560, %v3564
      %v3567 = vshrl.u32 %v3350, 16
      %v3569 = vrot.slane %v3567, 4
      %v3570 = vshll.u32 %v3350, 16
      %v3572 = vrot.slane %v3570, 5
      %v3573 = vor.u32 %v3569, %v3572
      %v3574 = vrot.slane %v3573, 4
      %v3576 = vshll.u32 %v3351, 16
      %v3578 = vrot.slane %v3576, 5
      %v3579 = vsel %vm339, %v3574, %v3578
      %v3580 = vshrl.u32 %v3351, 16
      %v3582 = vrot.slane %v3580, 4
      %v3583 = vor.u32 %v3582, %v3578
      %v3584 = vrot.slane %v3583, 4
      %v3586 = vshll.u32 %v3352, 16
      %v3588 = vrot.slane %v3586, 5
      %v3589 = vsel %vm339, %v3584, %v3588
      %v3591 = vshrl.u32 %v3353, 16
      %v3593 = vrot.slane %v3591, 4
      %v3594 = vshll.u32 %v3353, 16
      %v3596 = vrot.slane %v3594, 5
      %v3597 = vor.u32 %v3593, %v3596
      %v3598 = vrot.slane %v3597, 4
      %v3600 = vshll.u32 %v3354, 16
      %v3602 = vrot.slane %v3600, 5
      %v3603 = vsel %vm339, %v3598, %v3602
      %v3604 = vshrl.u32 %v3354, 16
      %v3606 = vrot.slane %v3604, 4
      %v3607 = vor.u32 %v3606, %v3602
      %v3608 = vrot.slane %v3607, 4
      %v3610 = vshll.u32 %v3355, 16
      %v3612 = vrot.slane %v3610, 5
      %v3613 = vsel %vm339, %v3608, %v3612
      %v3615 = vshrl.u32 %v3356, 16
      %v3617 = vrot.slane %v3615, 4
      %v3618 = vshll.u32 %v3356, 16
      %v3620 = vrot.slane %v3618, 5
      %v3621 = vor.u32 %v3617, %v3620
      %v3622 = vrot.slane %v3621, 4
      %v3624 = vshll.u32 %v3357, 16
      %v3626 = vrot.slane %v3624, 5
      %v3627 = vsel %vm339, %v3622, %v3626
      %v3628 = vshrl.u32 %v3357, 16
      %v3630 = vrot.slane %v3628, 4
      %v3631 = vor.u32 %v3630, %v3626
      %v3632 = vrot.slane %v3631, 4
      %v3634 = vshll.u32 %v3358, 16
      %v3636 = vrot.slane %v3634, 5
      %v3637 = vsel %vm339, %v3632, %v3636
      %v3639 = vshrl.u32 %v3359, 16
      %v3641 = vrot.slane %v3639, 4
      %v3642 = vshll.u32 %v3359, 16
      %v3644 = vrot.slane %v3642, 5
      %v3645 = vor.u32 %v3641, %v3644
      %v3646 = vrot.slane %v3645, 4
      %v3648 = vshll.u32 %v3360, 16
      %v3650 = vrot.slane %v3648, 5
      %v3651 = vsel %vm339, %v3646, %v3650
      %v3652 = vshrl.u32 %v3360, 16
      %v3654 = vrot.slane %v3652, 4
      %v3655 = vor.u32 %v3654, %v3650
      %v3656 = vrot.slane %v3655, 4
      %v3658 = vshll.u32 %v3361, 16
      %v3660 = vrot.slane %v3658, 5
      %v3661 = vsel %vm339, %v3656, %v3660
      %v3663 = vshrl.u32 %v3362, 16
      %v3665 = vrot.slane %v3663, 4
      %v3666 = vshll.u32 %v3362, 16
      %v3668 = vrot.slane %v3666, 5
      %v3669 = vor.u32 %v3665, %v3668
      %v3670 = vrot.slane %v3669, 4
      %v3672 = vshll.u32 %v3363, 16
      %v3674 = vrot.slane %v3672, 5
      %v3675 = vsel %vm339, %v3670, %v3674
      %v3676 = vshrl.u32 %v3363, 16
      %v3678 = vrot.slane %v3676, 4
      %v3679 = vor.u32 %v3678, %v3674
      %v3680 = vrot.slane %v3679, 4
      %v3682 = vshll.u32 %v3364, 16
      %v3684 = vrot.slane %v3682, 5
      %v3685 = vsel %vm339, %v3680, %v3684
      %v3687 = vshrl.u32 %v3365, 16
      %v3689 = vrot.slane %v3687, 4
      %v3690 = vshll.u32 %v3365, 16
      %v3692 = vrot.slane %v3690, 5
      %v3693 = vor.u32 %v3689, %v3692
      %v3694 = vrot.slane %v3693, 4
      %v3696 = vshll.u32 %v3366, 16
      %v3698 = vrot.slane %v3696, 5
      %v3699 = vsel %vm339, %v3694, %v3698
      %v3700 = vshrl.u32 %v3366, 16
      %v3702 = vrot.slane %v3700, 4
      %v3703 = vor.u32 %v3702, %v3698
      %v3704 = vrot.slane %v3703, 4
      %v3706 = vshll.u32 %v3367, 16
      %v3708 = vrot.slane %v3706, 5
      %v3709 = vsel %vm339, %v3704, %v3708
      %v3711 = vshrl.u32 %v3368, 16
      %v3713 = vrot.slane %v3711, 4
      %v3714 = vshll.u32 %v3368, 16
      %v3716 = vrot.slane %v3714, 5
      %v3717 = vor.u32 %v3713, %v3716
      %v3718 = vrot.slane %v3717, 4
      %v3720 = vshll.u32 %v3369, 16
      %v3722 = vrot.slane %v3720, 5
      %v3723 = vsel %vm339, %v3718, %v3722
      %v3724 = vshrl.u32 %v3369, 16
      %v3726 = vrot.slane %v3724, 4
      %v3727 = vor.u32 %v3726, %v3722
      %v3728 = vrot.slane %v3727, 4
      %v3730 = vshll.u32 %v3370, 16
      %v3732 = vrot.slane %v3730, 5
      %v3733 = vsel %vm339, %v3728, %v3732
      %v3735 = vshrl.u32 %v3371, 16
      %v3737 = vrot.slane %v3735, 4
      %v3738 = vshll.u32 %v3371, 16
      %v3740 = vrot.slane %v3738, 5
      %v3741 = vor.u32 %v3737, %v3740
      %v3742 = vrot.slane %v3741, 4
      %v3744 = vshll.u32 %v3372, 16
      %v3746 = vrot.slane %v3744, 5
      %v3747 = vsel %vm339, %v3742, %v3746
      %v3748 = vshrl.u32 %v3372, 16
      %v3750 = vrot.slane %v3748, 4
      %v3751 = vor.u32 %v3750, %v3746
      %v3752 = vrot.slane %v3751, 4
      %v3754 = vshll.u32 %v3373, 16
      %v3756 = vrot.slane %v3754, 5
      %v3757 = vsel %vm339, %v3752, %v3756
      %s3758 = scalar_lea.vmem %s2, 448
      %v3759 = vld [vmem:[%s3758] sm:$0xf]
      %v3760 = vld [vmem:[%s3758 + $0x4] sm:$0xf]
      %v3761 = vld [vmem:[%s3758 + $0x8] sm:$0xf]
      %v3762 = vld [vmem:[%s3758 + $0xc] sm:$0xf]
      %v3763 = vld [vmem:[%s3758 + $0x10] sm:$0xf]
      %v3764 = vld [vmem:[%s3758 + $0x14] sm:$0xf]
      %v3765 = vld [vmem:[%s3758 + $0x18] sm:$0xf]
      %v3766 = vld [vmem:[%s3758 + $0x1c] sm:$0xf]
      %v3767 = vld [vmem:[%s3758 + $0x20] sm:$0xf]
      %v3768 = vld [vmem:[%s3758 + $0x24] sm:$0xf]
      %v3769 = vld [vmem:[%s3758 + $0x28] sm:$0xf]
      %v3770 = vld [vmem:[%s3758 + $0x2c] sm:$0xf]
      %v3771 = vld [vmem:[%s3758 + $0x30] sm:$0xf]
      %v3772 = vld [vmem:[%s3758 + $0x34] sm:$0xf]
      %v3773 = vld [vmem:[%s3758 + $0x38] sm:$0xf]
      %v3774 = vld [vmem:[%s3758 + $0x3c] sm:$0xf]
      %v3775 = vunpack.c.l.b16 %v3387
      %v3776 = vunpack.c.l.b16 %v3397
      %v3777 = vunpack.c.l.b16 %v3411
      %v3778 = vunpack.c.l.b16 %v3421
      %v3779 = vunpack.c.l.b16 %v3435
      %v3780 = vunpack.c.l.b16 %v3445
      %v3781 = vunpack.c.l.b16 %v3459
      %v3782 = vunpack.c.l.b16 %v3469
      %v3783 = vunpack.c.l.b16 %v3483
      %v3784 = vunpack.c.l.b16 %v3493
      %v3785 = vunpack.c.l.b16 %v3507
      %v3786 = vunpack.c.l.b16 %v3517
      %v3787 = vunpack.c.l.b16 %v3531
      %v3788 = vunpack.c.l.b16 %v3541
      %v3789 = vunpack.c.l.b16 %v3555
      %v3790 = vunpack.c.l.b16 %v3565
      %v3791 = vunpack.c.l.b16 %v3579
      %v3792 = vunpack.c.l.b16 %v3589
      %v3793 = vunpack.c.l.b16 %v3603
      %v3794 = vunpack.c.l.b16 %v3613
      %v3795 = vunpack.c.l.b16 %v3627
      %v3796 = vunpack.c.l.b16 %v3637
      %v3797 = vunpack.c.l.b16 %v3651
      %v3798 = vunpack.c.l.b16 %v3661
      %v3799 = vunpack.c.l.b16 %v3675
      %v3800 = vunpack.c.l.b16 %v3685
      %v3801 = vunpack.c.l.b16 %v3699
      %v3802 = vunpack.c.l.b16 %v3709
      %v3803 = vunpack.c.l.b16 %v3723
      %v3804 = vunpack.c.l.b16 %v3733
      %v3805 = vunpack.c.l.b16 %v3747
      %v3806 = vunpack.c.l.b16 %v3757
      %v3807 = vpack.c.b16 %v3776, %v3775
      %v3808 = vpack.c.b16 %v3778, %v3777
      %v3809 = vpack.c.b16 %v3780, %v3779
      %v3810 = vpack.c.b16 %v3782, %v3781
      %v3811 = vpack.c.b16 %v3784, %v3783
      %v3812 = vpack.c.b16 %v3786, %v3785
      %v3813 = vpack.c.b16 %v3788, %v3787
      %v3814 = vpack.c.b16 %v3790, %v3789
      %v3815 = vpack.c.b16 %v3792, %v3791
      %v3816 = vpack.c.b16 %v3794, %v3793
      %v3817 = vpack.c.b16 %v3796, %v3795
      %v3818 = vpack.c.b16 %v3798, %v3797
      %v3819 = vpack.c.b16 %v3800, %v3799
      %v3820 = vpack.c.b16 %v3802, %v3801
      %v3821 = vpack.c.b16 %v3804, %v3803
      %v3822 = vpack.c.b16 %v3806, %v3805
      %v3855 = vunpack.c.l.b16 %v3759
      %v3856 = vunpack.c.l.b16 %v3760
      %v3857 = vunpack.c.l.b16 %v3761
      %v3858 = vunpack.c.l.b16 %v3762
      %v3859 = vunpack.c.l.b16 %v3763
      %v3860 = vunpack.c.l.b16 %v3764
      %v3861 = vunpack.c.l.b16 %v3765
      %v3862 = vunpack.c.l.b16 %v3766
      %v3863 = vunpack.c.l.b16 %v3767
      %v3864 = vunpack.c.l.b16 %v3768
      %v3865 = vunpack.c.l.b16 %v3769
      %v3866 = vunpack.c.l.b16 %v3770
      %v3867 = vunpack.c.l.b16 %v3771
      %v3868 = vunpack.c.l.b16 %v3772
      %v3869 = vunpack.c.l.b16 %v3773
      %v3870 = vunpack.c.l.b16 %v3774
      %v3871 = vpack.c.b16 %v3856, %v3855
      %v3872 = vpack.c.b16 %v3858, %v3857
      %v3873 = vpack.c.b16 %v3860, %v3859
      %v3874 = vpack.c.b16 %v3862, %v3861
      %v3875 = vpack.c.b16 %v3864, %v3863
      %v3876 = vpack.c.b16 %v3866, %v3865
      %v3877 = vpack.c.b16 %v3868, %v3867
      %v3878 = vpack.c.b16 %v3870, %v3869
      %3887 = vmatpush.bf16.msra.mxu0 %v3878
      %3888 = vmatpush.bf16.msra.mxu0 %v3877
      %3889 = vmatpush.bf16.msra.mxu0 %v3876
      %3890 = vmatpush.bf16.msra.mxu0 %v3875
      %3891 = vmatpush.bf16.msra.mxu0 %v3874
      %3892 = vmatpush.bf16.msra.mxu0 %v3873
      %3893 = vmatpush.bf16.msra.mxu0 %v3872
      %3894 = vmatpush.bf16.msra.mxu0 %v3871
      %3895 = vmatmul.bf16.gmra.mxu0 %v3807
      %v3896 = vpop.f32.mrf.mxu0
      %v3897 = vadd.f32 0.0, %v3896
      %v3898 = vpop.f32.mrf.mxu0
      %v3899 = vadd.f32 0.0, %v3898
      %3900 = vmatmul.bf16.gmra.mxu0 %v3808
      %v3901 = vpop.f32.mrf.mxu0
      %v3902 = vadd.f32 0.0, %v3901
      %v3903 = vpop.f32.mrf.mxu0
      %v3904 = vadd.f32 0.0, %v3903
      %3905 = vmatmul.bf16.gmra.mxu0 %v3809
      %v3906 = vpop.f32.mrf.mxu0
      %v3907 = vadd.f32 0.0, %v3906
      %v3908 = vpop.f32.mrf.mxu0
      %v3909 = vadd.f32 0.0, %v3908
      %3910 = vmatmul.bf16.gmra.mxu0 %v3810
      %v3911 = vpop.f32.mrf.mxu0
      %v3912 = vadd.f32 0.0, %v3911
      %v3913 = vpop.f32.mrf.mxu0
      %v3914 = vadd.f32 0.0, %v3913
      %3915 = vmatmul.bf16.gmra.mxu0 %v3811
      %v3916 = vpop.f32.mrf.mxu0
      %v3917 = vadd.f32 0.0, %v3916
      %v3918 = vpop.f32.mrf.mxu0
      %v3919 = vadd.f32 0.0, %v3918
      %3920 = vmatmul.bf16.gmra.mxu0 %v3812
      %v3921 = vpop.f32.mrf.mxu0
      %v3922 = vadd.f32 0.0, %v3921
      %v3923 = vpop.f32.mrf.mxu0
      %v3924 = vadd.f32 0.0, %v3923
      %3925 = vmatmul.bf16.gmra.mxu0 %v3813
      %v3926 = vpop.f32.mrf.mxu0
      %v3927 = vadd.f32 0.0, %v3926
      %v3928 = vpop.f32.mrf.mxu0
      %v3929 = vadd.f32 0.0, %v3928
      %3930 = vmatmul.bf16.gmra.mxu0 %v3814
      %v3931 = vpop.f32.mrf.mxu0
      %v3932 = vadd.f32 0.0, %v3931
      %v3933 = vpop.f32.mrf.mxu0
      %v3934 = vadd.f32 0.0, %v3933
      %3935 = vmatmul.bf16.gmra.mxu0 %v3815
      %v3936 = vpop.f32.mrf.mxu0
      %v3937 = vadd.f32 0.0, %v3936
      %v3938 = vpop.f32.mrf.mxu0
      %v3939 = vadd.f32 0.0, %v3938
      %3940 = vmatmul.bf16.gmra.mxu0 %v3816
      %v3941 = vpop.f32.mrf.mxu0
      %v3942 = vadd.f32 0.0, %v3941
      %v3943 = vpop.f32.mrf.mxu0
      %v3944 = vadd.f32 0.0, %v3943
      %3945 = vmatmul.bf16.gmra.mxu0 %v3817
      %v3946 = vpop.f32.mrf.mxu0
      %v3947 = vadd.f32 0.0, %v3946
      %v3948 = vpop.f32.mrf.mxu0
      %v3949 = vadd.f32 0.0, %v3948
      %3950 = vmatmul.bf16.gmra.mxu0 %v3818
      %v3951 = vpop.f32.mrf.mxu0
      %v3952 = vadd.f32 0.0, %v3951
      %v3953 = vpop.f32.mrf.mxu0
      %v3954 = vadd.f32 0.0, %v3953
      %3955 = vmatmul.bf16.gmra.mxu0 %v3819
      %v3956 = vpop.f32.mrf.mxu0
      %v3957 = vadd.f32 0.0, %v3956
      %v3958 = vpop.f32.mrf.mxu0
      %v3959 = vadd.f32 0.0, %v3958
      %3960 = vmatmul.bf16.gmra.mxu0 %v3820
      %v3961 = vpop.f32.mrf.mxu0
      %v3962 = vadd.f32 0.0, %v3961
      %v3963 = vpop.f32.mrf.mxu0
      %v3964 = vadd.f32 0.0, %v3963
      %3965 = vmatmul.bf16.gmra.mxu0 %v3821
      %v3966 = vpop.f32.mrf.mxu0
      %v3967 = vadd.f32 0.0, %v3966
      %v3968 = vpop.f32.mrf.mxu0
      %v3969 = vadd.f32 0.0, %v3968
      %3970 = vmatmul.bf16.gmra.mxu0 %v3822
      %v3971 = vpop.f32.mrf.mxu0
      %v3972 = vadd.f32 0.0, %v3971
      %v3973 = vpop.f32.mrf.mxu0
      %v3974 = vadd.f32 0.0, %v3973
      %3975 = vdwg.mxu0
      %v3976 = vadd.f32 %v3294, %v3897
      %v3977 = vadd.f32 %v3295, %v3899
      %v3978 = vadd.f32 %v3296, %v3902
      %v3979 = vadd.f32 %v3297, %v3904
      %v3980 = vadd.f32 %v3298, %v3907
      %v3981 = vadd.f32 %v3299, %v3909
      %v3982 = vadd.f32 %v3300, %v3912
      %v3983 = vadd.f32 %v3301, %v3914
      %v3984 = vadd.f32 %v3302, %v3917
      %v3985 = vadd.f32 %v3303, %v3919
      %v3986 = vadd.f32 %v3304, %v3922
      %v3987 = vadd.f32 %v3305, %v3924
      %v3988 = vadd.f32 %v3306, %v3927
      %v3989 = vadd.f32 %v3307, %v3929
      %v3990 = vadd.f32 %v3308, %v3932
      %v3991 = vadd.f32 %v3309, %v3934
      %v3992 = vadd.f32 %v3310, %v3937
      %v3993 = vadd.f32 %v3311, %v3939
      %v3994 = vadd.f32 %v3312, %v3942
      %v3995 = vadd.f32 %v3313, %v3944
      %v3996 = vadd.f32 %v3314, %v3947
      %v3997 = vadd.f32 %v3315, %v3949
      %v3998 = vadd.f32 %v3316, %v3952
      %v3999 = vadd.f32 %v3317, %v3954
      %v4000 = vadd.f32 %v3318, %v3957
      %v4001 = vadd.f32 %v3319, %v3959
      %v4002 = vadd.f32 %v3320, %v3962
      %v4003 = vadd.f32 %v3321, %v3964
      %v4004 = vadd.f32 %v3322, %v3967
      %v4005 = vadd.f32 %v3323, %v3969
      %v4006 = vadd.f32 %v3324, %v3972
      %v4007 = vadd.f32 %v3325, %v3974
      %v4008 = vld [vmem:[%s3011] sm:$0xe]
      %v4009 = vld [vmem:[%s3011 + $0xc] sm:$0xe]
      %v4010 = vld [vmem:[%s3011 + $0x18] sm:$0xe]
      %v4011 = vld [vmem:[%s3011 + $0x24] sm:$0xe]
      %v4012 = vld [vmem:[%s3011 + $0x30] sm:$0xe]
      %v4013 = vld [vmem:[%s3011 + $0x3c] sm:$0xe]
      %v4014 = vld [vmem:[%s3011 + $0x48] sm:$0xe]
      %v4015 = vld [vmem:[%s3011 + $0x54] sm:$0xe]
      %v4016 = vld [vmem:[%s3011 + $0x60] sm:$0xe]
      %v4017 = vld [vmem:[%s3011 + $0x6c] sm:$0xe]
      %v4018 = vld [vmem:[%s3011 + $0x78] sm:$0xe]
      %v4019 = vld [vmem:[%s3011 + $0x84] sm:$0xe]
      %v4020 = vld [vmem:[%s3011 + $0x90] sm:$0xe]
      %v4021 = vld [vmem:[%s3011 + $0x9c] sm:$0xe]
      %v4022 = vld [vmem:[%s3011 + $0xa8] sm:$0xe]
      %v4023 = vld [vmem:[%s3011 + $0xb4] sm:$0xe]
      %v4072 = vrot.slane %v4008, 5
      %v4073 = vrot.slane %v4072, 4
      %v4074 = vrot.slane %v3327, 5
      %v4075 = vsel %vm1225, %v4073, %v4074
      %v4076 = vrot.slane %v4074, 4
      %v4077 = vrot.slane %v3328, 5
      %v4078 = vsel %vm1225, %v4076, %v4077
      %v4079 = vrot.slane %v4009, 5
      %v4080 = vrot.slane %v4079, 4
      %v4081 = vrot.slane %v3330, 5
      %v4082 = vsel %vm1225, %v4080, %v4081
      %v4083 = vrot.slane %v4081, 4
      %v4084 = vrot.slane %v3331, 5
      %v4085 = vsel %vm1225, %v4083, %v4084
      %v4086 = vrot.slane %v4010, 5
      %v4087 = vrot.slane %v4086, 4
      %v4088 = vrot.slane %v3333, 5
      %v4089 = vsel %vm1225, %v4087, %v4088
      %v4090 = vrot.slane %v4088, 4
      %v4091 = vrot.slane %v3334, 5
      %v4092 = vsel %vm1225, %v4090, %v4091
      %v4093 = vrot.slane %v4011, 5
      %v4094 = vrot.slane %v4093, 4
      %v4095 = vrot.slane %v3336, 5
      %v4096 = vsel %vm1225, %v4094, %v4095
      %v4097 = vrot.slane %v4095, 4
      %v4098 = vrot.slane %v3337, 5
      %v4099 = vsel %vm1225, %v4097, %v4098
      %v4100 = vrot.slane %v4012, 5
      %v4101 = vrot.slane %v4100, 4
      %v4102 = vrot.slane %v3339, 5
      %v4103 = vsel %vm1225, %v4101, %v4102
      %v4104 = vrot.slane %v4102, 4
      %v4105 = vrot.slane %v3340, 5
      %v4106 = vsel %vm1225, %v4104, %v4105
      %v4107 = vrot.slane %v4013, 5
      %v4108 = vrot.slane %v4107, 4
      %v4109 = vrot.slane %v3342, 5
      %v4110 = vsel %vm1225, %v4108, %v4109
      %v4111 = vrot.slane %v4109, 4
      %v4112 = vrot.slane %v3343, 5
      %v4113 = vsel %vm1225, %v4111, %v4112
      %v4114 = vrot.slane %v4014, 5
      %v4115 = vrot.slane %v4114, 4
      %v4116 = vrot.slane %v3345, 5
      %v4117 = vsel %vm1225, %v4115, %v4116
      %v4118 = vrot.slane %v4116, 4
      %v4119 = vrot.slane %v3346, 5
      %v4120 = vsel %vm1225, %v4118, %v4119
      %v4121 = vrot.slane %v4015, 5
      %v4122 = vrot.slane %v4121, 4
      %v4123 = vrot.slane %v3348, 5
      %v4124 = vsel %vm1225, %v4122, %v4123
      %v4125 = vrot.slane %v4123, 4
      %v4126 = vrot.slane %v3349, 5
      %v4127 = vsel %vm1225, %v4125, %v4126
      %v4128 = vrot.slane %v4016, 5
      %v4129 = vrot.slane %v4128, 4
      %v4130 = vrot.slane %v3351, 5
      %v4131 = vsel %vm1225, %v4129, %v4130
      %v4132 = vrot.slane %v4130, 4
      %v4133 = vrot.slane %v3352, 5
      %v4134 = vsel %vm1225, %v4132, %v4133
      %v4135 = vrot.slane %v4017, 5
      %v4136 = vrot.slane %v4135, 4
      %v4137 = vrot.slane %v3354, 5
      %v4138 = vsel %vm1225, %v4136, %v4137
      %v4139 = vrot.slane %v4137, 4
      %v4140 = vrot.slane %v3355, 5
      %v4141 = vsel %vm1225, %v4139, %v4140
      %v4142 = vrot.slane %v4018, 5
      %v4143 = vrot.slane %v4142, 4
      %v4144 = vrot.slane %v3357, 5
      %v4145 = vsel %vm1225, %v4143, %v4144
      %v4146 = vrot.slane %v4144, 4
      %v4147 = vrot.slane %v3358, 5
      %v4148 = vsel %vm1225, %v4146, %v4147
      %v4149 = vrot.slane %v4019, 5
      %v4150 = vrot.slane %v4149, 4
      %v4151 = vrot.slane %v3360, 5
      %v4152 = vsel %vm1225, %v4150, %v4151
      %v4153 = vrot.slane %v4151, 4
      %v4154 = vrot.slane %v3361, 5
      %v4155 = vsel %vm1225, %v4153, %v4154
      %v4156 = vrot.slane %v4020, 5
      %v4157 = vrot.slane %v4156, 4
      %v4158 = vrot.slane %v3363, 5
      %v4159 = vsel %vm1225, %v4157, %v4158
      %v4160 = vrot.slane %v4158, 4
      %v4161 = vrot.slane %v3364, 5
      %v4162 = vsel %vm1225, %v4160, %v4161
      %v4163 = vrot.slane %v4021, 5
      %v4164 = vrot.slane %v4163, 4
      %v4165 = vrot.slane %v3366, 5
      %v4166 = vsel %vm1225, %v4164, %v4165
      %v4167 = vrot.slane %v4165, 4
      %v4168 = vrot.slane %v3367, 5
      %v4169 = vsel %vm1225, %v4167, %v4168
      %v4170 = vrot.slane %v4022, 5
      %v4171 = vrot.slane %v4170, 4
      %v4172 = vrot.slane %v3369, 5
      %v4173 = vsel %vm1225, %v4171, %v4172
      %v4174 = vrot.slane %v4172, 4
      %v4175 = vrot.slane %v3370, 5
      %v4176 = vsel %vm1225, %v4174, %v4175
      %v4177 = vrot.slane %v4023, 5
      %v4178 = vrot.slane %v4177, 4
      %v4179 = vrot.slane %v3372, 5
      %v4180 = vsel %vm1225, %v4178, %v4179
      %v4181 = vrot.slane %v4179, 4
      %v4182 = vrot.slane %v3373, 5
      %v4183 = vsel %vm1225, %v4181, %v4182
      %s4184 = scalar_lea.vmem %s2, 512
      %v4185 = vld [vmem:[%s4184] sm:$0xf]
      %v4186 = vld [vmem:[%s4184 + $0x4] sm:$0xf]
      %v4187 = vld [vmem:[%s4184 + $0x8] sm:$0xf]
      %v4188 = vld [vmem:[%s4184 + $0xc] sm:$0xf]
      %v4189 = vld [vmem:[%s4184 + $0x10] sm:$0xf]
      %v4190 = vld [vmem:[%s4184 + $0x14] sm:$0xf]
      %v4191 = vld [vmem:[%s4184 + $0x18] sm:$0xf]
      %v4192 = vld [vmem:[%s4184 + $0x1c] sm:$0xf]
      %v4193 = vld [vmem:[%s4184 + $0x20] sm:$0xf]
      %v4194 = vld [vmem:[%s4184 + $0x24] sm:$0xf]
      %v4195 = vld [vmem:[%s4184 + $0x28] sm:$0xf]
      %v4196 = vld [vmem:[%s4184 + $0x2c] sm:$0xf]
      %v4197 = vld [vmem:[%s4184 + $0x30] sm:$0xf]
      %v4198 = vld [vmem:[%s4184 + $0x34] sm:$0xf]
      %v4199 = vld [vmem:[%s4184 + $0x38] sm:$0xf]
      %v4200 = vld [vmem:[%s4184 + $0x3c] sm:$0xf]
      %v4201 = vunpack.c.l.b16 %v4075
      %v4202 = vunpack.c.l.b16 %v4078
      %v4203 = vunpack.c.l.b16 %v4082
      %v4204 = vunpack.c.l.b16 %v4085
      %v4205 = vunpack.c.l.b16 %v4089
      %v4206 = vunpack.c.l.b16 %v4092
      %v4207 = vunpack.c.l.b16 %v4096
      %v4208 = vunpack.c.l.b16 %v4099
      %v4209 = vunpack.c.l.b16 %v4103
      %v4210 = vunpack.c.l.b16 %v4106
      %v4211 = vunpack.c.l.b16 %v4110
      %v4212 = vunpack.c.l.b16 %v4113
      %v4213 = vunpack.c.l.b16 %v4117
      %v4214 = vunpack.c.l.b16 %v4120
      %v4215 = vunpack.c.l.b16 %v4124
      %v4216 = vunpack.c.l.b16 %v4127
      %v4217 = vunpack.c.l.b16 %v4131
      %v4218 = vunpack.c.l.b16 %v4134
      %v4219 = vunpack.c.l.b16 %v4138
      %v4220 = vunpack.c.l.b16 %v4141
      %v4221 = vunpack.c.l.b16 %v4145
      %v4222 = vunpack.c.l.b16 %v4148
      %v4223 = vunpack.c.l.b16 %v4152
      %v4224 = vunpack.c.l.b16 %v4155
      %v4225 = vunpack.c.l.b16 %v4159
      %v4226 = vunpack.c.l.b16 %v4162
      %v4227 = vunpack.c.l.b16 %v4166
      %v4228 = vunpack.c.l.b16 %v4169
      %v4229 = vunpack.c.l.b16 %v4173
      %v4230 = vunpack.c.l.b16 %v4176
      %v4231 = vunpack.c.l.b16 %v4180
      %v4232 = vunpack.c.l.b16 %v4183
      %v4233 = vpack.c.b16 %v4202, %v4201
      %v4234 = vpack.c.b16 %v4204, %v4203
      %v4235 = vpack.c.b16 %v4206, %v4205
      %v4236 = vpack.c.b16 %v4208, %v4207
      %v4237 = vpack.c.b16 %v4210, %v4209
      %v4238 = vpack.c.b16 %v4212, %v4211
      %v4239 = vpack.c.b16 %v4214, %v4213
      %v4240 = vpack.c.b16 %v4216, %v4215
      %v4241 = vpack.c.b16 %v4218, %v4217
      %v4242 = vpack.c.b16 %v4220, %v4219
      %v4243 = vpack.c.b16 %v4222, %v4221
      %v4244 = vpack.c.b16 %v4224, %v4223
      %v4245 = vpack.c.b16 %v4226, %v4225
      %v4246 = vpack.c.b16 %v4228, %v4227
      %v4247 = vpack.c.b16 %v4230, %v4229
      %v4248 = vpack.c.b16 %v4232, %v4231
      %v4281 = vunpack.c.l.b16 %v4185
      %v4282 = vunpack.c.l.b16 %v4186
      %v4283 = vunpack.c.l.b16 %v4187
      %v4284 = vunpack.c.l.b16 %v4188
      %v4285 = vunpack.c.l.b16 %v4189
      %v4286 = vunpack.c.l.b16 %v4190
      %v4287 = vunpack.c.l.b16 %v4191
      %v4288 = vunpack.c.l.b16 %v4192
      %v4289 = vunpack.c.l.b16 %v4193
      %v4290 = vunpack.c.l.b16 %v4194
      %v4291 = vunpack.c.l.b16 %v4195
      %v4292 = vunpack.c.l.b16 %v4196
      %v4293 = vunpack.c.l.b16 %v4197
      %v4294 = vunpack.c.l.b16 %v4198
      %v4295 = vunpack.c.l.b16 %v4199
      %v4296 = vunpack.c.l.b16 %v4200
      %v4297 = vpack.c.b16 %v4282, %v4281
      %v4298 = vpack.c.b16 %v4284, %v4283
      %v4299 = vpack.c.b16 %v4286, %v4285
      %v4300 = vpack.c.b16 %v4288, %v4287
      %v4301 = vpack.c.b16 %v4290, %v4289
      %v4302 = vpack.c.b16 %v4292, %v4291
      %v4303 = vpack.c.b16 %v4294, %v4293
      %v4304 = vpack.c.b16 %v4296, %v4295
      %4313 = vmatpush.bf16.msra.mxu0 %v4304
      %4314 = vmatpush.bf16.msra.mxu0 %v4303
      %4315 = vmatpush.bf16.msra.mxu0 %v4302
      %4316 = vmatpush.bf16.msra.mxu0 %v4301
      %4317 = vmatpush.bf16.msra.mxu0 %v4300
      %4318 = vmatpush.bf16.msra.mxu0 %v4299
      %4319 = vmatpush.bf16.msra.mxu0 %v4298
      %4320 = vmatpush.bf16.msra.mxu0 %v4297
      %4321 = vmatmul.bf16.gmra.mxu0 %v4233
      %v4322 = vpop.f32.mrf.mxu0
      %v4323 = vadd.f32 0.0, %v4322
      %v4324 = vpop.f32.mrf.mxu0
      %v4325 = vadd.f32 0.0, %v4324
      %4326 = vmatmul.bf16.gmra.mxu0 %v4234
      %v4327 = vpop.f32.mrf.mxu0
      %v4328 = vadd.f32 0.0, %v4327
      %v4329 = vpop.f32.mrf.mxu0
      %v4330 = vadd.f32 0.0, %v4329
      %4331 = vmatmul.bf16.gmra.mxu0 %v4235
      %v4332 = vpop.f32.mrf.mxu0
      %v4333 = vadd.f32 0.0, %v4332
      %v4334 = vpop.f32.mrf.mxu0
      %v4335 = vadd.f32 0.0, %v4334
      %4336 = vmatmul.bf16.gmra.mxu0 %v4236
      %v4337 = vpop.f32.mrf.mxu0
      %v4338 = vadd.f32 0.0, %v4337
      %v4339 = vpop.f32.mrf.mxu0
      %v4340 = vadd.f32 0.0, %v4339
      %4341 = vmatmul.bf16.gmra.mxu0 %v4237
      %v4342 = vpop.f32.mrf.mxu0
      %v4343 = vadd.f32 0.0, %v4342
      %v4344 = vpop.f32.mrf.mxu0
      %v4345 = vadd.f32 0.0, %v4344
      %4346 = vmatmul.bf16.gmra.mxu0 %v4238
      %v4347 = vpop.f32.mrf.mxu0
      %v4348 = vadd.f32 0.0, %v4347
      %v4349 = vpop.f32.mrf.mxu0
      %v4350 = vadd.f32 0.0, %v4349
      %4351 = vmatmul.bf16.gmra.mxu0 %v4239
      %v4352 = vpop.f32.mrf.mxu0
      %v4353 = vadd.f32 0.0, %v4352
      %v4354 = vpop.f32.mrf.mxu0
      %v4355 = vadd.f32 0.0, %v4354
      %4356 = vmatmul.bf16.gmra.mxu0 %v4240
      %v4357 = vpop.f32.mrf.mxu0
      %v4358 = vadd.f32 0.0, %v4357
      %v4359 = vpop.f32.mrf.mxu0
      %v4360 = vadd.f32 0.0, %v4359
      %4361 = vmatmul.bf16.gmra.mxu0 %v4241
      %v4362 = vpop.f32.mrf.mxu0
      %v4363 = vadd.f32 0.0, %v4362
      %v4364 = vpop.f32.mrf.mxu0
      %v4365 = vadd.f32 0.0, %v4364
      %4366 = vmatmul.bf16.gmra.mxu0 %v4242
      %v4367 = vpop.f32.mrf.mxu0
      %v4368 = vadd.f32 0.0, %v4367
      %v4369 = vpop.f32.mrf.mxu0
      %v4370 = vadd.f32 0.0, %v4369
      %4371 = vmatmul.bf16.gmra.mxu0 %v4243
      %v4372 = vpop.f32.mrf.mxu0
      %v4373 = vadd.f32 0.0, %v4372
      %v4374 = vpop.f32.mrf.mxu0
      %v4375 = vadd.f32 0.0, %v4374
      %4376 = vmatmul.bf16.gmra.mxu0 %v4244
      %v4377 = vpop.f32.mrf.mxu0
      %v4378 = vadd.f32 0.0, %v4377
      %v4379 = vpop.f32.mrf.mxu0
      %v4380 = vadd.f32 0.0, %v4379
      %4381 = vmatmul.bf16.gmra.mxu0 %v4245
      %v4382 = vpop.f32.mrf.mxu0
      %v4383 = vadd.f32 0.0, %v4382
      %v4384 = vpop.f32.mrf.mxu0
      %v4385 = vadd.f32 0.0, %v4384
      %4386 = vmatmul.bf16.gmra.mxu0 %v4246
      %v4387 = vpop.f32.mrf.mxu0
      %v4388 = vadd.f32 0.0, %v4387
      %v4389 = vpop.f32.mrf.mxu0
      %v4390 = vadd.f32 0.0, %v4389
      %4391 = vmatmul.bf16.gmra.mxu0 %v4247
      %v4392 = vpop.f32.mrf.mxu0
      %v4393 = vadd.f32 0.0, %v4392
      %v4394 = vpop.f32.mrf.mxu0
      %v4395 = vadd.f32 0.0, %v4394
      %4396 = vmatmul.bf16.gmra.mxu0 %v4248
      %v4397 = vpop.f32.mrf.mxu0
      %v4398 = vadd.f32 0.0, %v4397
      %v4399 = vpop.f32.mrf.mxu0
      %v4400 = vadd.f32 0.0, %v4399
      %4401 = vdwg.mxu0
      %v4402 = vadd.f32 %v3976, %v4323
      %v4403 = vadd.f32 %v3977, %v4325
      %v4404 = vadd.f32 %v3978, %v4328
      %v4405 = vadd.f32 %v3979, %v4330
      %v4406 = vadd.f32 %v3980, %v4333
      %v4407 = vadd.f32 %v3981, %v4335
      %v4408 = vadd.f32 %v3982, %v4338
      %v4409 = vadd.f32 %v3983, %v4340
      %v4410 = vadd.f32 %v3984, %v4343
      %v4411 = vadd.f32 %v3985, %v4345
      %v4412 = vadd.f32 %v3986, %v4348
      %v4413 = vadd.f32 %v3987, %v4350
      %v4414 = vadd.f32 %v3988, %v4353
      %v4415 = vadd.f32 %v3989, %v4355
      %v4416 = vadd.f32 %v3990, %v4358
      %v4417 = vadd.f32 %v3991, %v4360
      %v4418 = vadd.f32 %v3992, %v4363
      %v4419 = vadd.f32 %v3993, %v4365
      %v4420 = vadd.f32 %v3994, %v4368
      %v4421 = vadd.f32 %v3995, %v4370
      %v4422 = vadd.f32 %v3996, %v4373
      %v4423 = vadd.f32 %v3997, %v4375
      %v4424 = vadd.f32 %v3998, %v4378
      %v4425 = vadd.f32 %v3999, %v4380
      %v4426 = vadd.f32 %v4000, %v4383
      %v4427 = vadd.f32 %v4001, %v4385
      %v4428 = vadd.f32 %v4002, %v4388
      %v4429 = vadd.f32 %v4003, %v4390
      %v4430 = vadd.f32 %v4004, %v4393
      %v4431 = vadd.f32 %v4005, %v4395
      %v4432 = vadd.f32 %v4006, %v4398
      %v4433 = vadd.f32 %v4007, %v4400
      %v4434 = vld [vmem:[%s3] sm:$0x1]
      %v4436 = vperm.slane %v4434, 0
      %v4438 = vadd.f32 %v4402, %v4436
      %v4439 = vadd.f32 %v4403, %v4436
      %v4440 = vadd.f32 %v4404, %v4436
      %v4441 = vadd.f32 %v4405, %v4436
      %v4442 = vadd.f32 %v4406, %v4436
      %v4443 = vadd.f32 %v4407, %v4436
      %v4444 = vadd.f32 %v4408, %v4436
      %v4445 = vadd.f32 %v4409, %v4436
      %v4446 = vadd.f32 %v4410, %v4436
      %v4447 = vadd.f32 %v4411, %v4436
      %v4448 = vadd.f32 %v4412, %v4436
      %v4449 = vadd.f32 %v4413, %v4436
      %v4450 = vadd.f32 %v4414, %v4436
      %v4451 = vadd.f32 %v4415, %v4436
      %v4452 = vadd.f32 %v4416, %v4436
      %v4453 = vadd.f32 %v4417, %v4436
      %v4454 = vadd.f32 %v4418, %v4436
      %v4455 = vadd.f32 %v4419, %v4436
      %v4456 = vadd.f32 %v4420, %v4436
      %v4457 = vadd.f32 %v4421, %v4436
      %v4458 = vadd.f32 %v4422, %v4436
      %v4459 = vadd.f32 %v4423, %v4436
      %v4460 = vadd.f32 %v4424, %v4436
      %v4461 = vadd.f32 %v4425, %v4436
      %v4462 = vadd.f32 %v4426, %v4436
      %v4463 = vadd.f32 %v4427, %v4436
      %v4464 = vadd.f32 %v4428, %v4436
      %v4465 = vadd.f32 %v4429, %v4436
      %v4466 = vadd.f32 %v4430, %v4436
      %v4467 = vadd.f32 %v4431, %v4436
      %v4468 = vadd.f32 %v4432, %v4436
      %v4469 = vadd.f32 %v4433, %v4436
      %v4470 = vmax.f32 %v4438, 0.0
      %v4471 = vmax.f32 %v4439, 0.0
      %v4472 = vmax.f32 %v4440, 0.0
      %v4473 = vmax.f32 %v4441, 0.0
      %v4474 = vmax.f32 %v4442, 0.0
      %v4475 = vmax.f32 %v4443, 0.0
      %v4476 = vmax.f32 %v4444, 0.0
      %v4477 = vmax.f32 %v4445, 0.0
      %v4478 = vmax.f32 %v4446, 0.0
      %v4479 = vmax.f32 %v4447, 0.0
      %v4480 = vmax.f32 %v4448, 0.0
      %v4481 = vmax.f32 %v4449, 0.0
      %v4482 = vmax.f32 %v4450, 0.0
      %v4483 = vmax.f32 %v4451, 0.0
      %v4484 = vmax.f32 %v4452, 0.0
      %v4485 = vmax.f32 %v4453, 0.0
      %v4486 = vmax.f32 %v4454, 0.0
      %v4487 = vmax.f32 %v4455, 0.0
      %v4488 = vmax.f32 %v4456, 0.0
      %v4489 = vmax.f32 %v4457, 0.0
      %v4490 = vmax.f32 %v4458, 0.0
      %v4491 = vmax.f32 %v4459, 0.0
      %v4492 = vmax.f32 %v4460, 0.0
      %v4493 = vmax.f32 %v4461, 0.0
      %v4494 = vmax.f32 %v4462, 0.0
      %v4495 = vmax.f32 %v4463, 0.0
      %v4496 = vmax.f32 %v4464, 0.0
      %v4497 = vmax.f32 %v4465, 0.0
      %v4498 = vmax.f32 %v4466, 0.0
      %v4499 = vmax.f32 %v4467, 0.0
      %v4500 = vmax.f32 %v4468, 0.0
      %v4501 = vmax.f32 %v4469, 0.0
      %4502 = vst [vmem:[#allocation2] sm:$0xf] 0
      %4503 = vst [vmem:[#allocation2 + $0x4] sm:$0xf] 0
      %4504 = vst [vmem:[#allocation2 + $0x8] sm:$0x1] 0
      %4505 = vst [vmem:[#allocation2 + $0xc] sm:$0xf] 0
      %4506 = vst [vmem:[#allocation2 + $0x10] sm:$0xf] 0
      %4507 = vst [vmem:[#allocation2 + $0x14] sm:$0x1] 0
      %4508 = vst [vmem:[#allocation2 + $0x18] sm:$0xf] 0
      %4509 = vst [vmem:[#allocation2 + $0x1c] sm:$0xf] 0
      %4510 = vst [vmem:[#allocation2 + $0x20] sm:$0x1] 0
      %4511 = vst [vmem:[#allocation2 + $0x24] sm:$0xf] 0
      %4512 = vst [vmem:[#allocation2 + $0x28] sm:$0xf] 0
      %4513 = vst [vmem:[#allocation2 + $0x2c] sm:$0x1] 0
      %4514 = vst [vmem:[#allocation2 + $0x30] sm:$0xf] 0
      %4515 = vst [vmem:[#allocation2 + $0x34] sm:$0xf] 0
      %4516 = vst [vmem:[#allocation2 + $0x38] sm:$0x1] 0
      %4517 = vst [vmem:[#allocation2 + $0x3c] sm:$0xf] 0
      %4518 = vst [vmem:[#allocation2 + $0x40] sm:$0xf] 0
      %4519 = vst [vmem:[#allocation2 + $0x44] sm:$0x1] 0
      %4520 = vst [vmem:[#allocation2 + $0x48] sm:$0xf] 0
      %4521 = vst [vmem:[#allocation2 + $0x4c] sm:$0xf] 0
      %4522 = vst [vmem:[#allocation2 + $0x50] sm:$0x1] 0
      %4523 = vst [vmem:[#allocation2 + $0x54] sm:$0xf] 0
      %4524 = vst [vmem:[#allocation2 + $0x58] sm:$0xf] 0
      %4525 = vst [vmem:[#allocation2 + $0x5c] sm:$0x1] 0
      %4526 = vst [vmem:[#allocation2 + $0x60] sm:$0xf] 0
      %4527 = vst [vmem:[#allocation2 + $0x64] sm:$0xf] 0
      %4528 = vst [vmem:[#allocation2 + $0x68] sm:$0x1] 0
      %4529 = vst [vmem:[#allocation2 + $0x6c] sm:$0xf] 0
      %4530 = vst [vmem:[#allocation2 + $0x70] sm:$0xf] 0
      %4531 = vst [vmem:[#allocation2 + $0x74] sm:$0x1] 0
      %4532 = vst [vmem:[#allocation2 + $0x78] sm:$0xf] 0
      %4533 = vst [vmem:[#allocation2 + $0x7c] sm:$0xf] 0
      %4534 = vst [vmem:[#allocation2 + $0x80] sm:$0x1] 0
      %4535 = vst [vmem:[#allocation2 + $0x84] sm:$0xf] 0
      %4536 = vst [vmem:[#allocation2 + $0x88] sm:$0xf] 0
      %4537 = vst [vmem:[#allocation2 + $0x8c] sm:$0x1] 0
      %4538 = vst [vmem:[#allocation2 + $0x90] sm:$0xf] 0
      %4539 = vst [vmem:[#allocation2 + $0x94] sm:$0xf] 0
      %4540 = vst [vmem:[#allocation2 + $0x98] sm:$0x1] 0
      %4541 = vst [vmem:[#allocation2 + $0x9c] sm:$0xf] 0
      %4542 = vst [vmem:[#allocation2 + $0xa0] sm:$0xf] 0
      %4543 = vst [vmem:[#allocation2 + $0xa4] sm:$0x1] 0
      %4544 = vst [vmem:[#allocation2 + $0xa8] sm:$0xf] 0
      %4545 = vst [vmem:[#allocation2 + $0xac] sm:$0xf] 0
      %4546 = vst [vmem:[#allocation2 + $0xb0] sm:$0x1] 0
      %4547 = vst [vmem:[#allocation2 + $0xb4] sm:$0xf] 0
      %4548 = vst [vmem:[#allocation2 + $0xb8] sm:$0xf] 0
      %4549 = vst [vmem:[#allocation2 + $0xbc] sm:$0x1] 0
      %4550 = vst [vmem:[#allocation2 + $0xc0] sm:$0xf] 0
      %4551 = vst [vmem:[#allocation2 + $0xc4] sm:$0xf] 0
      %4552 = vst [vmem:[#allocation2 + $0xc8] sm:$0x1] 0
      %4553 = vst [vmem:[#allocation2 + $0xcc] sm:$0xf] 0
      %4554 = vst [vmem:[#allocation2 + $0xd0] sm:$0xf] 0
      %4555 = vst [vmem:[#allocation2 + $0xd4] sm:$0x1] 0
      %v4556 = vpack.c.bf16 %v4470, %v4470
      %v4557 = vpack.c.bf16 %v4471, %v4471
      %v4558 = vpack.c.bf16 %v4472, %v4472
      %v4559 = vpack.c.bf16 %v4473, %v4473
      %v4560 = vpack.c.bf16 %v4474, %v4474
      %v4561 = vpack.c.bf16 %v4475, %v4475
      %v4562 = vpack.c.bf16 %v4476, %v4476
      %v4563 = vpack.c.bf16 %v4477, %v4477
      %v4564 = vpack.c.bf16 %v4478, %v4478
      %v4565 = vpack.c.bf16 %v4479, %v4479
      %v4566 = vpack.c.bf16 %v4480, %v4480
      %v4567 = vpack.c.bf16 %v4481, %v4481
      %v4568 = vpack.c.bf16 %v4482, %v4482
      %v4569 = vpack.c.bf16 %v4483, %v4483
      %v4570 = vpack.c.bf16 %v4484, %v4484
      %v4571 = vpack.c.bf16 %v4485, %v4485
      %v4572 = vpack.c.bf16 %v4486, %v4486
      %v4573 = vpack.c.bf16 %v4487, %v4487
      %v4574 = vpack.c.bf16 %v4488, %v4488
      %v4575 = vpack.c.bf16 %v4489, %v4489
      %v4576 = vpack.c.bf16 %v4490, %v4490
      %v4577 = vpack.c.bf16 %v4491, %v4491
      %v4578 = vpack.c.bf16 %v4492, %v4492
      %v4579 = vpack.c.bf16 %v4493, %v4493
      %v4580 = vpack.c.bf16 %v4494, %v4494
      %v4581 = vpack.c.bf16 %v4495, %v4495
      %v4582 = vpack.c.bf16 %v4496, %v4496
      %v4583 = vpack.c.bf16 %v4497, %v4497
      %v4584 = vpack.c.bf16 %v4498, %v4498
      %v4585 = vpack.c.bf16 %v4499, %v4499
      %v4586 = vpack.c.bf16 %v4500, %v4500
      %v4587 = vpack.c.bf16 %v4501, %v4501
      %vm4588 = vsmask.f32 256
      %vm4589 = vsmask.f32 4368
      %vm4590 = vmor %vm4588, %vm4589
      %v4592 = vshrl.u32 %v4556, 16
      %v4594 = vrot.slane %v4592, 7
      %v4595 = vshll.u32 %v4556, 16
      %v4597 = vor.u32 %v4594, %v4595
      %v4598 = vrot.slane %v4594, 4
      %v4600 = vshrl.u32 %v4557, 16
      %v4602 = vrot.slane %v4600, 7
      %v4603 = vshll.u32 %v4557, 16
      %v4605 = vor.u32 %v4602, %v4603
      %v4606 = vsel %vm4590, %v4598, %v4605
      %v4607 = vrot.slane %v4602, 4
      %v4609 = vshrl.u32 %v4558, 16
      %v4611 = vrot.slane %v4609, 7
      %v4612 = vshll.u32 %v4558, 16
      %v4614 = vor.u32 %v4611, %v4612
      %v4615 = vrot.slane %v4611, 4
      %v4617 = vshrl.u32 %v4559, 16
      %v4619 = vrot.slane %v4617, 7
      %v4620 = vshll.u32 %v4559, 16
      %v4622 = vor.u32 %v4619, %v4620
      %v4623 = vsel %vm4590, %v4615, %v4622
      %v4624 = vrot.slane %v4619, 4
      %v4626 = vshrl.u32 %v4560, 16
      %v4628 = vrot.slane %v4626, 7
      %v4629 = vshll.u32 %v4560, 16
      %v4631 = vor.u32 %v4628, %v4629
      %v4632 = vrot.slane %v4628, 4
      %v4634 = vshrl.u32 %v4561, 16
      %v4636 = vrot.slane %v4634, 7
      %v4637 = vshll.u32 %v4561, 16
      %v4639 = vor.u32 %v4636, %v4637
      %v4640 = vsel %vm4590, %v4632, %v4639
      %v4641 = vrot.slane %v4636, 4
      %v4643 = vshrl.u32 %v4562, 16
      %v4645 = vrot.slane %v4643, 7
      %v4646 = vshll.u32 %v4562, 16
      %v4648 = vor.u32 %v4645, %v4646
      %v4649 = vrot.slane %v4645, 4
      %v4651 = vshrl.u32 %v4563, 16
      %v4653 = vrot.slane %v4651, 7
      %v4654 = vshll.u32 %v4563, 16
      %v4656 = vor.u32 %v4653, %v4654
      %v4657 = vsel %vm4590, %v4649, %v4656
      %v4658 = vrot.slane %v4653, 4
      %v4660 = vshrl.u32 %v4564, 16
      %v4662 = vrot.slane %v4660, 7
      %v4663 = vshll.u32 %v4564, 16
      %v4665 = vor.u32 %v4662, %v4663
      %v4666 = vrot.slane %v4662, 4
      %v4668 = vshrl.u32 %v4565, 16
      %v4670 = vrot.slane %v4668, 7
      %v4671 = vshll.u32 %v4565, 16
      %v4673 = vor.u32 %v4670, %v4671
      %v4674 = vsel %vm4590, %v4666, %v4673
      %v4675 = vrot.slane %v4670, 4
      %v4677 = vshrl.u32 %v4566, 16
      %v4679 = vrot.slane %v4677, 7
      %v4680 = vshll.u32 %v4566, 16
      %v4682 = vor.u32 %v4679, %v4680
      %v4683 = vrot.slane %v4679, 4
      %v4685 = vshrl.u32 %v4567, 16
      %v4687 = vrot.slane %v4685, 7
      %v4688 = vshll.u32 %v4567, 16
      %v4690 = vor.u32 %v4687, %v4688
      %v4691 = vsel %vm4590, %v4683, %v4690
      %v4692 = vrot.slane %v4687, 4
      %v4694 = vshrl.u32 %v4568, 16
      %v4696 = vrot.slane %v4694, 7
      %v4697 = vshll.u32 %v4568, 16
      %v4699 = vor.u32 %v4696, %v4697
      %v4700 = vrot.slane %v4696, 4
      %v4702 = vshrl.u32 %v4569, 16
      %v4704 = vrot.slane %v4702, 7
      %v4705 = vshll.u32 %v4569, 16
      %v4707 = vor.u32 %v4704, %v4705
      %v4708 = vsel %vm4590, %v4700, %v4707
      %v4709 = vrot.slane %v4704, 4
      %v4711 = vshrl.u32 %v4570, 16
      %v4713 = vrot.slane %v4711, 7
      %v4714 = vshll.u32 %v4570, 16
      %v4716 = vor.u32 %v4713, %v4714
      %v4717 = vrot.slane %v4713, 4
      %v4719 = vshrl.u32 %v4571, 16
      %v4721 = vrot.slane %v4719, 7
      %v4722 = vshll.u32 %v4571, 16
      %v4724 = vor.u32 %v4721, %v4722
      %v4725 = vsel %vm4590, %v4717, %v4724
      %v4726 = vrot.slane %v4721, 4
      %v4728 = vshrl.u32 %v4572, 16
      %v4730 = vrot.slane %v4728, 7
      %v4731 = vshll.u32 %v4572, 16
      %v4733 = vor.u32 %v4730, %v4731
      %v4734 = vrot.slane %v4730, 4
      %v4736 = vshrl.u32 %v4573, 16
      %v4738 = vrot.slane %v4736, 7
      %v4739 = vshll.u32 %v4573, 16
      %v4741 = vor.u32 %v4738, %v4739
      %v4742 = vsel %vm4590, %v4734, %v4741
      %v4743 = vrot.slane %v4738, 4
      %v4745 = vshrl.u32 %v4574, 16
      %v4747 = vrot.slane %v4745, 7
      %v4748 = vshll.u32 %v4574, 16
      %v4750 = vor.u32 %v4747, %v4748
      %v4751 = vrot.slane %v4747, 4
      %v4753 = vshrl.u32 %v4575, 16
      %v4755 = vrot.slane %v4753, 7
      %v4756 = vshll.u32 %v4575, 16
      %v4758 = vor.u32 %v4755, %v4756
      %v4759 = vsel %vm4590, %v4751, %v4758
      %v4760 = vrot.slane %v4755, 4
      %v4762 = vshrl.u32 %v4576, 16
      %v4764 = vrot.slane %v4762, 7
      %v4765 = vshll.u32 %v4576, 16
      %v4767 = vor.u32 %v4764, %v4765
      %v4768 = vrot.slane %v4764, 4
      %v4770 = vshrl.u32 %v4577, 16
      %v4772 = vrot.slane %v4770, 7
      %v4773 = vshll.u32 %v4577, 16
      %v4775 = vor.u32 %v4772, %v4773
      %v4776 = vsel %vm4590, %v4768, %v4775
      %v4777 = vrot.slane %v4772, 4
      %v4779 = vshrl.u32 %v4578, 16
      %v4781 = vrot.slane %v4779, 7
      %v4782 = vshll.u32 %v4578, 16
      %v4784 = vor.u32 %v4781, %v4782
      %v4785 = vrot.slane %v4781, 4
      %v4787 = vshrl.u32 %v4579, 16
      %v4789 = vrot.slane %v4787, 7
      %v4790 = vshll.u32 %v4579, 16
      %v4792 = vor.u32 %v4789, %v4790
      %v4793 = vsel %vm4590, %v4785, %v4792
      %v4794 = vrot.slane %v4789, 4
      %v4796 = vshrl.u32 %v4580, 16
      %v4798 = vrot.slane %v4796, 7
      %v4799 = vshll.u32 %v4580, 16
      %v4801 = vor.u32 %v4798, %v4799
      %v4802 = vrot.slane %v4798, 4
      %v4804 = vshrl.u32 %v4581, 16
      %v4806 = vrot.slane %v4804, 7
      %v4807 = vshll.u32 %v4581, 16
      %v4809 = vor.u32 %v4806, %v4807
      %v4810 = vsel %vm4590, %v4802, %v4809
      %v4811 = vrot.slane %v4806, 4
      %v4813 = vshrl.u32 %v4582, 16
      %v4815 = vrot.slane %v4813, 7
      %v4816 = vshll.u32 %v4582, 16
      %v4818 = vor.u32 %v4815, %v4816
      %v4819 = vrot.slane %v4815, 4
      %v4821 = vshrl.u32 %v4583, 16
      %v4823 = vrot.slane %v4821, 7
      %v4824 = vshll.u32 %v4583, 16
      %v4826 = vor.u32 %v4823, %v4824
      %v4827 = vsel %vm4590, %v4819, %v4826
      %v4828 = vrot.slane %v4823, 4
      %v4830 = vshrl.u32 %v4584, 16
      %v4832 = vrot.slane %v4830, 7
      %v4833 = vshll.u32 %v4584, 16
      %v4835 = vor.u32 %v4832, %v4833
      %v4836 = vrot.slane %v4832, 4
      %v4838 = vshrl.u32 %v4585, 16
      %v4840 = vrot.slane %v4838, 7
      %v4841 = vshll.u32 %v4585, 16
      %v4843 = vor.u32 %v4840, %v4841
      %v4844 = vsel %vm4590, %v4836, %v4843
      %v4845 = vrot.slane %v4840, 4
      %v4847 = vshrl.u32 %v4586, 16
      %v4849 = vrot.slane %v4847, 7
      %v4850 = vshll.u32 %v4586, 16
      %v4852 = vor.u32 %v4849, %v4850
      %v4853 = vrot.slane %v4849, 4
      %v4855 = vshrl.u32 %v4587, 16
      %v4857 = vrot.slane %v4855, 7
      %v4858 = vshll.u32 %v4587, 16
      %v4860 = vor.u32 %v4857, %v4858
      %v4861 = vsel %vm4590, %v4853, %v4860
      %v4862 = vrot.slane %v4857, 4
      %s4911 = scalar_lea.vmem [#allocation2], 12
      %vm4912 = vcmask 1043456
      %vm4913 = vsmask.f32 7938
      %vm4914 = vmand %vm4912, %vm4913
      %v4915 = vld [vmem:[%s4911] sm:$0xf]
      %v4916 = vsel %vm4914, %v4597, %v4915
      %4917 = vst [vmem:[%s4911] sm:$0xf] %v4916
      %4918 = vst [vmem:[%s4911 + $0x4] sm:$0xf] %v4606
      %vm4919 = vcmask 1040384
      %vm4920 = vmand %vm4919, %vm4588
      %v4921 = vld [vmem:[%s4911 + $0x8] sm:$0x1]
      %v4922 = vsel %vm4920, %v4607, %v4921
      %4923 = vst [vmem:[%s4911 + $0x8] sm:$0x1] %v4922
      %v4924 = vld [vmem:[%s4911 + $0xc] sm:$0xf]
      %v4925 = vsel %vm4914, %v4614, %v4924
      %4926 = vst [vmem:[%s4911 + $0xc] sm:$0xf] %v4925
      %4927 = vst [vmem:[%s4911 + $0x10] sm:$0xf] %v4623
      %v4928 = vld [vmem:[%s4911 + $0x14] sm:$0x1]
      %v4929 = vsel %vm4920, %v4624, %v4928
      %4930 = vst [vmem:[%s4911 + $0x14] sm:$0x1] %v4929
      %v4931 = vld [vmem:[%s4911 + $0x18] sm:$0xf]
      %v4932 = vsel %vm4914, %v4631, %v4931
      %4933 = vst [vmem:[%s4911 + $0x18] sm:$0xf] %v4932
      %4934 = vst [vmem:[%s4911 + $0x1c] sm:$0xf] %v4640
      %v4935 = vld [vmem:[%s4911 + $0x20] sm:$0x1]
      %v4936 = vsel %vm4920, %v4641, %v4935
      %4937 = vst [vmem:[%s4911 + $0x20] sm:$0x1] %v4936
      %v4938 = vld [vmem:[%s4911 + $0x24] sm:$0xf]
      %v4939 = vsel %vm4914, %v4648, %v4938
      %4940 = vst [vmem:[%s4911 + $0x24] sm:$0xf] %v4939
      %4941 = vst [vmem:[%s4911 + $0x28] sm:$0xf] %v4657
      %v4942 = vld [vmem:[%s4911 + $0x2c] sm:$0x1]
      %v4943 = vsel %vm4920, %v4658, %v4942
      %4944 = vst [vmem:[%s4911 + $0x2c] sm:$0x1] %v4943
      %v4945 = vld [vmem:[%s4911 + $0x30] sm:$0xf]
      %v4946 = vsel %vm4914, %v4665, %v4945
      %4947 = vst [vmem:[%s4911 + $0x30] sm:$0xf] %v4946
      %4948 = vst [vmem:[%s4911 + $0x34] sm:$0xf] %v4674
      %v4949 = vld [vmem:[%s4911 + $0x38] sm:$0x1]
      %v4950 = vsel %vm4920, %v4675, %v4949
      %4951 = vst [vmem:[%s4911 + $0x38] sm:$0x1] %v4950
      %v4952 = vld [vmem:[%s4911 + $0x3c] sm:$0xf]
      %v4953 = vsel %vm4914, %v4682, %v4952
      %4954 = vst [vmem:[%s4911 + $0x3c] sm:$0xf] %v4953
      %4955 = vst [vmem:[%s4911 + $0x40] sm:$0xf] %v4691
      %v4956 = vld [vmem:[%s4911 + $0x44] sm:$0x1]
      %v4957 = vsel %vm4920, %v4692, %v4956
      %4958 = vst [vmem:[%s4911 + $0x44] sm:$0x1] %v4957
      %v4959 = vld [vmem:[%s4911 + $0x48] sm:$0xf]
      %v4960 = vsel %vm4914, %v4699, %v4959
      %4961 = vst [vmem:[%s4911 + $0x48] sm:$0xf] %v4960
      %4962 = vst [vmem:[%s4911 + $0x4c] sm:$0xf] %v4708
      %v4963 = vld [vmem:[%s4911 + $0x50] sm:$0x1]
      %v4964 = vsel %vm4920, %v4709, %v4963
      %4965 = vst [vmem:[%s4911 + $0x50] sm:$0x1] %v4964
      %v4966 = vld [vmem:[%s4911 + $0x54] sm:$0xf]
      %v4967 = vsel %vm4914, %v4716, %v4966
      %4968 = vst [vmem:[%s4911 + $0x54] sm:$0xf] %v4967
      %4969 = vst [vmem:[%s4911 + $0x58] sm:$0xf] %v4725
      %v4970 = vld [vmem:[%s4911 + $0x5c] sm:$0x1]
      %v4971 = vsel %vm4920, %v4726, %v4970
      %4972 = vst [vmem:[%s4911 + $0x5c] sm:$0x1] %v4971
      %v4973 = vld [vmem:[%s4911 + $0x60] sm:$0xf]
      %v4974 = vsel %vm4914, %v4733, %v4973
      %4975 = vst [vmem:[%s4911 + $0x60] sm:$0xf] %v4974
      %4976 = vst [vmem:[%s4911 + $0x64] sm:$0xf] %v4742
      %v4977 = vld [vmem:[%s4911 + $0x68] sm:$0x1]
      %v4978 = vsel %vm4920, %v4743, %v4977
      %4979 = vst [vmem:[%s4911 + $0x68] sm:$0x1] %v4978
      %v4980 = vld [vmem:[%s4911 + $0x6c] sm:$0xf]
      %v4981 = vsel %vm4914, %v4750, %v4980
      %4982 = vst [vmem:[%s4911 + $0x6c] sm:$0xf] %v4981
      %4983 = vst [vmem:[%s4911 + $0x70] sm:$0xf] %v4759
      %v4984 = vld [vmem:[%s4911 + $0x74] sm:$0x1]
      %v4985 = vsel %vm4920, %v4760, %v4984
      %4986 = vst [vmem:[%s4911 + $0x74] sm:$0x1] %v4985
      %v4987 = vld [vmem:[%s4911 + $0x78] sm:$0xf]
      %v4988 = vsel %vm4914, %v4767, %v4987
      %4989 = vst [vmem:[%s4911 + $0x78] sm:$0xf] %v4988
      %4990 = vst [vmem:[%s4911 + $0x7c] sm:$0xf] %v4776
      %v4991 = vld [vmem:[%s4911 + $0x80] sm:$0x1]
      %v4992 = vsel %vm4920, %v4777, %v4991
      %4993 = vst [vmem:[%s4911 + $0x80] sm:$0x1] %v4992
      %v4994 = vld [vmem:[%s4911 + $0x84] sm:$0xf]
      %v4995 = vsel %vm4914, %v4784, %v4994
      %4996 = vst [vmem:[%s4911 + $0x84] sm:$0xf] %v4995
      %4997 = vst [vmem:[%s4911 + $0x88] sm:$0xf] %v4793
      %v4998 = vld [vmem:[%s4911 + $0x8c] sm:$0x1]
      %v4999 = vsel %vm4920, %v4794, %v4998
      %5000 = vst [vmem:[%s4911 + $0x8c] sm:$0x1] %v4999
      %v5001 = vld [vmem:[%s4911 + $0x90] sm:$0xf]
      %v5002 = vsel %vm4914, %v4801, %v5001
      %5003 = vst [vmem:[%s4911 + $0x90] sm:$0xf] %v5002
      %5004 = vst [vmem:[%s4911 + $0x94] sm:$0xf] %v4810
      %v5005 = vld [vmem:[%s4911 + $0x98] sm:$0x1]
      %v5006 = vsel %vm4920, %v4811, %v5005
      %5007 = vst [vmem:[%s4911 + $0x98] sm:$0x1] %v5006
      %v5008 = vld [vmem:[%s4911 + $0x9c] sm:$0xf]
      %v5009 = vsel %vm4914, %v4818, %v5008
      %5010 = vst [vmem:[%s4911 + $0x9c] sm:$0xf] %v5009
      %5011 = vst [vmem:[%s4911 + $0xa0] sm:$0xf] %v4827
      %v5012 = vld [vmem:[%s4911 + $0xa4] sm:$0x1]
      %v5013 = vsel %vm4920, %v4828, %v5012
      %5014 = vst [vmem:[%s4911 + $0xa4] sm:$0x1] %v5013
      %v5015 = vld [vmem:[%s4911 + $0xa8] sm:$0xf]
      %v5016 = vsel %vm4914, %v4835, %v5015
      %5017 = vst [vmem:[%s4911 + $0xa8] sm:$0xf] %v5016
      %5018 = vst [vmem:[%s4911 + $0xac] sm:$0xf] %v4844
      %v5019 = vld [vmem:[%s4911 + $0xb0] sm:$0x1]
      %v5020 = vsel %vm4920, %v4845, %v5019
      %5021 = vst [vmem:[%s4911 + $0xb0] sm:$0x1] %v5020
      %v5022 = vld [vmem:[%s4911 + $0xb4] sm:$0xf]
      %v5023 = vsel %vm4914, %v4852, %v5022
      %5024 = vst [vmem:[%s4911 + $0xb4] sm:$0xf] %v5023
      %5025 = vst [vmem:[%s4911 + $0xb8] sm:$0xf] %v4861
      %v5026 = vld [vmem:[%s4911 + $0xbc] sm:$0x1]
      %v5027 = vsel %vm4920, %v4862, %v5026
      %5028 = vst [vmem:[%s4911 + $0xbc] sm:$0x1] %v5027
      %v5029 = vld [vmem:[#allocation2] sm:$0xf]
      %v5030 = vld [vmem:[#allocation2 + $0x4] sm:$0xf]
      %v5031 = vld [vmem:[#allocation2 + $0xc] sm:$0xf]
      %v5032 = vld [vmem:[#allocation2 + $0x10] sm:$0xf]
      %v5033 = vld [vmem:[#allocation2 + $0x18] sm:$0xf]
      %v5034 = vld [vmem:[#allocation2 + $0x1c] sm:$0xf]
      %v5035 = vld [vmem:[#allocation2 + $0x24] sm:$0xf]
      %v5036 = vld [vmem:[#allocation2 + $0x28] sm:$0xf]
      %v5037 = vld [vmem:[#allocation2 + $0x30] sm:$0xf]
      %v5038 = vld [vmem:[#allocation2 + $0x34] sm:$0xf]
      %v5039 = vld [vmem:[#allocation2 + $0x3c] sm:$0xf]
      %v5040 = vld [vmem:[#allocation2 + $0x40] sm:$0xf]
      %v5041 = vld [vmem:[#allocation2 + $0x48] sm:$0xf]
      %v5042 = vld [vmem:[#allocation2 + $0x4c] sm:$0xf]
      %v5043 = vld [vmem:[#allocation2 + $0x54] sm:$0xf]
      %v5044 = vld [vmem:[#allocation2 + $0x58] sm:$0xf]
      %v5045 = vld [vmem:[#allocation2 + $0x60] sm:$0xf]
      %v5046 = vld [vmem:[#allocation2 + $0x64] sm:$0xf]
      %v5047 = vld [vmem:[#allocation2 + $0x6c] sm:$0xf]
      %v5048 = vld [vmem:[#allocation2 + $0x70] sm:$0xf]
      %v5049 = vld [vmem:[#allocation2 + $0x78] sm:$0xf]
      %v5050 = vld [vmem:[#allocation2 + $0x7c] sm:$0xf]
      %v5051 = vld [vmem:[#allocation2 + $0x84] sm:$0xf]
      %v5052 = vld [vmem:[#allocation2 + $0x88] sm:$0xf]
      %v5053 = vld [vmem:[#allocation2 + $0x90] sm:$0xf]
      %v5054 = vld [vmem:[#allocation2 + $0x94] sm:$0xf]
      %v5055 = vld [vmem:[#allocation2 + $0x9c] sm:$0xf]
      %v5056 = vld [vmem:[#allocation2 + $0xa0] sm:$0xf]
      %v5057 = vld [vmem:[#allocation2 + $0xa8] sm:$0xf]
      %v5058 = vld [vmem:[#allocation2 + $0xac] sm:$0xf]
      %v5059 = vld [vmem:[#allocation2 + $0xb4] sm:$0xf]
      %v5060 = vld [vmem:[#allocation2 + $0xb8] sm:$0xf]
      %v5061 = vld [vmem:[%s4] sm:$0xf]
      %v5062 = vld [vmem:[%s4 + $0x4] sm:$0xf]
      %v5063 = vld [vmem:[%s4 + $0x8] sm:$0xf]
      %v5064 = vld [vmem:[%s4 + $0xc] sm:$0xf]
      %v5065 = vld [vmem:[%s4 + $0x10] sm:$0xf]
      %v5066 = vld [vmem:[%s4 + $0x14] sm:$0xf]
      %v5067 = vld [vmem:[%s4 + $0x18] sm:$0xf]
      %v5068 = vld [vmem:[%s4 + $0x1c] sm:$0xf]
      %v5069 = vld [vmem:[%s4 + $0x20] sm:$0xf]
      %v5070 = vld [vmem:[%s4 + $0x24] sm:$0xf]
      %v5071 = vld [vmem:[%s4 + $0x28] sm:$0xf]
      %v5072 = vld [vmem:[%s4 + $0x2c] sm:$0xf]
      %v5073 = vld [vmem:[%s4 + $0x30] sm:$0xf]
      %v5074 = vld [vmem:[%s4 + $0x34] sm:$0xf]
      %v5075 = vld [vmem:[%s4 + $0x38] sm:$0xf]
      %v5076 = vld [vmem:[%s4 + $0x3c] sm:$0xf]
      %v5077 = vld [vmem:[#allocation2 + $0x8] sm:$0x1]
      %v5078 = vld [vmem:[#allocation2 + $0x14] sm:$0x1]
      %v5079 = vld [vmem:[#allocation2 + $0x20] sm:$0x1]
      %v5080 = vld [vmem:[#allocation2 + $0x2c] sm:$0x1]
      %v5081 = vld [vmem:[#allocation2 + $0x38] sm:$0x1]
      %v5082 = vld [vmem:[#allocation2 + $0x44] sm:$0x1]
      %v5083 = vld [vmem:[#allocation2 + $0x50] sm:$0x1]
      %v5084 = vld [vmem:[#allocation2 + $0x5c] sm:$0x1]
      %v5085 = vld [vmem:[#allocation2 + $0x68] sm:$0x1]
      %v5086 = vld [vmem:[#allocation2 + $0x74] sm:$0x1]
      %v5087 = vld [vmem:[#allocation2 + $0x80] sm:$0x1]
      %v5088 = vld [vmem:[#allocation2 + $0x8c] sm:$0x1]
      %v5089 = vld [vmem:[#allocation2 + $0x98] sm:$0x1]
      %v5090 = vld [vmem:[#allocation2 + $0xa4] sm:$0x1]
      %v5091 = vld [vmem:[#allocation2 + $0xb0] sm:$0x1]
      %v5092 = vld [vmem:[#allocation2 + $0xbc] sm:$0x1]
      %v5094 = vshrl.u32 %v5029, 16
      %v5096 = vrot.slane %v5094, 4
      %v5097 = vshll.u32 %v5029, 16
      %v5099 = vrot.slane %v5097, 5
      %v5100 = vor.u32 %v5096, %v5099
      %v5101 = vrot.slane %v5100, 4
      %v5103 = vshll.u32 %v5030, 16
      %v5105 = vrot.slane %v5103, 5
      %v5106 = vsel %vm339, %v5101, %v5105
      %v5107 = vshrl.u32 %v5030, 16
      %v5109 = vrot.slane %v5107, 4
      %v5110 = vor.u32 %v5109, %v5105
      %v5111 = vrot.slane %v5110, 4
      %v5113 = vshll.u32 %v5077, 16
      %v5115 = vrot.slane %v5113, 5
      %v5116 = vsel %vm339, %v5111, %v5115
      %v5118 = vshrl.u32 %v5031, 16
      %v5120 = vrot.slane %v5118, 4
      %v5121 = vshll.u32 %v5031, 16
      %v5123 = vrot.slane %v5121, 5
      %v5124 = vor.u32 %v5120, %v5123
      %v5125 = vrot.slane %v5124, 4
      %v5127 = vshll.u32 %v5032, 16
      %v5129 = vrot.slane %v5127, 5
      %v5130 = vsel %vm339, %v5125, %v5129
      %v5131 = vshrl.u32 %v5032, 16
      %v5133 = vrot.slane %v5131, 4
      %v5134 = vor.u32 %v5133, %v5129
      %v5135 = vrot.slane %v5134, 4
      %v5137 = vshll.u32 %v5078, 16
      %v5139 = vrot.slane %v5137, 5
      %v5140 = vsel %vm339, %v5135, %v5139
      %v5142 = vshrl.u32 %v5033, 16
      %v5144 = vrot.slane %v5142, 4
      %v5145 = vshll.u32 %v5033, 16
      %v5147 = vrot.slane %v5145, 5
      %v5148 = vor.u32 %v5144, %v5147
      %v5149 = vrot.slane %v5148, 4
      %v5151 = vshll.u32 %v5034, 16
      %v5153 = vrot.slane %v5151, 5
      %v5154 = vsel %vm339, %v5149, %v5153
      %v5155 = vshrl.u32 %v5034, 16
      %v5157 = vrot.slane %v5155, 4
      %v5158 = vor.u32 %v5157, %v5153
      %v5159 = vrot.slane %v5158, 4
      %v5161 = vshll.u32 %v5079, 16
      %v5163 = vrot.slane %v5161, 5
      %v5164 = vsel %vm339, %v5159, %v5163
      %v5166 = vshrl.u32 %v5035, 16
      %v5168 = vrot.slane %v5166, 4
      %v5169 = vshll.u32 %v5035, 16
      %v5171 = vrot.slane %v5169, 5
      %v5172 = vor.u32 %v5168, %v5171
      %v5173 = vrot.slane %v5172, 4
      %v5175 = vshll.u32 %v5036, 16
      %v5177 = vrot.slane %v5175, 5
      %v5178 = vsel %vm339, %v5173, %v5177
      %v5179 = vshrl.u32 %v5036, 16
      %v5181 = vrot.slane %v5179, 4
      %v5182 = vor.u32 %v5181, %v5177
      %v5183 = vrot.slane %v5182, 4
      %v5185 = vshll.u32 %v5080, 16
      %v5187 = vrot.slane %v5185, 5
      %v5188 = vsel %vm339, %v5183, %v5187
      %v5190 = vshrl.u32 %v5037, 16
      %v5192 = vrot.slane %v5190, 4
      %v5193 = vshll.u32 %v5037, 16
      %v5195 = vrot.slane %v5193, 5
      %v5196 = vor.u32 %v5192, %v5195
      %v5197 = vrot.slane %v5196, 4
      %v5199 = vshll.u32 %v5038, 16
      %v5201 = vrot.slane %v5199, 5
      %v5202 = vsel %vm339, %v5197, %v5201
      %v5203 = vshrl.u32 %v5038, 16
      %v5205 = vrot.slane %v5203, 4
      %v5206 = vor.u32 %v5205, %v5201
      %v5207 = vrot.slane %v5206, 4
      %v5209 = vshll.u32 %v5081, 16
      %v5211 = vrot.slane %v5209, 5
      %v5212 = vsel %vm339, %v5207, %v5211
      %v5214 = vshrl.u32 %v5039, 16
      %v5216 = vrot.slane %v5214, 4
      %v5217 = vshll.u32 %v5039, 16
      %v5219 = vrot.slane %v5217, 5
      %v5220 = vor.u32 %v5216, %v5219
      %v5221 = vrot.slane %v5220, 4
      %v5223 = vshll.u32 %v5040, 16
      %v5225 = vrot.slane %v5223, 5
      %v5226 = vsel %vm339, %v5221, %v5225
      %v5227 = vshrl.u32 %v5040, 16
      %v5229 = vrot.slane %v5227, 4
      %v5230 = vor.u32 %v5229, %v5225
      %v5231 = vrot.slane %v5230, 4
      %v5233 = vshll.u32 %v5082, 16
      %v5235 = vrot.slane %v5233, 5
      %v5236 = vsel %vm339, %v5231, %v5235
      %v5238 = vshrl.u32 %v5041, 16
      %v5240 = vrot.slane %v5238, 4
      %v5241 = vshll.u32 %v5041, 16
      %v5243 = vrot.slane %v5241, 5
      %v5244 = vor.u32 %v5240, %v5243
      %v5245 = vrot.slane %v5244, 4
      %v5247 = vshll.u32 %v5042, 16
      %v5249 = vrot.slane %v5247, 5
      %v5250 = vsel %vm339, %v5245, %v5249
      %v5251 = vshrl.u32 %v5042, 16
      %v5253 = vrot.slane %v5251, 4
      %v5254 = vor.u32 %v5253, %v5249
      %v5255 = vrot.slane %v5254, 4
      %v5257 = vshll.u32 %v5083, 16
      %v5259 = vrot.slane %v5257, 5
      %v5260 = vsel %vm339, %v5255, %v5259
      %v5262 = vshrl.u32 %v5043, 16
      %v5264 = vrot.slane %v5262, 4
      %v5265 = vshll.u32 %v5043, 16
      %v5267 = vrot.slane %v5265, 5
      %v5268 = vor.u32 %v5264, %v5267
      %v5269 = vrot.slane %v5268, 4
      %v5271 = vshll.u32 %v5044, 16
      %v5273 = vrot.slane %v5271, 5
      %v5274 = vsel %vm339, %v5269, %v5273
      %v5275 = vshrl.u32 %v5044, 16
      %v5277 = vrot.slane %v5275, 4
      %v5278 = vor.u32 %v5277, %v5273
      %v5279 = vrot.slane %v5278, 4
      %v5281 = vshll.u32 %v5084, 16
      %v5283 = vrot.slane %v5281, 5
      %v5284 = vsel %vm339, %v5279, %v5283
      %v5286 = vshrl.u32 %v5045, 16
      %v5288 = vrot.slane %v5286, 4
      %v5289 = vshll.u32 %v5045, 16
      %v5291 = vrot.slane %v5289, 5
      %v5292 = vor.u32 %v5288, %v5291
      %v5293 = vrot.slane %v5292, 4
      %v5295 = vshll.u32 %v5046, 16
      %v5297 = vrot.slane %v5295, 5
      %v5298 = vsel %vm339, %v5293, %v5297
      %v5299 = vshrl.u32 %v5046, 16
      %v5301 = vrot.slane %v5299, 4
      %v5302 = vor.u32 %v5301, %v5297
      %v5303 = vrot.slane %v5302, 4
      %v5305 = vshll.u32 %v5085, 16
      %v5307 = vrot.slane %v5305, 5
      %v5308 = vsel %vm339, %v5303, %v5307
      %v5310 = vshrl.u32 %v5047, 16
      %v5312 = vrot.slane %v5310, 4
      %v5313 = vshll.u32 %v5047, 16
      %v5315 = vrot.slane %v5313, 5
      %v5316 = vor.u32 %v5312, %v5315
      %v5317 = vrot.slane %v5316, 4
      %v5319 = vshll.u32 %v5048, 16
      %v5321 = vrot.slane %v5319, 5
      %v5322 = vsel %vm339, %v5317, %v5321
      %v5323 = vshrl.u32 %v5048, 16
      %v5325 = vrot.slane %v5323, 4
      %v5326 = vor.u32 %v5325, %v5321
      %v5327 = vrot.slane %v5326, 4
      %v5329 = vshll.u32 %v5086, 16
      %v5331 = vrot.slane %v5329, 5
      %v5332 = vsel %vm339, %v5327, %v5331
      %v5334 = vshrl.u32 %v5049, 16
      %v5336 = vrot.slane %v5334, 4
      %v5337 = vshll.u32 %v5049, 16
      %v5339 = vrot.slane %v5337, 5
      %v5340 = vor.u32 %v5336, %v5339
      %v5341 = vrot.slane %v5340, 4
      %v5343 = vshll.u32 %v5050, 16
      %v5345 = vrot.slane %v5343, 5
      %v5346 = vsel %vm339, %v5341, %v5345
      %v5347 = vshrl.u32 %v5050, 16
      %v5349 = vrot.slane %v5347, 4
      %v5350 = vor.u32 %v5349, %v5345
      %v5351 = vrot.slane %v5350, 4
      %v5353 = vshll.u32 %v5087, 16
      %v5355 = vrot.slane %v5353, 5
      %v5356 = vsel %vm339, %v5351, %v5355
      %v5358 = vshrl.u32 %v5051, 16
      %v5360 = vrot.slane %v5358, 4
      %v5361 = vshll.u32 %v5051, 16
      %v5363 = vrot.slane %v5361, 5
      %v5364 = vor.u32 %v5360, %v5363
      %v5365 = vrot.slane %v5364, 4
      %v5367 = vshll.u32 %v5052, 16
      %v5369 = vrot.slane %v5367, 5
      %v5370 = vsel %vm339, %v5365, %v5369
      %v5371 = vshrl.u32 %v5052, 16
      %v5373 = vrot.slane %v5371, 4
      %v5374 = vor.u32 %v5373, %v5369
      %v5375 = vrot.slane %v5374, 4
      %v5377 = vshll.u32 %v5088, 16
      %v5379 = vrot.slane %v5377, 5
      %v5380 = vsel %vm339, %v5375, %v5379
      %v5382 = vshrl.u32 %v5053, 16
      %v5384 = vrot.slane %v5382, 4
      %v5385 = vshll.u32 %v5053, 16
      %v5387 = vrot.slane %v5385, 5
      %v5388 = vor.u32 %v5384, %v5387
      %v5389 = vrot.slane %v5388, 4
      %v5391 = vshll.u32 %v5054, 16
      %v5393 = vrot.slane %v5391, 5
      %v5394 = vsel %vm339, %v5389, %v5393
      %v5395 = vshrl.u32 %v5054, 16
      %v5397 = vrot.slane %v5395, 4
      %v5398 = vor.u32 %v5397, %v5393
      %v5399 = vrot.slane %v5398, 4
      %v5401 = vshll.u32 %v5089, 16
      %v5403 = vrot.slane %v5401, 5
      %v5404 = vsel %vm339, %v5399, %v5403
      %v5406 = vshrl.u32 %v5055, 16
      %v5408 = vrot.slane %v5406, 4
      %v5409 = vshll.u32 %v5055, 16
      %v5411 = vrot.slane %v5409, 5
      %v5412 = vor.u32 %v5408, %v5411
      %v5413 = vrot.slane %v5412, 4
      %v5415 = vshll.u32 %v5056, 16
      %v5417 = vrot.slane %v5415, 5
      %v5418 = vsel %vm339, %v5413, %v5417
      %v5419 = vshrl.u32 %v5056, 16
      %v5421 = vrot.slane %v5419, 4
      %v5422 = vor.u32 %v5421, %v5417
      %v5423 = vrot.slane %v5422, 4
      %v5425 = vshll.u32 %v5090, 16
      %v5427 = vrot.slane %v5425, 5
      %v5428 = vsel %vm339, %v5423, %v5427
      %v5430 = vshrl.u32 %v5057, 16
      %v5432 = vrot.slane %v5430, 4
      %v5433 = vshll.u32 %v5057, 16
      %v5435 = vrot.slane %v5433, 5
      %v5436 = vor.u32 %v5432, %v5435
      %v5437 = vrot.slane %v5436, 4
      %v5439 = vshll.u32 %v5058, 16
      %v5441 = vrot.slane %v5439, 5
      %v5442 = vsel %vm339, %v5437, %v5441
      %v5443 = vshrl.u32 %v5058, 16
      %v5445 = vrot.slane %v5443, 4
      %v5446 = vor.u32 %v5445, %v5441
      %v5447 = vrot.slane %v5446, 4
      %v5449 = vshll.u32 %v5091, 16
      %v5451 = vrot.slane %v5449, 5
      %v5452 = vsel %vm339, %v5447, %v5451
      %v5454 = vshrl.u32 %v5059, 16
      %v5456 = vrot.slane %v5454, 4
      %v5457 = vshll.u32 %v5059, 16
      %v5459 = vrot.slane %v5457, 5
      %v5460 = vor.u32 %v5456, %v5459
      %v5461 = vrot.slane %v5460, 4
      %v5463 = vshll.u32 %v5060, 16
      %v5465 = vrot.slane %v5463, 5
      %v5466 = vsel %vm339, %v5461, %v5465
      %v5467 = vshrl.u32 %v5060, 16
      %v5469 = vrot.slane %v5467, 4
      %v5470 = vor.u32 %v5469, %v5465
      %v5471 = vrot.slane %v5470, 4
      %v5473 = vshll.u32 %v5092, 16
      %v5475 = vrot.slane %v5473, 5
      %v5476 = vsel %vm339, %v5471, %v5475
      %s5477 = scalar_lea.vmem %s4, 64
      %v5478 = vld [vmem:[%s5477] sm:$0xf]
      %v5479 = vld [vmem:[%s5477 + $0x4] sm:$0xf]
      %v5480 = vld [vmem:[%s5477 + $0x8] sm:$0xf]
      %v5481 = vld [vmem:[%s5477 + $0xc] sm:$0xf]
      %v5482 = vld [vmem:[%s5477 + $0x10] sm:$0xf]
      %v5483 = vld [vmem:[%s5477 + $0x14] sm:$0xf]
      %v5484 = vld [vmem:[%s5477 + $0x18] sm:$0xf]
      %v5485 = vld [vmem:[%s5477 + $0x1c] sm:$0xf]
      %v5486 = vld [vmem:[%s5477 + $0x20] sm:$0xf]
      %v5487 = vld [vmem:[%s5477 + $0x24] sm:$0xf]
      %v5488 = vld [vmem:[%s5477 + $0x28] sm:$0xf]
      %v5489 = vld [vmem:[%s5477 + $0x2c] sm:$0xf]
      %v5490 = vld [vmem:[%s5477 + $0x30] sm:$0xf]
      %v5491 = vld [vmem:[%s5477 + $0x34] sm:$0xf]
      %v5492 = vld [vmem:[%s5477 + $0x38] sm:$0xf]
      %v5493 = vld [vmem:[%s5477 + $0x3c] sm:$0xf]
      %v5494 = vunpack.c.l.b16 %v5106
      %v5495 = vunpack.c.l.b16 %v5116
      %v5496 = vunpack.c.l.b16 %v5130
      %v5497 = vunpack.c.l.b16 %v5140
      %v5498 = vunpack.c.l.b16 %v5154
      %v5499 = vunpack.c.l.b16 %v5164
      %v5500 = vunpack.c.l.b16 %v5178
      %v5501 = vunpack.c.l.b16 %v5188
      %v5502 = vunpack.c.l.b16 %v5202
      %v5503 = vunpack.c.l.b16 %v5212
      %v5504 = vunpack.c.l.b16 %v5226
      %v5505 = vunpack.c.l.b16 %v5236
      %v5506 = vunpack.c.l.b16 %v5250
      %v5507 = vunpack.c.l.b16 %v5260
      %v5508 = vunpack.c.l.b16 %v5274
      %v5509 = vunpack.c.l.b16 %v5284
      %v5510 = vunpack.c.l.b16 %v5298
      %v5511 = vunpack.c.l.b16 %v5308
      %v5512 = vunpack.c.l.b16 %v5322
      %v5513 = vunpack.c.l.b16 %v5332
      %v5514 = vunpack.c.l.b16 %v5346
      %v5515 = vunpack.c.l.b16 %v5356
      %v5516 = vunpack.c.l.b16 %v5370
      %v5517 = vunpack.c.l.b16 %v5380
      %v5518 = vunpack.c.l.b16 %v5394
      %v5519 = vunpack.c.l.b16 %v5404
      %v5520 = vunpack.c.l.b16 %v5418
      %v5521 = vunpack.c.l.b16 %v5428
      %v5522 = vunpack.c.l.b16 %v5442
      %v5523 = vunpack.c.l.b16 %v5452
      %v5524 = vunpack.c.l.b16 %v5466
      %v5525 = vunpack.c.l.b16 %v5476
      %v5526 = vpack.c.b16 %v5495, %v5494
      %v5527 = vpack.c.b16 %v5497, %v5496
      %v5528 = vpack.c.b16 %v5499, %v5498
      %v5529 = vpack.c.b16 %v5501, %v5500
      %v5530 = vpack.c.b16 %v5503, %v5502
      %v5531 = vpack.c.b16 %v5505, %v5504
      %v5532 = vpack.c.b16 %v5507, %v5506
      %v5533 = vpack.c.b16 %v5509, %v5508
      %v5534 = vpack.c.b16 %v5511, %v5510
      %v5535 = vpack.c.b16 %v5513, %v5512
      %v5536 = vpack.c.b16 %v5515, %v5514
      %v5537 = vpack.c.b16 %v5517, %v5516
      %v5538 = vpack.c.b16 %v5519, %v5518
      %v5539 = vpack.c.b16 %v5521, %v5520
      %v5540 = vpack.c.b16 %v5523, %v5522
      %v5541 = vpack.c.b16 %v5525, %v5524
      %v5574 = vunpack.c.l.b16 %v5478
      %v5575 = vunpack.c.l.b16 %v5479
      %v5576 = vunpack.c.l.b16 %v5480
      %v5577 = vunpack.c.l.b16 %v5481
      %v5578 = vunpack.c.l.b16 %v5482
      %v5579 = vunpack.c.l.b16 %v5483
      %v5580 = vunpack.c.l.b16 %v5484
      %v5581 = vunpack.c.l.b16 %v5485
      %v5582 = vunpack.c.l.b16 %v5486
      %v5583 = vunpack.c.l.b16 %v5487
      %v5584 = vunpack.c.l.b16 %v5488
      %v5585 = vunpack.c.l.b16 %v5489
      %v5586 = vunpack.c.l.b16 %v5490
      %v5587 = vunpack.c.l.b16 %v5491
      %v5588 = vunpack.c.l.b16 %v5492
      %v5589 = vunpack.c.l.b16 %v5493
      %v5590 = vpack.c.b16 %v5575, %v5574
      %v5591 = vpack.c.b16 %v5577, %v5576
      %v5592 = vpack.c.b16 %v5579, %v5578
      %v5593 = vpack.c.b16 %v5581, %v5580
      %v5594 = vpack.c.b16 %v5583, %v5582
      %v5595 = vpack.c.b16 %v5585, %v5584
      %v5596 = vpack.c.b16 %v5587, %v5586
      %v5597 = vpack.c.b16 %v5589, %v5588
      %5606 = vmatpush.bf16.msra.mxu0 %v5597
      %5607 = vmatpush.bf16.msra.mxu0 %v5596
      %5608 = vmatpush.bf16.msra.mxu0 %v5595
      %5609 = vmatpush.bf16.msra.mxu0 %v5594
      %5610 = vmatpush.bf16.msra.mxu0 %v5593
      %5611 = vmatpush.bf16.msra.mxu0 %v5592
      %5612 = vmatpush.bf16.msra.mxu0 %v5591
      %5613 = vmatpush.bf16.msra.mxu0 %v5590
      %5614 = vmatmul.bf16.gmra.mxu0 %v5526
      %v5615 = vpop.f32.mrf.mxu0
      %v5616 = vadd.f32 0.0, %v5615
      %v5617 = vpop.f32.mrf.mxu0
      %v5618 = vadd.f32 0.0, %v5617
      %5619 = vmatmul.bf16.gmra.mxu0 %v5527
      %v5620 = vpop.f32.mrf.mxu0
      %v5621 = vadd.f32 0.0, %v5620
      %v5622 = vpop.f32.mrf.mxu0
      %v5623 = vadd.f32 0.0, %v5622
      %5624 = vmatmul.bf16.gmra.mxu0 %v5528
      %v5625 = vpop.f32.mrf.mxu0
      %v5626 = vadd.f32 0.0, %v5625
      %v5627 = vpop.f32.mrf.mxu0
      %v5628 = vadd.f32 0.0, %v5627
      %5629 = vmatmul.bf16.gmra.mxu0 %v5529
      %v5630 = vpop.f32.mrf.mxu0
      %v5631 = vadd.f32 0.0, %v5630
      %v5632 = vpop.f32.mrf.mxu0
      %v5633 = vadd.f32 0.0, %v5632
      %5634 = vmatmul.bf16.gmra.mxu0 %v5530
      %v5635 = vpop.f32.mrf.mxu0
      %v5636 = vadd.f32 0.0, %v5635
      %v5637 = vpop.f32.mrf.mxu0
      %v5638 = vadd.f32 0.0, %v5637
      %5639 = vmatmul.bf16.gmra.mxu0 %v5531
      %v5640 = vpop.f32.mrf.mxu0
      %v5641 = vadd.f32 0.0, %v5640
      %v5642 = vpop.f32.mrf.mxu0
      %v5643 = vadd.f32 0.0, %v5642
      %5644 = vmatmul.bf16.gmra.mxu0 %v5532
      %v5645 = vpop.f32.mrf.mxu0
      %v5646 = vadd.f32 0.0, %v5645
      %v5647 = vpop.f32.mrf.mxu0
      %v5648 = vadd.f32 0.0, %v5647
      %5649 = vmatmul.bf16.gmra.mxu0 %v5533
      %v5650 = vpop.f32.mrf.mxu0
      %v5651 = vadd.f32 0.0, %v5650
      %v5652 = vpop.f32.mrf.mxu0
      %v5653 = vadd.f32 0.0, %v5652
      %5654 = vmatmul.bf16.gmra.mxu0 %v5534
      %v5655 = vpop.f32.mrf.mxu0
      %v5656 = vadd.f32 0.0, %v5655
      %v5657 = vpop.f32.mrf.mxu0
      %v5658 = vadd.f32 0.0, %v5657
      %5659 = vmatmul.bf16.gmra.mxu0 %v5535
      %v5660 = vpop.f32.mrf.mxu0
      %v5661 = vadd.f32 0.0, %v5660
      %v5662 = vpop.f32.mrf.mxu0
      %v5663 = vadd.f32 0.0, %v5662
      %5664 = vmatmul.bf16.gmra.mxu0 %v5536
      %v5665 = vpop.f32.mrf.mxu0
      %v5666 = vadd.f32 0.0, %v5665
      %v5667 = vpop.f32.mrf.mxu0
      %v5668 = vadd.f32 0.0, %v5667
      %5669 = vmatmul.bf16.gmra.mxu0 %v5537
      %v5670 = vpop.f32.mrf.mxu0
      %v5671 = vadd.f32 0.0, %v5670
      %v5672 = vpop.f32.mrf.mxu0
      %v5673 = vadd.f32 0.0, %v5672
      %5674 = vmatmul.bf16.gmra.mxu0 %v5538
      %v5675 = vpop.f32.mrf.mxu0
      %v5676 = vadd.f32 0.0, %v5675
      %v5677 = vpop.f32.mrf.mxu0
      %v5678 = vadd.f32 0.0, %v5677
      %5679 = vmatmul.bf16.gmra.mxu0 %v5539
      %v5680 = vpop.f32.mrf.mxu0
      %v5681 = vadd.f32 0.0, %v5680
      %v5682 = vpop.f32.mrf.mxu0
      %v5683 = vadd.f32 0.0, %v5682
      %5684 = vmatmul.bf16.gmra.mxu0 %v5540
      %v5685 = vpop.f32.mrf.mxu0
      %v5686 = vadd.f32 0.0, %v5685
      %v5687 = vpop.f32.mrf.mxu0
      %v5688 = vadd.f32 0.0, %v5687
      %5689 = vmatmul.bf16.gmra.mxu0 %v5541
      %v5690 = vpop.f32.mrf.mxu0
      %v5691 = vadd.f32 0.0, %v5690
      %v5692 = vpop.f32.mrf.mxu0
      %v5693 = vadd.f32 0.0, %v5692
      %5694 = vdwg.mxu0
      %v5727 = vunpack.c.l.b16 %v5029
      %v5728 = vunpack.c.l.b16 %v5030
      %v5729 = vunpack.c.l.b16 %v5031
      %v5730 = vunpack.c.l.b16 %v5032
      %v5731 = vunpack.c.l.b16 %v5033
      %v5732 = vunpack.c.l.b16 %v5034
      %v5733 = vunpack.c.l.b16 %v5035
      %v5734 = vunpack.c.l.b16 %v5036
      %v5735 = vunpack.c.l.b16 %v5037
      %v5736 = vunpack.c.l.b16 %v5038
      %v5737 = vunpack.c.l.b16 %v5039
      %v5738 = vunpack.c.l.b16 %v5040
      %v5739 = vunpack.c.l.b16 %v5041
      %v5740 = vunpack.c.l.b16 %v5042
      %v5741 = vunpack.c.l.b16 %v5043
      %v5742 = vunpack.c.l.b16 %v5044
      %v5743 = vunpack.c.l.b16 %v5045
      %v5744 = vunpack.c.l.b16 %v5046
      %v5745 = vunpack.c.l.b16 %v5047
      %v5746 = vunpack.c.l.b16 %v5048
      %v5747 = vunpack.c.l.b16 %v5049
      %v5748 = vunpack.c.l.b16 %v5050
      %v5749 = vunpack.c.l.b16 %v5051
      %v5750 = vunpack.c.l.b16 %v5052
      %v5751 = vunpack.c.l.b16 %v5053
      %v5752 = vunpack.c.l.b16 %v5054
      %v5753 = vunpack.c.l.b16 %v5055
      %v5754 = vunpack.c.l.b16 %v5056
      %v5755 = vunpack.c.l.b16 %v5057
      %v5756 = vunpack.c.l.b16 %v5058
      %v5757 = vunpack.c.l.b16 %v5059
      %v5758 = vunpack.c.l.b16 %v5060
      %v5759 = vpack.c.b16 %v5728, %v5727
      %v5760 = vpack.c.b16 %v5730, %v5729
      %v5761 = vpack.c.b16 %v5732, %v5731
      %v5762 = vpack.c.b16 %v5734, %v5733
      %v5763 = vpack.c.b16 %v5736, %v5735
      %v5764 = vpack.c.b16 %v5738, %v5737
      %v5765 = vpack.c.b16 %v5740, %v5739
      %v5766 = vpack.c.b16 %v5742, %v5741
      %v5767 = vpack.c.b16 %v5744, %v5743
      %v5768 = vpack.c.b16 %v5746, %v5745
      %v5769 = vpack.c.b16 %v5748, %v5747
      %v5770 = vpack.c.b16 %v5750, %v5749
      %v5771 = vpack.c.b16 %v5752, %v5751
      %v5772 = vpack.c.b16 %v5754, %v5753
      %v5773 = vpack.c.b16 %v5756, %v5755
      %v5774 = vpack.c.b16 %v5758, %v5757
      %v5807 = vunpack.c.l.b16 %v5061
      %v5808 = vunpack.c.l.b16 %v5062
      %v5809 = vunpack.c.l.b16 %v5063
      %v5810 = vunpack.c.l.b16 %v5064
      %v5811 = vunpack.c.l.b16 %v5065
      %v5812 = vunpack.c.l.b16 %v5066
      %v5813 = vunpack.c.l.b16 %v5067
      %v5814 = vunpack.c.l.b16 %v5068
      %v5815 = vunpack.c.l.b16 %v5069
      %v5816 = vunpack.c.l.b16 %v5070
      %v5817 = vunpack.c.l.b16 %v5071
      %v5818 = vunpack.c.l.b16 %v5072
      %v5819 = vunpack.c.l.b16 %v5073
      %v5820 = vunpack.c.l.b16 %v5074
      %v5821 = vunpack.c.l.b16 %v5075
      %v5822 = vunpack.c.l.b16 %v5076
      %v5823 = vpack.c.b16 %v5808, %v5807
      %v5824 = vpack.c.b16 %v5810, %v5809
      %v5825 = vpack.c.b16 %v5812, %v5811
      %v5826 = vpack.c.b16 %v5814, %v5813
      %v5827 = vpack.c.b16 %v5816, %v5815
      %v5828 = vpack.c.b16 %v5818, %v5817
      %v5829 = vpack.c.b16 %v5820, %v5819
      %v5830 = vpack.c.b16 %v5822, %v5821
      %5839 = vmatpush.bf16.msra.mxu0 %v5830
      %5840 = vmatpush.bf16.msra.mxu0 %v5829
      %5841 = vmatpush.bf16.msra.mxu0 %v5828
      %5842 = vmatpush.bf16.msra.mxu0 %v5827
      %5843 = vmatpush.bf16.msra.mxu0 %v5826
      %5844 = vmatpush.bf16.msra.mxu0 %v5825
      %5845 = vmatpush.bf16.msra.mxu0 %v5824
      %5846 = vmatpush.bf16.msra.mxu0 %v5823
      %5847 = vmatmul.bf16.gmra.mxu0 %v5759
      %v5848 = vpop.f32.mrf.mxu0
      %v5849 = vadd.f32 %v5616, %v5848
      %v5850 = vpop.f32.mrf.mxu0
      %v5851 = vadd.f32 %v5618, %v5850
      %5852 = vmatmul.bf16.gmra.mxu0 %v5760
      %v5853 = vpop.f32.mrf.mxu0
      %v5854 = vadd.f32 %v5621, %v5853
      %v5855 = vpop.f32.mrf.mxu0
      %v5856 = vadd.f32 %v5623, %v5855
      %5857 = vmatmul.bf16.gmra.mxu0 %v5761
      %v5858 = vpop.f32.mrf.mxu0
      %v5859 = vadd.f32 %v5626, %v5858
      %v5860 = vpop.f32.mrf.mxu0
      %v5861 = vadd.f32 %v5628, %v5860
      %5862 = vmatmul.bf16.gmra.mxu0 %v5762
      %v5863 = vpop.f32.mrf.mxu0
      %v5864 = vadd.f32 %v5631, %v5863
      %v5865 = vpop.f32.mrf.mxu0
      %v5866 = vadd.f32 %v5633, %v5865
      %5867 = vmatmul.bf16.gmra.mxu0 %v5763
      %v5868 = vpop.f32.mrf.mxu0
      %v5869 = vadd.f32 %v5636, %v5868
      %v5870 = vpop.f32.mrf.mxu0
      %v5871 = vadd.f32 %v5638, %v5870
      %5872 = vmatmul.bf16.gmra.mxu0 %v5764
      %v5873 = vpop.f32.mrf.mxu0
      %v5874 = vadd.f32 %v5641, %v5873
      %v5875 = vpop.f32.mrf.mxu0
      %v5876 = vadd.f32 %v5643, %v5875
      %5877 = vmatmul.bf16.gmra.mxu0 %v5765
      %v5878 = vpop.f32.mrf.mxu0
      %v5879 = vadd.f32 %v5646, %v5878
      %v5880 = vpop.f32.mrf.mxu0
      %v5881 = vadd.f32 %v5648, %v5880
      %5882 = vmatmul.bf16.gmra.mxu0 %v5766
      %v5883 = vpop.f32.mrf.mxu0
      %v5884 = vadd.f32 %v5651, %v5883
      %v5885 = vpop.f32.mrf.mxu0
      %v5886 = vadd.f32 %v5653, %v5885
      %5887 = vmatmul.bf16.gmra.mxu0 %v5767
      %v5888 = vpop.f32.mrf.mxu0
      %v5889 = vadd.f32 %v5656, %v5888
      %v5890 = vpop.f32.mrf.mxu0
      %v5891 = vadd.f32 %v5658, %v5890
      %5892 = vmatmul.bf16.gmra.mxu0 %v5768
      %v5893 = vpop.f32.mrf.mxu0
      %v5894 = vadd.f32 %v5661, %v5893
      %v5895 = vpop.f32.mrf.mxu0
      %v5896 = vadd.f32 %v5663, %v5895
      %5897 = vmatmul.bf16.gmra.mxu0 %v5769
      %v5898 = vpop.f32.mrf.mxu0
      %v5899 = vadd.f32 %v5666, %v5898
      %v5900 = vpop.f32.mrf.mxu0
      %v5901 = vadd.f32 %v5668, %v5900
      %5902 = vmatmul.bf16.gmra.mxu0 %v5770
      %v5903 = vpop.f32.mrf.mxu0
      %v5904 = vadd.f32 %v5671, %v5903
      %v5905 = vpop.f32.mrf.mxu0
      %v5906 = vadd.f32 %v5673, %v5905
      %5907 = vmatmul.bf16.gmra.mxu0 %v5771
      %v5908 = vpop.f32.mrf.mxu0
      %v5909 = vadd.f32 %v5676, %v5908
      %v5910 = vpop.f32.mrf.mxu0
      %v5911 = vadd.f32 %v5678, %v5910
      %5912 = vmatmul.bf16.gmra.mxu0 %v5772
      %v5913 = vpop.f32.mrf.mxu0
      %v5914 = vadd.f32 %v5681, %v5913
      %v5915 = vpop.f32.mrf.mxu0
      %v5916 = vadd.f32 %v5683, %v5915
      %5917 = vmatmul.bf16.gmra.mxu0 %v5773
      %v5918 = vpop.f32.mrf.mxu0
      %v5919 = vadd.f32 %v5686, %v5918
      %v5920 = vpop.f32.mrf.mxu0
      %v5921 = vadd.f32 %v5688, %v5920
      %5922 = vmatmul.bf16.gmra.mxu0 %v5774
      %v5923 = vpop.f32.mrf.mxu0
      %v5924 = vadd.f32 %v5691, %v5923
      %v5925 = vpop.f32.mrf.mxu0
      %v5926 = vadd.f32 %v5693, %v5925
      %5927 = vdwg.mxu0
      %v5928 = vld [vmem:[#allocation2] sm:$0xe]
      %v5929 = vld [vmem:[#allocation2 + $0xc] sm:$0xe]
      %v5930 = vld [vmem:[#allocation2 + $0x18] sm:$0xe]
      %v5931 = vld [vmem:[#allocation2 + $0x24] sm:$0xe]
      %v5932 = vld [vmem:[#allocation2 + $0x30] sm:$0xe]
      %v5933 = vld [vmem:[#allocation2 + $0x3c] sm:$0xe]
      %v5934 = vld [vmem:[#allocation2 + $0x48] sm:$0xe]
      %v5935 = vld [vmem:[#allocation2 + $0x54] sm:$0xe]
      %v5936 = vld [vmem:[#allocation2 + $0x60] sm:$0xe]
      %v5937 = vld [vmem:[#allocation2 + $0x6c] sm:$0xe]
      %v5938 = vld [vmem:[#allocation2 + $0x78] sm:$0xe]
      %v5939 = vld [vmem:[#allocation2 + $0x84] sm:$0xe]
      %v5940 = vld [vmem:[#allocation2 + $0x90] sm:$0xe]
      %v5941 = vld [vmem:[#allocation2 + $0x9c] sm:$0xe]
      %v5942 = vld [vmem:[#allocation2 + $0xa8] sm:$0xe]
      %v5943 = vld [vmem:[#allocation2 + $0xb4] sm:$0xe]
      %v5976 = vrot.slane %v5928, 5
      %v5977 = vrot.slane %v5976, 4
      %v5978 = vrot.slane %v5030, 5
      %v5979 = vsel %vm1225, %v5977, %v5978
      %v5980 = vrot.slane %v5978, 4
      %v5981 = vrot.slane %v5077, 5
      %v5982 = vsel %vm1225, %v5980, %v5981
      %v5983 = vrot.slane %v5929, 5
      %v5984 = vrot.slane %v5983, 4
      %v5985 = vrot.slane %v5032, 5
      %v5986 = vsel %vm1225, %v5984, %v5985
      %v5987 = vrot.slane %v5985, 4
      %v5988 = vrot.slane %v5078, 5
      %v5989 = vsel %vm1225, %v5987, %v5988
      %v5990 = vrot.slane %v5930, 5
      %v5991 = vrot.slane %v5990, 4
      %v5992 = vrot.slane %v5034, 5
      %v5993 = vsel %vm1225, %v5991, %v5992
      %v5994 = vrot.slane %v5992, 4
      %v5995 = vrot.slane %v5079, 5
      %v5996 = vsel %vm1225, %v5994, %v5995
      %v5997 = vrot.slane %v5931, 5
      %v5998 = vrot.slane %v5997, 4
      %v5999 = vrot.slane %v5036, 5
      %v6000 = vsel %vm1225, %v5998, %v5999
      %v6001 = vrot.slane %v5999, 4
      %v6002 = vrot.slane %v5080, 5
      %v6003 = vsel %vm1225, %v6001, %v6002
      %v6004 = vrot.slane %v5932, 5
      %v6005 = vrot.slane %v6004, 4
      %v6006 = vrot.slane %v5038, 5
      %v6007 = vsel %vm1225, %v6005, %v6006
      %v6008 = vrot.slane %v6006, 4
      %v6009 = vrot.slane %v5081, 5
      %v6010 = vsel %vm1225, %v6008, %v6009
      %v6011 = vrot.slane %v5933, 5
      %v6012 = vrot.slane %v6011, 4
      %v6013 = vrot.slane %v5040, 5
      %v6014 = vsel %vm1225, %v6012, %v6013
      %v6015 = vrot.slane %v6013, 4
      %v6016 = vrot.slane %v5082, 5
      %v6017 = vsel %vm1225, %v6015, %v6016
      %v6018 = vrot.slane %v5934, 5
      %v6019 = vrot.slane %v6018, 4
      %v6020 = vrot.slane %v5042, 5
      %v6021 = vsel %vm1225, %v6019, %v6020
      %v6022 = vrot.slane %v6020, 4
      %v6023 = vrot.slane %v5083, 5
      %v6024 = vsel %vm1225, %v6022, %v6023
      %v6025 = vrot.slane %v5935, 5
      %v6026 = vrot.slane %v6025, 4
      %v6027 = vrot.slane %v5044, 5
      %v6028 = vsel %vm1225, %v6026, %v6027
      %v6029 = vrot.slane %v6027, 4
      %v6030 = vrot.slane %v5084, 5
      %v6031 = vsel %vm1225, %v6029, %v6030
      %v6032 = vrot.slane %v5936, 5
      %v6033 = vrot.slane %v6032, 4
      %v6034 = vrot.slane %v5046, 5
      %v6035 = vsel %vm1225, %v6033, %v6034
      %v6036 = vrot.slane %v6034, 4
      %v6037 = vrot.slane %v5085, 5
      %v6038 = vsel %vm1225, %v6036, %v6037
      %v6039 = vrot.slane %v5937, 5
      %v6040 = vrot.slane %v6039, 4
      %v6041 = vrot.slane %v5048, 5
      %v6042 = vsel %vm1225, %v6040, %v6041
      %v6043 = vrot.slane %v6041, 4
      %v6044 = vrot.slane %v5086, 5
      %v6045 = vsel %vm1225, %v6043, %v6044
      %v6046 = vrot.slane %v5938, 5
      %v6047 = vrot.slane %v6046, 4
      %v6048 = vrot.slane %v5050, 5
      %v6049 = vsel %vm1225, %v6047, %v6048
      %v6050 = vrot.slane %v6048, 4
      %v6051 = vrot.slane %v5087, 5
      %v6052 = vsel %vm1225, %v6050, %v6051
      %v6053 = vrot.slane %v5939, 5
      %v6054 = vrot.slane %v6053, 4
      %v6055 = vrot.slane %v5052, 5
      %v6056 = vsel %vm1225, %v6054, %v6055
      %v6057 = vrot.slane %v6055, 4
      %v6058 = vrot.slane %v5088, 5
      %v6059 = vsel %vm1225, %v6057, %v6058
      %v6060 = vrot.slane %v5940, 5
      %v6061 = vrot.slane %v6060, 4
      %v6062 = vrot.slane %v5054, 5
      %v6063 = vsel %vm1225, %v6061, %v6062
      %v6064 = vrot.slane %v6062, 4
      %v6065 = vrot.slane %v5089, 5
      %v6066 = vsel %vm1225, %v6064, %v6065
      %v6067 = vrot.slane %v5941, 5
      %v6068 = vrot.slane %v6067, 4
      %v6069 = vrot.slane %v5056, 5
      %v6070 = vsel %vm1225, %v6068, %v6069
      %v6071 = vrot.slane %v6069, 4
      %v6072 = vrot.slane %v5090, 5
      %v6073 = vsel %vm1225, %v6071, %v6072
      %v6074 = vrot.slane %v5942, 5
      %v6075 = vrot.slane %v6074, 4
      %v6076 = vrot.slane %v5058, 5
      %v6077 = vsel %vm1225, %v6075, %v6076
      %v6078 = vrot.slane %v6076, 4
      %v6079 = vrot.slane %v5091, 5
      %v6080 = vsel %vm1225, %v6078, %v6079
      %v6081 = vrot.slane %v5943, 5
      %v6082 = vrot.slane %v6081, 4
      %v6083 = vrot.slane %v5060, 5
      %v6084 = vsel %vm1225, %v6082, %v6083
      %v6085 = vrot.slane %v6083, 4
      %v6086 = vrot.slane %v5092, 5
      %v6087 = vsel %vm1225, %v6085, %v6086
      %s6088 = scalar_lea.vmem %s4, 128
      %v6089 = vld [vmem:[%s6088] sm:$0xf]
      %v6090 = vld [vmem:[%s6088 + $0x4] sm:$0xf]
      %v6091 = vld [vmem:[%s6088 + $0x8] sm:$0xf]
      %v6092 = vld [vmem:[%s6088 + $0xc] sm:$0xf]
      %v6093 = vld [vmem:[%s6088 + $0x10] sm:$0xf]
      %v6094 = vld [vmem:[%s6088 + $0x14] sm:$0xf]
      %v6095 = vld [vmem:[%s6088 + $0x18] sm:$0xf]
      %v6096 = vld [vmem:[%s6088 + $0x1c] sm:$0xf]
      %v6097 = vld [vmem:[%s6088 + $0x20] sm:$0xf]
      %v6098 = vld [vmem:[%s6088 + $0x24] sm:$0xf]
      %v6099 = vld [vmem:[%s6088 + $0x28] sm:$0xf]
      %v6100 = vld [vmem:[%s6088 + $0x2c] sm:$0xf]
      %v6101 = vld [vmem:[%s6088 + $0x30] sm:$0xf]
      %v6102 = vld [vmem:[%s6088 + $0x34] sm:$0xf]
      %v6103 = vld [vmem:[%s6088 + $0x38] sm:$0xf]
      %v6104 = vld [vmem:[%s6088 + $0x3c] sm:$0xf]
      %v6105 = vunpack.c.l.b16 %v5979
      %v6106 = vunpack.c.l.b16 %v5982
      %v6107 = vunpack.c.l.b16 %v5986
      %v6108 = vunpack.c.l.b16 %v5989
      %v6109 = vunpack.c.l.b16 %v5993
      %v6110 = vunpack.c.l.b16 %v5996
      %v6111 = vunpack.c.l.b16 %v6000
      %v6112 = vunpack.c.l.b16 %v6003
      %v6113 = vunpack.c.l.b16 %v6007
      %v6114 = vunpack.c.l.b16 %v6010
      %v6115 = vunpack.c.l.b16 %v6014
      %v6116 = vunpack.c.l.b16 %v6017
      %v6117 = vunpack.c.l.b16 %v6021
      %v6118 = vunpack.c.l.b16 %v6024
      %v6119 = vunpack.c.l.b16 %v6028
      %v6120 = vunpack.c.l.b16 %v6031
      %v6121 = vunpack.c.l.b16 %v6035
      %v6122 = vunpack.c.l.b16 %v6038
      %v6123 = vunpack.c.l.b16 %v6042
      %v6124 = vunpack.c.l.b16 %v6045
      %v6125 = vunpack.c.l.b16 %v6049
      %v6126 = vunpack.c.l.b16 %v6052
      %v6127 = vunpack.c.l.b16 %v6056
      %v6128 = vunpack.c.l.b16 %v6059
      %v6129 = vunpack.c.l.b16 %v6063
      %v6130 = vunpack.c.l.b16 %v6066
      %v6131 = vunpack.c.l.b16 %v6070
      %v6132 = vunpack.c.l.b16 %v6073
      %v6133 = vunpack.c.l.b16 %v6077
      %v6134 = vunpack.c.l.b16 %v6080
      %v6135 = vunpack.c.l.b16 %v6084
      %v6136 = vunpack.c.l.b16 %v6087
      %v6137 = vpack.c.b16 %v6106, %v6105
      %v6138 = vpack.c.b16 %v6108, %v6107
      %v6139 = vpack.c.b16 %v6110, %v6109
      %v6140 = vpack.c.b16 %v6112, %v6111
      %v6141 = vpack.c.b16 %v6114, %v6113
      %v6142 = vpack.c.b16 %v6116, %v6115
      %v6143 = vpack.c.b16 %v6118, %v6117
      %v6144 = vpack.c.b16 %v6120, %v6119
      %v6145 = vpack.c.b16 %v6122, %v6121
      %v6146 = vpack.c.b16 %v6124, %v6123
      %v6147 = vpack.c.b16 %v6126, %v6125
      %v6148 = vpack.c.b16 %v6128, %v6127
      %v6149 = vpack.c.b16 %v6130, %v6129
      %v6150 = vpack.c.b16 %v6132, %v6131
      %v6151 = vpack.c.b16 %v6134, %v6133
      %v6152 = vpack.c.b16 %v6136, %v6135
      %v6185 = vunpack.c.l.b16 %v6089
      %v6186 = vunpack.c.l.b16 %v6090
      %v6187 = vunpack.c.l.b16 %v6091
      %v6188 = vunpack.c.l.b16 %v6092
      %v6189 = vunpack.c.l.b16 %v6093
      %v6190 = vunpack.c.l.b16 %v6094
      %v6191 = vunpack.c.l.b16 %v6095
      %v6192 = vunpack.c.l.b16 %v6096
      %v6193 = vunpack.c.l.b16 %v6097
      %v6194 = vunpack.c.l.b16 %v6098
      %v6195 = vunpack.c.l.b16 %v6099
      %v6196 = vunpack.c.l.b16 %v6100
      %v6197 = vunpack.c.l.b16 %v6101
      %v6198 = vunpack.c.l.b16 %v6102
      %v6199 = vunpack.c.l.b16 %v6103
      %v6200 = vunpack.c.l.b16 %v6104
      %v6201 = vpack.c.b16 %v6186, %v6185
      %v6202 = vpack.c.b16 %v6188, %v6187
      %v6203 = vpack.c.b16 %v6190, %v6189
      %v6204 = vpack.c.b16 %v6192, %v6191
      %v6205 = vpack.c.b16 %v6194, %v6193
      %v6206 = vpack.c.b16 %v6196, %v6195
      %v6207 = vpack.c.b16 %v6198, %v6197
      %v6208 = vpack.c.b16 %v6200, %v6199
      %6217 = vmatpush.bf16.msra.mxu0 %v6208
      %6218 = vmatpush.bf16.msra.mxu0 %v6207
      %6219 = vmatpush.bf16.msra.mxu0 %v6206
      %6220 = vmatpush.bf16.msra.mxu0 %v6205
      %6221 = vmatpush.bf16.msra.mxu0 %v6204
      %6222 = vmatpush.bf16.msra.mxu0 %v6203
      %6223 = vmatpush.bf16.msra.mxu0 %v6202
      %6224 = vmatpush.bf16.msra.mxu0 %v6201
      %6225 = vmatmul.bf16.gmra.mxu0 %v6137
      %v6226 = vpop.f32.mrf.mxu0
      %v6227 = vadd.f32 0.0, %v6226
      %v6228 = vpop.f32.mrf.mxu0
      %v6229 = vadd.f32 0.0, %v6228
      %6230 = vmatmul.bf16.gmra.mxu0 %v6138
      %v6231 = vpop.f32.mrf.mxu0
      %v6232 = vadd.f32 0.0, %v6231
      %v6233 = vpop.f32.mrf.mxu0
      %v6234 = vadd.f32 0.0, %v6233
      %6235 = vmatmul.bf16.gmra.mxu0 %v6139
      %v6236 = vpop.f32.mrf.mxu0
      %v6237 = vadd.f32 0.0, %v6236
      %v6238 = vpop.f32.mrf.mxu0
      %v6239 = vadd.f32 0.0, %v6238
      %6240 = vmatmul.bf16.gmra.mxu0 %v6140
      %v6241 = vpop.f32.mrf.mxu0
      %v6242 = vadd.f32 0.0, %v6241
      %v6243 = vpop.f32.mrf.mxu0
      %v6244 = vadd.f32 0.0, %v6243
      %6245 = vmatmul.bf16.gmra.mxu0 %v6141
      %v6246 = vpop.f32.mrf.mxu0
      %v6247 = vadd.f32 0.0, %v6246
      %v6248 = vpop.f32.mrf.mxu0
      %v6249 = vadd.f32 0.0, %v6248
      %6250 = vmatmul.bf16.gmra.mxu0 %v6142
      %v6251 = vpop.f32.mrf.mxu0
      %v6252 = vadd.f32 0.0, %v6251
      %v6253 = vpop.f32.mrf.mxu0
      %v6254 = vadd.f32 0.0, %v6253
      %6255 = vmatmul.bf16.gmra.mxu0 %v6143
      %v6256 = vpop.f32.mrf.mxu0
      %v6257 = vadd.f32 0.0, %v6256
      %v6258 = vpop.f32.mrf.mxu0
      %v6259 = vadd.f32 0.0, %v6258
      %6260 = vmatmul.bf16.gmra.mxu0 %v6144
      %v6261 = vpop.f32.mrf.mxu0
      %v6262 = vadd.f32 0.0, %v6261
      %v6263 = vpop.f32.mrf.mxu0
      %v6264 = vadd.f32 0.0, %v6263
      %6265 = vmatmul.bf16.gmra.mxu0 %v6145
      %v6266 = vpop.f32.mrf.mxu0
      %v6267 = vadd.f32 0.0, %v6266
      %v6268 = vpop.f32.mrf.mxu0
      %v6269 = vadd.f32 0.0, %v6268
      %6270 = vmatmul.bf16.gmra.mxu0 %v6146
      %v6271 = vpop.f32.mrf.mxu0
      %v6272 = vadd.f32 0.0, %v6271
      %v6273 = vpop.f32.mrf.mxu0
      %v6274 = vadd.f32 0.0, %v6273
      %6275 = vmatmul.bf16.gmra.mxu0 %v6147
      %v6276 = vpop.f32.mrf.mxu0
      %v6277 = vadd.f32 0.0, %v6276
      %v6278 = vpop.f32.mrf.mxu0
      %v6279 = vadd.f32 0.0, %v6278
      %6280 = vmatmul.bf16.gmra.mxu0 %v6148
      %v6281 = vpop.f32.mrf.mxu0
      %v6282 = vadd.f32 0.0, %v6281
      %v6283 = vpop.f32.mrf.mxu0
      %v6284 = vadd.f32 0.0, %v6283
      %6285 = vmatmul.bf16.gmra.mxu0 %v6149
      %v6286 = vpop.f32.mrf.mxu0
      %v6287 = vadd.f32 0.0, %v6286
      %v6288 = vpop.f32.mrf.mxu0
      %v6289 = vadd.f32 0.0, %v6288
      %6290 = vmatmul.bf16.gmra.mxu0 %v6150
      %v6291 = vpop.f32.mrf.mxu0
      %v6292 = vadd.f32 0.0, %v6291
      %v6293 = vpop.f32.mrf.mxu0
      %v6294 = vadd.f32 0.0, %v6293
      %6295 = vmatmul.bf16.gmra.mxu0 %v6151
      %v6296 = vpop.f32.mrf.mxu0
      %v6297 = vadd.f32 0.0, %v6296
      %v6298 = vpop.f32.mrf.mxu0
      %v6299 = vadd.f32 0.0, %v6298
      %6300 = vmatmul.bf16.gmra.mxu0 %v6152
      %v6301 = vpop.f32.mrf.mxu0
      %v6302 = vadd.f32 0.0, %v6301
      %v6303 = vpop.f32.mrf.mxu0
      %v6304 = vadd.f32 0.0, %v6303
      %6305 = vdwg.mxu0
      %v6306 = vadd.f32 %v5849, %v6227
      %v6307 = vadd.f32 %v5851, %v6229
      %v6308 = vadd.f32 %v5854, %v6232
      %v6309 = vadd.f32 %v5856, %v6234
      %v6310 = vadd.f32 %v5859, %v6237
      %v6311 = vadd.f32 %v5861, %v6239
      %v6312 = vadd.f32 %v5864, %v6242
      %v6313 = vadd.f32 %v5866, %v6244
      %v6314 = vadd.f32 %v5869, %v6247
      %v6315 = vadd.f32 %v5871, %v6249
      %v6316 = vadd.f32 %v5874, %v6252
      %v6317 = vadd.f32 %v5876, %v6254
      %v6318 = vadd.f32 %v5879, %v6257
      %v6319 = vadd.f32 %v5881, %v6259
      %v6320 = vadd.f32 %v5884, %v6262
      %v6321 = vadd.f32 %v5886, %v6264
      %v6322 = vadd.f32 %v5889, %v6267
      %v6323 = vadd.f32 %v5891, %v6269
      %v6324 = vadd.f32 %v5894, %v6272
      %v6325 = vadd.f32 %v5896, %v6274
      %v6326 = vadd.f32 %v5899, %v6277
      %v6327 = vadd.f32 %v5901, %v6279
      %v6328 = vadd.f32 %v5904, %v6282
      %v6329 = vadd.f32 %v5906, %v6284
      %v6330 = vadd.f32 %v5909, %v6287
      %v6331 = vadd.f32 %v5911, %v6289
      %v6332 = vadd.f32 %v5914, %v6292
      %v6333 = vadd.f32 %v5916, %v6294
      %v6334 = vadd.f32 %v5919, %v6297
      %v6335 = vadd.f32 %v5921, %v6299
      %v6336 = vadd.f32 %v5924, %v6302
      %v6337 = vadd.f32 %v5926, %v6304
      %v6338 = vld [vmem:[%s4911] sm:$0xf]
      %v6339 = vld [vmem:[%s4911 + $0x4] sm:$0xf]
      %v6340 = vld [vmem:[%s4911 + $0xc] sm:$0xf]
      %v6341 = vld [vmem:[%s4911 + $0x10] sm:$0xf]
      %v6342 = vld [vmem:[%s4911 + $0x18] sm:$0xf]
      %v6343 = vld [vmem:[%s4911 + $0x1c] sm:$0xf]
      %v6344 = vld [vmem:[%s4911 + $0x24] sm:$0xf]
      %v6345 = vld [vmem:[%s4911 + $0x28] sm:$0xf]
      %v6346 = vld [vmem:[%s4911 + $0x30] sm:$0xf]
      %v6347 = vld [vmem:[%s4911 + $0x34] sm:$0xf]
      %v6348 = vld [vmem:[%s4911 + $0x3c] sm:$0xf]
      %v6349 = vld [vmem:[%s4911 + $0x40] sm:$0xf]
      %v6350 = vld [vmem:[%s4911 + $0x48] sm:$0xf]
      %v6351 = vld [vmem:[%s4911 + $0x4c] sm:$0xf]
      %v6352 = vld [vmem:[%s4911 + $0x54] sm:$0xf]
      %v6353 = vld [vmem:[%s4911 + $0x58] sm:$0xf]
      %v6354 = vld [vmem:[%s4911 + $0x60] sm:$0xf]
      %v6355 = vld [vmem:[%s4911 + $0x64] sm:$0xf]
      %v6356 = vld [vmem:[%s4911 + $0x6c] sm:$0xf]
      %v6357 = vld [vmem:[%s4911 + $0x70] sm:$0xf]
      %v6358 = vld [vmem:[%s4911 + $0x78] sm:$0xf]
      %v6359 = vld [vmem:[%s4911 + $0x7c] sm:$0xf]
      %v6360 = vld [vmem:[%s4911 + $0x84] sm:$0xf]
      %v6361 = vld [vmem:[%s4911 + $0x88] sm:$0xf]
      %v6362 = vld [vmem:[%s4911 + $0x90] sm:$0xf]
      %v6363 = vld [vmem:[%s4911 + $0x94] sm:$0xf]
      %v6364 = vld [vmem:[%s4911 + $0x9c] sm:$0xf]
      %v6365 = vld [vmem:[%s4911 + $0xa0] sm:$0xf]
      %v6366 = vld [vmem:[%s4911 + $0xa8] sm:$0xf]
      %v6367 = vld [vmem:[%s4911 + $0xac] sm:$0xf]
      %v6368 = vld [vmem:[%s4911 + $0xb4] sm:$0xf]
      %v6369 = vld [vmem:[%s4911 + $0xb8] sm:$0xf]
      %s6370 = scalar_lea.vmem %s4, 192
      %v6371 = vld [vmem:[%s6370] sm:$0xf]
      %v6372 = vld [vmem:[%s6370 + $0x4] sm:$0xf]
      %v6373 = vld [vmem:[%s6370 + $0x8] sm:$0xf]
      %v6374 = vld [vmem:[%s6370 + $0xc] sm:$0xf]
      %v6375 = vld [vmem:[%s6370 + $0x10] sm:$0xf]
      %v6376 = vld [vmem:[%s6370 + $0x14] sm:$0xf]
      %v6377 = vld [vmem:[%s6370 + $0x18] sm:$0xf]
      %v6378 = vld [vmem:[%s6370 + $0x1c] sm:$0xf]
      %v6379 = vld [vmem:[%s6370 + $0x20] sm:$0xf]
      %v6380 = vld [vmem:[%s6370 + $0x24] sm:$0xf]
      %v6381 = vld [vmem:[%s6370 + $0x28] sm:$0xf]
      %v6382 = vld [vmem:[%s6370 + $0x2c] sm:$0xf]
      %v6383 = vld [vmem:[%s6370 + $0x30] sm:$0xf]
      %v6384 = vld [vmem:[%s6370 + $0x34] sm:$0xf]
      %v6385 = vld [vmem:[%s6370 + $0x38] sm:$0xf]
      %v6386 = vld [vmem:[%s6370 + $0x3c] sm:$0xf]
      %v6419 = vunpack.c.l.b16 %v6338
      %v6420 = vunpack.c.l.b16 %v6339
      %v6421 = vunpack.c.l.b16 %v6340
      %v6422 = vunpack.c.l.b16 %v6341
      %v6423 = vunpack.c.l.b16 %v6342
      %v6424 = vunpack.c.l.b16 %v6343
      %v6425 = vunpack.c.l.b16 %v6344
      %v6426 = vunpack.c.l.b16 %v6345
      %v6427 = vunpack.c.l.b16 %v6346
      %v6428 = vunpack.c.l.b16 %v6347
      %v6429 = vunpack.c.l.b16 %v6348
      %v6430 = vunpack.c.l.b16 %v6349
      %v6431 = vunpack.c.l.b16 %v6350
      %v6432 = vunpack.c.l.b16 %v6351
      %v6433 = vunpack.c.l.b16 %v6352
      %v6434 = vunpack.c.l.b16 %v6353
      %v6435 = vunpack.c.l.b16 %v6354
      %v6436 = vunpack.c.l.b16 %v6355
      %v6437 = vunpack.c.l.b16 %v6356
      %v6438 = vunpack.c.l.b16 %v6357
      %v6439 = vunpack.c.l.b16 %v6358
      %v6440 = vunpack.c.l.b16 %v6359
      %v6441 = vunpack.c.l.b16 %v6360
      %v6442 = vunpack.c.l.b16 %v6361
      %v6443 = vunpack.c.l.b16 %v6362
      %v6444 = vunpack.c.l.b16 %v6363
      %v6445 = vunpack.c.l.b16 %v6364
      %v6446 = vunpack.c.l.b16 %v6365
      %v6447 = vunpack.c.l.b16 %v6366
      %v6448 = vunpack.c.l.b16 %v6367
      %v6449 = vunpack.c.l.b16 %v6368
      %v6450 = vunpack.c.l.b16 %v6369
      %v6451 = vpack.c.b16 %v6420, %v6419
      %v6452 = vpack.c.b16 %v6422, %v6421
      %v6453 = vpack.c.b16 %v6424, %v6423
      %v6454 = vpack.c.b16 %v6426, %v6425
      %v6455 = vpack.c.b16 %v6428, %v6427
      %v6456 = vpack.c.b16 %v6430, %v6429
      %v6457 = vpack.c.b16 %v6432, %v6431
      %v6458 = vpack.c.b16 %v6434, %v6433
      %v6459 = vpack.c.b16 %v6436, %v6435
      %v6460 = vpack.c.b16 %v6438, %v6437
      %v6461 = vpack.c.b16 %v6440, %v6439
      %v6462 = vpack.c.b16 %v6442, %v6441
      %v6463 = vpack.c.b16 %v6444, %v6443
      %v6464 = vpack.c.b16 %v6446, %v6445
      %v6465 = vpack.c.b16 %v6448, %v6447
      %v6466 = vpack.c.b16 %v6450, %v6449
      %v6499 = vunpack.c.l.b16 %v6371
      %v6500 = vunpack.c.l.b16 %v6372
      %v6501 = vunpack.c.l.b16 %v6373
      %v6502 = vunpack.c.l.b16 %v6374
      %v6503 = vunpack.c.l.b16 %v6375
      %v6504 = vunpack.c.l.b16 %v6376
      %v6505 = vunpack.c.l.b16 %v6377
      %v6506 = vunpack.c.l.b16 %v6378
      %v6507 = vunpack.c.l.b16 %v6379
      %v6508 = vunpack.c.l.b16 %v6380
      %v6509 = vunpack.c.l.b16 %v6381
      %v6510 = vunpack.c.l.b16 %v6382
      %v6511 = vunpack.c.l.b16 %v6383
      %v6512 = vunpack.c.l.b16 %v6384
      %v6513 = vunpack.c.l.b16 %v6385
      %v6514 = vunpack.c.l.b16 %v6386
      %v6515 = vpack.c.b16 %v6500, %v6499
      %v6516 = vpack.c.b16 %v6502, %v6501
      %v6517 = vpack.c.b16 %v6504, %v6503
      %v6518 = vpack.c.b16 %v6506, %v6505
      %v6519 = vpack.c.b16 %v6508, %v6507
      %v6520 = vpack.c.b16 %v6510, %v6509
      %v6521 = vpack.c.b16 %v6512, %v6511
      %v6522 = vpack.c.b16 %v6514, %v6513
      %6531 = vmatpush.bf16.msra.mxu0 %v6522
      %6532 = vmatpush.bf16.msra.mxu0 %v6521
      %6533 = vmatpush.bf16.msra.mxu0 %v6520
      %6534 = vmatpush.bf16.msra.mxu0 %v6519
      %6535 = vmatpush.bf16.msra.mxu0 %v6518
      %6536 = vmatpush.bf16.msra.mxu0 %v6517
      %6537 = vmatpush.bf16.msra.mxu0 %v6516
      %6538 = vmatpush.bf16.msra.mxu0 %v6515
      %6539 = vmatmul.bf16.gmra.mxu0 %v6451
      %v6540 = vpop.f32.mrf.mxu0
      %v6541 = vadd.f32 0.0, %v6540
      %v6542 = vpop.f32.mrf.mxu0
      %v6543 = vadd.f32 0.0, %v6542
      %6544 = vmatmul.bf16.gmra.mxu0 %v6452
      %v6545 = vpop.f32.mrf.mxu0
      %v6546 = vadd.f32 0.0, %v6545
      %v6547 = vpop.f32.mrf.mxu0
      %v6548 = vadd.f32 0.0, %v6547
      %6549 = vmatmul.bf16.gmra.mxu0 %v6453
      %v6550 = vpop.f32.mrf.mxu0
      %v6551 = vadd.f32 0.0, %v6550
      %v6552 = vpop.f32.mrf.mxu0
      %v6553 = vadd.f32 0.0, %v6552
      %6554 = vmatmul.bf16.gmra.mxu0 %v6454
      %v6555 = vpop.f32.mrf.mxu0
      %v6556 = vadd.f32 0.0, %v6555
      %v6557 = vpop.f32.mrf.mxu0
      %v6558 = vadd.f32 0.0, %v6557
      %6559 = vmatmul.bf16.gmra.mxu0 %v6455
      %v6560 = vpop.f32.mrf.mxu0
      %v6561 = vadd.f32 0.0, %v6560
      %v6562 = vpop.f32.mrf.mxu0
      %v6563 = vadd.f32 0.0, %v6562
      %6564 = vmatmul.bf16.gmra.mxu0 %v6456
      %v6565 = vpop.f32.mrf.mxu0
      %v6566 = vadd.f32 0.0, %v6565
      %v6567 = vpop.f32.mrf.mxu0
      %v6568 = vadd.f32 0.0, %v6567
      %6569 = vmatmul.bf16.gmra.mxu0 %v6457
      %v6570 = vpop.f32.mrf.mxu0
      %v6571 = vadd.f32 0.0, %v6570
      %v6572 = vpop.f32.mrf.mxu0
      %v6573 = vadd.f32 0.0, %v6572
      %6574 = vmatmul.bf16.gmra.mxu0 %v6458
      %v6575 = vpop.f32.mrf.mxu0
      %v6576 = vadd.f32 0.0, %v6575
      %v6577 = vpop.f32.mrf.mxu0
      %v6578 = vadd.f32 0.0, %v6577
      %6579 = vmatmul.bf16.gmra.mxu0 %v6459
      %v6580 = vpop.f32.mrf.mxu0
      %v6581 = vadd.f32 0.0, %v6580
      %v6582 = vpop.f32.mrf.mxu0
      %v6583 = vadd.f32 0.0, %v6582
      %6584 = vmatmul.bf16.gmra.mxu0 %v6460
      %v6585 = vpop.f32.mrf.mxu0
      %v6586 = vadd.f32 0.0, %v6585
      %v6587 = vpop.f32.mrf.mxu0
      %v6588 = vadd.f32 0.0, %v6587
      %6589 = vmatmul.bf16.gmra.mxu0 %v6461
      %v6590 = vpop.f32.mrf.mxu0
      %v6591 = vadd.f32 0.0, %v6590
      %v6592 = vpop.f32.mrf.mxu0
      %v6593 = vadd.f32 0.0, %v6592
      %6594 = vmatmul.bf16.gmra.mxu0 %v6462
      %v6595 = vpop.f32.mrf.mxu0
      %v6596 = vadd.f32 0.0, %v6595
      %v6597 = vpop.f32.mrf.mxu0
      %v6598 = vadd.f32 0.0, %v6597
      %6599 = vmatmul.bf16.gmra.mxu0 %v6463
      %v6600 = vpop.f32.mrf.mxu0
      %v6601 = vadd.f32 0.0, %v6600
      %v6602 = vpop.f32.mrf.mxu0
      %v6603 = vadd.f32 0.0, %v6602
      %6604 = vmatmul.bf16.gmra.mxu0 %v6464
      %v6605 = vpop.f32.mrf.mxu0
      %v6606 = vadd.f32 0.0, %v6605
      %v6607 = vpop.f32.mrf.mxu0
      %v6608 = vadd.f32 0.0, %v6607
      %6609 = vmatmul.bf16.gmra.mxu0 %v6465
      %v6610 = vpop.f32.mrf.mxu0
      %v6611 = vadd.f32 0.0, %v6610
      %v6612 = vpop.f32.mrf.mxu0
      %v6613 = vadd.f32 0.0, %v6612
      %6614 = vmatmul.bf16.gmra.mxu0 %v6466
      %v6615 = vpop.f32.mrf.mxu0
      %v6616 = vadd.f32 0.0, %v6615
      %v6617 = vpop.f32.mrf.mxu0
      %v6618 = vadd.f32 0.0, %v6617
      %6619 = vdwg.mxu0
      %v6620 = vadd.f32 %v6306, %v6541
      %v6621 = vadd.f32 %v6307, %v6543
      %v6622 = vadd.f32 %v6308, %v6546
      %v6623 = vadd.f32 %v6309, %v6548
      %v6624 = vadd.f32 %v6310, %v6551
      %v6625 = vadd.f32 %v6311, %v6553
      %v6626 = vadd.f32 %v6312, %v6556
      %v6627 = vadd.f32 %v6313, %v6558
      %v6628 = vadd.f32 %v6314, %v6561
      %v6629 = vadd.f32 %v6315, %v6563
      %v6630 = vadd.f32 %v6316, %v6566
      %v6631 = vadd.f32 %v6317, %v6568
      %v6632 = vadd.f32 %v6318, %v6571
      %v6633 = vadd.f32 %v6319, %v6573
      %v6634 = vadd.f32 %v6320, %v6576
      %v6635 = vadd.f32 %v6321, %v6578
      %v6636 = vadd.f32 %v6322, %v6581
      %v6637 = vadd.f32 %v6323, %v6583
      %v6638 = vadd.f32 %v6324, %v6586
      %v6639 = vadd.f32 %v6325, %v6588
      %v6640 = vadd.f32 %v6326, %v6591
      %v6641 = vadd.f32 %v6327, %v6593
      %v6642 = vadd.f32 %v6328, %v6596
      %v6643 = vadd.f32 %v6329, %v6598
      %v6644 = vadd.f32 %v6330, %v6601
      %v6645 = vadd.f32 %v6331, %v6603
      %v6646 = vadd.f32 %v6332, %v6606
      %v6647 = vadd.f32 %v6333, %v6608
      %v6648 = vadd.f32 %v6334, %v6611
      %v6649 = vadd.f32 %v6335, %v6613
      %v6650 = vadd.f32 %v6336, %v6616
      %v6651 = vadd.f32 %v6337, %v6618
      %v6652 = vld [vmem:[%s4911] sm:$0xf]
      %v6653 = vld [vmem:[%s4911 + $0x4] sm:$0xf]
      %v6654 = vld [vmem:[%s4911 + $0x8] sm:$0x1]
      %v6655 = vld [vmem:[%s4911 + $0xc] sm:$0xf]
      %v6656 = vld [vmem:[%s4911 + $0x10] sm:$0xf]
      %v6657 = vld [vmem:[%s4911 + $0x14] sm:$0x1]
      %v6658 = vld [vmem:[%s4911 + $0x18] sm:$0xf]
      %v6659 = vld [vmem:[%s4911 + $0x1c] sm:$0xf]
      %v6660 = vld [vmem:[%s4911 + $0x20] sm:$0x1]
      %v6661 = vld [vmem:[%s4911 + $0x24] sm:$0xf]
      %v6662 = vld [vmem:[%s4911 + $0x28] sm:$0xf]
      %v6663 = vld [vmem:[%s4911 + $0x2c] sm:$0x1]
      %v6664 = vld [vmem:[%s4911 + $0x30] sm:$0xf]
      %v6665 = vld [vmem:[%s4911 + $0x34] sm:$0xf]
      %v6666 = vld [vmem:[%s4911 + $0x38] sm:$0x1]
      %v6667 = vld [vmem:[%s4911 + $0x3c] sm:$0xf]
      %v6668 = vld [vmem:[%s4911 + $0x40] sm:$0xf]
      %v6669 = vld [vmem:[%s4911 + $0x44] sm:$0x1]
      %v6670 = vld [vmem:[%s4911 + $0x48] sm:$0xf]
      %v6671 = vld [vmem:[%s4911 + $0x4c] sm:$0xf]
      %v6672 = vld [vmem:[%s4911 + $0x50] sm:$0x1]
      %v6673 = vld [vmem:[%s4911 + $0x54] sm:$0xf]
      %v6674 = vld [vmem:[%s4911 + $0x58] sm:$0xf]
      %v6675 = vld [vmem:[%s4911 + $0x5c] sm:$0x1]
      %v6676 = vld [vmem:[%s4911 + $0x60] sm:$0xf]
      %v6677 = vld [vmem:[%s4911 + $0x64] sm:$0xf]
      %v6678 = vld [vmem:[%s4911 + $0x68] sm:$0x1]
      %v6679 = vld [vmem:[%s4911 + $0x6c] sm:$0xf]
      %v6680 = vld [vmem:[%s4911 + $0x70] sm:$0xf]
      %v6681 = vld [vmem:[%s4911 + $0x74] sm:$0x1]
      %v6682 = vld [vmem:[%s4911 + $0x78] sm:$0xf]
      %v6683 = vld [vmem:[%s4911 + $0x7c] sm:$0xf]
      %v6684 = vld [vmem:[%s4911 + $0x80] sm:$0x1]
      %v6685 = vld [vmem:[%s4911 + $0x84] sm:$0xf]
      %v6686 = vld [vmem:[%s4911 + $0x88] sm:$0xf]
      %v6687 = vld [vmem:[%s4911 + $0x8c] sm:$0x1]
      %v6688 = vld [vmem:[%s4911 + $0x90] sm:$0xf]
      %v6689 = vld [vmem:[%s4911 + $0x94] sm:$0xf]
      %v6690 = vld [vmem:[%s4911 + $0x98] sm:$0x1]
      %v6691 = vld [vmem:[%s4911 + $0x9c] sm:$0xf]
      %v6692 = vld [vmem:[%s4911 + $0xa0] sm:$0xf]
      %v6693 = vld [vmem:[%s4911 + $0xa4] sm:$0x1]
      %v6694 = vld [vmem:[%s4911 + $0xa8] sm:$0xf]
      %v6695 = vld [vmem:[%s4911 + $0xac] sm:$0xf]
      %v6696 = vld [vmem:[%s4911 + $0xb0] sm:$0x1]
      %v6697 = vld [vmem:[%s4911 + $0xb4] sm:$0xf]
      %v6698 = vld [vmem:[%s4911 + $0xb8] sm:$0xf]
      %v6699 = vld [vmem:[%s4911 + $0xbc] sm:$0x1]
      %v6701 = vshrl.u32 %v6652, 16
      %v6703 = vrot.slane %v6701, 4
      %v6704 = vshll.u32 %v6652, 16
      %v6706 = vrot.slane %v6704, 5
      %v6707 = vor.u32 %v6703, %v6706
      %v6708 = vrot.slane %v6707, 4
      %v6710 = vshll.u32 %v6653, 16
      %v6712 = vrot.slane %v6710, 5
      %v6713 = vsel %vm339, %v6708, %v6712
      %v6714 = vshrl.u32 %v6653, 16
      %v6716 = vrot.slane %v6714, 4
      %v6717 = vor.u32 %v6716, %v6712
      %v6718 = vrot.slane %v6717, 4
      %v6720 = vshll.u32 %v6654, 16
      %v6722 = vrot.slane %v6720, 5
      %v6723 = vsel %vm339, %v6718, %v6722
      %v6725 = vshrl.u32 %v6655, 16
      %v6727 = vrot.slane %v6725, 4
      %v6728 = vshll.u32 %v6655, 16
      %v6730 = vrot.slane %v6728, 5
      %v6731 = vor.u32 %v6727, %v6730
      %v6732 = vrot.slane %v6731, 4
      %v6734 = vshll.u32 %v6656, 16
      %v6736 = vrot.slane %v6734, 5
      %v6737 = vsel %vm339, %v6732, %v6736
      %v6738 = vshrl.u32 %v6656, 16
      %v6740 = vrot.slane %v6738, 4
      %v6741 = vor.u32 %v6740, %v6736
      %v6742 = vrot.slane %v6741, 4
      %v6744 = vshll.u32 %v6657, 16
      %v6746 = vrot.slane %v6744, 5
      %v6747 = vsel %vm339, %v6742, %v6746
      %v6749 = vshrl.u32 %v6658, 16
      %v6751 = vrot.slane %v6749, 4
      %v6752 = vshll.u32 %v6658, 16
      %v6754 = vrot.slane %v6752, 5
      %v6755 = vor.u32 %v6751, %v6754
      %v6756 = vrot.slane %v6755, 4
      %v6758 = vshll.u32 %v6659, 16
      %v6760 = vrot.slane %v6758, 5
      %v6761 = vsel %vm339, %v6756, %v6760
      %v6762 = vshrl.u32 %v6659, 16
      %v6764 = vrot.slane %v6762, 4
      %v6765 = vor.u32 %v6764, %v6760
      %v6766 = vrot.slane %v6765, 4
      %v6768 = vshll.u32 %v6660, 16
      %v6770 = vrot.slane %v6768, 5
      %v6771 = vsel %vm339, %v6766, %v6770
      %v6773 = vshrl.u32 %v6661, 16
      %v6775 = vrot.slane %v6773, 4
      %v6776 = vshll.u32 %v6661, 16
      %v6778 = vrot.slane %v6776, 5
      %v6779 = vor.u32 %v6775, %v6778
      %v6780 = vrot.slane %v6779, 4
      %v6782 = vshll.u32 %v6662, 16
      %v6784 = vrot.slane %v6782, 5
      %v6785 = vsel %vm339, %v6780, %v6784
      %v6786 = vshrl.u32 %v6662, 16
      %v6788 = vrot.slane %v6786, 4
      %v6789 = vor.u32 %v6788, %v6784
      %v6790 = vrot.slane %v6789, 4
      %v6792 = vshll.u32 %v6663, 16
      %v6794 = vrot.slane %v6792, 5
      %v6795 = vsel %vm339, %v6790, %v6794
      %v6797 = vshrl.u32 %v6664, 16
      %v6799 = vrot.slane %v6797, 4
      %v6800 = vshll.u32 %v6664, 16
      %v6802 = vrot.slane %v6800, 5
      %v6803 = vor.u32 %v6799, %v6802
      %v6804 = vrot.slane %v6803, 4
      %v6806 = vshll.u32 %v6665, 16
      %v6808 = vrot.slane %v6806, 5
      %v6809 = vsel %vm339, %v6804, %v6808
      %v6810 = vshrl.u32 %v6665, 16
      %v6812 = vrot.slane %v6810, 4
      %v6813 = vor.u32 %v6812, %v6808
      %v6814 = vrot.slane %v6813, 4
      %v6816 = vshll.u32 %v6666, 16
      %v6818 = vrot.slane %v6816, 5
      %v6819 = vsel %vm339, %v6814, %v6818
      %v6821 = vshrl.u32 %v6667, 16
      %v6823 = vrot.slane %v6821, 4
      %v6824 = vshll.u32 %v6667, 16
      %v6826 = vrot.slane %v6824, 5
      %v6827 = vor.u32 %v6823, %v6826
      %v6828 = vrot.slane %v6827, 4
      %v6830 = vshll.u32 %v6668, 16
      %v6832 = vrot.slane %v6830, 5
      %v6833 = vsel %vm339, %v6828, %v6832
      %v6834 = vshrl.u32 %v6668, 16
      %v6836 = vrot.slane %v6834, 4
      %v6837 = vor.u32 %v6836, %v6832
      %v6838 = vrot.slane %v6837, 4
      %v6840 = vshll.u32 %v6669, 16
      %v6842 = vrot.slane %v6840, 5
      %v6843 = vsel %vm339, %v6838, %v6842
      %v6845 = vshrl.u32 %v6670, 16
      %v6847 = vrot.slane %v6845, 4
      %v6848 = vshll.u32 %v6670, 16
      %v6850 = vrot.slane %v6848, 5
      %v6851 = vor.u32 %v6847, %v6850
      %v6852 = vrot.slane %v6851, 4
      %v6854 = vshll.u32 %v6671, 16
      %v6856 = vrot.slane %v6854, 5
      %v6857 = vsel %vm339, %v6852, %v6856
      %v6858 = vshrl.u32 %v6671, 16
      %v6860 = vrot.slane %v6858, 4
      %v6861 = vor.u32 %v6860, %v6856
      %v6862 = vrot.slane %v6861, 4
      %v6864 = vshll.u32 %v6672, 16
      %v6866 = vrot.slane %v6864, 5
      %v6867 = vsel %vm339, %v6862, %v6866
      %v6869 = vshrl.u32 %v6673, 16
      %v6871 = vrot.slane %v6869, 4
      %v6872 = vshll.u32 %v6673, 16
      %v6874 = vrot.slane %v6872, 5
      %v6875 = vor.u32 %v6871, %v6874
      %v6876 = vrot.slane %v6875, 4
      %v6878 = vshll.u32 %v6674, 16
      %v6880 = vrot.slane %v6878, 5
      %v6881 = vsel %vm339, %v6876, %v6880
      %v6882 = vshrl.u32 %v6674, 16
      %v6884 = vrot.slane %v6882, 4
      %v6885 = vor.u32 %v6884, %v6880
      %v6886 = vrot.slane %v6885, 4
      %v6888 = vshll.u32 %v6675, 16
      %v6890 = vrot.slane %v6888, 5
      %v6891 = vsel %vm339, %v6886, %v6890
      %v6893 = vshrl.u32 %v6676, 16
      %v6895 = vrot.slane %v6893, 4
      %v6896 = vshll.u32 %v6676, 16
      %v6898 = vrot.slane %v6896, 5
      %v6899 = vor.u32 %v6895, %v6898
      %v6900 = vrot.slane %v6899, 4
      %v6902 = vshll.u32 %v6677, 16
      %v6904 = vrot.slane %v6902, 5
      %v6905 = vsel %vm339, %v6900, %v6904
      %v6906 = vshrl.u32 %v6677, 16
      %v6908 = vrot.slane %v6906, 4
      %v6909 = vor.u32 %v6908, %v6904
      %v6910 = vrot.slane %v6909, 4
      %v6912 = vshll.u32 %v6678, 16
      %v6914 = vrot.slane %v6912, 5
      %v6915 = vsel %vm339, %v6910, %v6914
      %v6917 = vshrl.u32 %v6679, 16
      %v6919 = vrot.slane %v6917, 4
      %v6920 = vshll.u32 %v6679, 16
      %v6922 = vrot.slane %v6920, 5
      %v6923 = vor.u32 %v6919, %v6922
      %v6924 = vrot.slane %v6923, 4
      %v6926 = vshll.u32 %v6680, 16
      %v6928 = vrot.slane %v6926, 5
      %v6929 = vsel %vm339, %v6924, %v6928
      %v6930 = vshrl.u32 %v6680, 16
      %v6932 = vrot.slane %v6930, 4
      %v6933 = vor.u32 %v6932, %v6928
      %v6934 = vrot.slane %v6933, 4
      %v6936 = vshll.u32 %v6681, 16
      %v6938 = vrot.slane %v6936, 5
      %v6939 = vsel %vm339, %v6934, %v6938
      %v6941 = vshrl.u32 %v6682, 16
      %v6943 = vrot.slane %v6941, 4
      %v6944 = vshll.u32 %v6682, 16
      %v6946 = vrot.slane %v6944, 5
      %v6947 = vor.u32 %v6943, %v6946
      %v6948 = vrot.slane %v6947, 4
      %v6950 = vshll.u32 %v6683, 16
      %v6952 = vrot.slane %v6950, 5
      %v6953 = vsel %vm339, %v6948, %v6952
      %v6954 = vshrl.u32 %v6683, 16
      %v6956 = vrot.slane %v6954, 4
      %v6957 = vor.u32 %v6956, %v6952
      %v6958 = vrot.slane %v6957, 4
      %v6960 = vshll.u32 %v6684, 16
      %v6962 = vrot.slane %v6960, 5
      %v6963 = vsel %vm339, %v6958, %v6962
      %v6965 = vshrl.u32 %v6685, 16
      %v6967 = vrot.slane %v6965, 4
      %v6968 = vshll.u32 %v6685, 16
      %v6970 = vrot.slane %v6968, 5
      %v6971 = vor.u32 %v6967, %v6970
      %v6972 = vrot.slane %v6971, 4
      %v6974 = vshll.u32 %v6686, 16
      %v6976 = vrot.slane %v6974, 5
      %v6977 = vsel %vm339, %v6972, %v6976
      %v6978 = vshrl.u32 %v6686, 16
      %v6980 = vrot.slane %v6978, 4
      %v6981 = vor.u32 %v6980, %v6976
      %v6982 = vrot.slane %v6981, 4
      %v6984 = vshll.u32 %v6687, 16
      %v6986 = vrot.slane %v6984, 5
      %v6987 = vsel %vm339, %v6982, %v6986
      %v6989 = vshrl.u32 %v6688, 16
      %v6991 = vrot.slane %v6989, 4
      %v6992 = vshll.u32 %v6688, 16
      %v6994 = vrot.slane %v6992, 5
      %v6995 = vor.u32 %v6991, %v6994
      %v6996 = vrot.slane %v6995, 4
      %v6998 = vshll.u32 %v6689, 16
      %v7000 = vrot.slane %v6998, 5
      %v7001 = vsel %vm339, %v6996, %v7000
      %v7002 = vshrl.u32 %v6689, 16
      %v7004 = vrot.slane %v7002, 4
      %v7005 = vor.u32 %v7004, %v7000
      %v7006 = vrot.slane %v7005, 4
      %v7008 = vshll.u32 %v6690, 16
      %v7010 = vrot.slane %v7008, 5
      %v7011 = vsel %vm339, %v7006, %v7010
      %v7013 = vshrl.u32 %v6691, 16
      %v7015 = vrot.slane %v7013, 4
      %v7016 = vshll.u32 %v6691, 16
      %v7018 = vrot.slane %v7016, 5
      %v7019 = vor.u32 %v7015, %v7018
      %v7020 = vrot.slane %v7019, 4
      %v7022 = vshll.u32 %v6692, 16
      %v7024 = vrot.slane %v7022, 5
      %v7025 = vsel %vm339, %v7020, %v7024
      %v7026 = vshrl.u32 %v6692, 16
      %v7028 = vrot.slane %v7026, 4
      %v7029 = vor.u32 %v7028, %v7024
      %v7030 = vrot.slane %v7029, 4
      %v7032 = vshll.u32 %v6693, 16
      %v7034 = vrot.slane %v7032, 5
      %v7035 = vsel %vm339, %v7030, %v7034
      %v7037 = vshrl.u32 %v6694, 16
      %v7039 = vrot.slane %v7037, 4
      %v7040 = vshll.u32 %v6694, 16
      %v7042 = vrot.slane %v7040, 5
      %v7043 = vor.u32 %v7039, %v7042
      %v7044 = vrot.slane %v7043, 4
      %v7046 = vshll.u32 %v6695, 16
      %v7048 = vrot.slane %v7046, 5
      %v7049 = vsel %vm339, %v7044, %v7048
      %v7050 = vshrl.u32 %v6695, 16
      %v7052 = vrot.slane %v7050, 4
      %v7053 = vor.u32 %v7052, %v7048
      %v7054 = vrot.slane %v7053, 4
      %v7056 = vshll.u32 %v6696, 16
      %v7058 = vrot.slane %v7056, 5
      %v7059 = vsel %vm339, %v7054, %v7058
      %v7061 = vshrl.u32 %v6697, 16
      %v7063 = vrot.slane %v7061, 4
      %v7064 = vshll.u32 %v6697, 16
      %v7066 = vrot.slane %v7064, 5
      %v7067 = vor.u32 %v7063, %v7066
      %v7068 = vrot.slane %v7067, 4
      %v7070 = vshll.u32 %v6698, 16
      %v7072 = vrot.slane %v7070, 5
      %v7073 = vsel %vm339, %v7068, %v7072
      %v7074 = vshrl.u32 %v6698, 16
      %v7076 = vrot.slane %v7074, 4
      %v7077 = vor.u32 %v7076, %v7072
      %v7078 = vrot.slane %v7077, 4
      %v7080 = vshll.u32 %v6699, 16
      %v7082 = vrot.slane %v7080, 5
      %v7083 = vsel %vm339, %v7078, %v7082
      %s7084 = scalar_lea.vmem %s4, 256
      %v7085 = vld [vmem:[%s7084] sm:$0xf]
      %v7086 = vld [vmem:[%s7084 + $0x4] sm:$0xf]
      %v7087 = vld [vmem:[%s7084 + $0x8] sm:$0xf]
      %v7088 = vld [vmem:[%s7084 + $0xc] sm:$0xf]
      %v7089 = vld [vmem:[%s7084 + $0x10] sm:$0xf]
      %v7090 = vld [vmem:[%s7084 + $0x14] sm:$0xf]
      %v7091 = vld [vmem:[%s7084 + $0x18] sm:$0xf]
      %v7092 = vld [vmem:[%s7084 + $0x1c] sm:$0xf]
      %v7093 = vld [vmem:[%s7084 + $0x20] sm:$0xf]
      %v7094 = vld [vmem:[%s7084 + $0x24] sm:$0xf]
      %v7095 = vld [vmem:[%s7084 + $0x28] sm:$0xf]
      %v7096 = vld [vmem:[%s7084 + $0x2c] sm:$0xf]
      %v7097 = vld [vmem:[%s7084 + $0x30] sm:$0xf]
      %v7098 = vld [vmem:[%s7084 + $0x34] sm:$0xf]
      %v7099 = vld [vmem:[%s7084 + $0x38] sm:$0xf]
      %v7100 = vld [vmem:[%s7084 + $0x3c] sm:$0xf]
      %v7101 = vunpack.c.l.b16 %v6713
      %v7102 = vunpack.c.l.b16 %v6723
      %v7103 = vunpack.c.l.b16 %v6737
      %v7104 = vunpack.c.l.b16 %v6747
      %v7105 = vunpack.c.l.b16 %v6761
      %v7106 = vunpack.c.l.b16 %v6771
      %v7107 = vunpack.c.l.b16 %v6785
      %v7108 = vunpack.c.l.b16 %v6795
      %v7109 = vunpack.c.l.b16 %v6809
      %v7110 = vunpack.c.l.b16 %v6819
      %v7111 = vunpack.c.l.b16 %v6833
      %v7112 = vunpack.c.l.b16 %v6843
      %v7113 = vunpack.c.l.b16 %v6857
      %v7114 = vunpack.c.l.b16 %v6867
      %v7115 = vunpack.c.l.b16 %v6881
      %v7116 = vunpack.c.l.b16 %v6891
      %v7117 = vunpack.c.l.b16 %v6905
      %v7118 = vunpack.c.l.b16 %v6915
      %v7119 = vunpack.c.l.b16 %v6929
      %v7120 = vunpack.c.l.b16 %v6939
      %v7121 = vunpack.c.l.b16 %v6953
      %v7122 = vunpack.c.l.b16 %v6963
      %v7123 = vunpack.c.l.b16 %v6977
      %v7124 = vunpack.c.l.b16 %v6987
      %v7125 = vunpack.c.l.b16 %v7001
      %v7126 = vunpack.c.l.b16 %v7011
      %v7127 = vunpack.c.l.b16 %v7025
      %v7128 = vunpack.c.l.b16 %v7035
      %v7129 = vunpack.c.l.b16 %v7049
      %v7130 = vunpack.c.l.b16 %v7059
      %v7131 = vunpack.c.l.b16 %v7073
      %v7132 = vunpack.c.l.b16 %v7083
      %v7133 = vpack.c.b16 %v7102, %v7101
      %v7134 = vpack.c.b16 %v7104, %v7103
      %v7135 = vpack.c.b16 %v7106, %v7105
      %v7136 = vpack.c.b16 %v7108, %v7107
      %v7137 = vpack.c.b16 %v7110, %v7109
      %v7138 = vpack.c.b16 %v7112, %v7111
      %v7139 = vpack.c.b16 %v7114, %v7113
      %v7140 = vpack.c.b16 %v7116, %v7115
      %v7141 = vpack.c.b16 %v7118, %v7117
      %v7142 = vpack.c.b16 %v7120, %v7119
      %v7143 = vpack.c.b16 %v7122, %v7121
      %v7144 = vpack.c.b16 %v7124, %v7123
      %v7145 = vpack.c.b16 %v7126, %v7125
      %v7146 = vpack.c.b16 %v7128, %v7127
      %v7147 = vpack.c.b16 %v7130, %v7129
      %v7148 = vpack.c.b16 %v7132, %v7131
      %v7181 = vunpack.c.l.b16 %v7085
      %v7182 = vunpack.c.l.b16 %v7086
      %v7183 = vunpack.c.l.b16 %v7087
      %v7184 = vunpack.c.l.b16 %v7088
      %v7185 = vunpack.c.l.b16 %v7089
      %v7186 = vunpack.c.l.b16 %v7090
      %v7187 = vunpack.c.l.b16 %v7091
      %v7188 = vunpack.c.l.b16 %v7092
      %v7189 = vunpack.c.l.b16 %v7093
      %v7190 = vunpack.c.l.b16 %v7094
      %v7191 = vunpack.c.l.b16 %v7095
      %v7192 = vunpack.c.l.b16 %v7096
      %v7193 = vunpack.c.l.b16 %v7097
      %v7194 = vunpack.c.l.b16 %v7098
      %v7195 = vunpack.c.l.b16 %v7099
      %v7196 = vunpack.c.l.b16 %v7100
      %v7197 = vpack.c.b16 %v7182, %v7181
      %v7198 = vpack.c.b16 %v7184, %v7183
      %v7199 = vpack.c.b16 %v7186, %v7185
      %v7200 = vpack.c.b16 %v7188, %v7187
      %v7201 = vpack.c.b16 %v7190, %v7189
      %v7202 = vpack.c.b16 %v7192, %v7191
      %v7203 = vpack.c.b16 %v7194, %v7193
      %v7204 = vpack.c.b16 %v7196, %v7195
      %7213 = vmatpush.bf16.msra.mxu0 %v7204
      %7214 = vmatpush.bf16.msra.mxu0 %v7203
      %7215 = vmatpush.bf16.msra.mxu0 %v7202
      %7216 = vmatpush.bf16.msra.mxu0 %v7201
      %7217 = vmatpush.bf16.msra.mxu0 %v7200
      %7218 = vmatpush.bf16.msra.mxu0 %v7199
      %7219 = vmatpush.bf16.msra.mxu0 %v7198
      %7220 = vmatpush.bf16.msra.mxu0 %v7197
      %7221 = vmatmul.bf16.gmra.mxu0 %v7133
      %v7222 = vpop.f32.mrf.mxu0
      %v7223 = vadd.f32 0.0, %v7222
      %v7224 = vpop.f32.mrf.mxu0
      %v7225 = vadd.f32 0.0, %v7224
      %7226 = vmatmul.bf16.gmra.mxu0 %v7134
      %v7227 = vpop.f32.mrf.mxu0
      %v7228 = vadd.f32 0.0, %v7227
      %v7229 = vpop.f32.mrf.mxu0
      %v7230 = vadd.f32 0.0, %v7229
      %7231 = vmatmul.bf16.gmra.mxu0 %v7135
      %v7232 = vpop.f32.mrf.mxu0
      %v7233 = vadd.f32 0.0, %v7232
      %v7234 = vpop.f32.mrf.mxu0
      %v7235 = vadd.f32 0.0, %v7234
      %7236 = vmatmul.bf16.gmra.mxu0 %v7136
      %v7237 = vpop.f32.mrf.mxu0
      %v7238 = vadd.f32 0.0, %v7237
      %v7239 = vpop.f32.mrf.mxu0
      %v7240 = vadd.f32 0.0, %v7239
      %7241 = vmatmul.bf16.gmra.mxu0 %v7137
      %v7242 = vpop.f32.mrf.mxu0
      %v7243 = vadd.f32 0.0, %v7242
      %v7244 = vpop.f32.mrf.mxu0
      %v7245 = vadd.f32 0.0, %v7244
      %7246 = vmatmul.bf16.gmra.mxu0 %v7138
      %v7247 = vpop.f32.mrf.mxu0
      %v7248 = vadd.f32 0.0, %v7247
      %v7249 = vpop.f32.mrf.mxu0
      %v7250 = vadd.f32 0.0, %v7249
      %7251 = vmatmul.bf16.gmra.mxu0 %v7139
      %v7252 = vpop.f32.mrf.mxu0
      %v7253 = vadd.f32 0.0, %v7252
      %v7254 = vpop.f32.mrf.mxu0
      %v7255 = vadd.f32 0.0, %v7254
      %7256 = vmatmul.bf16.gmra.mxu0 %v7140
      %v7257 = vpop.f32.mrf.mxu0
      %v7258 = vadd.f32 0.0, %v7257
      %v7259 = vpop.f32.mrf.mxu0
      %v7260 = vadd.f32 0.0, %v7259
      %7261 = vmatmul.bf16.gmra.mxu0 %v7141
      %v7262 = vpop.f32.mrf.mxu0
      %v7263 = vadd.f32 0.0, %v7262
      %v7264 = vpop.f32.mrf.mxu0
      %v7265 = vadd.f32 0.0, %v7264
      %7266 = vmatmul.bf16.gmra.mxu0 %v7142
      %v7267 = vpop.f32.mrf.mxu0
      %v7268 = vadd.f32 0.0, %v7267
      %v7269 = vpop.f32.mrf.mxu0
      %v7270 = vadd.f32 0.0, %v7269
      %7271 = vmatmul.bf16.gmra.mxu0 %v7143
      %v7272 = vpop.f32.mrf.mxu0
      %v7273 = vadd.f32 0.0, %v7272
      %v7274 = vpop.f32.mrf.mxu0
      %v7275 = vadd.f32 0.0, %v7274
      %7276 = vmatmul.bf16.gmra.mxu0 %v7144
      %v7277 = vpop.f32.mrf.mxu0
      %v7278 = vadd.f32 0.0, %v7277
      %v7279 = vpop.f32.mrf.mxu0
      %v7280 = vadd.f32 0.0, %v7279
      %7281 = vmatmul.bf16.gmra.mxu0 %v7145
      %v7282 = vpop.f32.mrf.mxu0
      %v7283 = vadd.f32 0.0, %v7282
      %v7284 = vpop.f32.mrf.mxu0
      %v7285 = vadd.f32 0.0, %v7284
      %7286 = vmatmul.bf16.gmra.mxu0 %v7146
      %v7287 = vpop.f32.mrf.mxu0
      %v7288 = vadd.f32 0.0, %v7287
      %v7289 = vpop.f32.mrf.mxu0
      %v7290 = vadd.f32 0.0, %v7289
      %7291 = vmatmul.bf16.gmra.mxu0 %v7147
      %v7292 = vpop.f32.mrf.mxu0
      %v7293 = vadd.f32 0.0, %v7292
      %v7294 = vpop.f32.mrf.mxu0
      %v7295 = vadd.f32 0.0, %v7294
      %7296 = vmatmul.bf16.gmra.mxu0 %v7148
      %v7297 = vpop.f32.mrf.mxu0
      %v7298 = vadd.f32 0.0, %v7297
      %v7299 = vpop.f32.mrf.mxu0
      %v7300 = vadd.f32 0.0, %v7299
      %7301 = vdwg.mxu0
      %v7302 = vadd.f32 %v6620, %v7223
      %v7303 = vadd.f32 %v6621, %v7225
      %v7304 = vadd.f32 %v6622, %v7228
      %v7305 = vadd.f32 %v6623, %v7230
      %v7306 = vadd.f32 %v6624, %v7233
      %v7307 = vadd.f32 %v6625, %v7235
      %v7308 = vadd.f32 %v6626, %v7238
      %v7309 = vadd.f32 %v6627, %v7240
      %v7310 = vadd.f32 %v6628, %v7243
      %v7311 = vadd.f32 %v6629, %v7245
      %v7312 = vadd.f32 %v6630, %v7248
      %v7313 = vadd.f32 %v6631, %v7250
      %v7314 = vadd.f32 %v6632, %v7253
      %v7315 = vadd.f32 %v6633, %v7255
      %v7316 = vadd.f32 %v6634, %v7258
      %v7317 = vadd.f32 %v6635, %v7260
      %v7318 = vadd.f32 %v6636, %v7263
      %v7319 = vadd.f32 %v6637, %v7265
      %v7320 = vadd.f32 %v6638, %v7268
      %v7321 = vadd.f32 %v6639, %v7270
      %v7322 = vadd.f32 %v6640, %v7273
      %v7323 = vadd.f32 %v6641, %v7275
      %v7324 = vadd.f32 %v6642, %v7278
      %v7325 = vadd.f32 %v6643, %v7280
      %v7326 = vadd.f32 %v6644, %v7283
      %v7327 = vadd.f32 %v6645, %v7285
      %v7328 = vadd.f32 %v6646, %v7288
      %v7329 = vadd.f32 %v6647, %v7290
      %v7330 = vadd.f32 %v6648, %v7293
      %v7331 = vadd.f32 %v6649, %v7295
      %v7332 = vadd.f32 %v6650, %v7298
      %v7333 = vadd.f32 %v6651, %v7300
      %v7334 = vld [vmem:[%s4911] sm:$0xe]
      %v7335 = vld [vmem:[%s4911 + $0xc] sm:$0xe]
      %v7336 = vld [vmem:[%s4911 + $0x18] sm:$0xe]
      %v7337 = vld [vmem:[%s4911 + $0x24] sm:$0xe]
      %v7338 = vld [vmem:[%s4911 + $0x30] sm:$0xe]
      %v7339 = vld [vmem:[%s4911 + $0x3c] sm:$0xe]
      %v7340 = vld [vmem:[%s4911 + $0x48] sm:$0xe]
      %v7341 = vld [vmem:[%s4911 + $0x54] sm:$0xe]
      %v7342 = vld [vmem:[%s4911 + $0x60] sm:$0xe]
      %v7343 = vld [vmem:[%s4911 + $0x6c] sm:$0xe]
      %v7344 = vld [vmem:[%s4911 + $0x78] sm:$0xe]
      %v7345 = vld [vmem:[%s4911 + $0x84] sm:$0xe]
      %v7346 = vld [vmem:[%s4911 + $0x90] sm:$0xe]
      %v7347 = vld [vmem:[%s4911 + $0x9c] sm:$0xe]
      %v7348 = vld [vmem:[%s4911 + $0xa8] sm:$0xe]
      %v7349 = vld [vmem:[%s4911 + $0xb4] sm:$0xe]
      %v7398 = vrot.slane %v7334, 5
      %v7399 = vrot.slane %v7398, 4
      %v7400 = vrot.slane %v6653, 5
      %v7401 = vsel %vm1225, %v7399, %v7400
      %v7402 = vrot.slane %v7400, 4
      %v7403 = vrot.slane %v6654, 5
      %v7404 = vsel %vm1225, %v7402, %v7403
      %v7405 = vrot.slane %v7335, 5
      %v7406 = vrot.slane %v7405, 4
      %v7407 = vrot.slane %v6656, 5
      %v7408 = vsel %vm1225, %v7406, %v7407
      %v7409 = vrot.slane %v7407, 4
      %v7410 = vrot.slane %v6657, 5
      %v7411 = vsel %vm1225, %v7409, %v7410
      %v7412 = vrot.slane %v7336, 5
      %v7413 = vrot.slane %v7412, 4
      %v7414 = vrot.slane %v6659, 5
      %v7415 = vsel %vm1225, %v7413, %v7414
      %v7416 = vrot.slane %v7414, 4
      %v7417 = vrot.slane %v6660, 5
      %v7418 = vsel %vm1225, %v7416, %v7417
      %v7419 = vrot.slane %v7337, 5
      %v7420 = vrot.slane %v7419, 4
      %v7421 = vrot.slane %v6662, 5
      %v7422 = vsel %vm1225, %v7420, %v7421
      %v7423 = vrot.slane %v7421, 4
      %v7424 = vrot.slane %v6663, 5
      %v7425 = vsel %vm1225, %v7423, %v7424
      %v7426 = vrot.slane %v7338, 5
      %v7427 = vrot.slane %v7426, 4
      %v7428 = vrot.slane %v6665, 5
      %v7429 = vsel %vm1225, %v7427, %v7428
      %v7430 = vrot.slane %v7428, 4
      %v7431 = vrot.slane %v6666, 5
      %v7432 = vsel %vm1225, %v7430, %v7431
      %v7433 = vrot.slane %v7339, 5
      %v7434 = vrot.slane %v7433, 4
      %v7435 = vrot.slane %v6668, 5
      %v7436 = vsel %vm1225, %v7434, %v7435
      %v7437 = vrot.slane %v7435, 4
      %v7438 = vrot.slane %v6669, 5
      %v7439 = vsel %vm1225, %v7437, %v7438
      %v7440 = vrot.slane %v7340, 5
      %v7441 = vrot.slane %v7440, 4
      %v7442 = vrot.slane %v6671, 5
      %v7443 = vsel %vm1225, %v7441, %v7442
      %v7444 = vrot.slane %v7442, 4
      %v7445 = vrot.slane %v6672, 5
      %v7446 = vsel %vm1225, %v7444, %v7445
      %v7447 = vrot.slane %v7341, 5
      %v7448 = vrot.slane %v7447, 4
      %v7449 = vrot.slane %v6674, 5
      %v7450 = vsel %vm1225, %v7448, %v7449
      %v7451 = vrot.slane %v7449, 4
      %v7452 = vrot.slane %v6675, 5
      %v7453 = vsel %vm1225, %v7451, %v7452
      %v7454 = vrot.slane %v7342, 5
      %v7455 = vrot.slane %v7454, 4
      %v7456 = vrot.slane %v6677, 5
      %v7457 = vsel %vm1225, %v7455, %v7456
      %v7458 = vrot.slane %v7456, 4
      %v7459 = vrot.slane %v6678, 5
      %v7460 = vsel %vm1225, %v7458, %v7459
      %v7461 = vrot.slane %v7343, 5
      %v7462 = vrot.slane %v7461, 4
      %v7463 = vrot.slane %v6680, 5
      %v7464 = vsel %vm1225, %v7462, %v7463
      %v7465 = vrot.slane %v7463, 4
      %v7466 = vrot.slane %v6681, 5
      %v7467 = vsel %vm1225, %v7465, %v7466
      %v7468 = vrot.slane %v7344, 5
      %v7469 = vrot.slane %v7468, 4
      %v7470 = vrot.slane %v6683, 5
      %v7471 = vsel %vm1225, %v7469, %v7470
      %v7472 = vrot.slane %v7470, 4
      %v7473 = vrot.slane %v6684, 5
      %v7474 = vsel %vm1225, %v7472, %v7473
      %v7475 = vrot.slane %v7345, 5
      %v7476 = vrot.slane %v7475, 4
      %v7477 = vrot.slane %v6686, 5
      %v7478 = vsel %vm1225, %v7476, %v7477
      %v7479 = vrot.slane %v7477, 4
      %v7480 = vrot.slane %v6687, 5
      %v7481 = vsel %vm1225, %v7479, %v7480
      %v7482 = vrot.slane %v7346, 5
      %v7483 = vrot.slane %v7482, 4
      %v7484 = vrot.slane %v6689, 5
      %v7485 = vsel %vm1225, %v7483, %v7484
      %v7486 = vrot.slane %v7484, 4
      %v7487 = vrot.slane %v6690, 5
      %v7488 = vsel %vm1225, %v7486, %v7487
      %v7489 = vrot.slane %v7347, 5
      %v7490 = vrot.slane %v7489, 4
      %v7491 = vrot.slane %v6692, 5
      %v7492 = vsel %vm1225, %v7490, %v7491
      %v7493 = vrot.slane %v7491, 4
      %v7494 = vrot.slane %v6693, 5
      %v7495 = vsel %vm1225, %v7493, %v7494
      %v7496 = vrot.slane %v7348, 5
      %v7497 = vrot.slane %v7496, 4
      %v7498 = vrot.slane %v6695, 5
      %v7499 = vsel %vm1225, %v7497, %v7498
      %v7500 = vrot.slane %v7498, 4
      %v7501 = vrot.slane %v6696, 5
      %v7502 = vsel %vm1225, %v7500, %v7501
      %v7503 = vrot.slane %v7349, 5
      %v7504 = vrot.slane %v7503, 4
      %v7505 = vrot.slane %v6698, 5
      %v7506 = vsel %vm1225, %v7504, %v7505
      %v7507 = vrot.slane %v7505, 4
      %v7508 = vrot.slane %v6699, 5
      %v7509 = vsel %vm1225, %v7507, %v7508
      %s7510 = scalar_lea.vmem %s4, 320
      %v7511 = vld [vmem:[%s7510] sm:$0xf]
      %v7512 = vld [vmem:[%s7510 + $0x4] sm:$0xf]
      %v7513 = vld [vmem:[%s7510 + $0x8] sm:$0xf]
      %v7514 = vld [vmem:[%s7510 + $0xc] sm:$0xf]
      %v7515 = vld [vmem:[%s7510 + $0x10] sm:$0xf]
      %v7516 = vld [vmem:[%s7510 + $0x14] sm:$0xf]
      %v7517 = vld [vmem:[%s7510 + $0x18] sm:$0xf]
      %v7518 = vld [vmem:[%s7510 + $0x1c] sm:$0xf]
      %v7519 = vld [vmem:[%s7510 + $0x20] sm:$0xf]
      %v7520 = vld [vmem:[%s7510 + $0x24] sm:$0xf]
      %v7521 = vld [vmem:[%s7510 + $0x28] sm:$0xf]
      %v7522 = vld [vmem:[%s7510 + $0x2c] sm:$0xf]
      %v7523 = vld [vmem:[%s7510 + $0x30] sm:$0xf]
      %v7524 = vld [vmem:[%s7510 + $0x34] sm:$0xf]
      %v7525 = vld [vmem:[%s7510 + $0x38] sm:$0xf]
      %v7526 = vld [vmem:[%s7510 + $0x3c] sm:$0xf]
      %v7527 = vunpack.c.l.b16 %v7401
      %v7528 = vunpack.c.l.b16 %v7404
      %v7529 = vunpack.c.l.b16 %v7408
      %v7530 = vunpack.c.l.b16 %v7411
      %v7531 = vunpack.c.l.b16 %v7415
      %v7532 = vunpack.c.l.b16 %v7418
      %v7533 = vunpack.c.l.b16 %v7422
      %v7534 = vunpack.c.l.b16 %v7425
      %v7535 = vunpack.c.l.b16 %v7429
      %v7536 = vunpack.c.l.b16 %v7432
      %v7537 = vunpack.c.l.b16 %v7436
      %v7538 = vunpack.c.l.b16 %v7439
      %v7539 = vunpack.c.l.b16 %v7443
      %v7540 = vunpack.c.l.b16 %v7446
      %v7541 = vunpack.c.l.b16 %v7450
      %v7542 = vunpack.c.l.b16 %v7453
      %v7543 = vunpack.c.l.b16 %v7457
      %v7544 = vunpack.c.l.b16 %v7460
      %v7545 = vunpack.c.l.b16 %v7464
      %v7546 = vunpack.c.l.b16 %v7467
      %v7547 = vunpack.c.l.b16 %v7471
      %v7548 = vunpack.c.l.b16 %v7474
      %v7549 = vunpack.c.l.b16 %v7478
      %v7550 = vunpack.c.l.b16 %v7481
      %v7551 = vunpack.c.l.b16 %v7485
      %v7552 = vunpack.c.l.b16 %v7488
      %v7553 = vunpack.c.l.b16 %v7492
      %v7554 = vunpack.c.l.b16 %v7495
      %v7555 = vunpack.c.l.b16 %v7499
      %v7556 = vunpack.c.l.b16 %v7502
      %v7557 = vunpack.c.l.b16 %v7506
      %v7558 = vunpack.c.l.b16 %v7509
      %v7559 = vpack.c.b16 %v7528, %v7527
      %v7560 = vpack.c.b16 %v7530, %v7529
      %v7561 = vpack.c.b16 %v7532, %v7531
      %v7562 = vpack.c.b16 %v7534, %v7533
      %v7563 = vpack.c.b16 %v7536, %v7535
      %v7564 = vpack.c.b16 %v7538, %v7537
      %v7565 = vpack.c.b16 %v7540, %v7539
      %v7566 = vpack.c.b16 %v7542, %v7541
      %v7567 = vpack.c.b16 %v7544, %v7543
      %v7568 = vpack.c.b16 %v7546, %v7545
      %v7569 = vpack.c.b16 %v7548, %v7547
      %v7570 = vpack.c.b16 %v7550, %v7549
      %v7571 = vpack.c.b16 %v7552, %v7551
      %v7572 = vpack.c.b16 %v7554, %v7553
      %v7573 = vpack.c.b16 %v7556, %v7555
      %v7574 = vpack.c.b16 %v7558, %v7557
      %v7607 = vunpack.c.l.b16 %v7511
      %v7608 = vunpack.c.l.b16 %v7512
      %v7609 = vunpack.c.l.b16 %v7513
      %v7610 = vunpack.c.l.b16 %v7514
      %v7611 = vunpack.c.l.b16 %v7515
      %v7612 = vunpack.c.l.b16 %v7516
      %v7613 = vunpack.c.l.b16 %v7517
      %v7614 = vunpack.c.l.b16 %v7518
      %v7615 = vunpack.c.l.b16 %v7519
      %v7616 = vunpack.c.l.b16 %v7520
      %v7617 = vunpack.c.l.b16 %v7521
      %v7618 = vunpack.c.l.b16 %v7522
      %v7619 = vunpack.c.l.b16 %v7523
      %v7620 = vunpack.c.l.b16 %v7524
      %v7621 = vunpack.c.l.b16 %v7525
      %v7622 = vunpack.c.l.b16 %v7526
      %v7623 = vpack.c.b16 %v7608, %v7607
      %v7624 = vpack.c.b16 %v7610, %v7609
      %v7625 = vpack.c.b16 %v7612, %v7611
      %v7626 = vpack.c.b16 %v7614, %v7613
      %v7627 = vpack.c.b16 %v7616, %v7615
      %v7628 = vpack.c.b16 %v7618, %v7617
      %v7629 = vpack.c.b16 %v7620, %v7619
      %v7630 = vpack.c.b16 %v7622, %v7621
      %7639 = vmatpush.bf16.msra.mxu0 %v7630
      %7640 = vmatpush.bf16.msra.mxu0 %v7629
      %7641 = vmatpush.bf16.msra.mxu0 %v7628
      %7642 = vmatpush.bf16.msra.mxu0 %v7627
      %7643 = vmatpush.bf16.msra.mxu0 %v7626
      %7644 = vmatpush.bf16.msra.mxu0 %v7625
      %7645 = vmatpush.bf16.msra.mxu0 %v7624
      %7646 = vmatpush.bf16.msra.mxu0 %v7623
      %7647 = vmatmul.bf16.gmra.mxu0 %v7559
      %v7648 = vpop.f32.mrf.mxu0
      %v7649 = vadd.f32 0.0, %v7648
      %v7650 = vpop.f32.mrf.mxu0
      %v7651 = vadd.f32 0.0, %v7650
      %7652 = vmatmul.bf16.gmra.mxu0 %v7560
      %v7653 = vpop.f32.mrf.mxu0
      %v7654 = vadd.f32 0.0, %v7653
      %v7655 = vpop.f32.mrf.mxu0
      %v7656 = vadd.f32 0.0, %v7655
      %7657 = vmatmul.bf16.gmra.mxu0 %v7561
      %v7658 = vpop.f32.mrf.mxu0
      %v7659 = vadd.f32 0.0, %v7658
      %v7660 = vpop.f32.mrf.mxu0
      %v7661 = vadd.f32 0.0, %v7660
      %7662 = vmatmul.bf16.gmra.mxu0 %v7562
      %v7663 = vpop.f32.mrf.mxu0
      %v7664 = vadd.f32 0.0, %v7663
      %v7665 = vpop.f32.mrf.mxu0
      %v7666 = vadd.f32 0.0, %v7665
      %7667 = vmatmul.bf16.gmra.mxu0 %v7563
      %v7668 = vpop.f32.mrf.mxu0
      %v7669 = vadd.f32 0.0, %v7668
      %v7670 = vpop.f32.mrf.mxu0
      %v7671 = vadd.f32 0.0, %v7670
      %7672 = vmatmul.bf16.gmra.mxu0 %v7564
      %v7673 = vpop.f32.mrf.mxu0
      %v7674 = vadd.f32 0.0, %v7673
      %v7675 = vpop.f32.mrf.mxu0
      %v7676 = vadd.f32 0.0, %v7675
      %7677 = vmatmul.bf16.gmra.mxu0 %v7565
      %v7678 = vpop.f32.mrf.mxu0
      %v7679 = vadd.f32 0.0, %v7678
      %v7680 = vpop.f32.mrf.mxu0
      %v7681 = vadd.f32 0.0, %v7680
      %7682 = vmatmul.bf16.gmra.mxu0 %v7566
      %v7683 = vpop.f32.mrf.mxu0
      %v7684 = vadd.f32 0.0, %v7683
      %v7685 = vpop.f32.mrf.mxu0
      %v7686 = vadd.f32 0.0, %v7685
      %7687 = vmatmul.bf16.gmra.mxu0 %v7567
      %v7688 = vpop.f32.mrf.mxu0
      %v7689 = vadd.f32 0.0, %v7688
      %v7690 = vpop.f32.mrf.mxu0
      %v7691 = vadd.f32 0.0, %v7690
      %7692 = vmatmul.bf16.gmra.mxu0 %v7568
      %v7693 = vpop.f32.mrf.mxu0
      %v7694 = vadd.f32 0.0, %v7693
      %v7695 = vpop.f32.mrf.mxu0
      %v7696 = vadd.f32 0.0, %v7695
      %7697 = vmatmul.bf16.gmra.mxu0 %v7569
      %v7698 = vpop.f32.mrf.mxu0
      %v7699 = vadd.f32 0.0, %v7698
      %v7700 = vpop.f32.mrf.mxu0
      %v7701 = vadd.f32 0.0, %v7700
      %7702 = vmatmul.bf16.gmra.mxu0 %v7570
      %v7703 = vpop.f32.mrf.mxu0
      %v7704 = vadd.f32 0.0, %v7703
      %v7705 = vpop.f32.mrf.mxu0
      %v7706 = vadd.f32 0.0, %v7705
      %7707 = vmatmul.bf16.gmra.mxu0 %v7571
      %v7708 = vpop.f32.mrf.mxu0
      %v7709 = vadd.f32 0.0, %v7708
      %v7710 = vpop.f32.mrf.mxu0
      %v7711 = vadd.f32 0.0, %v7710
      %7712 = vmatmul.bf16.gmra.mxu0 %v7572
      %v7713 = vpop.f32.mrf.mxu0
      %v7714 = vadd.f32 0.0, %v7713
      %v7715 = vpop.f32.mrf.mxu0
      %v7716 = vadd.f32 0.0, %v7715
      %7717 = vmatmul.bf16.gmra.mxu0 %v7573
      %v7718 = vpop.f32.mrf.mxu0
      %v7719 = vadd.f32 0.0, %v7718
      %v7720 = vpop.f32.mrf.mxu0
      %v7721 = vadd.f32 0.0, %v7720
      %7722 = vmatmul.bf16.gmra.mxu0 %v7574
      %v7723 = vpop.f32.mrf.mxu0
      %v7724 = vadd.f32 0.0, %v7723
      %v7725 = vpop.f32.mrf.mxu0
      %v7726 = vadd.f32 0.0, %v7725
      %7727 = vdwg.mxu0
      %v7728 = vadd.f32 %v7302, %v7649
      %v7729 = vadd.f32 %v7303, %v7651
      %v7730 = vadd.f32 %v7304, %v7654
      %v7731 = vadd.f32 %v7305, %v7656
      %v7732 = vadd.f32 %v7306, %v7659
      %v7733 = vadd.f32 %v7307, %v7661
      %v7734 = vadd.f32 %v7308, %v7664
      %v7735 = vadd.f32 %v7309, %v7666
      %v7736 = vadd.f32 %v7310, %v7669
      %v7737 = vadd.f32 %v7311, %v7671
      %v7738 = vadd.f32 %v7312, %v7674
      %v7739 = vadd.f32 %v7313, %v7676
      %v7740 = vadd.f32 %v7314, %v7679
      %v7741 = vadd.f32 %v7315, %v7681
      %v7742 = vadd.f32 %v7316, %v7684
      %v7743 = vadd.f32 %v7317, %v7686
      %v7744 = vadd.f32 %v7318, %v7689
      %v7745 = vadd.f32 %v7319, %v7691
      %v7746 = vadd.f32 %v7320, %v7694
      %v7747 = vadd.f32 %v7321, %v7696
      %v7748 = vadd.f32 %v7322, %v7699
      %v7749 = vadd.f32 %v7323, %v7701
      %v7750 = vadd.f32 %v7324, %v7704
      %v7751 = vadd.f32 %v7325, %v7706
      %v7752 = vadd.f32 %v7326, %v7709
      %v7753 = vadd.f32 %v7327, %v7711
      %v7754 = vadd.f32 %v7328, %v7714
      %v7755 = vadd.f32 %v7329, %v7716
      %v7756 = vadd.f32 %v7330, %v7719
      %v7757 = vadd.f32 %v7331, %v7721
      %v7758 = vadd.f32 %v7332, %v7724
      %v7759 = vadd.f32 %v7333, %v7726
      %s7760 = scalar_lea.vmem [#allocation2], 24
      %v7761 = vld [vmem:[%s7760] sm:$0xf]
      %v7762 = vld [vmem:[%s7760 + $0x4] sm:$0xf]
      %v7763 = vld [vmem:[%s7760 + $0xc] sm:$0xf]
      %v7764 = vld [vmem:[%s7760 + $0x10] sm:$0xf]
      %v7765 = vld [vmem:[%s7760 + $0x18] sm:$0xf]
      %v7766 = vld [vmem:[%s7760 + $0x1c] sm:$0xf]
      %v7767 = vld [vmem:[%s7760 + $0x24] sm:$0xf]
      %v7768 = vld [vmem:[%s7760 + $0x28] sm:$0xf]
      %v7769 = vld [vmem:[%s7760 + $0x30] sm:$0xf]
      %v7770 = vld [vmem:[%s7760 + $0x34] sm:$0xf]
      %v7771 = vld [vmem:[%s7760 + $0x3c] sm:$0xf]
      %v7772 = vld [vmem:[%s7760 + $0x40] sm:$0xf]
      %v7773 = vld [vmem:[%s7760 + $0x48] sm:$0xf]
      %v7774 = vld [vmem:[%s7760 + $0x4c] sm:$0xf]
      %v7775 = vld [vmem:[%s7760 + $0x54] sm:$0xf]
      %v7776 = vld [vmem:[%s7760 + $0x58] sm:$0xf]
      %v7777 = vld [vmem:[%s7760 + $0x60] sm:$0xf]
      %v7778 = vld [vmem:[%s7760 + $0x64] sm:$0xf]
      %v7779 = vld [vmem:[%s7760 + $0x6c] sm:$0xf]
      %v7780 = vld [vmem:[%s7760 + $0x70] sm:$0xf]
      %v7781 = vld [vmem:[%s7760 + $0x78] sm:$0xf]
      %v7782 = vld [vmem:[%s7760 + $0x7c] sm:$0xf]
      %v7783 = vld [vmem:[%s7760 + $0x84] sm:$0xf]
      %v7784 = vld [vmem:[%s7760 + $0x88] sm:$0xf]
      %v7785 = vld [vmem:[%s7760 + $0x90] sm:$0xf]
      %v7786 = vld [vmem:[%s7760 + $0x94] sm:$0xf]
      %v7787 = vld [vmem:[%s7760 + $0x9c] sm:$0xf]
      %v7788 = vld [vmem:[%s7760 + $0xa0] sm:$0xf]
      %v7789 = vld [vmem:[%s7760 + $0xa8] sm:$0xf]
      %v7790 = vld [vmem:[%s7760 + $0xac] sm:$0xf]
      %v7791 = vld [vmem:[%s7760 + $0xb4] sm:$0xf]
      %v7792 = vld [vmem:[%s7760 + $0xb8] sm:$0xf]
      %s7793 = scalar_lea.vmem %s4, 384
      %v7794 = vld [vmem:[%s7793] sm:$0xf]
      %v7795 = vld [vmem:[%s7793 + $0x4] sm:$0xf]
      %v7796 = vld [vmem:[%s7793 + $0x8] sm:$0xf]
      %v7797 = vld [vmem:[%s7793 + $0xc] sm:$0xf]
      %v7798 = vld [vmem:[%s7793 + $0x10] sm:$0xf]
      %v7799 = vld [vmem:[%s7793 + $0x14] sm:$0xf]
      %v7800 = vld [vmem:[%s7793 + $0x18] sm:$0xf]
      %v7801 = vld [vmem:[%s7793 + $0x1c] sm:$0xf]
      %v7802 = vld [vmem:[%s7793 + $0x20] sm:$0xf]
      %v7803 = vld [vmem:[%s7793 + $0x24] sm:$0xf]
      %v7804 = vld [vmem:[%s7793 + $0x28] sm:$0xf]
      %v7805 = vld [vmem:[%s7793 + $0x2c] sm:$0xf]
      %v7806 = vld [vmem:[%s7793 + $0x30] sm:$0xf]
      %v7807 = vld [vmem:[%s7793 + $0x34] sm:$0xf]
      %v7808 = vld [vmem:[%s7793 + $0x38] sm:$0xf]
      %v7809 = vld [vmem:[%s7793 + $0x3c] sm:$0xf]
      %v7842 = vunpack.c.l.b16 %v7761
      %v7843 = vunpack.c.l.b16 %v7762
      %v7844 = vunpack.c.l.b16 %v7763
      %v7845 = vunpack.c.l.b16 %v7764
      %v7846 = vunpack.c.l.b16 %v7765
      %v7847 = vunpack.c.l.b16 %v7766
      %v7848 = vunpack.c.l.b16 %v7767
      %v7849 = vunpack.c.l.b16 %v7768
      %v7850 = vunpack.c.l.b16 %v7769
      %v7851 = vunpack.c.l.b16 %v7770
      %v7852 = vunpack.c.l.b16 %v7771
      %v7853 = vunpack.c.l.b16 %v7772
      %v7854 = vunpack.c.l.b16 %v7773
      %v7855 = vunpack.c.l.b16 %v7774
      %v7856 = vunpack.c.l.b16 %v7775
      %v7857 = vunpack.c.l.b16 %v7776
      %v7858 = vunpack.c.l.b16 %v7777
      %v7859 = vunpack.c.l.b16 %v7778
      %v7860 = vunpack.c.l.b16 %v7779
      %v7861 = vunpack.c.l.b16 %v7780
      %v7862 = vunpack.c.l.b16 %v7781
      %v7863 = vunpack.c.l.b16 %v7782
      %v7864 = vunpack.c.l.b16 %v7783
      %v7865 = vunpack.c.l.b16 %v7784
      %v7866 = vunpack.c.l.b16 %v7785
      %v7867 = vunpack.c.l.b16 %v7786
      %v7868 = vunpack.c.l.b16 %v7787
      %v7869 = vunpack.c.l.b16 %v7788
      %v7870 = vunpack.c.l.b16 %v7789
      %v7871 = vunpack.c.l.b16 %v7790
      %v7872 = vunpack.c.l.b16 %v7791
      %v7873 = vunpack.c.l.b16 %v7792
      %v7874 = vpack.c.b16 %v7843, %v7842
      %v7875 = vpack.c.b16 %v7845, %v7844
      %v7876 = vpack.c.b16 %v7847, %v7846
      %v7877 = vpack.c.b16 %v7849, %v7848
      %v7878 = vpack.c.b16 %v7851, %v7850
      %v7879 = vpack.c.b16 %v7853, %v7852
      %v7880 = vpack.c.b16 %v7855, %v7854
      %v7881 = vpack.c.b16 %v7857, %v7856
      %v7882 = vpack.c.b16 %v7859, %v7858
      %v7883 = vpack.c.b16 %v7861, %v7860
      %v7884 = vpack.c.b16 %v7863, %v7862
      %v7885 = vpack.c.b16 %v7865, %v7864
      %v7886 = vpack.c.b16 %v7867, %v7866
      %v7887 = vpack.c.b16 %v7869, %v7868
      %v7888 = vpack.c.b16 %v7871, %v7870
      %v7889 = vpack.c.b16 %v7873, %v7872
      %v7922 = vunpack.c.l.b16 %v7794
      %v7923 = vunpack.c.l.b16 %v7795
      %v7924 = vunpack.c.l.b16 %v7796
      %v7925 = vunpack.c.l.b16 %v7797
      %v7926 = vunpack.c.l.b16 %v7798
      %v7927 = vunpack.c.l.b16 %v7799
      %v7928 = vunpack.c.l.b16 %v7800
      %v7929 = vunpack.c.l.b16 %v7801
      %v7930 = vunpack.c.l.b16 %v7802
      %v7931 = vunpack.c.l.b16 %v7803
      %v7932 = vunpack.c.l.b16 %v7804
      %v7933 = vunpack.c.l.b16 %v7805
      %v7934 = vunpack.c.l.b16 %v7806
      %v7935 = vunpack.c.l.b16 %v7807
      %v7936 = vunpack.c.l.b16 %v7808
      %v7937 = vunpack.c.l.b16 %v7809
      %v7938 = vpack.c.b16 %v7923, %v7922
      %v7939 = vpack.c.b16 %v7925, %v7924
      %v7940 = vpack.c.b16 %v7927, %v7926
      %v7941 = vpack.c.b16 %v7929, %v7928
      %v7942 = vpack.c.b16 %v7931, %v7930
      %v7943 = vpack.c.b16 %v7933, %v7932
      %v7944 = vpack.c.b16 %v7935, %v7934
      %v7945 = vpack.c.b16 %v7937, %v7936
      %7954 = vmatpush.bf16.msra.mxu0 %v7945
      %7955 = vmatpush.bf16.msra.mxu0 %v7944
      %7956 = vmatpush.bf16.msra.mxu0 %v7943
      %7957 = vmatpush.bf16.msra.mxu0 %v7942
      %7958 = vmatpush.bf16.msra.mxu0 %v7941
      %7959 = vmatpush.bf16.msra.mxu0 %v7940
      %7960 = vmatpush.bf16.msra.mxu0 %v7939
      %7961 = vmatpush.bf16.msra.mxu0 %v7938
      %7962 = vmatmul.bf16.gmra.mxu0 %v7874
      %v7963 = vpop.f32.mrf.mxu0
      %v7964 = vadd.f32 0.0, %v7963
      %v7965 = vpop.f32.mrf.mxu0
      %v7966 = vadd.f32 0.0, %v7965
      %7967 = vmatmul.bf16.gmra.mxu0 %v7875
      %v7968 = vpop.f32.mrf.mxu0
      %v7969 = vadd.f32 0.0, %v7968
      %v7970 = vpop.f32.mrf.mxu0
      %v7971 = vadd.f32 0.0, %v7970
      %7972 = vmatmul.bf16.gmra.mxu0 %v7876
      %v7973 = vpop.f32.mrf.mxu0
      %v7974 = vadd.f32 0.0, %v7973
      %v7975 = vpop.f32.mrf.mxu0
      %v7976 = vadd.f32 0.0, %v7975
      %7977 = vmatmul.bf16.gmra.mxu0 %v7877
      %v7978 = vpop.f32.mrf.mxu0
      %v7979 = vadd.f32 0.0, %v7978
      %v7980 = vpop.f32.mrf.mxu0
      %v7981 = vadd.f32 0.0, %v7980
      %7982 = vmatmul.bf16.gmra.mxu0 %v7878
      %v7983 = vpop.f32.mrf.mxu0
      %v7984 = vadd.f32 0.0, %v7983
      %v7985 = vpop.f32.mrf.mxu0
      %v7986 = vadd.f32 0.0, %v7985
      %7987 = vmatmul.bf16.gmra.mxu0 %v7879
      %v7988 = vpop.f32.mrf.mxu0
      %v7989 = vadd.f32 0.0, %v7988
      %v7990 = vpop.f32.mrf.mxu0
      %v7991 = vadd.f32 0.0, %v7990
      %7992 = vmatmul.bf16.gmra.mxu0 %v7880
      %v7993 = vpop.f32.mrf.mxu0
      %v7994 = vadd.f32 0.0, %v7993
      %v7995 = vpop.f32.mrf.mxu0
      %v7996 = vadd.f32 0.0, %v7995
      %7997 = vmatmul.bf16.gmra.mxu0 %v7881
      %v7998 = vpop.f32.mrf.mxu0
      %v7999 = vadd.f32 0.0, %v7998
      %v8000 = vpop.f32.mrf.mxu0
      %v8001 = vadd.f32 0.0, %v8000
      %8002 = vmatmul.bf16.gmra.mxu0 %v7882
      %v8003 = vpop.f32.mrf.mxu0
      %v8004 = vadd.f32 0.0, %v8003
      %v8005 = vpop.f32.mrf.mxu0
      %v8006 = vadd.f32 0.0, %v8005
      %8007 = vmatmul.bf16.gmra.mxu0 %v7883
      %v8008 = vpop.f32.mrf.mxu0
      %v8009 = vadd.f32 0.0, %v8008
      %v8010 = vpop.f32.mrf.mxu0
      %v8011 = vadd.f32 0.0, %v8010
      %8012 = vmatmul.bf16.gmra.mxu0 %v7884
      %v8013 = vpop.f32.mrf.mxu0
      %v8014 = vadd.f32 0.0, %v8013
      %v8015 = vpop.f32.mrf.mxu0
      %v8016 = vadd.f32 0.0, %v8015
      %8017 = vmatmul.bf16.gmra.mxu0 %v7885
      %v8018 = vpop.f32.mrf.mxu0
      %v8019 = vadd.f32 0.0, %v8018
      %v8020 = vpop.f32.mrf.mxu0
      %v8021 = vadd.f32 0.0, %v8020
      %8022 = vmatmul.bf16.gmra.mxu0 %v7886
      %v8023 = vpop.f32.mrf.mxu0
      %v8024 = vadd.f32 0.0, %v8023
      %v8025 = vpop.f32.mrf.mxu0
      %v8026 = vadd.f32 0.0, %v8025
      %8027 = vmatmul.bf16.gmra.mxu0 %v7887
      %v8028 = vpop.f32.mrf.mxu0
      %v8029 = vadd.f32 0.0, %v8028
      %v8030 = vpop.f32.mrf.mxu0
      %v8031 = vadd.f32 0.0, %v8030
      %8032 = vmatmul.bf16.gmra.mxu0 %v7888
      %v8033 = vpop.f32.mrf.mxu0
      %v8034 = vadd.f32 0.0, %v8033
      %v8035 = vpop.f32.mrf.mxu0
      %v8036 = vadd.f32 0.0, %v8035
      %8037 = vmatmul.bf16.gmra.mxu0 %v7889
      %v8038 = vpop.f32.mrf.mxu0
      %v8039 = vadd.f32 0.0, %v8038
      %v8040 = vpop.f32.mrf.mxu0
      %v8041 = vadd.f32 0.0, %v8040
      %8042 = vdwg.mxu0
      %v8043 = vadd.f32 %v7728, %v7964
      %v8044 = vadd.f32 %v7729, %v7966
      %v8045 = vadd.f32 %v7730, %v7969
      %v8046 = vadd.f32 %v7731, %v7971
      %v8047 = vadd.f32 %v7732, %v7974
      %v8048 = vadd.f32 %v7733, %v7976
      %v8049 = vadd.f32 %v7734, %v7979
      %v8050 = vadd.f32 %v7735, %v7981
      %v8051 = vadd.f32 %v7736, %v7984
      %v8052 = vadd.f32 %v7737, %v7986
      %v8053 = vadd.f32 %v7738, %v7989
      %v8054 = vadd.f32 %v7739, %v7991
      %v8055 = vadd.f32 %v7740, %v7994
      %v8056 = vadd.f32 %v7741, %v7996
      %v8057 = vadd.f32 %v7742, %v7999
      %v8058 = vadd.f32 %v7743, %v8001
      %v8059 = vadd.f32 %v7744, %v8004
      %v8060 = vadd.f32 %v7745, %v8006
      %v8061 = vadd.f32 %v7746, %v8009
      %v8062 = vadd.f32 %v7747, %v8011
      %v8063 = vadd.f32 %v7748, %v8014
      %v8064 = vadd.f32 %v7749, %v8016
      %v8065 = vadd.f32 %v7750, %v8019
      %v8066 = vadd.f32 %v7751, %v8021
      %v8067 = vadd.f32 %v7752, %v8024
      %v8068 = vadd.f32 %v7753, %v8026
      %v8069 = vadd.f32 %v7754, %v8029
      %v8070 = vadd.f32 %v7755, %v8031
      %v8071 = vadd.f32 %v7756, %v8034
      %v8072 = vadd.f32 %v7757, %v8036
      %v8073 = vadd.f32 %v7758, %v8039
      %v8074 = vadd.f32 %v7759, %v8041
      %v8075 = vld [vmem:[%s7760] sm:$0xf]
      %v8076 = vld [vmem:[%s7760 + $0x4] sm:$0xf]
      %v8077 = vld [vmem:[%s7760 + $0x8] sm:$0x1]
      %v8078 = vld [vmem:[%s7760 + $0xc] sm:$0xf]
      %v8079 = vld [vmem:[%s7760 + $0x10] sm:$0xf]
      %v8080 = vld [vmem:[%s7760 + $0x14] sm:$0x1]
      %v8081 = vld [vmem:[%s7760 + $0x18] sm:$0xf]
      %v8082 = vld [vmem:[%s7760 + $0x1c] sm:$0xf]
      %v8083 = vld [vmem:[%s7760 + $0x20] sm:$0x1]
      %v8084 = vld [vmem:[%s7760 + $0x24] sm:$0xf]
      %v8085 = vld [vmem:[%s7760 + $0x28] sm:$0xf]
      %v8086 = vld [vmem:[%s7760 + $0x2c] sm:$0x1]
      %v8087 = vld [vmem:[%s7760 + $0x30] sm:$0xf]
      %v8088 = vld [vmem:[%s7760 + $0x34] sm:$0xf]
      %v8089 = vld [vmem:[%s7760 + $0x38] sm:$0x1]
      %v8090 = vld [vmem:[%s7760 + $0x3c] sm:$0xf]
      %v8091 = vld [vmem:[%s7760 + $0x40] sm:$0xf]
      %v8092 = vld [vmem:[%s7760 + $0x44] sm:$0x1]
      %v8093 = vld [vmem:[%s7760 + $0x48] sm:$0xf]
      %v8094 = vld [vmem:[%s7760 + $0x4c] sm:$0xf]
      %v8095 = vld [vmem:[%s7760 + $0x50] sm:$0x1]
      %v8096 = vld [vmem:[%s7760 + $0x54] sm:$0xf]
      %v8097 = vld [vmem:[%s7760 + $0x58] sm:$0xf]
      %v8098 = vld [vmem:[%s7760 + $0x5c] sm:$0x1]
      %v8099 = vld [vmem:[%s7760 + $0x60] sm:$0xf]
      %v8100 = vld [vmem:[%s7760 + $0x64] sm:$0xf]
      %v8101 = vld [vmem:[%s7760 + $0x68] sm:$0x1]
      %v8102 = vld [vmem:[%s7760 + $0x6c] sm:$0xf]
      %v8103 = vld [vmem:[%s7760 + $0x70] sm:$0xf]
      %v8104 = vld [vmem:[%s7760 + $0x74] sm:$0x1]
      %v8105 = vld [vmem:[%s7760 + $0x78] sm:$0xf]
      %v8106 = vld [vmem:[%s7760 + $0x7c] sm:$0xf]
      %v8107 = vld [vmem:[%s7760 + $0x80] sm:$0x1]
      %v8108 = vld [vmem:[%s7760 + $0x84] sm:$0xf]
      %v8109 = vld [vmem:[%s7760 + $0x88] sm:$0xf]
      %v8110 = vld [vmem:[%s7760 + $0x8c] sm:$0x1]
      %v8111 = vld [vmem:[%s7760 + $0x90] sm:$0xf]
      %v8112 = vld [vmem:[%s7760 + $0x94] sm:$0xf]
      %v8113 = vld [vmem:[%s7760 + $0x98] sm:$0x1]
      %v8114 = vld [vmem:[%s7760 + $0x9c] sm:$0xf]
      %v8115 = vld [vmem:[%s7760 + $0xa0] sm:$0xf]
      %v8116 = vld [vmem:[%s7760 + $0xa4] sm:$0x1]
      %v8117 = vld [vmem:[%s7760 + $0xa8] sm:$0xf]
      %v8118 = vld [vmem:[%s7760 + $0xac] sm:$0xf]
      %v8119 = vld [vmem:[%s7760 + $0xb0] sm:$0x1]
      %v8120 = vld [vmem:[%s7760 + $0xb4] sm:$0xf]
      %v8121 = vld [vmem:[%s7760 + $0xb8] sm:$0xf]
      %v8122 = vld [vmem:[%s7760 + $0xbc] sm:$0x1]
      %v8124 = vshrl.u32 %v8075, 16
      %v8126 = vrot.slane %v8124, 4
      %v8127 = vshll.u32 %v8075, 16
      %v8129 = vrot.slane %v8127, 5
      %v8130 = vor.u32 %v8126, %v8129
      %v8131 = vrot.slane %v8130, 4
      %v8133 = vshll.u32 %v8076, 16
      %v8135 = vrot.slane %v8133, 5
      %v8136 = vsel %vm339, %v8131, %v8135
      %v8137 = vshrl.u32 %v8076, 16
      %v8139 = vrot.slane %v8137, 4
      %v8140 = vor.u32 %v8139, %v8135
      %v8141 = vrot.slane %v8140, 4
      %v8143 = vshll.u32 %v8077, 16
      %v8145 = vrot.slane %v8143, 5
      %v8146 = vsel %vm339, %v8141, %v8145
      %v8148 = vshrl.u32 %v8078, 16
      %v8150 = vrot.slane %v8148, 4
      %v8151 = vshll.u32 %v8078, 16
      %v8153 = vrot.slane %v8151, 5
      %v8154 = vor.u32 %v8150, %v8153
      %v8155 = vrot.slane %v8154, 4
      %v8157 = vshll.u32 %v8079, 16
      %v8159 = vrot.slane %v8157, 5
      %v8160 = vsel %vm339, %v8155, %v8159
      %v8161 = vshrl.u32 %v8079, 16
      %v8163 = vrot.slane %v8161, 4
      %v8164 = vor.u32 %v8163, %v8159
      %v8165 = vrot.slane %v8164, 4
      %v8167 = vshll.u32 %v8080, 16
      %v8169 = vrot.slane %v8167, 5
      %v8170 = vsel %vm339, %v8165, %v8169
      %v8172 = vshrl.u32 %v8081, 16
      %v8174 = vrot.slane %v8172, 4
      %v8175 = vshll.u32 %v8081, 16
      %v8177 = vrot.slane %v8175, 5
      %v8178 = vor.u32 %v8174, %v8177
      %v8179 = vrot.slane %v8178, 4
      %v8181 = vshll.u32 %v8082, 16
      %v8183 = vrot.slane %v8181, 5
      %v8184 = vsel %vm339, %v8179, %v8183
      %v8185 = vshrl.u32 %v8082, 16
      %v8187 = vrot.slane %v8185, 4
      %v8188 = vor.u32 %v8187, %v8183
      %v8189 = vrot.slane %v8188, 4
      %v8191 = vshll.u32 %v8083, 16
      %v8193 = vrot.slane %v8191, 5
      %v8194 = vsel %vm339, %v8189, %v8193
      %v8196 = vshrl.u32 %v8084, 16
      %v8198 = vrot.slane %v8196, 4
      %v8199 = vshll.u32 %v8084, 16
      %v8201 = vrot.slane %v8199, 5
      %v8202 = vor.u32 %v8198, %v8201
      %v8203 = vrot.slane %v8202, 4
      %v8205 = vshll.u32 %v8085, 16
      %v8207 = vrot.slane %v8205, 5
      %v8208 = vsel %vm339, %v8203, %v8207
      %v8209 = vshrl.u32 %v8085, 16
      %v8211 = vrot.slane %v8209, 4
      %v8212 = vor.u32 %v8211, %v8207
      %v8213 = vrot.slane %v8212, 4
      %v8215 = vshll.u32 %v8086, 16
      %v8217 = vrot.slane %v8215, 5
      %v8218 = vsel %vm339, %v8213, %v8217
      %v8220 = vshrl.u32 %v8087, 16
      %v8222 = vrot.slane %v8220, 4
      %v8223 = vshll.u32 %v8087, 16
      %v8225 = vrot.slane %v8223, 5
      %v8226 = vor.u32 %v8222, %v8225
      %v8227 = vrot.slane %v8226, 4
      %v8229 = vshll.u32 %v8088, 16
      %v8231 = vrot.slane %v8229, 5
      %v8232 = vsel %vm339, %v8227, %v8231
      %v8233 = vshrl.u32 %v8088, 16
      %v8235 = vrot.slane %v8233, 4
      %v8236 = vor.u32 %v8235, %v8231
      %v8237 = vrot.slane %v8236, 4
      %v8239 = vshll.u32 %v8089, 16
      %v8241 = vrot.slane %v8239, 5
      %v8242 = vsel %vm339, %v8237, %v8241
      %v8244 = vshrl.u32 %v8090, 16
      %v8246 = vrot.slane %v8244, 4
      %v8247 = vshll.u32 %v8090, 16
      %v8249 = vrot.slane %v8247, 5
      %v8250 = vor.u32 %v8246, %v8249
      %v8251 = vrot.slane %v8250, 4
      %v8253 = vshll.u32 %v8091, 16
      %v8255 = vrot.slane %v8253, 5
      %v8256 = vsel %vm339, %v8251, %v8255
      %v8257 = vshrl.u32 %v8091, 16
      %v8259 = vrot.slane %v8257, 4
      %v8260 = vor.u32 %v8259, %v8255
      %v8261 = vrot.slane %v8260, 4
      %v8263 = vshll.u32 %v8092, 16
      %v8265 = vrot.slane %v8263, 5
      %v8266 = vsel %vm339, %v8261, %v8265
      %v8268 = vshrl.u32 %v8093, 16
      %v8270 = vrot.slane %v8268, 4
      %v8271 = vshll.u32 %v8093, 16
      %v8273 = vrot.slane %v8271, 5
      %v8274 = vor.u32 %v8270, %v8273
      %v8275 = vrot.slane %v8274, 4
      %v8277 = vshll.u32 %v8094, 16
      %v8279 = vrot.slane %v8277, 5
      %v8280 = vsel %vm339, %v8275, %v8279
      %v8281 = vshrl.u32 %v8094, 16
      %v8283 = vrot.slane %v8281, 4
      %v8284 = vor.u32 %v8283, %v8279
      %v8285 = vrot.slane %v8284, 4
      %v8287 = vshll.u32 %v8095, 16
      %v8289 = vrot.slane %v8287, 5
      %v8290 = vsel %vm339, %v8285, %v8289
      %v8292 = vshrl.u32 %v8096, 16
      %v8294 = vrot.slane %v8292, 4
      %v8295 = vshll.u32 %v8096, 16
      %v8297 = vrot.slane %v8295, 5
      %v8298 = vor.u32 %v8294, %v8297
      %v8299 = vrot.slane %v8298, 4
      %v8301 = vshll.u32 %v8097, 16
      %v8303 = vrot.slane %v8301, 5
      %v8304 = vsel %vm339, %v8299, %v8303
      %v8305 = vshrl.u32 %v8097, 16
      %v8307 = vrot.slane %v8305, 4
      %v8308 = vor.u32 %v8307, %v8303
      %v8309 = vrot.slane %v8308, 4
      %v8311 = vshll.u32 %v8098, 16
      %v8313 = vrot.slane %v8311, 5
      %v8314 = vsel %vm339, %v8309, %v8313
      %v8316 = vshrl.u32 %v8099, 16
      %v8318 = vrot.slane %v8316, 4
      %v8319 = vshll.u32 %v8099, 16
      %v8321 = vrot.slane %v8319, 5
      %v8322 = vor.u32 %v8318, %v8321
      %v8323 = vrot.slane %v8322, 4
      %v8325 = vshll.u32 %v8100, 16
      %v8327 = vrot.slane %v8325, 5
      %v8328 = vsel %vm339, %v8323, %v8327
      %v8329 = vshrl.u32 %v8100, 16
      %v8331 = vrot.slane %v8329, 4
      %v8332 = vor.u32 %v8331, %v8327
      %v8333 = vrot.slane %v8332, 4
      %v8335 = vshll.u32 %v8101, 16
      %v8337 = vrot.slane %v8335, 5
      %v8338 = vsel %vm339, %v8333, %v8337
      %v8340 = vshrl.u32 %v8102, 16
      %v8342 = vrot.slane %v8340, 4
      %v8343 = vshll.u32 %v8102, 16
      %v8345 = vrot.slane %v8343, 5
      %v8346 = vor.u32 %v8342, %v8345
      %v8347 = vrot.slane %v8346, 4
      %v8349 = vshll.u32 %v8103, 16
      %v8351 = vrot.slane %v8349, 5
      %v8352 = vsel %vm339, %v8347, %v8351
      %v8353 = vshrl.u32 %v8103, 16
      %v8355 = vrot.slane %v8353, 4
      %v8356 = vor.u32 %v8355, %v8351
      %v8357 = vrot.slane %v8356, 4
      %v8359 = vshll.u32 %v8104, 16
      %v8361 = vrot.slane %v8359, 5
      %v8362 = vsel %vm339, %v8357, %v8361
      %v8364 = vshrl.u32 %v8105, 16
      %v8366 = vrot.slane %v8364, 4
      %v8367 = vshll.u32 %v8105, 16
      %v8369 = vrot.slane %v8367, 5
      %v8370 = vor.u32 %v8366, %v8369
      %v8371 = vrot.slane %v8370, 4
      %v8373 = vshll.u32 %v8106, 16
      %v8375 = vrot.slane %v8373, 5
      %v8376 = vsel %vm339, %v8371, %v8375
      %v8377 = vshrl.u32 %v8106, 16
      %v8379 = vrot.slane %v8377, 4
      %v8380 = vor.u32 %v8379, %v8375
      %v8381 = vrot.slane %v8380, 4
      %v8383 = vshll.u32 %v8107, 16
      %v8385 = vrot.slane %v8383, 5
      %v8386 = vsel %vm339, %v8381, %v8385
      %v8388 = vshrl.u32 %v8108, 16
      %v8390 = vrot.slane %v8388, 4
      %v8391 = vshll.u32 %v8108, 16
      %v8393 = vrot.slane %v8391, 5
      %v8394 = vor.u32 %v8390, %v8393
      %v8395 = vrot.slane %v8394, 4
      %v8397 = vshll.u32 %v8109, 16
      %v8399 = vrot.slane %v8397, 5
      %v8400 = vsel %vm339, %v8395, %v8399
      %v8401 = vshrl.u32 %v8109, 16
      %v8403 = vrot.slane %v8401, 4
      %v8404 = vor.u32 %v8403, %v8399
      %v8405 = vrot.slane %v8404, 4
      %v8407 = vshll.u32 %v8110, 16
      %v8409 = vrot.slane %v8407, 5
      %v8410 = vsel %vm339, %v8405, %v8409
      %v8412 = vshrl.u32 %v8111, 16
      %v8414 = vrot.slane %v8412, 4
      %v8415 = vshll.u32 %v8111, 16
      %v8417 = vrot.slane %v8415, 5
      %v8418 = vor.u32 %v8414, %v8417
      %v8419 = vrot.slane %v8418, 4
      %v8421 = vshll.u32 %v8112, 16
      %v8423 = vrot.slane %v8421, 5
      %v8424 = vsel %vm339, %v8419, %v8423
      %v8425 = vshrl.u32 %v8112, 16
      %v8427 = vrot.slane %v8425, 4
      %v8428 = vor.u32 %v8427, %v8423
      %v8429 = vrot.slane %v8428, 4
      %v8431 = vshll.u32 %v8113, 16
      %v8433 = vrot.slane %v8431, 5
      %v8434 = vsel %vm339, %v8429, %v8433
      %v8436 = vshrl.u32 %v8114, 16
      %v8438 = vrot.slane %v8436, 4
      %v8439 = vshll.u32 %v8114, 16
      %v8441 = vrot.slane %v8439, 5
      %v8442 = vor.u32 %v8438, %v8441
      %v8443 = vrot.slane %v8442, 4
      %v8445 = vshll.u32 %v8115, 16
      %v8447 = vrot.slane %v8445, 5
      %v8448 = vsel %vm339, %v8443, %v8447
      %v8449 = vshrl.u32 %v8115, 16
      %v8451 = vrot.slane %v8449, 4
      %v8452 = vor.u32 %v8451, %v8447
      %v8453 = vrot.slane %v8452, 4
      %v8455 = vshll.u32 %v8116, 16
      %v8457 = vrot.slane %v8455, 5
      %v8458 = vsel %vm339, %v8453, %v8457
      %v8460 = vshrl.u32 %v8117, 16
      %v8462 = vrot.slane %v8460, 4
      %v8463 = vshll.u32 %v8117, 16
      %v8465 = vrot.slane %v8463, 5
      %v8466 = vor.u32 %v8462, %v8465
      %v8467 = vrot.slane %v8466, 4
      %v8469 = vshll.u32 %v8118, 16
      %v8471 = vrot.slane %v8469, 5
      %v8472 = vsel %vm339, %v8467, %v8471
      %v8473 = vshrl.u32 %v8118, 16
      %v8475 = vrot.slane %v8473, 4
      %v8476 = vor.u32 %v8475, %v8471
      %v8477 = vrot.slane %v8476, 4
      %v8479 = vshll.u32 %v8119, 16
      %v8481 = vrot.slane %v8479, 5
      %v8482 = vsel %vm339, %v8477, %v8481
      %v8484 = vshrl.u32 %v8120, 16
      %v8486 = vrot.slane %v8484, 4
      %v8487 = vshll.u32 %v8120, 16
      %v8489 = vrot.slane %v8487, 5
      %v8490 = vor.u32 %v8486, %v8489
      %v8491 = vrot.slane %v8490, 4
      %v8493 = vshll.u32 %v8121, 16
      %v8495 = vrot.slane %v8493, 5
      %v8496 = vsel %vm339, %v8491, %v8495
      %v8497 = vshrl.u32 %v8121, 16
      %v8499 = vrot.slane %v8497, 4
      %v8500 = vor.u32 %v8499, %v8495
      %v8501 = vrot.slane %v8500, 4
      %v8503 = vshll.u32 %v8122, 16
      %v8505 = vrot.slane %v8503, 5
      %v8506 = vsel %vm339, %v8501, %v8505
      %s8507 = scalar_lea.vmem %s4, 448
      %v8508 = vld [vmem:[%s8507] sm:$0xf]
      %v8509 = vld [vmem:[%s8507 + $0x4] sm:$0xf]
      %v8510 = vld [vmem:[%s8507 + $0x8] sm:$0xf]
      %v8511 = vld [vmem:[%s8507 + $0xc] sm:$0xf]
      %v8512 = vld [vmem:[%s8507 + $0x10] sm:$0xf]
      %v8513 = vld [vmem:[%s8507 + $0x14] sm:$0xf]
      %v8514 = vld [vmem:[%s8507 + $0x18] sm:$0xf]
      %v8515 = vld [vmem:[%s8507 + $0x1c] sm:$0xf]
      %v8516 = vld [vmem:[%s8507 + $0x20] sm:$0xf]
      %v8517 = vld [vmem:[%s8507 + $0x24] sm:$0xf]
      %v8518 = vld [vmem:[%s8507 + $0x28] sm:$0xf]
      %v8519 = vld [vmem:[%s8507 + $0x2c] sm:$0xf]
      %v8520 = vld [vmem:[%s8507 + $0x30] sm:$0xf]
      %v8521 = vld [vmem:[%s8507 + $0x34] sm:$0xf]
      %v8522 = vld [vmem:[%s8507 + $0x38] sm:$0xf]
      %v8523 = vld [vmem:[%s8507 + $0x3c] sm:$0xf]
      %v8524 = vunpack.c.l.b16 %v8136
      %v8525 = vunpack.c.l.b16 %v8146
      %v8526 = vunpack.c.l.b16 %v8160
      %v8527 = vunpack.c.l.b16 %v8170
      %v8528 = vunpack.c.l.b16 %v8184
      %v8529 = vunpack.c.l.b16 %v8194
      %v8530 = vunpack.c.l.b16 %v8208
      %v8531 = vunpack.c.l.b16 %v8218
      %v8532 = vunpack.c.l.b16 %v8232
      %v8533 = vunpack.c.l.b16 %v8242
      %v8534 = vunpack.c.l.b16 %v8256
      %v8535 = vunpack.c.l.b16 %v8266
      %v8536 = vunpack.c.l.b16 %v8280
      %v8537 = vunpack.c.l.b16 %v8290
      %v8538 = vunpack.c.l.b16 %v8304
      %v8539 = vunpack.c.l.b16 %v8314
      %v8540 = vunpack.c.l.b16 %v8328
      %v8541 = vunpack.c.l.b16 %v8338
      %v8542 = vunpack.c.l.b16 %v8352
      %v8543 = vunpack.c.l.b16 %v8362
      %v8544 = vunpack.c.l.b16 %v8376
      %v8545 = vunpack.c.l.b16 %v8386
      %v8546 = vunpack.c.l.b16 %v8400
      %v8547 = vunpack.c.l.b16 %v8410
      %v8548 = vunpack.c.l.b16 %v8424
      %v8549 = vunpack.c.l.b16 %v8434
      %v8550 = vunpack.c.l.b16 %v8448
      %v8551 = vunpack.c.l.b16 %v8458
      %v8552 = vunpack.c.l.b16 %v8472
      %v8553 = vunpack.c.l.b16 %v8482
      %v8554 = vunpack.c.l.b16 %v8496
      %v8555 = vunpack.c.l.b16 %v8506
      %v8556 = vpack.c.b16 %v8525, %v8524
      %v8557 = vpack.c.b16 %v8527, %v8526
      %v8558 = vpack.c.b16 %v8529, %v8528
      %v8559 = vpack.c.b16 %v8531, %v8530
      %v8560 = vpack.c.b16 %v8533, %v8532
      %v8561 = vpack.c.b16 %v8535, %v8534
      %v8562 = vpack.c.b16 %v8537, %v8536
      %v8563 = vpack.c.b16 %v8539, %v8538
      %v8564 = vpack.c.b16 %v8541, %v8540
      %v8565 = vpack.c.b16 %v8543, %v8542
      %v8566 = vpack.c.b16 %v8545, %v8544
      %v8567 = vpack.c.b16 %v8547, %v8546
      %v8568 = vpack.c.b16 %v8549, %v8548
      %v8569 = vpack.c.b16 %v8551, %v8550
      %v8570 = vpack.c.b16 %v8553, %v8552
      %v8571 = vpack.c.b16 %v8555, %v8554
      %v8604 = vunpack.c.l.b16 %v8508
      %v8605 = vunpack.c.l.b16 %v8509
      %v8606 = vunpack.c.l.b16 %v8510
      %v8607 = vunpack.c.l.b16 %v8511
      %v8608 = vunpack.c.l.b16 %v8512
      %v8609 = vunpack.c.l.b16 %v8513
      %v8610 = vunpack.c.l.b16 %v8514
      %v8611 = vunpack.c.l.b16 %v8515
      %v8612 = vunpack.c.l.b16 %v8516
      %v8613 = vunpack.c.l.b16 %v8517
      %v8614 = vunpack.c.l.b16 %v8518
      %v8615 = vunpack.c.l.b16 %v8519
      %v8616 = vunpack.c.l.b16 %v8520
      %v8617 = vunpack.c.l.b16 %v8521
      %v8618 = vunpack.c.l.b16 %v8522
      %v8619 = vunpack.c.l.b16 %v8523
      %v8620 = vpack.c.b16 %v8605, %v8604
      %v8621 = vpack.c.b16 %v8607, %v8606
      %v8622 = vpack.c.b16 %v8609, %v8608
      %v8623 = vpack.c.b16 %v8611, %v8610
      %v8624 = vpack.c.b16 %v8613, %v8612
      %v8625 = vpack.c.b16 %v8615, %v8614
      %v8626 = vpack.c.b16 %v8617, %v8616
      %v8627 = vpack.c.b16 %v8619, %v8618
      %8636 = vmatpush.bf16.msra.mxu0 %v8627
      %8637 = vmatpush.bf16.msra.mxu0 %v8626
      %8638 = vmatpush.bf16.msra.mxu0 %v8625
      %8639 = vmatpush.bf16.msra.mxu0 %v8624
      %8640 = vmatpush.bf16.msra.mxu0 %v8623
      %8641 = vmatpush.bf16.msra.mxu0 %v8622
      %8642 = vmatpush.bf16.msra.mxu0 %v8621
      %8643 = vmatpush.bf16.msra.mxu0 %v8620
      %8644 = vmatmul.bf16.gmra.mxu0 %v8556
      %v8645 = vpop.f32.mrf.mxu0
      %v8646 = vadd.f32 0.0, %v8645
      %v8647 = vpop.f32.mrf.mxu0
      %v8648 = vadd.f32 0.0, %v8647
      %8649 = vmatmul.bf16.gmra.mxu0 %v8557
      %v8650 = vpop.f32.mrf.mxu0
      %v8651 = vadd.f32 0.0, %v8650
      %v8652 = vpop.f32.mrf.mxu0
      %v8653 = vadd.f32 0.0, %v8652
      %8654 = vmatmul.bf16.gmra.mxu0 %v8558
      %v8655 = vpop.f32.mrf.mxu0
      %v8656 = vadd.f32 0.0, %v8655
      %v8657 = vpop.f32.mrf.mxu0
      %v8658 = vadd.f32 0.0, %v8657
      %8659 = vmatmul.bf16.gmra.mxu0 %v8559
      %v8660 = vpop.f32.mrf.mxu0
      %v8661 = vadd.f32 0.0, %v8660
      %v8662 = vpop.f32.mrf.mxu0
      %v8663 = vadd.f32 0.0, %v8662
      %8664 = vmatmul.bf16.gmra.mxu0 %v8560
      %v8665 = vpop.f32.mrf.mxu0
      %v8666 = vadd.f32 0.0, %v8665
      %v8667 = vpop.f32.mrf.mxu0
      %v8668 = vadd.f32 0.0, %v8667
      %8669 = vmatmul.bf16.gmra.mxu0 %v8561
      %v8670 = vpop.f32.mrf.mxu0
      %v8671 = vadd.f32 0.0, %v8670
      %v8672 = vpop.f32.mrf.mxu0
      %v8673 = vadd.f32 0.0, %v8672
      %8674 = vmatmul.bf16.gmra.mxu0 %v8562
      %v8675 = vpop.f32.mrf.mxu0
      %v8676 = vadd.f32 0.0, %v8675
      %v8677 = vpop.f32.mrf.mxu0
      %v8678 = vadd.f32 0.0, %v8677
      %8679 = vmatmul.bf16.gmra.mxu0 %v8563
      %v8680 = vpop.f32.mrf.mxu0
      %v8681 = vadd.f32 0.0, %v8680
      %v8682 = vpop.f32.mrf.mxu0
      %v8683 = vadd.f32 0.0, %v8682
      %8684 = vmatmul.bf16.gmra.mxu0 %v8564
      %v8685 = vpop.f32.mrf.mxu0
      %v8686 = vadd.f32 0.0, %v8685
      %v8687 = vpop.f32.mrf.mxu0
      %v8688 = vadd.f32 0.0, %v8687
      %8689 = vmatmul.bf16.gmra.mxu0 %v8565
      %v8690 = vpop.f32.mrf.mxu0
      %v8691 = vadd.f32 0.0, %v8690
      %v8692 = vpop.f32.mrf.mxu0
      %v8693 = vadd.f32 0.0, %v8692
      %8694 = vmatmul.bf16.gmra.mxu0 %v8566
      %v8695 = vpop.f32.mrf.mxu0
      %v8696 = vadd.f32 0.0, %v8695
      %v8697 = vpop.f32.mrf.mxu0
      %v8698 = vadd.f32 0.0, %v8697
      %8699 = vmatmul.bf16.gmra.mxu0 %v8567
      %v8700 = vpop.f32.mrf.mxu0
      %v8701 = vadd.f32 0.0, %v8700
      %v8702 = vpop.f32.mrf.mxu0
      %v8703 = vadd.f32 0.0, %v8702
      %8704 = vmatmul.bf16.gmra.mxu0 %v8568
      %v8705 = vpop.f32.mrf.mxu0
      %v8706 = vadd.f32 0.0, %v8705
      %v8707 = vpop.f32.mrf.mxu0
      %v8708 = vadd.f32 0.0, %v8707
      %8709 = vmatmul.bf16.gmra.mxu0 %v8569
      %v8710 = vpop.f32.mrf.mxu0
      %v8711 = vadd.f32 0.0, %v8710
      %v8712 = vpop.f32.mrf.mxu0
      %v8713 = vadd.f32 0.0, %v8712
      %8714 = vmatmul.bf16.gmra.mxu0 %v8570
      %v8715 = vpop.f32.mrf.mxu0
      %v8716 = vadd.f32 0.0, %v8715
      %v8717 = vpop.f32.mrf.mxu0
      %v8718 = vadd.f32 0.0, %v8717
      %8719 = vmatmul.bf16.gmra.mxu0 %v8571
      %v8720 = vpop.f32.mrf.mxu0
      %v8721 = vadd.f32 0.0, %v8720
      %v8722 = vpop.f32.mrf.mxu0
      %v8723 = vadd.f32 0.0, %v8722
      %8724 = vdwg.mxu0
      %v8725 = vadd.f32 %v8043, %v8646
      %v8726 = vadd.f32 %v8044, %v8648
      %v8727 = vadd.f32 %v8045, %v8651
      %v8728 = vadd.f32 %v8046, %v8653
      %v8729 = vadd.f32 %v8047, %v8656
      %v8730 = vadd.f32 %v8048, %v8658
      %v8731 = vadd.f32 %v8049, %v8661
      %v8732 = vadd.f32 %v8050, %v8663
      %v8733 = vadd.f32 %v8051, %v8666
      %v8734 = vadd.f32 %v8052, %v8668
      %v8735 = vadd.f32 %v8053, %v8671
      %v8736 = vadd.f32 %v8054, %v8673
      %v8737 = vadd.f32 %v8055, %v8676
      %v8738 = vadd.f32 %v8056, %v8678
      %v8739 = vadd.f32 %v8057, %v8681
      %v8740 = vadd.f32 %v8058, %v8683
      %v8741 = vadd.f32 %v8059, %v8686
      %v8742 = vadd.f32 %v8060, %v8688
      %v8743 = vadd.f32 %v8061, %v8691
      %v8744 = vadd.f32 %v8062, %v8693
      %v8745 = vadd.f32 %v8063, %v8696
      %v8746 = vadd.f32 %v8064, %v8698
      %v8747 = vadd.f32 %v8065, %v8701
      %v8748 = vadd.f32 %v8066, %v8703
      %v8749 = vadd.f32 %v8067, %v8706
      %v8750 = vadd.f32 %v8068, %v8708
      %v8751 = vadd.f32 %v8069, %v8711
      %v8752 = vadd.f32 %v8070, %v8713
      %v8753 = vadd.f32 %v8071, %v8716
      %v8754 = vadd.f32 %v8072, %v8718
      %v8755 = vadd.f32 %v8073, %v8721
      %v8756 = vadd.f32 %v8074, %v8723
      %v8757 = vld [vmem:[%s7760] sm:$0xe]
      %v8758 = vld [vmem:[%s7760 + $0xc] sm:$0xe]
      %v8759 = vld [vmem:[%s7760 + $0x18] sm:$0xe]
      %v8760 = vld [vmem:[%s7760 + $0x24] sm:$0xe]
      %v8761 = vld [vmem:[%s7760 + $0x30] sm:$0xe]
      %v8762 = vld [vmem:[%s7760 + $0x3c] sm:$0xe]
      %v8763 = vld [vmem:[%s7760 + $0x48] sm:$0xe]
      %v8764 = vld [vmem:[%s7760 + $0x54] sm:$0xe]
      %v8765 = vld [vmem:[%s7760 + $0x60] sm:$0xe]
      %v8766 = vld [vmem:[%s7760 + $0x6c] sm:$0xe]
      %v8767 = vld [vmem:[%s7760 + $0x78] sm:$0xe]
      %v8768 = vld [vmem:[%s7760 + $0x84] sm:$0xe]
      %v8769 = vld [vmem:[%s7760 + $0x90] sm:$0xe]
      %v8770 = vld [vmem:[%s7760 + $0x9c] sm:$0xe]
      %v8771 = vld [vmem:[%s7760 + $0xa8] sm:$0xe]
      %v8772 = vld [vmem:[%s7760 + $0xb4] sm:$0xe]
      %v8821 = vrot.slane %v8757, 5
      %v8822 = vrot.slane %v8821, 4
      %v8823 = vrot.slane %v8076, 5
      %v8824 = vsel %vm1225, %v8822, %v8823
      %v8825 = vrot.slane %v8823, 4
      %v8826 = vrot.slane %v8077, 5
      %v8827 = vsel %vm1225, %v8825, %v8826
      %v8828 = vrot.slane %v8758, 5
      %v8829 = vrot.slane %v8828, 4
      %v8830 = vrot.slane %v8079, 5
      %v8831 = vsel %vm1225, %v8829, %v8830
      %v8832 = vrot.slane %v8830, 4
      %v8833 = vrot.slane %v8080, 5
      %v8834 = vsel %vm1225, %v8832, %v8833
      %v8835 = vrot.slane %v8759, 5
      %v8836 = vrot.slane %v8835, 4
      %v8837 = vrot.slane %v8082, 5
      %v8838 = vsel %vm1225, %v8836, %v8837
      %v8839 = vrot.slane %v8837, 4
      %v8840 = vrot.slane %v8083, 5
      %v8841 = vsel %vm1225, %v8839, %v8840
      %v8842 = vrot.slane %v8760, 5
      %v8843 = vrot.slane %v8842, 4
      %v8844 = vrot.slane %v8085, 5
      %v8845 = vsel %vm1225, %v8843, %v8844
      %v8846 = vrot.slane %v8844, 4
      %v8847 = vrot.slane %v8086, 5
      %v8848 = vsel %vm1225, %v8846, %v8847
      %v8849 = vrot.slane %v8761, 5
      %v8850 = vrot.slane %v8849, 4
      %v8851 = vrot.slane %v8088, 5
      %v8852 = vsel %vm1225, %v8850, %v8851
      %v8853 = vrot.slane %v8851, 4
      %v8854 = vrot.slane %v8089, 5
      %v8855 = vsel %vm1225, %v8853, %v8854
      %v8856 = vrot.slane %v8762, 5
      %v8857 = vrot.slane %v8856, 4
      %v8858 = vrot.slane %v8091, 5
      %v8859 = vsel %vm1225, %v8857, %v8858
      %v8860 = vrot.slane %v8858, 4
      %v8861 = vrot.slane %v8092, 5
      %v8862 = vsel %vm1225, %v8860, %v8861
      %v8863 = vrot.slane %v8763, 5
      %v8864 = vrot.slane %v8863, 4
      %v8865 = vrot.slane %v8094, 5
      %v8866 = vsel %vm1225, %v8864, %v8865
      %v8867 = vrot.slane %v8865, 4
      %v8868 = vrot.slane %v8095, 5
      %v8869 = vsel %vm1225, %v8867, %v8868
      %v8870 = vrot.slane %v8764, 5
      %v8871 = vrot.slane %v8870, 4
      %v8872 = vrot.slane %v8097, 5
      %v8873 = vsel %vm1225, %v8871, %v8872
      %v8874 = vrot.slane %v8872, 4
      %v8875 = vrot.slane %v8098, 5
      %v8876 = vsel %vm1225, %v8874, %v8875
      %v8877 = vrot.slane %v8765, 5
      %v8878 = vrot.slane %v8877, 4
      %v8879 = vrot.slane %v8100, 5
      %v8880 = vsel %vm1225, %v8878, %v8879
      %v8881 = vrot.slane %v8879, 4
      %v8882 = vrot.slane %v8101, 5
      %v8883 = vsel %vm1225, %v8881, %v8882
      %v8884 = vrot.slane %v8766, 5
      %v8885 = vrot.slane %v8884, 4
      %v8886 = vrot.slane %v8103, 5
      %v8887 = vsel %vm1225, %v8885, %v8886
      %v8888 = vrot.slane %v8886, 4
      %v8889 = vrot.slane %v8104, 5
      %v8890 = vsel %vm1225, %v8888, %v8889
      %v8891 = vrot.slane %v8767, 5
      %v8892 = vrot.slane %v8891, 4
      %v8893 = vrot.slane %v8106, 5
      %v8894 = vsel %vm1225, %v8892, %v8893
      %v8895 = vrot.slane %v8893, 4
      %v8896 = vrot.slane %v8107, 5
      %v8897 = vsel %vm1225, %v8895, %v8896
      %v8898 = vrot.slane %v8768, 5
      %v8899 = vrot.slane %v8898, 4
      %v8900 = vrot.slane %v8109, 5
      %v8901 = vsel %vm1225, %v8899, %v8900
      %v8902 = vrot.slane %v8900, 4
      %v8903 = vrot.slane %v8110, 5
      %v8904 = vsel %vm1225, %v8902, %v8903
      %v8905 = vrot.slane %v8769, 5
      %v8906 = vrot.slane %v8905, 4
      %v8907 = vrot.slane %v8112, 5
      %v8908 = vsel %vm1225, %v8906, %v8907
      %v8909 = vrot.slane %v8907, 4
      %v8910 = vrot.slane %v8113, 5
      %v8911 = vsel %vm1225, %v8909, %v8910
      %v8912 = vrot.slane %v8770, 5
      %v8913 = vrot.slane %v8912, 4
      %v8914 = vrot.slane %v8115, 5
      %v8915 = vsel %vm1225, %v8913, %v8914
      %v8916 = vrot.slane %v8914, 4
      %v8917 = vrot.slane %v8116, 5
      %v8918 = vsel %vm1225, %v8916, %v8917
      %v8919 = vrot.slane %v8771, 5
      %v8920 = vrot.slane %v8919, 4
      %v8921 = vrot.slane %v8118, 5
      %v8922 = vsel %vm1225, %v8920, %v8921
      %v8923 = vrot.slane %v8921, 4
      %v8924 = vrot.slane %v8119, 5
      %v8925 = vsel %vm1225, %v8923, %v8924
      %v8926 = vrot.slane %v8772, 5
      %v8927 = vrot.slane %v8926, 4
      %v8928 = vrot.slane %v8121, 5
      %v8929 = vsel %vm1225, %v8927, %v8928
      %v8930 = vrot.slane %v8928, 4
      %v8931 = vrot.slane %v8122, 5
      %v8932 = vsel %vm1225, %v8930, %v8931
      %s8933 = scalar_lea.vmem %s4, 512
      %v8934 = vld [vmem:[%s8933] sm:$0xf]
      %v8935 = vld [vmem:[%s8933 + $0x4] sm:$0xf]
      %v8936 = vld [vmem:[%s8933 + $0x8] sm:$0xf]
      %v8937 = vld [vmem:[%s8933 + $0xc] sm:$0xf]
      %v8938 = vld [vmem:[%s8933 + $0x10] sm:$0xf]
      %v8939 = vld [vmem:[%s8933 + $0x14] sm:$0xf]
      %v8940 = vld [vmem:[%s8933 + $0x18] sm:$0xf]
      %v8941 = vld [vmem:[%s8933 + $0x1c] sm:$0xf]
      %v8942 = vld [vmem:[%s8933 + $0x20] sm:$0xf]
      %v8943 = vld [vmem:[%s8933 + $0x24] sm:$0xf]
      %v8944 = vld [vmem:[%s8933 + $0x28] sm:$0xf]
      %v8945 = vld [vmem:[%s8933 + $0x2c] sm:$0xf]
      %v8946 = vld [vmem:[%s8933 + $0x30] sm:$0xf]
      %v8947 = vld [vmem:[%s8933 + $0x34] sm:$0xf]
      %v8948 = vld [vmem:[%s8933 + $0x38] sm:$0xf]
      %v8949 = vld [vmem:[%s8933 + $0x3c] sm:$0xf]
      %v8950 = vunpack.c.l.b16 %v8824
      %v8951 = vunpack.c.l.b16 %v8827
      %v8952 = vunpack.c.l.b16 %v8831
      %v8953 = vunpack.c.l.b16 %v8834
      %v8954 = vunpack.c.l.b16 %v8838
      %v8955 = vunpack.c.l.b16 %v8841
      %v8956 = vunpack.c.l.b16 %v8845
      %v8957 = vunpack.c.l.b16 %v8848
      %v8958 = vunpack.c.l.b16 %v8852
      %v8959 = vunpack.c.l.b16 %v8855
      %v8960 = vunpack.c.l.b16 %v8859
      %v8961 = vunpack.c.l.b16 %v8862
      %v8962 = vunpack.c.l.b16 %v8866
      %v8963 = vunpack.c.l.b16 %v8869
      %v8964 = vunpack.c.l.b16 %v8873
      %v8965 = vunpack.c.l.b16 %v8876
      %v8966 = vunpack.c.l.b16 %v8880
      %v8967 = vunpack.c.l.b16 %v8883
      %v8968 = vunpack.c.l.b16 %v8887
      %v8969 = vunpack.c.l.b16 %v8890
      %v8970 = vunpack.c.l.b16 %v8894
      %v8971 = vunpack.c.l.b16 %v8897
      %v8972 = vunpack.c.l.b16 %v8901
      %v8973 = vunpack.c.l.b16 %v8904
      %v8974 = vunpack.c.l.b16 %v8908
      %v8975 = vunpack.c.l.b16 %v8911
      %v8976 = vunpack.c.l.b16 %v8915
      %v8977 = vunpack.c.l.b16 %v8918
      %v8978 = vunpack.c.l.b16 %v8922
      %v8979 = vunpack.c.l.b16 %v8925
      %v8980 = vunpack.c.l.b16 %v8929
      %v8981 = vunpack.c.l.b16 %v8932
      %v8982 = vpack.c.b16 %v8951, %v8950
      %v8983 = vpack.c.b16 %v8953, %v8952
      %v8984 = vpack.c.b16 %v8955, %v8954
      %v8985 = vpack.c.b16 %v8957, %v8956
      %v8986 = vpack.c.b16 %v8959, %v8958
      %v8987 = vpack.c.b16 %v8961, %v8960
      %v8988 = vpack.c.b16 %v8963, %v8962
      %v8989 = vpack.c.b16 %v8965, %v8964
      %v8990 = vpack.c.b16 %v8967, %v8966
      %v8991 = vpack.c.b16 %v8969, %v8968
      %v8992 = vpack.c.b16 %v8971, %v8970
      %v8993 = vpack.c.b16 %v8973, %v8972
      %v8994 = vpack.c.b16 %v8975, %v8974
      %v8995 = vpack.c.b16 %v8977, %v8976
      %v8996 = vpack.c.b16 %v8979, %v8978
      %v8997 = vpack.c.b16 %v8981, %v8980
      %v9030 = vunpack.c.l.b16 %v8934
      %v9031 = vunpack.c.l.b16 %v8935
      %v9032 = vunpack.c.l.b16 %v8936
      %v9033 = vunpack.c.l.b16 %v8937
      %v9034 = vunpack.c.l.b16 %v8938
      %v9035 = vunpack.c.l.b16 %v8939
      %v9036 = vunpack.c.l.b16 %v8940
      %v9037 = vunpack.c.l.b16 %v8941
      %v9038 = vunpack.c.l.b16 %v8942
      %v9039 = vunpack.c.l.b16 %v8943
      %v9040 = vunpack.c.l.b16 %v8944
      %v9041 = vunpack.c.l.b16 %v8945
      %v9042 = vunpack.c.l.b16 %v8946
      %v9043 = vunpack.c.l.b16 %v8947
      %v9044 = vunpack.c.l.b16 %v8948
      %v9045 = vunpack.c.l.b16 %v8949
      %v9046 = vpack.c.b16 %v9031, %v9030
      %v9047 = vpack.c.b16 %v9033, %v9032
      %v9048 = vpack.c.b16 %v9035, %v9034
      %v9049 = vpack.c.b16 %v9037, %v9036
      %v9050 = vpack.c.b16 %v9039, %v9038
      %v9051 = vpack.c.b16 %v9041, %v9040
      %v9052 = vpack.c.b16 %v9043, %v9042
      %v9053 = vpack.c.b16 %v9045, %v9044
      %9062 = vmatpush.bf16.msra.mxu0 %v9053
      %9063 = vmatpush.bf16.msra.mxu0 %v9052
      %9064 = vmatpush.bf16.msra.mxu0 %v9051
      %9065 = vmatpush.bf16.msra.mxu0 %v9050
      %9066 = vmatpush.bf16.msra.mxu0 %v9049
      %9067 = vmatpush.bf16.msra.mxu0 %v9048
      %9068 = vmatpush.bf16.msra.mxu0 %v9047
      %9069 = vmatpush.bf16.msra.mxu0 %v9046
      %9070 = vmatmul.bf16.gmra.mxu0 %v8982
      %v9071 = vpop.f32.mrf.mxu0
      %v9072 = vadd.f32 0.0, %v9071
      %v9073 = vpop.f32.mrf.mxu0
      %v9074 = vadd.f32 0.0, %v9073
      %9075 = vmatmul.bf16.gmra.mxu0 %v8983
      %v9076 = vpop.f32.mrf.mxu0
      %v9077 = vadd.f32 0.0, %v9076
      %v9078 = vpop.f32.mrf.mxu0
      %v9079 = vadd.f32 0.0, %v9078
      %9080 = vmatmul.bf16.gmra.mxu0 %v8984
      %v9081 = vpop.f32.mrf.mxu0
      %v9082 = vadd.f32 0.0, %v9081
      %v9083 = vpop.f32.mrf.mxu0
      %v9084 = vadd.f32 0.0, %v9083
      %9085 = vmatmul.bf16.gmra.mxu0 %v8985
      %v9086 = vpop.f32.mrf.mxu0
      %v9087 = vadd.f32 0.0, %v9086
      %v9088 = vpop.f32.mrf.mxu0
      %v9089 = vadd.f32 0.0, %v9088
      %9090 = vmatmul.bf16.gmra.mxu0 %v8986
      %v9091 = vpop.f32.mrf.mxu0
      %v9092 = vadd.f32 0.0, %v9091
      %v9093 = vpop.f32.mrf.mxu0
      %v9094 = vadd.f32 0.0, %v9093
      %9095 = vmatmul.bf16.gmra.mxu0 %v8987
      %v9096 = vpop.f32.mrf.mxu0
      %v9097 = vadd.f32 0.0, %v9096
      %v9098 = vpop.f32.mrf.mxu0
      %v9099 = vadd.f32 0.0, %v9098
      %9100 = vmatmul.bf16.gmra.mxu0 %v8988
      %v9101 = vpop.f32.mrf.mxu0
      %v9102 = vadd.f32 0.0, %v9101
      %v9103 = vpop.f32.mrf.mxu0
      %v9104 = vadd.f32 0.0, %v9103
      %9105 = vmatmul.bf16.gmra.mxu0 %v8989
      %v9106 = vpop.f32.mrf.mxu0
      %v9107 = vadd.f32 0.0, %v9106
      %v9108 = vpop.f32.mrf.mxu0
      %v9109 = vadd.f32 0.0, %v9108
      %9110 = vmatmul.bf16.gmra.mxu0 %v8990
      %v9111 = vpop.f32.mrf.mxu0
      %v9112 = vadd.f32 0.0, %v9111
      %v9113 = vpop.f32.mrf.mxu0
      %v9114 = vadd.f32 0.0, %v9113
      %9115 = vmatmul.bf16.gmra.mxu0 %v8991
      %v9116 = vpop.f32.mrf.mxu0
      %v9117 = vadd.f32 0.0, %v9116
      %v9118 = vpop.f32.mrf.mxu0
      %v9119 = vadd.f32 0.0, %v9118
      %9120 = vmatmul.bf16.gmra.mxu0 %v8992
      %v9121 = vpop.f32.mrf.mxu0
      %v9122 = vadd.f32 0.0, %v9121
      %v9123 = vpop.f32.mrf.mxu0
      %v9124 = vadd.f32 0.0, %v9123
      %9125 = vmatmul.bf16.gmra.mxu0 %v8993
      %v9126 = vpop.f32.mrf.mxu0
      %v9127 = vadd.f32 0.0, %v9126
      %v9128 = vpop.f32.mrf.mxu0
      %v9129 = vadd.f32 0.0, %v9128
      %9130 = vmatmul.bf16.gmra.mxu0 %v8994
      %v9131 = vpop.f32.mrf.mxu0
      %v9132 = vadd.f32 0.0, %v9131
      %v9133 = vpop.f32.mrf.mxu0
      %v9134 = vadd.f32 0.0, %v9133
      %9135 = vmatmul.bf16.gmra.mxu0 %v8995
      %v9136 = vpop.f32.mrf.mxu0
      %v9137 = vadd.f32 0.0, %v9136
      %v9138 = vpop.f32.mrf.mxu0
      %v9139 = vadd.f32 0.0, %v9138
      %9140 = vmatmul.bf16.gmra.mxu0 %v8996
      %v9141 = vpop.f32.mrf.mxu0
      %v9142 = vadd.f32 0.0, %v9141
      %v9143 = vpop.f32.mrf.mxu0
      %v9144 = vadd.f32 0.0, %v9143
      %9145 = vmatmul.bf16.gmra.mxu0 %v8997
      %v9146 = vpop.f32.mrf.mxu0
      %v9147 = vadd.f32 0.0, %v9146
      %v9148 = vpop.f32.mrf.mxu0
      %v9149 = vadd.f32 0.0, %v9148
      %9150 = vdwg.mxu0
      %v9151 = vadd.f32 %v8725, %v9072
      %v9152 = vadd.f32 %v8726, %v9074
      %v9153 = vadd.f32 %v8727, %v9077
      %v9154 = vadd.f32 %v8728, %v9079
      %v9155 = vadd.f32 %v8729, %v9082
      %v9156 = vadd.f32 %v8730, %v9084
      %v9157 = vadd.f32 %v8731, %v9087
      %v9158 = vadd.f32 %v8732, %v9089
      %v9159 = vadd.f32 %v8733, %v9092
      %v9160 = vadd.f32 %v8734, %v9094
      %v9161 = vadd.f32 %v8735, %v9097
      %v9162 = vadd.f32 %v8736, %v9099
      %v9163 = vadd.f32 %v8737, %v9102
      %v9164 = vadd.f32 %v8738, %v9104
      %v9165 = vadd.f32 %v8739, %v9107
      %v9166 = vadd.f32 %v8740, %v9109
      %v9167 = vadd.f32 %v8741, %v9112
      %v9168 = vadd.f32 %v8742, %v9114
      %v9169 = vadd.f32 %v8743, %v9117
      %v9170 = vadd.f32 %v8744, %v9119
      %v9171 = vadd.f32 %v8745, %v9122
      %v9172 = vadd.f32 %v8746, %v9124
      %v9173 = vadd.f32 %v8747, %v9127
      %v9174 = vadd.f32 %v8748, %v9129
      %v9175 = vadd.f32 %v8749, %v9132
      %v9176 = vadd.f32 %v8750, %v9134
      %v9177 = vadd.f32 %v8751, %v9137
      %v9178 = vadd.f32 %v8752, %v9139
      %v9179 = vadd.f32 %v8753, %v9142
      %v9180 = vadd.f32 %v8754, %v9144
      %v9181 = vadd.f32 %v8755, %v9147
      %v9182 = vadd.f32 %v8756, %v9149
      %v9183 = vld [vmem:[%s5] sm:$0x1]
      %v9185 = vperm.slane %v9183, 0
      %v9187 = vadd.f32 %v9151, %v9185
      %v9188 = vadd.f32 %v9152, %v9185
      %v9189 = vadd.f32 %v9153, %v9185
      %v9190 = vadd.f32 %v9154, %v9185
      %v9191 = vadd.f32 %v9155, %v9185
      %v9192 = vadd.f32 %v9156, %v9185
      %v9193 = vadd.f32 %v9157, %v9185
      %v9194 = vadd.f32 %v9158, %v9185
      %v9195 = vadd.f32 %v9159, %v9185
      %v9196 = vadd.f32 %v9160, %v9185
      %v9197 = vadd.f32 %v9161, %v9185
      %v9198 = vadd.f32 %v9162, %v9185
      %v9199 = vadd.f32 %v9163, %v9185
      %v9200 = vadd.f32 %v9164, %v9185
      %v9201 = vadd.f32 %v9165, %v9185
      %v9202 = vadd.f32 %v9166, %v9185
      %v9203 = vadd.f32 %v9167, %v9185
      %v9204 = vadd.f32 %v9168, %v9185
      %v9205 = vadd.f32 %v9169, %v9185
      %v9206 = vadd.f32 %v9170, %v9185
      %v9207 = vadd.f32 %v9171, %v9185
      %v9208 = vadd.f32 %v9172, %v9185
      %v9209 = vadd.f32 %v9173, %v9185
      %v9210 = vadd.f32 %v9174, %v9185
      %v9211 = vadd.f32 %v9175, %v9185
      %v9212 = vadd.f32 %v9176, %v9185
      %v9213 = vadd.f32 %v9177, %v9185
      %v9214 = vadd.f32 %v9178, %v9185
      %v9215 = vadd.f32 %v9179, %v9185
      %v9216 = vadd.f32 %v9180, %v9185
      %v9217 = vadd.f32 %v9181, %v9185
      %v9218 = vadd.f32 %v9182, %v9185
      %v9219 = vld [vmem:[%s266] sm:$0xff]
      %v9220 = vld [vmem:[%s266 + $0x8] sm:$0xff]
      %v9221 = vld [vmem:[%s266 + $0x10] sm:$0xff]
      %v9222 = vld [vmem:[%s266 + $0x18] sm:$0xff]
      %v9223 = vld [vmem:[%s266 + $0x20] sm:$0xff]
      %v9224 = vld [vmem:[%s266 + $0x28] sm:$0xff]
      %v9225 = vld [vmem:[%s266 + $0x30] sm:$0xff]
      %v9226 = vld [vmem:[%s266 + $0x38] sm:$0xff]
      %v9227 = vld [vmem:[%s266 + $0x40] sm:$0xff]
      %v9228 = vld [vmem:[%s266 + $0x48] sm:$0xff]
      %v9229 = vld [vmem:[%s266 + $0x50] sm:$0xff]
      %v9230 = vld [vmem:[%s266 + $0x58] sm:$0xff]
      %v9231 = vld [vmem:[%s266 + $0x60] sm:$0xff]
      %v9232 = vld [vmem:[%s266 + $0x68] sm:$0xff]
      %v9233 = vld [vmem:[%s266 + $0x70] sm:$0xff]
      %v9234 = vld [vmem:[%s266 + $0x78] sm:$0xff]
      %v9235 = vld [vmem:[%s266 + $0x80] sm:$0xff]
      %v9236 = vld [vmem:[%s266 + $0x88] sm:$0xff]
      %v9237 = vld [vmem:[%s266 + $0x90] sm:$0xff]
      %v9238 = vld [vmem:[%s266 + $0x98] sm:$0xff]
      %v9239 = vld [vmem:[%s266 + $0xa0] sm:$0xff]
      %v9240 = vld [vmem:[%s266 + $0xa8] sm:$0xff]
      %v9241 = vld [vmem:[%s266 + $0xb0] sm:$0xff]
      %v9242 = vld [vmem:[%s266 + $0xb8] sm:$0xff]
      %v9243 = vld [vmem:[%s266 + $0xc0] sm:$0xff]
      %v9244 = vld [vmem:[%s266 + $0xc8] sm:$0xff]
      %v9245 = vld [vmem:[%s266 + $0xd0] sm:$0xff]
      %v9246 = vld [vmem:[%s266 + $0xd8] sm:$0xff]
      %v9247 = vld [vmem:[%s266 + $0xe0] sm:$0xff]
      %v9248 = vld [vmem:[%s266 + $0xe8] sm:$0xff]
      %v9249 = vld [vmem:[%s266 + $0xf0] sm:$0xff]
      %v9250 = vld [vmem:[%s266 + $0xf8] sm:$0xff]
      %v9251 = vadd.f32 %v9187, %v9219
      %v9252 = vadd.f32 %v9188, %v9220
      %v9253 = vadd.f32 %v9189, %v9221
      %v9254 = vadd.f32 %v9190, %v9222
      %v9255 = vadd.f32 %v9191, %v9223
      %v9256 = vadd.f32 %v9192, %v9224
      %v9257 = vadd.f32 %v9193, %v9225
      %v9258 = vadd.f32 %v9194, %v9226
      %v9259 = vadd.f32 %v9195, %v9227
      %v9260 = vadd.f32 %v9196, %v9228
      %v9261 = vadd.f32 %v9197, %v9229
      %v9262 = vadd.f32 %v9198, %v9230
      %v9263 = vadd.f32 %v9199, %v9231
      %v9264 = vadd.f32 %v9200, %v9232
      %v9265 = vadd.f32 %v9201, %v9233
      %v9266 = vadd.f32 %v9202, %v9234
      %v9267 = vadd.f32 %v9203, %v9235
      %v9268 = vadd.f32 %v9204, %v9236
      %v9269 = vadd.f32 %v9205, %v9237
      %v9270 = vadd.f32 %v9206, %v9238
      %v9271 = vadd.f32 %v9207, %v9239
      %v9272 = vadd.f32 %v9208, %v9240
      %v9273 = vadd.f32 %v9209, %v9241
      %v9274 = vadd.f32 %v9210, %v9242
      %v9275 = vadd.f32 %v9211, %v9243
      %v9276 = vadd.f32 %v9212, %v9244
      %v9277 = vadd.f32 %v9213, %v9245
      %v9278 = vadd.f32 %v9214, %v9246
      %v9279 = vadd.f32 %v9215, %v9247
      %v9280 = vadd.f32 %v9216, %v9248
      %v9281 = vadd.f32 %v9217, %v9249
      %v9282 = vadd.f32 %v9218, %v9250
      %v9283 = vmax.f32 %v9251, 0.0
      %v9284 = vmax.f32 %v9252, 0.0
      %v9285 = vmax.f32 %v9253, 0.0
      %v9286 = vmax.f32 %v9254, 0.0
      %v9287 = vmax.f32 %v9255, 0.0
      %v9288 = vmax.f32 %v9256, 0.0
      %v9289 = vmax.f32 %v9257, 0.0
      %v9290 = vmax.f32 %v9258, 0.0
      %v9291 = vmax.f32 %v9259, 0.0
      %v9292 = vmax.f32 %v9260, 0.0
      %v9293 = vmax.f32 %v9261, 0.0
      %v9294 = vmax.f32 %v9262, 0.0
      %v9295 = vmax.f32 %v9263, 0.0
      %v9296 = vmax.f32 %v9264, 0.0
      %v9297 = vmax.f32 %v9265, 0.0
      %v9298 = vmax.f32 %v9266, 0.0
      %v9299 = vmax.f32 %v9267, 0.0
      %v9300 = vmax.f32 %v9268, 0.0
      %v9301 = vmax.f32 %v9269, 0.0
      %v9302 = vmax.f32 %v9270, 0.0
      %v9303 = vmax.f32 %v9271, 0.0
      %v9304 = vmax.f32 %v9272, 0.0
      %v9305 = vmax.f32 %v9273, 0.0
      %v9306 = vmax.f32 %v9274, 0.0
      %v9307 = vmax.f32 %v9275, 0.0
      %v9308 = vmax.f32 %v9276, 0.0
      %v9309 = vmax.f32 %v9277, 0.0
      %v9310 = vmax.f32 %v9278, 0.0
      %v9311 = vmax.f32 %v9279, 0.0
      %v9312 = vmax.f32 %v9280, 0.0
      %v9313 = vmax.f32 %v9281, 0.0
      %v9314 = vmax.f32 %v9282, 0.0
      %9315 = vst [vmem:[%s271] sm:$0xff] %v9283
      %9316 = vst [vmem:[%s271 + $0x8] sm:$0xff] %v9284
      %9317 = vst [vmem:[%s271 + $0x10] sm:$0xff] %v9285
      %9318 = vst [vmem:[%s271 + $0x18] sm:$0xff] %v9286
      %9319 = vst [vmem:[%s271 + $0x20] sm:$0xff] %v9287
      %9320 = vst [vmem:[%s271 + $0x28] sm:$0xff] %v9288
      %9321 = vst [vmem:[%s271 + $0x30] sm:$0xff] %v9289
      %9322 = vst [vmem:[%s271 + $0x38] sm:$0xff] %v9290
      %9323 = vst [vmem:[%s271 + $0x40] sm:$0xff] %v9291
      %9324 = vst [vmem:[%s271 + $0x48] sm:$0xff] %v9292
      %9325 = vst [vmem:[%s271 + $0x50] sm:$0xff] %v9293
      %9326 = vst [vmem:[%s271 + $0x58] sm:$0xff] %v9294
      %9327 = vst [vmem:[%s271 + $0x60] sm:$0xff] %v9295
      %9328 = vst [vmem:[%s271 + $0x68] sm:$0xff] %v9296
      %9329 = vst [vmem:[%s271 + $0x70] sm:$0xff] %v9297
      %9330 = vst [vmem:[%s271 + $0x78] sm:$0xff] %v9298
      %9331 = vst [vmem:[%s271 + $0x80] sm:$0xff] %v9299
      %9332 = vst [vmem:[%s271 + $0x88] sm:$0xff] %v9300
      %9333 = vst [vmem:[%s271 + $0x90] sm:$0xff] %v9301
      %9334 = vst [vmem:[%s271 + $0x98] sm:$0xff] %v9302
      %9335 = vst [vmem:[%s271 + $0xa0] sm:$0xff] %v9303
      %9336 = vst [vmem:[%s271 + $0xa8] sm:$0xff] %v9304
      %9337 = vst [vmem:[%s271 + $0xb0] sm:$0xff] %v9305
      %9338 = vst [vmem:[%s271 + $0xb8] sm:$0xff] %v9306
      %9339 = vst [vmem:[%s271 + $0xc0] sm:$0xff] %v9307
      %9340 = vst [vmem:[%s271 + $0xc8] sm:$0xff] %v9308
      %9341 = vst [vmem:[%s271 + $0xd0] sm:$0xff] %v9309
      %9342 = vst [vmem:[%s271 + $0xd8] sm:$0xff] %v9310
      %9343 = vst [vmem:[%s271 + $0xe0] sm:$0xff] %v9311
      %9344 = vst [vmem:[%s271 + $0xe8] sm:$0xff] %v9312
      %9345 = vst [vmem:[%s271 + $0xf0] sm:$0xff] %v9313
      %9346 = vst [vmem:[%s271 + $0xf8] sm:$0xff] %v9314
      %p9347 = scmp.lt.s32.totalorder %s17, 1
      %s9348 = scalar_select %p9347, %s17, 1
      %s9349 = smul.addr %s9348, 32
      %s9350 = smul.addr %s9349, 8
      %s9351 = scalar_lea.vmem %s6, %s9350
      // Predicated region
      $region45: #{basic_block_forward.1} parent=43 // pred_check
        %p9352 = pneg %p171
      $region46: #{basic_block_forward.1} parent=43 // pred_check_branch
        %9354 = sbr.rel (%p9352) target = $region48
      $region47: #{basic_block_forward.1} parent=43 // pred_region
        _
      $region48: #{basic_block_forward.1} parent=43 // pred_fallthru
        _
    $region44: #{basic_block_forward.1} parent=5 // pred_fallthru
      _
    %p9355 = scmp.le.s32.totalorder 2, %s12
    // Predicated region
    $region49: #{basic_block_forward.1} parent=5 // pred_check
      %p9356 = pneg %p9355
    $region50: #{basic_block_forward.1} parent=5 // pred_check_branch
      %9358 = sbr.rel (%p9356) target = $region52
    $region51: #{basic_block_forward.1} parent=5 // pred_region
      %s9359 = ssub.s32 %s12, 2
      // Predicated region
      $region53: #{basic_block_forward.1} parent=51 // pred_check
        %p9360 = pneg %p177
      $region54: #{basic_block_forward.1} parent=51 // pred_check_branch
        %9362 = sbr.rel (%p9360) target = $region56
      $region55: #{basic_block_forward.1} parent=51 // pred_region
        %p9363 = scmp.lt.s32.totalorder %s18, 1
        %s9364 = scalar_select %p9363, %s18, 1
        %s9365 = smul.addr %s9364, 32
        %s9366 = smul.addr %s9365, 8
        %s9367 = scalar_lea.vmem %s6, %s9366
      $region56: #{basic_block_forward.1} parent=51 // pred_fallthru
        _
    $region52: #{basic_block_forward.1} parent=5 // pred_fallthru
      _
  $region6: #{basic_block_forward.1} parent=0 // loop_footer
    %s16 = sadd.s32 1, %s12
  $region7: #{basic_block_forward.1} parent=0 // loop_footer_branch
    %11 = sbr.rel target = $region3
  $region8: #{basic_block_forward.1} parent=0 // loop_exit
    _

</llo_original>
